<compile_context>
chip_gen: v6e
topology: v6e:2x2x1
jax: 0.10.0
libtpu: 0.0.40
codegen_flags: <defaults>
</compile_context>

<pallas_src>
import jax
import jax.numpy as jnp
from jax.experimental import pallas as pl
from jax.experimental.pallas import tpu as pltpu

_SQRT1_2 = 0.7071067811865476


def _erf(x):
    # Abramowitz & Stegun 7.1.26 erf polynomial (|err| ~1.5e-7): surrogate for the exact
    # (erf-based) GELU that nn.GELU() implements; lowers to VPU mul/add + one EUP exp.
    a1, a2, a3, a4, a5 = 0.254829592, -0.284496736, 1.421413741, -1.453152027, 1.061405429
    p = 0.3275911
    s = jnp.where(x >= 0.0, 1.0, -1.0)
    ax = jnp.abs(x)
    t = 1.0 / (1.0 + p * ax)
    poly = ((((a5 * t + a4) * t + a3) * t + a2) * t + a1) * t
    return s * (1.0 - poly * jnp.exp(-ax * ax))


def _gelu(x):
    return 0.5 * x * (1.0 + _erf(x * _SQRT1_2))


def _round_up(x, m):
    return (x + m - 1) // m * m


def _make_kernel(H, W, c_real, d_real, c_pad, d_pad):
    K = 7
    Hp, Wp = H + 6, W + 6
    f32 = jnp.float32

    def kernel(xin_ref, wdw_ref, bdw_ref, lnw_ref, lnb_ref,
               w1_ref, b1_ref, gg_ref, gb_ref, w2_ref, b2_ref,
               o_ref, xpad_ref):
        # ---- build padded sample in VMEM scratch (halo zeroed every step so it is
        #      correct under any megacore partitioning of the batch axis) ----
        xpad_ref[0:3, :, :] = jnp.zeros((3, Wp, c_pad), f32)
        xpad_ref[H + 3:Hp, :, :] = jnp.zeros((3, Wp, c_pad), f32)
        xpad_ref[3:3 + H, 0:3, :] = jnp.zeros((H, 3, c_pad), f32)
        xpad_ref[3:3 + H, W + 3:Wp, :] = jnp.zeros((H, 3, c_pad), f32)
        xpad_ref[3:3 + H, 3:3 + W, :] = xin_ref[0]

        # ---- depthwise 7x7: 7 hoisted W (sublane) shifts, kh loop slices the major
        #      (H) axis only; accumulator starts at the dwconv bias ----
        acc = jnp.zeros((H, W, c_pad), f32) + bdw_ref[...].reshape(1, 1, c_pad)
        for kw in range(K):
            slab = xpad_ref[:, kw:kw + W, :]                      # (H+6, W, Cp)
            for kh in range(K):
                idx = kh * K + kw
                wk = wdw_ref[idx:idx + 1, :].reshape(1, 1, c_pad)
                acc = acc + slab[kh:kh + H, :, :] * wk

        x2 = acc.reshape(H * W, c_pad)                            # (HW, Cp)

        # ---- LayerNorm over real channels (eps=1e-6); zero-padded lanes excluded ----
        inv_c = 1.0 / c_real
        mu = jnp.sum(x2, axis=-1, keepdims=True) * inv_c
        diff = x2 - mu
        if c_real < c_pad:
            lane = jax.lax.broadcasted_iota(jnp.int32, (1, c_pad), 1)
            diff = jnp.where(lane < c_real, diff, 0.0)
        var = jnp.sum(diff * diff, axis=-1, keepdims=True) * inv_c
        xn = (x2 - mu) * jax.lax.rsqrt(var + 1e-6)
        xn = xn * lnw_ref[...] + lnb_ref[...]          # padded lanes -> 0 (zero-padded params)

        # ---- pwconv1 (C -> 4C): bf16 operands on MXU, f32 accumulate; exact-erf GELU ----
        h = jnp.dot(xn.astype(jnp.bfloat16), w1_ref[...],
                    preferred_element_type=jnp.float32) + b1_ref[...]
        h = _gelu(h)                                   # padded lanes stay exactly 0

        # ---- GRN: per-channel L2 over spatial, normalized by mean over real channels ----
        gx = jnp.sqrt(jnp.sum(h * h, axis=0, keepdims=True))                 # (1, Dp)
        denom = jnp.sum(gx, axis=-1, keepdims=True) * (1.0 / d_real) + 1e-6  # (1, 1)
        nx = gx * pl.reciprocal(denom, approx=True)
        h = gg_ref[...] * (h * nx) + gb_ref[...]

        # ---- pwconv2 (4C -> C): bf16 on MXU, + bias, + residual from scratch center ----
        y = jnp.dot(h.astype(jnp.bfloat16), w2_ref[...],
                    preferred_element_type=jnp.float32) + b2_ref[...]
        o_ref[0] = xpad_ref[3:3 + H, 3:3 + W, :] + y.reshape(H, W, c_pad)

    return kernel


def convnext_block(x_nchw, params):
    """Forward pass of ConvNextBlock. `params` uses torch-native parameter layouts."""
    B, C, H, W = x_nchw.shape
    D = 4 * C
    Cp = _round_up(C, 128)
    Dp = _round_up(D, 128)
    f32 = jnp.float32

    def pad_last(a, n):
        p = n - a.shape[-1]
        return a if p == 0 else jnp.pad(a, [(0, 0)] * (a.ndim - 1) + [(0, p)])

    # torch layouts -> kernel layouts (channel-last, zero lane-padded)
    w_dw = pad_last(jnp.transpose(params["dwconv_w"].reshape(C, 7, 7),
                                  (1, 2, 0)).reshape(49, C).astype(f32), Cp)     # (49, Cp)
    b_dw = pad_last(params["dwconv_b"].reshape(1, C).astype(f32), Cp)
    ln_w = pad_last(params["norm_w"].reshape(1, C).astype(f32), Cp)
    ln_b = pad_last(params["norm_b"].reshape(1, C).astype(f32), Cp)
    w1 = jnp.pad(jnp.transpose(params["pw1_w"].astype(f32)),                     # (C, D)
                 ((0, Cp - C), (0, Dp - D))).astype(jnp.bfloat16)                # (Cp, Dp)
    b1 = pad_last(params["pw1_b"].reshape(1, D).astype(f32), Dp)
    gg = pad_last(params["grn_gamma"].reshape(1, D).astype(f32), Dp)
    gb = pad_last(params["grn_beta"].reshape(1, D).astype(f32), Dp)
    w2 = jnp.pad(jnp.transpose(params["pw2_w"].astype(f32)),                     # (D, C)
                 ((0, Dp - D), (0, Cp - C))).astype(jnp.bfloat16)                # (Dp, Cp)
    b2 = pad_last(params["pw2_b"].reshape(1, C).astype(f32), Cp)

    # activation: NCHW -> NHWC, channels zero-padded to lane-dense Cp
    x = jnp.transpose(x_nchw, (0, 2, 3, 1)).astype(f32)
    if Cp > C:
        x = jnp.pad(x, ((0, 0), (0, 0), (0, 0), (0, Cp - C)))

    def rep(shape):
        return pl.BlockSpec(shape, lambda b, _n=len(shape): (0,) * _n)

    kernel = _make_kernel(H, W, C, D, Cp, Dp)

    out_nhwc = pl.pallas_call(
        kernel,
        out_shape=jax.ShapeDtypeStruct((B, H, W, Cp), f32),
        grid=(B,),
        in_specs=[
            pl.BlockSpec((1, H, W, Cp), lambda b: (b, 0, 0, 0)),   # input (also residual)
            rep((49, Cp)),    # dwconv weight
            rep((1, Cp)),     # dwconv bias
            rep((1, Cp)),     # LN weight
            rep((1, Cp)),     # LN bias
            rep((Cp, Dp)),    # pwconv1 weight (bf16)
            rep((1, Dp)),     # pwconv1 bias
            rep((1, Dp)),     # GRN gamma
            rep((1, Dp)),     # GRN beta
            rep((Dp, Cp)),    # pwconv2 weight (bf16)
            rep((1, Cp)),     # pwconv2 bias
        ],
        out_specs=pl.BlockSpec((1, H, W, Cp), lambda b: (b, 0, 0, 0)),
        scratch_shapes=[pltpu.VMEM((H + 6, W + 6, Cp), f32)],      # padded-sample scratch
        compiler_params=pltpu.CompilerParams(
            dimension_semantics=("parallel",),
            vmem_limit_bytes=48 * 1024 * 1024),
    )(x, w_dw, b_dw, ln_w, ln_b, w1, b1, gg, gb, w2, b2)

    return jnp.transpose(out_nhwc[..., :C], (0, 3, 1, 2))          # drop pad lanes, NCHW


def convnext_ref(x_nchw, params):
    """Pure-JAX fp32 reference matching the PyTorch module semantics (for verification)."""
    B, C, H, W = x_nchw.shape
    x = jnp.transpose(x_nchw, (0, 2, 3, 1)).astype(jnp.float32)
    w_dw = jnp.transpose(params["dwconv_w"].reshape(C, 7, 7), (1, 2, 0))       # (7,7,C)
    xpad = jnp.pad(x, ((0, 0), (3, 3), (3, 3), (0, 0)))
    dw = jnp.zeros_like(x)
    for kh in range(7):
        for kw in range(7):
            dw = dw + xpad[:, kh:kh + H, kw:kw + W, :] * w_dw[kh, kw][None, None, None, :]
    dw = dw + params["dwconv_b"]
    mu = dw.mean(-1, keepdims=True)
    var = ((dw - mu) ** 2).mean(-1, keepdims=True)
    xn = (dw - mu) / jnp.sqrt(var + 1e-6) * params["norm_w"] + params["norm_b"]
    h = xn @ params["pw1_w"].T + params["pw1_b"]
    h = 0.5 * h * (1.0 + jax.scipy.special.erf(h * _SQRT1_2))
    gx = jnp.sqrt(jnp.sum(h * h, axis=(1, 2), keepdims=True))
    nx = gx / (gx.mean(-1, keepdims=True) + 1e-6)
    h = params["grn_gamma"].reshape(1, 1, 1, 4 * C) * (h * nx) \
        + params["grn_beta"].reshape(1, 1, 1, 4 * C)
    y = h @ params["pw2_w"].T + params["pw2_b"]
    return x_nchw + jnp.transpose(y, (0, 3, 1, 2))


if __name__ == "__main__":
    B, C, H, W = 2, 4, 16, 16
    D = 4 * C
    key = jax.random.PRNGKey(0)
    ks = jax.random.split(key, 9)
    params = {
        # torch-native parameter layouts
        "dwconv_w": 0.1 * jax.random.normal(ks[0], (C, 1, 7, 7), jnp.float32),  # Conv2d(C,C,7,groups=C)
        "dwconv_b": 0.1 * jax.random.normal(ks[1], (C,), jnp.float32),
        "norm_w": jnp.ones((C,), jnp.float32),
        "norm_b": jnp.zeros((C,), jnp.float32),
        "pw1_w": 0.1 * jax.random.normal(ks[2], (D, C), jnp.float32),           # Linear(C, 4C).weight
        "pw1_b": 0.1 * jax.random.normal(ks[3], (D,), jnp.float32),
        # torch inits GRN gamma/beta to zeros; small randoms used so the GRN path is exercised
        "grn_gamma": 0.05 * jax.random.normal(ks[4], (1, 1, 1, D), jnp.float32),
        "grn_beta": 0.05 * jax.random.normal(ks[5], (1, 1, 1, D), jnp.float32),
        "pw2_w": 0.1 * jax.random.normal(ks[6], (C, D), jnp.float32),           # Linear(4C, C).weight
        "pw2_b": 0.1 * jax.random.normal(ks[7], (C,), jnp.float32),
    }
    x = jax.random.normal(ks[8], (B, C, H, W), jnp.float32)

    out = jax.block_until_ready(convnext_block(x, params))
    ref = convnext_ref(x, params)
    assert out.shape == x.shape
    # bf16 MXU operands + approx GRN reciprocal => compare against the fp32 reference
    # at a slightly loosened tolerance.
    if not jnp.allclose(out, ref, atol=5e-3, rtol=5e-3):
        err = float(jnp.max(jnp.abs(out - ref)))
        raise AssertionError(f"Pallas output does not match reference (max abs err {err})")
    print("KERNEL_OK")
</pallas_src>

<mosaic_0001>
module attributes {stable_mosaic.version = 11 : i64} {
  func.func @kernel(%arg0: i32, %arg1: memref<1x16x16x128xf32, #tpu.memory_space<vmem>>, %arg2: memref<49x128xf32, #tpu.memory_space<vmem>>, %arg3: memref<1x128xf32, #tpu.memory_space<vmem>>, %arg4: memref<1x128xf32, #tpu.memory_space<vmem>>, %arg5: memref<1x128xf32, #tpu.memory_space<vmem>>, %arg6: memref<128x128xbf16, #tpu.memory_space<vmem>>, %arg7: memref<1x128xf32, #tpu.memory_space<vmem>>, %arg8: memref<1x128xf32, #tpu.memory_space<vmem>>, %arg9: memref<1x128xf32, #tpu.memory_space<vmem>>, %arg10: memref<128x128xbf16, #tpu.memory_space<vmem>>, %arg11: memref<1x128xf32, #tpu.memory_space<vmem>>, %arg12: memref<1x16x16x128xf32, #tpu.memory_space<vmem>>, %arg13: memref<22x22x128xf32, #tpu.memory_space<vmem>>) attributes {dimension_semantics = [#tpu.dimension_semantics<parallel>], iteration_bounds = array<i64: 2>, scalar_prefetch = 0 : i64, scratch_operands = 1 : i64, tpu.core_type = #tpu.core_type<tc>, window_params = [{transform_indices = @transform_0, window_bounds = array<i64: 1, 16, 16, 128>}, {pipeline_mode = #tpu.pipeline_mode<synchronous>, transform_indices = @transform_1, window_bounds = array<i64: 49, 128>}, {pipeline_mode = #tpu.pipeline_mode<synchronous>, transform_indices = @transform_2, window_bounds = array<i64: 1, 128>}, {pipeline_mode = #tpu.pipeline_mode<synchronous>, transform_indices = @transform_3, window_bounds = array<i64: 1, 128>}, {pipeline_mode = #tpu.pipeline_mode<synchronous>, transform_indices = @transform_4, window_bounds = array<i64: 1, 128>}, {pipeline_mode = #tpu.pipeline_mode<synchronous>, transform_indices = @transform_5, window_bounds = array<i64: 128, 128>}, {pipeline_mode = #tpu.pipeline_mode<synchronous>, transform_indices = @transform_6, window_bounds = array<i64: 1, 128>}, {pipeline_mode = #tpu.pipeline_mode<synchronous>, transform_indices = @transform_7, window_bounds = array<i64: 1, 128>}, {pipeline_mode = #tpu.pipeline_mode<synchronous>, transform_indices = @transform_8, window_bounds = array<i64: 1, 128>}, {pipeline_mode = #tpu.pipeline_mode<synchronous>, transform_indices = @transform_9, window_bounds = array<i64: 128, 128>}, {pipeline_mode = #tpu.pipeline_mode<synchronous>, transform_indices = @transform_10, window_bounds = array<i64: 1, 128>}, {transform_indices = @transform_11, window_bounds = array<i64: 1, 16, 16, 128>}]} {
    %cst = arith.constant 0.000000e+00 : f32
    %0 = vector.broadcast %cst : f32 to vector<3x22x128xf32>
    %c0 = arith.constant 0 : index
    %c0_0 = arith.constant 0 : index
    %c0_1 = arith.constant 0 : index
    %1 = vector.load %arg13[%c0, %c0_0, %c0_1] : memref<22x22x128xf32, #tpu.memory_space<vmem>>, vector<3x22x128xf32>
    tpu.vector_store %arg13[%c0, %c0_0, %c0_1], %0 {strides = array<i32>} : memref<22x22x128xf32, #tpu.memory_space<vmem>>, vector<3x22x128xf32>,
    %cst_2 = arith.constant 0.000000e+00 : f32
    %2 = vector.broadcast %cst_2 : f32 to vector<3x22x128xf32>
    %c19 = arith.constant 19 : index
    %c0_3 = arith.constant 0 : index
    %c0_4 = arith.constant 0 : index
    %3 = vector.load %arg13[%c19, %c0_3, %c0_4] : memref<22x22x128xf32, #tpu.memory_space<vmem>>, vector<3x22x128xf32>
    tpu.vector_store %arg13[%c19, %c0_3, %c0_4], %2 {strides = array<i32>} : memref<22x22x128xf32, #tpu.memory_space<vmem>>, vector<3x22x128xf32>,
    %cst_5 = arith.constant 0.000000e+00 : f32
    %4 = vector.broadcast %cst_5 : f32 to vector<16x3x128xf32>
    %c3 = arith.constant 3 : index
    %c0_6 = arith.constant 0 : index
    %c0_7 = arith.constant 0 : index
    %5 = vector.load %arg13[%c3, %c0_6, %c0_7] : memref<22x22x128xf32, #tpu.memory_space<vmem>>, vector<16x3x128xf32>
    tpu.vector_store %arg13[%c3, %c0_6, %c0_7], %4 {strides = array<i32>} : memref<22x22x128xf32, #tpu.memory_space<vmem>>, vector<16x3x128xf32>,
    %cst_8 = arith.constant 0.000000e+00 : f32
    %6 = vector.broadcast %cst_8 : f32 to vector<16x3x128xf32>
    %c3_9 = arith.constant 3 : index
    %c19_10 = arith.constant 19 : index
    %c0_11 = arith.constant 0 : index
    %7 = vector.load %arg13[%c3_9, %c19_10, %c0_11] : memref<22x22x128xf32, #tpu.memory_space<vmem>>, vector<16x3x128xf32>
    tpu.vector_store %arg13[%c3_9, %c19_10, %c0_11], %6 {strides = array<i32>} : memref<22x22x128xf32, #tpu.memory_space<vmem>>, vector<16x3x128xf32>,
    %c0_12 = arith.constant 0 : index
    %c0_13 = arith.constant 0 : index
    %c0_14 = arith.constant 0 : index
    %c0_15 = arith.constant 0 : index
    %8 = vector.load %arg1[%c0_12, %c0_13, %c0_14, %c0_15] : memref<1x16x16x128xf32, #tpu.memory_space<vmem>>, vector<1x16x16x128xf32>
    %9 = vector.shape_cast %8 : vector<1x16x16x128xf32> to vector<16x16x128xf32>
    %c3_16 = arith.constant 3 : index
    %c3_17 = arith.constant 3 : index
    %c0_18 = arith.constant 0 : index
    %10 = vector.load %arg13[%c3_16, %c3_17, %c0_18] : memref<22x22x128xf32, #tpu.memory_space<vmem>>, vector<16x16x128xf32>
    tpu.vector_store %arg13[%c3_16, %c3_17, %c0_18], %9 {strides = array<i32>} : memref<22x22x128xf32, #tpu.memory_space<vmem>>, vector<16x16x128xf32>,
    %cst_19 = arith.constant 0.000000e+00 : f32
    %11 = vector.broadcast %cst_19 : f32 to vector<16x16x128xf32>
    %c0_20 = arith.constant 0 : index
    %c0_21 = arith.constant 0 : index
    %12 = vector.load %arg3[%c0_20, %c0_21] : memref<1x128xf32, #tpu.memory_space<vmem>>, vector<1x128xf32>
    %13 = vector.shape_cast %12 : vector<1x128xf32> to vector<1x1x128xf32>
    %14 = vector.broadcast %13 : vector<1x1x128xf32> to vector<16x16x128xf32>
    %15 = arith.addf %11, %14 : vector<16x16x128xf32>
    %c0_22 = arith.constant 0 : index
    %c0_23 = arith.constant 0 : index
    %c0_24 = arith.constant 0 : index
    %16 = vector.load %arg13[%c0_22, %c0_23, %c0_24] : memref<22x22x128xf32, #tpu.memory_space<vmem>>, vector<22x16x128xf32>
    %c0_25 = arith.constant 0 : index
    %c0_26 = arith.constant 0 : index
    %17 = vector.load %arg2[%c0_25, %c0_26] : memref<49x128xf32, #tpu.memory_space<vmem>>, vector<1x128xf32>
    %18 = vector.shape_cast %17 : vector<1x128xf32> to vector<1x1x128xf32>
    %19 = vector.extract_strided_slice %16 {offsets = [0, 0, 0], sizes = [16, 16, 128], strides = [1, 1, 1]} : vector<22x16x128xf32> to vector<16x16x128xf32>
    %20 = vector.broadcast %18 : vector<1x1x128xf32> to vector<16x16x128xf32>
    %21 = arith.mulf %19, %20 : vector<16x16x128xf32>
    %22 = arith.addf %15, %21 : vector<16x16x128xf32>
    %c7 = arith.constant 7 : index
    %c0_27 = arith.constant 0 : index
    %23 = vector.load %arg2[%c7, %c0_27] : memref<49x128xf32, #tpu.memory_space<vmem>>, vector<1x128xf32>
    %24 = vector.shape_cast %23 : vector<1x128xf32> to vector<1x1x128xf32>
    %25 = vector.extract_strided_slice %16 {offsets = [1, 0, 0], sizes = [16, 16, 128], strides = [1, 1, 1]} : vector<22x16x128xf32> to vector<16x16x128xf32>
    %26 = vector.broadcast %24 : vector<1x1x128xf32> to vector<16x16x128xf32>
    %27 = arith.mulf %25, %26 : vector<16x16x128xf32>
    %28 = arith.addf %22, %27 : vector<16x16x128xf32>
    %c14 = arith.constant 14 : index
    %c0_28 = arith.constant 0 : index
    %29 = vector.load %arg2[%c14, %c0_28] : memref<49x128xf32, #tpu.memory_space<vmem>>, vector<1x128xf32>
    %30 = vector.shape_cast %29 : vector<1x128xf32> to vector<1x1x128xf32>
    %31 = vector.extract_strided_slice %16 {offsets = [2, 0, 0], sizes = [16, 16, 128], strides = [1, 1, 1]} : vector<22x16x128xf32> to vector<16x16x128xf32>
    %32 = vector.broadcast %30 : vector<1x1x128xf32> to vector<16x16x128xf32>
    %33 = arith.mulf %31, %32 : vector<16x16x128xf32>
    %34 = arith.addf %28, %33 : vector<16x16x128xf32>
    %c21 = arith.constant 21 : index
    %c0_29 = arith.constant 0 : index
    %35 = vector.load %arg2[%c21, %c0_29] : memref<49x128xf32, #tpu.memory_space<vmem>>, vector<1x128xf32>
    %36 = vector.shape_cast %35 : vector<1x128xf32> to vector<1x1x128xf32>
    %37 = vector.extract_strided_slice %16 {offsets = [3, 0, 0], sizes = [16, 16, 128], strides = [1, 1, 1]} : vector<22x16x128xf32> to vector<16x16x128xf32>
    %38 = vector.broadcast %36 : vector<1x1x128xf32> to vector<16x16x128xf32>
    %39 = arith.mulf %37, %38 : vector<16x16x128xf32>
    %40 = arith.addf %34, %39 : vector<16x16x128xf32>
    %c28 = arith.constant 28 : index
    %c0_30 = arith.constant 0 : index
    %41 = vector.load %arg2[%c28, %c0_30] : memref<49x128xf32, #tpu.memory_space<vmem>>, vector<1x128xf32>
    %42 = vector.shape_cast %41 : vector<1x128xf32> to vector<1x1x128xf32>
    %43 = vector.extract_strided_slice %16 {offsets = [4, 0, 0], sizes = [16, 16, 128], strides = [1, 1, 1]} : vector<22x16x128xf32> to vector<16x16x128xf32>
    %44 = vector.broadcast %42 : vector<1x1x128xf32> to vector<16x16x128xf32>
    %45 = arith.mulf %43, %44 : vector<16x16x128xf32>
    %46 = arith.addf %40, %45 : vector<16x16x128xf32>
    %c35 = arith.constant 35 : index
    %c0_31 = arith.constant 0 : index
    %47 = vector.load %arg2[%c35, %c0_31] : memref<49x128xf32, #tpu.memory_space<vmem>>, vector<1x128xf32>
    %48 = vector.shape_cast %47 : vector<1x128xf32> to vector<1x1x128xf32>
    %49 = vector.extract_strided_slice %16 {offsets = [5, 0, 0], sizes = [16, 16, 128], strides = [1, 1, 1]} : vector<22x16x128xf32> to vector<16x16x128xf32>
    %50 = vector.broadcast %48 : vector<1x1x128xf32> to vector<16x16x128xf32>
    %51 = arith.mulf %49, %50 : vector<16x16x128xf32>
    %52 = arith.addf %46, %51 : vector<16x16x128xf32>
    %c42 = arith.constant 42 : index
    %c0_32 = arith.constant 0 : index
    %53 = vector.load %arg2[%c42, %c0_32] : memref<49x128xf32, #tpu.memory_space<vmem>>, vector<1x128xf32>
    %54 = vector.shape_cast %53 : vector<1x128xf32> to vector<1x1x128xf32>
    %55 = vector.extract_strided_slice %16 {offsets = [6, 0, 0], sizes = [16, 16, 128], strides = [1, 1, 1]} : vector<22x16x128xf32> to vector<16x16x128xf32>
    %56 = vector.broadcast %54 : vector<1x1x128xf32> to vector<16x16x128xf32>
    %57 = arith.mulf %55, %56 : vector<16x16x128xf32>
    %58 = arith.addf %52, %57 : vector<16x16x128xf32>
    %c0_33 = arith.constant 0 : index
    %c1 = arith.constant 1 : index
    %c0_34 = arith.constant 0 : index
    %59 = vector.load %arg13[%c0_33, %c1, %c0_34] : memref<22x22x128xf32, #tpu.memory_space<vmem>>, vector<22x16x128xf32>
    %c1_35 = arith.constant 1 : index
    %c0_36 = arith.constant 0 : index
    %60 = vector.load %arg2[%c1_35, %c0_36] : memref<49x128xf32, #tpu.memory_space<vmem>>, vector<1x128xf32>
    %61 = vector.shape_cast %60 : vector<1x128xf32> to vector<1x1x128xf32>
    %62 = vector.extract_strided_slice %59 {offsets = [0, 0, 0], sizes = [16, 16, 128], strides = [1, 1, 1]} : vector<22x16x128xf32> to vector<16x16x128xf32>
    %63 = vector.broadcast %61 : vector<1x1x128xf32> to vector<16x16x128xf32>
    %64 = arith.mulf %62, %63 : vector<16x16x128xf32>
    %65 = arith.addf %58, %64 : vector<16x16x128xf32>
    %c8 = arith.constant 8 : index
    %c0_37 = arith.constant 0 : index
    %66 = vector.load %arg2[%c8, %c0_37] : memref<49x128xf32, #tpu.memory_space<vmem>>, vector<1x128xf32>
    %67 = vector.shape_cast %66 : vector<1x128xf32> to vector<1x1x128xf32>
    %68 = vector.extract_strided_slice %59 {offsets = [1, 0, 0], sizes = [16, 16, 128], strides = [1, 1, 1]} : vector<22x16x128xf32> to vector<16x16x128xf32>
    %69 = vector.broadcast %67 : vector<1x1x128xf32> to vector<16x16x128xf32>
    %70 = arith.mulf %68, %69 : vector<16x16x128xf32>
    %71 = arith.addf %65, %70 : vector<16x16x128xf32>
    %c15 = arith.constant 15 : index
    %c0_38 = arith.constant 0 : index
    %72 = vector.load %arg2[%c15, %c0_38] : memref<49x128xf32, #tpu.memory_space<vmem>>, vector<1x128xf32>
    %73 = vector.shape_cast %72 : vector<1x128xf32> to vector<1x1x128xf32>
    %74 = vector.extract_strided_slice %59 {offsets = [2, 0, 0], sizes = [16, 16, 128], strides = [1, 1, 1]} : vector<22x16x128xf32> to vector<16x16x128xf32>
    %75 = vector.broadcast %73 : vector<1x1x128xf32> to vector<16x16x128xf32>
    %76 = arith.mulf %74, %75 : vector<16x16x128xf32>
    %77 = arith.addf %71, %76 : vector<16x16x128xf32>
    %c22 = arith.constant 22 : index
    %c0_39 = arith.constant 0 : index
    %78 = vector.load %arg2[%c22, %c0_39] : memref<49x128xf32, #tpu.memory_space<vmem>>, vector<1x128xf32>
    %79 = vector.shape_cast %78 : vector<1x128xf32> to vector<1x1x128xf32>
    %80 = vector.extract_strided_slice %59 {offsets = [3, 0, 0], sizes = [16, 16, 128], strides = [1, 1, 1]} : vector<22x16x128xf32> to vector<16x16x128xf32>
    %81 = vector.broadcast %79 : vector<1x1x128xf32> to vector<16x16x128xf32>
    %82 = arith.mulf %80, %81 : vector<16x16x128xf32>
    %83 = arith.addf %77, %82 : vector<16x16x128xf32>
    %c29 = arith.constant 29 : index
    %c0_40 = arith.constant 0 : index
    %84 = vector.load %arg2[%c29, %c0_40] : memref<49x128xf32, #tpu.memory_space<vmem>>, vector<1x128xf32>
    %85 = vector.shape_cast %84 : vector<1x128xf32> to vector<1x1x128xf32>
    %86 = vector.extract_strided_slice %59 {offsets = [4, 0, 0], sizes = [16, 16, 128], strides = [1, 1, 1]} : vector<22x16x128xf32> to vector<16x16x128xf32>
    %87 = vector.broadcast %85 : vector<1x1x128xf32> to vector<16x16x128xf32>
    %88 = arith.mulf %86, %87 : vector<16x16x128xf32>
    %89 = arith.addf %83, %88 : vector<16x16x128xf32>
    %c36 = arith.constant 36 : index
    %c0_41 = arith.constant 0 : index
    %90 = vector.load %arg2[%c36, %c0_41] : memref<49x128xf32, #tpu.memory_space<vmem>>, vector<1x128xf32>
    %91 = vector.shape_cast %90 : vector<1x128xf32> to vector<1x1x128xf32>
    %92 = vector.extract_strided_slice %59 {offsets = [5, 0, 0], sizes = [16, 16, 128], strides = [1, 1, 1]} : vector<22x16x128xf32> to vector<16x16x128xf32>
    %93 = vector.broadcast %91 : vector<1x1x128xf32> to vector<16x16x128xf32>
    %94 = arith.mulf %92, %93 : vector<16x16x128xf32>
    %95 = arith.addf %89, %94 : vector<16x16x128xf32>
    %c43 = arith.constant 43 : index
    %c0_42 = arith.constant 0 : index
    %96 = vector.load %arg2[%c43, %c0_42] : memref<49x128xf32, #tpu.memory_space<vmem>>, vector<1x128xf32>
    %97 = vector.shape_cast %96 : vector<1x128xf32> to vector<1x1x128xf32>
    %98 = vector.extract_strided_slice %59 {offsets = [6, 0, 0], sizes = [16, 16, 128], strides = [1, 1, 1]} : vector<22x16x128xf32> to vector<16x16x128xf32>
    %99 = vector.broadcast %97 : vector<1x1x128xf32> to vector<16x16x128xf32>
    %100 = arith.mulf %98, %99 : vector<16x16x128xf32>
    %101 = arith.addf %95, %100 : vector<16x16x128xf32>
    %c0_43 = arith.constant 0 : index
    %c2 = arith.constant 2 : index
    %c0_44 = arith.constant 0 : index
    %102 = vector.load %arg13[%c0_43, %c2, %c0_44] : memref<22x22x128xf32, #tpu.memory_space<vmem>>, vector<22x16x128xf32>
    %c2_45 = arith.constant 2 : index
    %c0_46 = arith.constant 0 : index
    %103 = vector.load %arg2[%c2_45, %c0_46] : memref<49x128xf32, #tpu.memory_space<vmem>>, vector<1x128xf32>
    %104 = vector.shape_cast %103 : vector<1x128xf32> to vector<1x1x128xf32>
    %105 = vector.extract_strided_slice %102 {offsets = [0, 0, 0], sizes = [16, 16, 128], strides = [1, 1, 1]} : vector<22x16x128xf32> to vector<16x16x128xf32>
    %106 = vector.broadcast %104 : vector<1x1x128xf32> to vector<16x16x128xf32>
    %107 = arith.mulf %105, %106 : vector<16x16x128xf32>
    %108 = arith.addf %101, %107 : vector<16x16x128xf32>
    %c9 = arith.constant 9 : index
    %c0_47 = arith.constant 0 : index
    %109 = vector.load %arg2[%c9, %c0_47] : memref<49x128xf32, #tpu.memory_space<vmem>>, vector<1x128xf32>
    %110 = vector.shape_cast %109 : vector<1x128xf32> to vector<1x1x128xf32>
    %111 = vector.extract_strided_slice %102 {offsets = [1, 0, 0], sizes = [16, 16, 128], strides = [1, 1, 1]} : vector<22x16x128xf32> to vector<16x16x128xf32>
    %112 = vector.broadcast %110 : vector<1x1x128xf32> to vector<16x16x128xf32>
    %113 = arith.mulf %111, %112 : vector<16x16x128xf32>
    %114 = arith.addf %108, %113 : vector<16x16x128xf32>
    %c16 = arith.constant 16 : index
    %c0_48 = arith.constant 0 : index
    %115 = vector.load %arg2[%c16, %c0_48] : memref<49x128xf32, #tpu.memory_space<vmem>>, vector<1x128xf32>
    %116 = vector.shape_cast %115 : vector<1x128xf32> to vector<1x1x128xf32>
    %117 = vector.extract_strided_slice %102 {offsets = [2, 0, 0], sizes = [16, 16, 128], strides = [1, 1, 1]} : vector<22x16x128xf32> to vector<16x16x128xf32>
    %118 = vector.broadcast %116 : vector<1x1x128xf32> to vector<16x16x128xf32>
    %119 = arith.mulf %117, %118 : vector<16x16x128xf32>
    %120 = arith.addf %114, %119 : vector<16x16x128xf32>
    %c23 = arith.constant 23 : index
    %c0_49 = arith.constant 0 : index
    %121 = vector.load %arg2[%c23, %c0_49] : memref<49x128xf32, #tpu.memory_space<vmem>>, vector<1x128xf32>
    %122 = vector.shape_cast %121 : vector<1x128xf32> to vector<1x1x128xf32>
    %123 = vector.extract_strided_slice %102 {offsets = [3, 0, 0], sizes = [16, 16, 128], strides = [1, 1, 1]} : vector<22x16x128xf32> to vector<16x16x128xf32>
    %124 = vector.broadcast %122 : vector<1x1x128xf32> to vector<16x16x128xf32>
    %125 = arith.mulf %123, %124 : vector<16x16x128xf32>
    %126 = arith.addf %120, %125 : vector<16x16x128xf32>
    %c30 = arith.constant 30 : index
    %c0_50 = arith.constant 0 : index
    %127 = vector.load %arg2[%c30, %c0_50] : memref<49x128xf32, #tpu.memory_space<vmem>>, vector<1x128xf32>
    %128 = vector.shape_cast %127 : vector<1x128xf32> to vector<1x1x128xf32>
    %129 = vector.extract_strided_slice %102 {offsets = [4, 0, 0], sizes = [16, 16, 128], strides = [1, 1, 1]} : vector<22x16x128xf32> to vector<16x16x128xf32>
    %130 = vector.broadcast %128 : vector<1x1x128xf32> to vector<16x16x128xf32>
    %131 = arith.mulf %129, %130 : vector<16x16x128xf32>
    %132 = arith.addf %126, %131 : vector<16x16x128xf32>
    %c37 = arith.constant 37 : index
    %c0_51 = arith.constant 0 : index
    %133 = vector.load %arg2[%c37, %c0_51] : memref<49x128xf32, #tpu.memory_space<vmem>>, vector<1x128xf32>
    %134 = vector.shape_cast %133 : vector<1x128xf32> to vector<1x1x128xf32>
    %135 = vector.extract_strided_slice %102 {offsets = [5, 0, 0], sizes = [16, 16, 128], strides = [1, 1, 1]} : vector<22x16x128xf32> to vector<16x16x128xf32>
    %136 = vector.broadcast %134 : vector<1x1x128xf32> to vector<16x16x128xf32>
    %137 = arith.mulf %135, %136 : vector<16x16x128xf32>
    %138 = arith.addf %132, %137 : vector<16x16x128xf32>
    %c44 = arith.constant 44 : index
    %c0_52 = arith.constant 0 : index
    %139 = vector.load %arg2[%c44, %c0_52] : memref<49x128xf32, #tpu.memory_space<vmem>>, vector<1x128xf32>
    %140 = vector.shape_cast %139 : vector<1x128xf32> to vector<1x1x128xf32>
    %141 = vector.extract_strided_slice %102 {offsets = [6, 0, 0], sizes = [16, 16, 128], strides = [1, 1, 1]} : vector<22x16x128xf32> to vector<16x16x128xf32>
    %142 = vector.broadcast %140 : vector<1x1x128xf32> to vector<16x16x128xf32>
    %143 = arith.mulf %141, %142 : vector<16x16x128xf32>
    %144 = arith.addf %138, %143 : vector<16x16x128xf32>
    %c0_53 = arith.constant 0 : index
    %c3_54 = arith.constant 3 : index
    %c0_55 = arith.constant 0 : index
    %145 = vector.load %arg13[%c0_53, %c3_54, %c0_55] : memref<22x22x128xf32, #tpu.memory_space<vmem>>, vector<22x16x128xf32>
    %c3_56 = arith.constant 3 : index
    %c0_57 = arith.constant 0 : index
    %146 = vector.load %arg2[%c3_56, %c0_57] : memref<49x128xf32, #tpu.memory_space<vmem>>, vector<1x128xf32>
    %147 = vector.shape_cast %146 : vector<1x128xf32> to vector<1x1x128xf32>
    %148 = vector.extract_strided_slice %145 {offsets = [0, 0, 0], sizes = [16, 16, 128], strides = [1, 1, 1]} : vector<22x16x128xf32> to vector<16x16x128xf32>
    %149 = vector.broadcast %147 : vector<1x1x128xf32> to vector<16x16x128xf32>
    %150 = arith.mulf %148, %149 : vector<16x16x128xf32>
    %151 = arith.addf %144, %150 : vector<16x16x128xf32>
    %c10 = arith.constant 10 : index
    %c0_58 = arith.constant 0 : index
    %152 = vector.load %arg2[%c10, %c0_58] : memref<49x128xf32, #tpu.memory_space<vmem>>, vector<1x128xf32>
    %153 = vector.shape_cast %152 : vector<1x128xf32> to vector<1x1x128xf32>
    %154 = vector.extract_strided_slice %145 {offsets = [1, 0, 0], sizes = [16, 16, 128], strides = [1, 1, 1]} : vector<22x16x128xf32> to vector<16x16x128xf32>
    %155 = vector.broadcast %153 : vector<1x1x128xf32> to vector<16x16x128xf32>
    %156 = arith.mulf %154, %155 : vector<16x16x128xf32>
    %157 = arith.addf %151, %156 : vector<16x16x128xf32>
    %c17 = arith.constant 17 : index
    %c0_59 = arith.constant 0 : index
    %158 = vector.load %arg2[%c17, %c0_59] : memref<49x128xf32, #tpu.memory_space<vmem>>, vector<1x128xf32>
    %159 = vector.shape_cast %158 : vector<1x128xf32> to vector<1x1x128xf32>
    %160 = vector.extract_strided_slice %145 {offsets = [2, 0, 0], sizes = [16, 16, 128], strides = [1, 1, 1]} : vector<22x16x128xf32> to vector<16x16x128xf32>
    %161 = vector.broadcast %159 : vector<1x1x128xf32> to vector<16x16x128xf32>
    %162 = arith.mulf %160, %161 : vector<16x16x128xf32>
    %163 = arith.addf %157, %162 : vector<16x16x128xf32>
    %c24 = arith.constant 24 : index
    %c0_60 = arith.constant 0 : index
    %164 = vector.load %arg2[%c24, %c0_60] : memref<49x128xf32, #tpu.memory_space<vmem>>, vector<1x128xf32>
    %165 = vector.shape_cast %164 : vector<1x128xf32> to vector<1x1x128xf32>
    %166 = vector.extract_strided_slice %145 {offsets = [3, 0, 0], sizes = [16, 16, 128], strides = [1, 1, 1]} : vector<22x16x128xf32> to vector<16x16x128xf32>
    %167 = vector.broadcast %165 : vector<1x1x128xf32> to vector<16x16x128xf32>
    %168 = arith.mulf %166, %167 : vector<16x16x128xf32>
    %169 = arith.addf %163, %168 : vector<16x16x128xf32>
    %c31 = arith.constant 31 : index
    %c0_61 = arith.constant 0 : index
    %170 = vector.load %arg2[%c31, %c0_61] : memref<49x128xf32, #tpu.memory_space<vmem>>, vector<1x128xf32>
    %171 = vector.shape_cast %170 : vector<1x128xf32> to vector<1x1x128xf32>
    %172 = vector.extract_strided_slice %145 {offsets = [4, 0, 0], sizes = [16, 16, 128], strides = [1, 1, 1]} : vector<22x16x128xf32> to vector<16x16x128xf32>
    %173 = vector.broadcast %171 : vector<1x1x128xf32> to vector<16x16x128xf32>
    %174 = arith.mulf %172, %173 : vector<16x16x128xf32>
    %175 = arith.addf %169, %174 : vector<16x16x128xf32>
    %c38 = arith.constant 38 : index
    %c0_62 = arith.constant 0 : index
    %176 = vector.load %arg2[%c38, %c0_62] : memref<49x128xf32, #tpu.memory_space<vmem>>, vector<1x128xf32>
    %177 = vector.shape_cast %176 : vector<1x128xf32> to vector<1x1x128xf32>
    %178 = vector.extract_strided_slice %145 {offsets = [5, 0, 0], sizes = [16, 16, 128], strides = [1, 1, 1]} : vector<22x16x128xf32> to vector<16x16x128xf32>
    %179 = vector.broadcast %177 : vector<1x1x128xf32> to vector<16x16x128xf32>
    %180 = arith.mulf %178, %179 : vector<16x16x128xf32>
    %181 = arith.addf %175, %180 : vector<16x16x128xf32>
    %c45 = arith.constant 45 : index
    %c0_63 = arith.constant 0 : index
    %182 = vector.load %arg2[%c45, %c0_63] : memref<49x128xf32, #tpu.memory_space<vmem>>, vector<1x128xf32>
    %183 = vector.shape_cast %182 : vector<1x128xf32> to vector<1x1x128xf32>
    %184 = vector.extract_strided_slice %145 {offsets = [6, 0, 0], sizes = [16, 16, 128], strides = [1, 1, 1]} : vector<22x16x128xf32> to vector<16x16x128xf32>
    %185 = vector.broadcast %183 : vector<1x1x128xf32> to vector<16x16x128xf32>
    %186 = arith.mulf %184, %185 : vector<16x16x128xf32>
    %187 = arith.addf %181, %186 : vector<16x16x128xf32>
    %c0_64 = arith.constant 0 : index
    %c4 = arith.constant 4 : index
    %c0_65 = arith.constant 0 : index
    %188 = vector.load %arg13[%c0_64, %c4, %c0_65] : memref<22x22x128xf32, #tpu.memory_space<vmem>>, vector<22x16x128xf32>
    %c4_66 = arith.constant 4 : index
    %c0_67 = arith.constant 0 : index
    %189 = vector.load %arg2[%c4_66, %c0_67] : memref<49x128xf32, #tpu.memory_space<vmem>>, vector<1x128xf32>
    %190 = vector.shape_cast %189 : vector<1x128xf32> to vector<1x1x128xf32>
    %191 = vector.extract_strided_slice %188 {offsets = [0, 0, 0], sizes = [16, 16, 128], strides = [1, 1, 1]} : vector<22x16x128xf32> to vector<16x16x128xf32>
    %192 = vector.broadcast %190 : vector<1x1x128xf32> to vector<16x16x128xf32>
    %193 = arith.mulf %191, %192 : vector<16x16x128xf32>
    %194 = arith.addf %187, %193 : vector<16x16x128xf32>
    %c11 = arith.constant 11 : index
    %c0_68 = arith.constant 0 : index
    %195 = vector.load %arg2[%c11, %c0_68] : memref<49x128xf32, #tpu.memory_space<vmem>>, vector<1x128xf32>
    %196 = vector.shape_cast %195 : vector<1x128xf32> to vector<1x1x128xf32>
    %197 = vector.extract_strided_slice %188 {offsets = [1, 0, 0], sizes = [16, 16, 128], strides = [1, 1, 1]} : vector<22x16x128xf32> to vector<16x16x128xf32>
    %198 = vector.broadcast %196 : vector<1x1x128xf32> to vector<16x16x128xf32>
    %199 = arith.mulf %197, %198 : vector<16x16x128xf32>
    %200 = arith.addf %194, %199 : vector<16x16x128xf32>
    %c18 = arith.constant 18 : index
    %c0_69 = arith.constant 0 : index
    %201 = vector.load %arg2[%c18, %c0_69] : memref<49x128xf32, #tpu.memory_space<vmem>>, vector<1x128xf32>
    %202 = vector.shape_cast %201 : vector<1x128xf32> to vector<1x1x128xf32>
    %203 = vector.extract_strided_slice %188 {offsets = [2, 0, 0], sizes = [16, 16, 128], strides = [1, 1, 1]} : vector<22x16x128xf32> to vector<16x16x128xf32>
    %204 = vector.broadcast %202 : vector<1x1x128xf32> to vector<16x16x128xf32>
    %205 = arith.mulf %203, %204 : vector<16x16x128xf32>
    %206 = arith.addf %200, %205 : vector<16x16x128xf32>
    %c25 = arith.constant 25 : index
    %c0_70 = arith.constant 0 : index
    %207 = vector.load %arg2[%c25, %c0_70] : memref<49x128xf32, #tpu.memory_space<vmem>>, vector<1x128xf32>
    %208 = vector.shape_cast %207 : vector<1x128xf32> to vector<1x1x128xf32>
    %209 = vector.extract_strided_slice %188 {offsets = [3, 0, 0], sizes = [16, 16, 128], strides = [1, 1, 1]} : vector<22x16x128xf32> to vector<16x16x128xf32>
    %210 = vector.broadcast %208 : vector<1x1x128xf32> to vector<16x16x128xf32>
    %211 = arith.mulf %209, %210 : vector<16x16x128xf32>
    %212 = arith.addf %206, %211 : vector<16x16x128xf32>
    %c32 = arith.constant 32 : index
    %c0_71 = arith.constant 0 : index
    %213 = vector.load %arg2[%c32, %c0_71] : memref<49x128xf32, #tpu.memory_space<vmem>>, vector<1x128xf32>
    %214 = vector.shape_cast %213 : vector<1x128xf32> to vector<1x1x128xf32>
    %215 = vector.extract_strided_slice %188 {offsets = [4, 0, 0], sizes = [16, 16, 128], strides = [1, 1, 1]} : vector<22x16x128xf32> to vector<16x16x128xf32>
    %216 = vector.broadcast %214 : vector<1x1x128xf32> to vector<16x16x128xf32>
    %217 = arith.mulf %215, %216 : vector<16x16x128xf32>
    %218 = arith.addf %212, %217 : vector<16x16x128xf32>
    %c39 = arith.constant 39 : index
    %c0_72 = arith.constant 0 : index
    %219 = vector.load %arg2[%c39, %c0_72] : memref<49x128xf32, #tpu.memory_space<vmem>>, vector<1x128xf32>
    %220 = vector.shape_cast %219 : vector<1x128xf32> to vector<1x1x128xf32>
    %221 = vector.extract_strided_slice %188 {offsets = [5, 0, 0], sizes = [16, 16, 128], strides = [1, 1, 1]} : vector<22x16x128xf32> to vector<16x16x128xf32>
    %222 = vector.broadcast %220 : vector<1x1x128xf32> to vector<16x16x128xf32>
    %223 = arith.mulf %221, %222 : vector<16x16x128xf32>
    %224 = arith.addf %218, %223 : vector<16x16x128xf32>
    %c46 = arith.constant 46 : index
    %c0_73 = arith.constant 0 : index
    %225 = vector.load %arg2[%c46, %c0_73] : memref<49x128xf32, #tpu.memory_space<vmem>>, vector<1x128xf32>
    %226 = vector.shape_cast %225 : vector<1x128xf32> to vector<1x1x128xf32>
    %227 = vector.extract_strided_slice %188 {offsets = [6, 0, 0], sizes = [16, 16, 128], strides = [1, 1, 1]} : vector<22x16x128xf32> to vector<16x16x128xf32>
    %228 = vector.broadcast %226 : vector<1x1x128xf32> to vector<16x16x128xf32>
    %229 = arith.mulf %227, %228 : vector<16x16x128xf32>
    %230 = arith.addf %224, %229 : vector<16x16x128xf32>
    %c0_74 = arith.constant 0 : index
    %c5 = arith.constant 5 : index
    %c0_75 = arith.constant 0 : index
    %231 = vector.load %arg13[%c0_74, %c5, %c0_75] : memref<22x22x128xf32, #tpu.memory_space<vmem>>, vector<22x16x128xf32>
    %c5_76 = arith.constant 5 : index
    %c0_77 = arith.constant 0 : index
    %232 = vector.load %arg2[%c5_76, %c0_77] : memref<49x128xf32, #tpu.memory_space<vmem>>, vector<1x128xf32>
    %233 = vector.shape_cast %232 : vector<1x128xf32> to vector<1x1x128xf32>
    %234 = vector.extract_strided_slice %231 {offsets = [0, 0, 0], sizes = [16, 16, 128], strides = [1, 1, 1]} : vector<22x16x128xf32> to vector<16x16x128xf32>
    %235 = vector.broadcast %233 : vector<1x1x128xf32> to vector<16x16x128xf32>
    %236 = arith.mulf %234, %235 : vector<16x16x128xf32>
    %237 = arith.addf %230, %236 : vector<16x16x128xf32>
    %c12 = arith.constant 12 : index
    %c0_78 = arith.constant 0 : index
    %238 = vector.load %arg2[%c12, %c0_78] : memref<49x128xf32, #tpu.memory_space<vmem>>, vector<1x128xf32>
    %239 = vector.shape_cast %238 : vector<1x128xf32> to vector<1x1x128xf32>
    %240 = vector.extract_strided_slice %231 {offsets = [1, 0, 0], sizes = [16, 16, 128], strides = [1, 1, 1]} : vector<22x16x128xf32> to vector<16x16x128xf32>
    %241 = vector.broadcast %239 : vector<1x1x128xf32> to vector<16x16x128xf32>
    %242 = arith.mulf %240, %241 : vector<16x16x128xf32>
    %243 = arith.addf %237, %242 : vector<16x16x128xf32>
    %c19_79 = arith.constant 19 : index
    %c0_80 = arith.constant 0 : index
    %244 = vector.load %arg2[%c19_79, %c0_80] : memref<49x128xf32, #tpu.memory_space<vmem>>, vector<1x128xf32>
    %245 = vector.shape_cast %244 : vector<1x128xf32> to vector<1x1x128xf32>
    %246 = vector.extract_strided_slice %231 {offsets = [2, 0, 0], sizes = [16, 16, 128], strides = [1, 1, 1]} : vector<22x16x128xf32> to vector<16x16x128xf32>
    %247 = vector.broadcast %245 : vector<1x1x128xf32> to vector<16x16x128xf32>
    %248 = arith.mulf %246, %247 : vector<16x16x128xf32>
    %249 = arith.addf %243, %248 : vector<16x16x128xf32>
    %c26 = arith.constant 26 : index
    %c0_81 = arith.constant 0 : index
    %250 = vector.load %arg2[%c26, %c0_81] : memref<49x128xf32, #tpu.memory_space<vmem>>, vector<1x128xf32>
    %251 = vector.shape_cast %250 : vector<1x128xf32> to vector<1x1x128xf32>
    %252 = vector.extract_strided_slice %231 {offsets = [3, 0, 0], sizes = [16, 16, 128], strides = [1, 1, 1]} : vector<22x16x128xf32> to vector<16x16x128xf32>
    %253 = vector.broadcast %251 : vector<1x1x128xf32> to vector<16x16x128xf32>
    %254 = arith.mulf %252, %253 : vector<16x16x128xf32>
    %255 = arith.addf %249, %254 : vector<16x16x128xf32>
    %c33 = arith.constant 33 : index
    %c0_82 = arith.constant 0 : index
    %256 = vector.load %arg2[%c33, %c0_82] : memref<49x128xf32, #tpu.memory_space<vmem>>, vector<1x128xf32>
    %257 = vector.shape_cast %256 : vector<1x128xf32> to vector<1x1x128xf32>
    %258 = vector.extract_strided_slice %231 {offsets = [4, 0, 0], sizes = [16, 16, 128], strides = [1, 1, 1]} : vector<22x16x128xf32> to vector<16x16x128xf32>
    %259 = vector.broadcast %257 : vector<1x1x128xf32> to vector<16x16x128xf32>
    %260 = arith.mulf %258, %259 : vector<16x16x128xf32>
    %261 = arith.addf %255, %260 : vector<16x16x128xf32>
    %c40 = arith.constant 40 : index
    %c0_83 = arith.constant 0 : index
    %262 = vector.load %arg2[%c40, %c0_83] : memref<49x128xf32, #tpu.memory_space<vmem>>, vector<1x128xf32>
    %263 = vector.shape_cast %262 : vector<1x128xf32> to vector<1x1x128xf32>
    %264 = vector.extract_strided_slice %231 {offsets = [5, 0, 0], sizes = [16, 16, 128], strides = [1, 1, 1]} : vector<22x16x128xf32> to vector<16x16x128xf32>
    %265 = vector.broadcast %263 : vector<1x1x128xf32> to vector<16x16x128xf32>
    %266 = arith.mulf %264, %265 : vector<16x16x128xf32>
    %267 = arith.addf %261, %266 : vector<16x16x128xf32>
    %c47 = arith.constant 47 : index
    %c0_84 = arith.constant 0 : index
    %268 = vector.load %arg2[%c47, %c0_84] : memref<49x128xf32, #tpu.memory_space<vmem>>, vector<1x128xf32>
    %269 = vector.shape_cast %268 : vector<1x128xf32> to vector<1x1x128xf32>
    %270 = vector.extract_strided_slice %231 {offsets = [6, 0, 0], sizes = [16, 16, 128], strides = [1, 1, 1]} : vector<22x16x128xf32> to vector<16x16x128xf32>
    %271 = vector.broadcast %269 : vector<1x1x128xf32> to vector<16x16x128xf32>
    %272 = arith.mulf %270, %271 : vector<16x16x128xf32>
    %273 = arith.addf %267, %272 : vector<16x16x128xf32>
    %c0_85 = arith.constant 0 : index
    %c6 = arith.constant 6 : index
    %c0_86 = arith.constant 0 : index
    %274 = vector.load %arg13[%c0_85, %c6, %c0_86] : memref<22x22x128xf32, #tpu.memory_space<vmem>>, vector<22x16x128xf32>
    %c6_87 = arith.constant 6 : index
    %c0_88 = arith.constant 0 : index
    %275 = vector.load %arg2[%c6_87, %c0_88] : memref<49x128xf32, #tpu.memory_space<vmem>>, vector<1x128xf32>
    %276 = vector.shape_cast %275 : vector<1x128xf32> to vector<1x1x128xf32>
    %277 = vector.extract_strided_slice %274 {offsets = [0, 0, 0], sizes = [16, 16, 128], strides = [1, 1, 1]} : vector<22x16x128xf32> to vector<16x16x128xf32>
    %278 = vector.broadcast %276 : vector<1x1x128xf32> to vector<16x16x128xf32>
    %279 = arith.mulf %277, %278 : vector<16x16x128xf32>
    %280 = arith.addf %273, %279 : vector<16x16x128xf32>
    %c13 = arith.constant 13 : index
    %c0_89 = arith.constant 0 : index
    %281 = vector.load %arg2[%c13, %c0_89] : memref<49x128xf32, #tpu.memory_space<vmem>>, vector<1x128xf32>
    %282 = vector.shape_cast %281 : vector<1x128xf32> to vector<1x1x128xf32>
    %283 = vector.extract_strided_slice %274 {offsets = [1, 0, 0], sizes = [16, 16, 128], strides = [1, 1, 1]} : vector<22x16x128xf32> to vector<16x16x128xf32>
    %284 = vector.broadcast %282 : vector<1x1x128xf32> to vector<16x16x128xf32>
    %285 = arith.mulf %283, %284 : vector<16x16x128xf32>
    %286 = arith.addf %280, %285 : vector<16x16x128xf32>
    %c20 = arith.constant 20 : index
    %c0_90 = arith.constant 0 : index
    %287 = vector.load %arg2[%c20, %c0_90] : memref<49x128xf32, #tpu.memory_space<vmem>>, vector<1x128xf32>
    %288 = vector.shape_cast %287 : vector<1x128xf32> to vector<1x1x128xf32>
    %289 = vector.extract_strided_slice %274 {offsets = [2, 0, 0], sizes = [16, 16, 128], strides = [1, 1, 1]} : vector<22x16x128xf32> to vector<16x16x128xf32>
    %290 = vector.broadcast %288 : vector<1x1x128xf32> to vector<16x16x128xf32>
    %291 = arith.mulf %289, %290 : vector<16x16x128xf32>
    %292 = arith.addf %286, %291 : vector<16x16x128xf32>
    %c27 = arith.constant 27 : index
    %c0_91 = arith.constant 0 : index
    %293 = vector.load %arg2[%c27, %c0_91] : memref<49x128xf32, #tpu.memory_space<vmem>>, vector<1x128xf32>
    %294 = vector.shape_cast %293 : vector<1x128xf32> to vector<1x1x128xf32>
    %295 = vector.extract_strided_slice %274 {offsets = [3, 0, 0], sizes = [16, 16, 128], strides = [1, 1, 1]} : vector<22x16x128xf32> to vector<16x16x128xf32>
    %296 = vector.broadcast %294 : vector<1x1x128xf32> to vector<16x16x128xf32>
    %297 = arith.mulf %295, %296 : vector<16x16x128xf32>
    %298 = arith.addf %292, %297 : vector<16x16x128xf32>
    %c34 = arith.constant 34 : index
    %c0_92 = arith.constant 0 : index
    %299 = vector.load %arg2[%c34, %c0_92] : memref<49x128xf32, #tpu.memory_space<vmem>>, vector<1x128xf32>
    %300 = vector.shape_cast %299 : vector<1x128xf32> to vector<1x1x128xf32>
    %301 = vector.extract_strided_slice %274 {offsets = [4, 0, 0], sizes = [16, 16, 128], strides = [1, 1, 1]} : vector<22x16x128xf32> to vector<16x16x128xf32>
    %302 = vector.broadcast %300 : vector<1x1x128xf32> to vector<16x16x128xf32>
    %303 = arith.mulf %301, %302 : vector<16x16x128xf32>
    %304 = arith.addf %298, %303 : vector<16x16x128xf32>
    %c41 = arith.constant 41 : index
    %c0_93 = arith.constant 0 : index
    %305 = vector.load %arg2[%c41, %c0_93] : memref<49x128xf32, #tpu.memory_space<vmem>>, vector<1x128xf32>
    %306 = vector.shape_cast %305 : vector<1x128xf32> to vector<1x1x128xf32>
    %307 = vector.extract_strided_slice %274 {offsets = [5, 0, 0], sizes = [16, 16, 128], strides = [1, 1, 1]} : vector<22x16x128xf32> to vector<16x16x128xf32>
    %308 = vector.broadcast %306 : vector<1x1x128xf32> to vector<16x16x128xf32>
    %309 = arith.mulf %307, %308 : vector<16x16x128xf32>
    %310 = arith.addf %304, %309 : vector<16x16x128xf32>
    %c48 = arith.constant 48 : index
    %c0_94 = arith.constant 0 : index
    %311 = vector.load %arg2[%c48, %c0_94] : memref<49x128xf32, #tpu.memory_space<vmem>>, vector<1x128xf32>
    %312 = vector.shape_cast %311 : vector<1x128xf32> to vector<1x1x128xf32>
    %313 = vector.extract_strided_slice %274 {offsets = [6, 0, 0], sizes = [16, 16, 128], strides = [1, 1, 1]} : vector<22x16x128xf32> to vector<16x16x128xf32>
    %314 = vector.broadcast %312 : vector<1x1x128xf32> to vector<16x16x128xf32>
    %315 = arith.mulf %313, %314 : vector<16x16x128xf32>
    %316 = arith.addf %310, %315 : vector<16x16x128xf32>
    %317 = vector.shape_cast %316 : vector<16x16x128xf32> to vector<256x128xf32>
    %cst_95 = arith.constant dense<0.000000e+00> : vector<256xf32>
    %318 = vector.multi_reduction <add>, %317, %cst_95 [1] : vector<256x128xf32> to vector<256xf32>
    %319 = vector.shape_cast %318 : vector<256xf32> to vector<256x1xf32>
    %cst_96 = arith.constant 2.500000e-01 : f32
    %320 = vector.broadcast %cst_96 : f32 to vector<256x1xf32>
    %321 = arith.mulf %319, %320 : vector<256x1xf32>
    %322 = vector.broadcast %321 : vector<256x1xf32> to vector<256x128xf32>
    %323 = arith.subf %317, %322 : vector<256x128xf32>
    %324 = tpu.iota {dimensions = array<i32: 1>} : vector<1x128xi32>
    %c4_i32 = arith.constant 4 : i32
    %325 = vector.broadcast %c4_i32 : i32 to vector<1x128xi32>
    %326 = arith.cmpi slt, %324, %325 : vector<1x128xi32>
    %cst_97 = arith.constant 0.000000e+00 : f32
    %327 = vector.shape_cast %326 : vector<1x128xi1> to vector<1x128xi1>
    %328 = vector.broadcast %327 : vector<1x128xi1> to vector<256x128xi1>
    %329 = vector.broadcast %cst_97 : f32 to vector<256x128xf32>
    %330 = arith.select %328, %323, %329 : vector<256x128xi1>, vector<256x128xf32>
    %331 = arith.mulf %330, %330 : vector<256x128xf32>
    %cst_98 = arith.constant dense<0.000000e+00> : vector<256xf32>
    %332 = vector.multi_reduction <add>, %331, %cst_98 [1] : vector<256x128xf32> to vector<256xf32>
    %333 = vector.shape_cast %332 : vector<256xf32> to vector<256x1xf32>
    %cst_99 = arith.constant 2.500000e-01 : f32
    %334 = vector.broadcast %cst_99 : f32 to vector<256x1xf32>
    %335 = arith.mulf %333, %334 : vector<256x1xf32>
    %336 = vector.broadcast %321 : vector<256x1xf32> to vector<256x128xf32>
    %337 = arith.subf %317, %336 : vector<256x128xf32>
    %cst_100 = arith.constant 9.99999997E-7 : f32
    %338 = vector.broadcast %cst_100 : f32 to vector<256x1xf32>
    %339 = arith.addf %335, %338 : vector<256x1xf32>
    %340 = math.rsqrt %339 : vector<256x1xf32>
    %341 = vector.broadcast %340 : vector<256x1xf32> to vector<256x128xf32>
    %342 = arith.mulf %337, %341 : vector<256x128xf32>
    %c0_101 = arith.constant 0 : index
    %c0_102 = arith.constant 0 : index
    %343 = vector.load %arg4[%c0_101, %c0_102] : memref<1x128xf32, #tpu.memory_space<vmem>>, vector<1x128xf32>
    %344 = vector.broadcast %343 : vector<1x128xf32> to vector<256x128xf32>
    %345 = arith.mulf %342, %344 : vector<256x128xf32>
    %c0_103 = arith.constant 0 : index
    %c0_104 = arith.constant 0 : index
    %346 = vector.load %arg5[%c0_103, %c0_104] : memref<1x128xf32, #tpu.memory_space<vmem>>, vector<1x128xf32>
    %347 = vector.broadcast %346 : vector<1x128xf32> to vector<256x128xf32>
    %348 = arith.addf %345, %347 : vector<256x128xf32>
    %349 = arith.truncf %348 : vector<256x128xf32> to vector<256x128xbf16>
    %c0_105 = arith.constant 0 : index
    %c0_106 = arith.constant 0 : index
    %350 = vector.load %arg6[%c0_105, %c0_106] : memref<128x128xbf16, #tpu.memory_space<vmem>>, vector<128x128xbf16>
    %cst_107 = arith.constant dense<0.000000e+00> : vector<256x128xf32>
    %351 = tpu.matmul %349, %350, %cst_107 {dimension_numbers = #tpu.dot_dimension_numbers<[1], [0], [0], [1], [0, 0, 1, 1], [], []>} : vector<256x128xbf16>, vector<128x128xbf16>, vector<256x128xf32> -> vector<256x128xf32>
    %c0_108 = arith.constant 0 : index
    %c0_109 = arith.constant 0 : index
    %352 = vector.load %arg7[%c0_108, %c0_109] : memref<1x128xf32, #tpu.memory_space<vmem>>, vector<1x128xf32>
    %353 = vector.broadcast %352 : vector<1x128xf32> to vector<256x128xf32>
    %354 = arith.addf %351, %353 : vector<256x128xf32>
    %cst_110 = arith.constant 5.000000e-01 : f32
    %355 = vector.broadcast %cst_110 : f32 to vector<256x128xf32>
    %356 = arith.mulf %355, %354 : vector<256x128xf32>
    %cst_111 = arith.constant 0.707106769 : f32
    %357 = vector.broadcast %cst_111 : f32 to vector<256x128xf32>
    %358 = arith.mulf %354, %357 : vector<256x128xf32>
    %cst_112 = arith.constant 0.000000e+00 : f32
    %359 = vector.broadcast %cst_112 : f32 to vector<256x128xf32>
    %360 = arith.cmpf oge, %358, %359 : vector<256x128xf32>
    %cst_113 = arith.constant 1.000000e+00 : f32
    %cst_114 = arith.constant -1.000000e+00 : f32
    %361 = vector.broadcast %cst_113 : f32 to vector<256x128xf32>
    %362 = vector.broadcast %cst_114 : f32 to vector<256x128xf32>
    %363 = arith.select %360, %361, %362 : vector<256x128xi1>, vector<256x128xf32>
    %364 = math.absf %358 : vector<256x128xf32>
    %cst_115 = arith.constant 0.327591091 : f32
    %365 = vector.broadcast %cst_115 : f32 to vector<256x128xf32>
    %366 = arith.mulf %365, %364 : vector<256x128xf32>
    %cst_116 = arith.constant 1.000000e+00 : f32
    %367 = vector.broadcast %cst_116 : f32 to vector<256x128xf32>
    %368 = arith.addf %367, %366 : vector<256x128xf32>
    %cst_117 = arith.constant 1.000000e+00 : f32
    %369 = vector.broadcast %cst_117 : f32 to vector<256x128xf32>
    %370 = arith.divf %369, %368 : vector<256x128xf32>
    %cst_118 = arith.constant 1.06140542 : f32
    %371 = vector.broadcast %cst_118 : f32 to vector<256x128xf32>
    %372 = arith.mulf %371, %370 : vector<256x128xf32>
    %cst_119 = arith.constant -1.45315206 : f32
    %373 = vector.broadcast %cst_119 : f32 to vector<256x128xf32>
    %374 = arith.addf %372, %373 : vector<256x128xf32>
    %375 = arith.mulf %374, %370 : vector<256x128xf32>
    %cst_120 = arith.constant 1.42141378 : f32
    %376 = vector.broadcast %cst_120 : f32 to vector<256x128xf32>
    %377 = arith.addf %375, %376 : vector<256x128xf32>
    %378 = arith.mulf %377, %370 : vector<256x128xf32>
    %cst_121 = arith.constant -0.284496725 : f32
    %379 = vector.broadcast %cst_121 : f32 to vector<256x128xf32>
    %380 = arith.addf %378, %379 : vector<256x128xf32>
    %381 = arith.mulf %380, %370 : vector<256x128xf32>
    %cst_122 = arith.constant 0.254829586 : f32
    %382 = vector.broadcast %cst_122 : f32 to vector<256x128xf32>
    %383 = arith.addf %381, %382 : vector<256x128xf32>
    %384 = arith.mulf %383, %370 : vector<256x128xf32>
    %cst_123 = arith.constant 0.000000e+00 : f32
    %385 = vector.broadcast %cst_123 : f32 to vector<256x128xf32>
    %386 = arith.subf %385, %364 : vector<256x128xf32>
    %387 = arith.mulf %386, %364 : vector<256x128xf32>
    %388 = math.exp %387 : vector<256x128xf32>
    %389 = arith.mulf %384, %388 : vector<256x128xf32>
    %cst_124 = arith.constant 1.000000e+00 : f32
    %390 = vector.broadcast %cst_124 : f32 to vector<256x128xf32>
    %391 = arith.subf %390, %389 : vector<256x128xf32>
    %392 = arith.mulf %363, %391 : vector<256x128xf32>
    %cst_125 = arith.constant 1.000000e+00 : f32
    %393 = vector.broadcast %cst_125 : f32 to vector<256x128xf32>
    %394 = arith.addf %393, %392 : vector<256x128xf32>
    %395 = arith.mulf %356, %394 : vector<256x128xf32>
    %396 = arith.mulf %395, %395 : vector<256x128xf32>
    %cst_126 = arith.constant dense<0.000000e+00> : vector<128xf32>
    %397 = vector.multi_reduction <add>, %396, %cst_126 [0] : vector<256x128xf32> to vector<128xf32>
    %398 = vector.shape_cast %397 : vector<128xf32> to vector<1x128xf32>
    %399 = math.sqrt %398 : vector<1x128xf32>
    %cst_127 = arith.constant dense<0.000000e+00> : vector<1xf32>
    %400 = vector.multi_reduction <add>, %399, %cst_127 [1] : vector<1x128xf32> to vector<1xf32>
    %401 = vector.shape_cast %400 : vector<1xf32> to vector<1x1xf32>
    %cst_128 = arith.constant 6.250000e-02 : f32
    %402 = vector.broadcast %cst_128 : f32 to vector<1x1xf32>
    %403 = arith.mulf %401, %402 : vector<1x1xf32>
    %cst_129 = arith.constant 9.99999997E-7 : f32
    %404 = vector.broadcast %cst_129 : f32 to vector<1x1xf32>
    %405 = arith.addf %403, %404 : vector<1x1xf32>
    %406 = tpu.reciprocal %405 {approx = true} : vector<1x1xf32> -> vector<1x1xf32>
    %407 = vector.broadcast %406 : vector<1x1xf32> to vector<1x128xf32>
    %408 = arith.mulf %399, %407 : vector<1x128xf32>
    %c0_130 = arith.constant 0 : index
    %c0_131 = arith.constant 0 : index
    %409 = vector.load %arg8[%c0_130, %c0_131] : memref<1x128xf32, #tpu.memory_space<vmem>>, vector<1x128xf32>
    %410 = vector.broadcast %408 : vector<1x128xf32> to vector<256x128xf32>
    %411 = arith.mulf %395, %410 : vector<256x128xf32>
    %412 = vector.broadcast %409 : vector<1x128xf32> to vector<256x128xf32>
    %413 = arith.mulf %412, %411 : vector<256x128xf32>
    %c0_132 = arith.constant 0 : index
    %c0_133 = arith.constant 0 : index
    %414 = vector.load %arg9[%c0_132, %c0_133] : memref<1x128xf32, #tpu.memory_space<vmem>>, vector<1x128xf32>
    %415 = vector.broadcast %414 : vector<1x128xf32> to vector<256x128xf32>
    %416 = arith.addf %413, %415 : vector<256x128xf32>
    %417 = arith.truncf %416 : vector<256x128xf32> to vector<256x128xbf16>
    %c0_134 = arith.constant 0 : index
    %c0_135 = arith.constant 0 : index
    %418 = vector.load %arg10[%c0_134, %c0_135] : memref<128x128xbf16, #tpu.memory_space<vmem>>, vector<128x128xbf16>
    %cst_136 = arith.constant dense<0.000000e+00> : vector<256x128xf32>
    %419 = tpu.matmul %417, %418, %cst_136 {dimension_numbers = #tpu.dot_dimension_numbers<[1], [0], [0], [1], [0, 0, 1, 1], [], []>} : vector<256x128xbf16>, vector<128x128xbf16>, vector<256x128xf32> -> vector<256x128xf32>
    %c0_137 = arith.constant 0 : index
    %c0_138 = arith.constant 0 : index
    %420 = vector.load %arg11[%c0_137, %c0_138] : memref<1x128xf32, #tpu.memory_space<vmem>>, vector<1x128xf32>
    %421 = vector.broadcast %420 : vector<1x128xf32> to vector<256x128xf32>
    %422 = arith.addf %419, %421 : vector<256x128xf32>
    %c3_139 = arith.constant 3 : index
    %c3_140 = arith.constant 3 : index
    %c0_141 = arith.constant 0 : index
    %423 = vector.load %arg13[%c3_139, %c3_140, %c0_141] : memref<22x22x128xf32, #tpu.memory_space<vmem>>, vector<16x16x128xf32>
    %424 = vector.shape_cast %422 : vector<256x128xf32> to vector<16x16x128xf32>
    %425 = arith.addf %423, %424 : vector<16x16x128xf32>
    %c0_142 = arith.constant 0 : index
    %c0_143 = arith.constant 0 : index
    %c0_144 = arith.constant 0 : index
    %c0_145 = arith.constant 0 : index
    %426 = vector.load %arg12[%c0_142, %c0_143, %c0_144, %c0_145] : memref<1x16x16x128xf32, #tpu.memory_space<vmem>>, vector<1x16x16x128xf32>
    %427 = vector.shape_cast %426 : vector<1x16x16x128xf32> to vector<16x16x128xf32>
    %428 = vector.shape_cast %425 : vector<16x16x128xf32> to vector<1x16x16x128xf32>
    tpu.vector_store %arg12[%c0_142, %c0_143, %c0_144, %c0_145], %428 {strides = array<i32>} : memref<1x16x16x128xf32, #tpu.memory_space<vmem>>, vector<1x16x16x128xf32>,
    return
  }
  func.func @transform_0(%arg0: i32) -> (i32, i32, i32, i32) {
    %c0_i32 = arith.constant 0 : i32
    %c0_i32_0 = arith.constant 0 : i32
    %c0_i32_1 = arith.constant 0 : i32
    %c0_i32_2 = arith.constant 0 : i32
    return %arg0, %c0_i32, %c0_i32_0, %c0_i32_1 : i32, i32, i32, i32
  }
  func.func @transform_1(%arg0: i32) -> (i32, i32) {
    %c0_i32 = arith.constant 0 : i32
    %c0_i32_0 = arith.constant 0 : i32
    %c0_i32_1 = arith.constant 0 : i32
    return %c0_i32, %c0_i32_0 : i32, i32
  }
  func.func @transform_2(%arg0: i32) -> (i32, i32) {
    %c0_i32 = arith.constant 0 : i32
    %c0_i32_0 = arith.constant 0 : i32
    %c0_i32_1 = arith.constant 0 : i32
    return %c0_i32, %c0_i32_0 : i32, i32
  }
  func.func @transform_3(%arg0: i32) -> (i32, i32) {
    %c0_i32 = arith.constant 0 : i32
    %c0_i32_0 = arith.constant 0 : i32
    %c0_i32_1 = arith.constant 0 : i32
    return %c0_i32, %c0_i32_0 : i32, i32
  }
  func.func @transform_4(%arg0: i32) -> (i32, i32) {
    %c0_i32 = arith.constant 0 : i32
    %c0_i32_0 = arith.constant 0 : i32
    %c0_i32_1 = arith.constant 0 : i32
    return %c0_i32, %c0_i32_0 : i32, i32
  }
  func.func @transform_5(%arg0: i32) -> (i32, i32) {
    %c0_i32 = arith.constant 0 : i32
    %c0_i32_0 = arith.constant 0 : i32
    %c0_i32_1 = arith.constant 0 : i32
    return %c0_i32, %c0_i32_0 : i32, i32
  }
  func.func @transform_6(%arg0: i32) -> (i32, i32) {
    %c0_i32 = arith.constant 0 : i32
    %c0_i32_0 = arith.constant 0 : i32
    %c0_i32_1 = arith.constant 0 : i32
    return %c0_i32, %c0_i32_0 : i32, i32
  }
  func.func @transform_7(%arg0: i32) -> (i32, i32) {
    %c0_i32 = arith.constant 0 : i32
    %c0_i32_0 = arith.constant 0 : i32
    %c0_i32_1 = arith.constant 0 : i32
    return %c0_i32, %c0_i32_0 : i32, i32
  }
  func.func @transform_8(%arg0: i32) -> (i32, i32) {
    %c0_i32 = arith.constant 0 : i32
    %c0_i32_0 = arith.constant 0 : i32
    %c0_i32_1 = arith.constant 0 : i32
    return %c0_i32, %c0_i32_0 : i32, i32
  }
  func.func @transform_9(%arg0: i32) -> (i32, i32) {
    %c0_i32 = arith.constant 0 : i32
    %c0_i32_0 = arith.constant 0 : i32
    %c0_i32_1 = arith.constant 0 : i32
    return %c0_i32, %c0_i32_0 : i32, i32
  }
  func.func @transform_10(%arg0: i32) -> (i32, i32) {
    %c0_i32 = arith.constant 0 : i32
    %c0_i32_0 = arith.constant 0 : i32
    %c0_i32_1 = arith.constant 0 : i32
    return %c0_i32, %c0_i32_0 : i32, i32
  }
  func.func @transform_11(%arg0: i32) -> (i32, i32, i32, i32) {
    %c0_i32 = arith.constant 0 : i32
    %c0_i32_0 = arith.constant 0 : i32
    %c0_i32_1 = arith.constant 0 : i32
    %c0_i32_2 = arith.constant 0 : i32
    return %arg0, %c0_i32, %c0_i32_0, %c0_i32_1 : i32, i32, i32, i32
  }
}

</mosaic_0001>

<llo_original>
// kernel: tpu_custom_call.1
$region0: #{tpu_custom_call.1}
  #allocation0 [shape = 'u32[]', space=smem, size = 0x4, offset = 0x4, fixed_abs, tag = 'smem constant byte address 0x4 - core index']
  #allocation1 [shape = 'u32[144,128]{1,0:T(1,128)}', space=vmem, size = 0x12000, scoped, tag = 'internal scratch']
  #allocation2 [shape = 'f32[22,22,128]{2,1,0:T(8,128)}', space=vmem, size = 0x42000, scoped, tag = 'scratch operand']
  %s0 = inlined_call_operand.hbm [shape: f32[2,16,16,128], index: 0, kind: input, shape index: {}]
  %s1 = inlined_call_operand.hbm [shape: f32[49,128], index: 1, kind: input, shape index: {}]
  %s2 = inlined_call_operand.vmem [shape: f32[1,128], index: 2, kind: input, shape index: {}]
  %s3 = inlined_call_operand.vmem [shape: f32[1,128], index: 3, kind: input, shape index: {}]
  %s4 = inlined_call_operand.vmem [shape: f32[1,128], index: 4, kind: input, shape index: {}]
  %s5 = inlined_call_operand.hbm [shape: bf16[128,128], index: 5, kind: input, shape index: {}]
  %s6 = inlined_call_operand.vmem [shape: f32[1,128], index: 6, kind: input, shape index: {}]
  %s7 = inlined_call_operand.vmem [shape: f32[1,128], index: 7, kind: input, shape index: {}]
  %s8 = inlined_call_operand.vmem [shape: f32[1,128], index: 8, kind: input, shape index: {}]
  %s9 = inlined_call_operand.hbm [shape: bf16[128,128], index: 9, kind: input, shape index: {}]
  %s10 = inlined_call_operand.vmem [shape: f32[1,128], index: 10, kind: input, shape index: {}]
  %s11 = inlined_call_operand.hbm [shape: f32[2,16,16,128], index: 11, kind: output, shape index: {}]
  %s12 = sld [smem:[#allocation0]]
  $region93: #{tpu_custom_call.1} parent=0
    _
  %s14 = ssub.s32 1, %s12
  %s15 = scalar_select 0, %s14, %s12
  $region1: #{tpu_custom_call.1} parent=0
    #allocation3 [shape = 'u8[262144]{0}', space=vmem, size = 0x40000, scoped, tag = 'input window, operand 0']
    #allocation4 [shape = 's32[2]{0}', space=sflag, size = 0x8, scoped, tag = 'scoped memory for tpu_custom_call.1']
    #allocation5 [shape = 's32[2]{0}', space=sflag, size = 0x8, scoped, tag = 'scoped memory for tpu_custom_call.1']
    #allocation6 [shape = 'u8[28672]{0}', space=vmem, size = 0x7000, scoped, tag = 'input window, operand 1, single buffered']
    #allocation7 [shape = 's32[1]{0}', space=sflag, size = 0x4, scoped, tag = 'scoped memory for tpu_custom_call.1']
    #allocation8 [shape = 'u8[32768]{0}', space=vmem, size = 0x8000, scoped, tag = 'input window, operand 5, single buffered']
    #allocation9 [shape = 'u8[32768]{0}', space=vmem, size = 0x8000, scoped, tag = 'input window, operand 9, single buffered']
    #allocation10 [shape = 's32[1]{0}', space=sflag, size = 0x4, scoped, tag = 'scoped memory for tpu_custom_call.1']
    #allocation11 [shape = 'u8[262144]{0}', space=vmem, size = 0x40000, scoped, tag = 'output window, operand 0']
    %16 = vsyncpa [#allocation4], 0
    %s17 = scalar_lea.sflag [#allocation4], 1
    %18 = vsyncpa %s17, 0
    %19 = vsyncpa [#allocation7], 0
    %20 = vsyncpa [#allocation10], 0
    %21 = vsyncpa [#allocation5], 0
    %s22 = scalar_lea.sflag [#allocation5], 1
    %23 = vsyncpa %s22, 0
    loop: start=0, step=1, limit=4
    $region2: #{tpu_custom_call.1} parent=1 // loop_pre_header
      _
    $region3: #{tpu_custom_call.1} parent=1 // loop_header
      %s25 = sphi 0, %s29
      %p26 = scmp.ge.s32.totalorder %s25, 4
      %s35 = sphi 0, %s37
      %s38 = sphi 0, %s35
      %s39 = sphi 0, %s38
      %s55 = sphi 0, %s39
      %s59 = sphi 0, %s59
      %s61 = sphi 0, %s59
      %s62 = sphi 0, %s61
      %s76 = sphi 0, %s62
      %s80 = sphi 0, %s80
      %s82 = sphi 0, %s80
      %s83 = sphi 0, %s82
      %s97 = sphi 0, %s83
      %s101 = sphi 0, %s101
      %s103 = sphi 0, %s101
      %s104 = sphi 0, %s103
      %s118 = sphi 0, %s104
      %s122 = sphi 0, %s122
      %s124 = sphi 0, %s122
      %s125 = sphi 0, %s124
      %s139 = sphi 0, %s125
      %s143 = sphi 0, %s143
      %s145 = sphi 0, %s143
      %s146 = sphi 0, %s145
      %s160 = sphi 0, %s146
      %s164 = sphi 0, %s164
      %s166 = sphi 0, %s164
      %s167 = sphi 0, %s166
      %s181 = sphi 0, %s167
      %s185 = sphi 0, %s185
      %s187 = sphi 0, %s185
      %s188 = sphi 0, %s187
      %s202 = sphi 0, %s188
      %s206 = sphi 0, %s206
      %s208 = sphi 0, %s206
      %s209 = sphi 0, %s208
      %s223 = sphi 0, %s209
      %s227 = sphi 0, %s227
      %s229 = sphi 0, %s227
      %s230 = sphi 0, %s229
      %s244 = sphi 0, %s230
      %s248 = sphi 0, %s248
      %s250 = sphi 0, %s248
      %s251 = sphi 0, %s250
      %s265 = sphi 0, %s251
      %s271 = sphi 0, %s273
      %s274 = sphi 0, %s271
      %s275 = sphi 0, %s274
      %s291 = sphi 0, %s275
    $region4: #{tpu_custom_call.1} parent=1 // loop_header_branch
      %28 = sbr.rel (%p26) target = $region8
    $region5: #{tpu_custom_call.1} parent=1 // loop_body
      %s30 = ssub.s32 %s25, 1
      %s31 = ssub.s32 %s25, 2
      %s32 = sadd.s32 %s25, 1
      %s33 = ssub.s32 %s25, %s32
      %p34 = scmp.eq.s32.totalorder %s33, 0
      %s36 = sadd.s32 %s35, 1
      %s37 = scalar_select %p34, %s35, %s36
      %p40 = pneg %p34
      %p41 = scmp.eq.s32.totalorder %s25, 1
      %p42 = por %p40, %p41
      %p43 = scmp.ne.s32.totalorder %s35, %s38
      %p44 = scmp.eq.s32.totalorder %s25, 0
      %p45 = por %p43, %p44
      %p46 = scmp.ne.s32.totalorder %s35, %s38
      %p47 = scmp.eq.s32.totalorder %s30, 1
      %p48 = por %p46, %p47
      %p49 = scmp.ne.s32.totalorder %s38, %s39
      %p50 = scmp.eq.s32.totalorder %s30, 0
      %p51 = por %p49, %p50
      %p52 = scmp.ne.s32.totalorder %s38, %s39
      %p53 = scmp.eq.s32.totalorder %s31, 1
      %p54 = por %p52, %p53
      %p56 = scmp.ne.s32.totalorder %s39, %s55
      %p57 = scmp.eq.s32.totalorder %s31, 0
      %p58 = por %p56, %p57
      %s60 = sadd.s32 %s59, 1
      %p63 = scmp.eq.s32.totalorder %s25, 1
      %p64 = scmp.ne.s32.totalorder %s59, %s61
      %p65 = scmp.eq.s32.totalorder %s25, 0
      %p66 = por %p64, %p65
      %p67 = scmp.ne.s32.totalorder %s59, %s61
      %p68 = scmp.eq.s32.totalorder %s30, 1
      %p69 = por %p67, %p68
      %p70 = scmp.ne.s32.totalorder %s61, %s62
      %p71 = scmp.eq.s32.totalorder %s30, 0
      %p72 = por %p70, %p71
      %p73 = scmp.ne.s32.totalorder %s61, %s62
      %p74 = scmp.eq.s32.totalorder %s31, 1
      %p75 = por %p73, %p74
      %p77 = scmp.ne.s32.totalorder %s62, %s76
      %p78 = scmp.eq.s32.totalorder %s31, 0
      %p79 = por %p77, %p78
      %s81 = sadd.s32 %s80, 1
      %p84 = scmp.eq.s32.totalorder %s25, 1
      %p85 = scmp.ne.s32.totalorder %s80, %s82
      %p86 = scmp.eq.s32.totalorder %s25, 0
      %p87 = por %p85, %p86
      %p88 = scmp.ne.s32.totalorder %s80, %s82
      %p89 = scmp.eq.s32.totalorder %s30, 1
      %p90 = por %p88, %p89
      %p91 = scmp.ne.s32.totalorder %s82, %s83
      %p92 = scmp.eq.s32.totalorder %s30, 0
      %p93 = por %p91, %p92
      %p94 = scmp.ne.s32.totalorder %s82, %s83
      %p95 = scmp.eq.s32.totalorder %s31, 1
      %p96 = por %p94, %p95
      %p98 = scmp.ne.s32.totalorder %s83, %s97
      %p99 = scmp.eq.s32.totalorder %s31, 0
      %p100 = por %p98, %p99
      %s102 = sadd.s32 %s101, 1
      %p105 = scmp.eq.s32.totalorder %s25, 1
      %p106 = scmp.ne.s32.totalorder %s101, %s103
      %p107 = scmp.eq.s32.totalorder %s25, 0
      %p108 = por %p106, %p107
      %p109 = scmp.ne.s32.totalorder %s101, %s103
      %p110 = scmp.eq.s32.totalorder %s30, 1
      %p111 = por %p109, %p110
      %p112 = scmp.ne.s32.totalorder %s103, %s104
      %p113 = scmp.eq.s32.totalorder %s30, 0
      %p114 = por %p112, %p113
      %p115 = scmp.ne.s32.totalorder %s103, %s104
      %p116 = scmp.eq.s32.totalorder %s31, 1
      %p117 = por %p115, %p116
      %p119 = scmp.ne.s32.totalorder %s104, %s118
      %p120 = scmp.eq.s32.totalorder %s31, 0
      %p121 = por %p119, %p120
      %s123 = sadd.s32 %s122, 1
      %p126 = scmp.eq.s32.totalorder %s25, 1
      %p127 = scmp.ne.s32.totalorder %s122, %s124
      %p128 = scmp.eq.s32.totalorder %s25, 0
      %p129 = por %p127, %p128
      %p130 = scmp.ne.s32.totalorder %s122, %s124
      %p131 = scmp.eq.s32.totalorder %s30, 1
      %p132 = por %p130, %p131
      %p133 = scmp.ne.s32.totalorder %s124, %s125
      %p134 = scmp.eq.s32.totalorder %s30, 0
      %p135 = por %p133, %p134
      %p136 = scmp.ne.s32.totalorder %s124, %s125
      %p137 = scmp.eq.s32.totalorder %s31, 1
      %p138 = por %p136, %p137
      %p140 = scmp.ne.s32.totalorder %s125, %s139
      %p141 = scmp.eq.s32.totalorder %s31, 0
      %p142 = por %p140, %p141
      %s144 = sadd.s32 %s143, 1
      %p147 = scmp.eq.s32.totalorder %s25, 1
      %p148 = scmp.ne.s32.totalorder %s143, %s145
      %p149 = scmp.eq.s32.totalorder %s25, 0
      %p150 = por %p148, %p149
      %p151 = scmp.ne.s32.totalorder %s143, %s145
      %p152 = scmp.eq.s32.totalorder %s30, 1
      %p153 = por %p151, %p152
      %p154 = scmp.ne.s32.totalorder %s145, %s146
      %p155 = scmp.eq.s32.totalorder %s30, 0
      %p156 = por %p154, %p155
      %p157 = scmp.ne.s32.totalorder %s145, %s146
      %p158 = scmp.eq.s32.totalorder %s31, 1
      %p159 = por %p157, %p158
      %p161 = scmp.ne.s32.totalorder %s146, %s160
      %p162 = scmp.eq.s32.totalorder %s31, 0
      %p163 = por %p161, %p162
      %s165 = sadd.s32 %s164, 1
      %p168 = scmp.eq.s32.totalorder %s25, 1
      %p169 = scmp.ne.s32.totalorder %s164, %s166
      %p170 = scmp.eq.s32.totalorder %s25, 0
      %p171 = por %p169, %p170
      %p172 = scmp.ne.s32.totalorder %s164, %s166
      %p173 = scmp.eq.s32.totalorder %s30, 1
      %p174 = por %p172, %p173
      %p175 = scmp.ne.s32.totalorder %s166, %s167
      %p176 = scmp.eq.s32.totalorder %s30, 0
      %p177 = por %p175, %p176
      %p178 = scmp.ne.s32.totalorder %s166, %s167
      %p179 = scmp.eq.s32.totalorder %s31, 1
      %p180 = por %p178, %p179
      %p182 = scmp.ne.s32.totalorder %s167, %s181
      %p183 = scmp.eq.s32.totalorder %s31, 0
      %p184 = por %p182, %p183
      %s186 = sadd.s32 %s185, 1
      %p189 = scmp.eq.s32.totalorder %s25, 1
      %p190 = scmp.ne.s32.totalorder %s185, %s187
      %p191 = scmp.eq.s32.totalorder %s25, 0
      %p192 = por %p190, %p191
      %p193 = scmp.ne.s32.totalorder %s185, %s187
      %p194 = scmp.eq.s32.totalorder %s30, 1
      %p195 = por %p193, %p194
      %p196 = scmp.ne.s32.totalorder %s187, %s188
      %p197 = scmp.eq.s32.totalorder %s30, 0
      %p198 = por %p196, %p197
      %p199 = scmp.ne.s32.totalorder %s187, %s188
      %p200 = scmp.eq.s32.totalorder %s31, 1
      %p201 = por %p199, %p200
      %p203 = scmp.ne.s32.totalorder %s188, %s202
      %p204 = scmp.eq.s32.totalorder %s31, 0
      %p205 = por %p203, %p204
      %s207 = sadd.s32 %s206, 1
      %p210 = scmp.eq.s32.totalorder %s25, 1
      %p211 = scmp.ne.s32.totalorder %s206, %s208
      %p212 = scmp.eq.s32.totalorder %s25, 0
      %p213 = por %p211, %p212
      %p214 = scmp.ne.s32.totalorder %s206, %s208
      %p215 = scmp.eq.s32.totalorder %s30, 1
      %p216 = por %p214, %p215
      %p217 = scmp.ne.s32.totalorder %s208, %s209
      %p218 = scmp.eq.s32.totalorder %s30, 0
      %p219 = por %p217, %p218
      %p220 = scmp.ne.s32.totalorder %s208, %s209
      %p221 = scmp.eq.s32.totalorder %s31, 1
      %p222 = por %p220, %p221
      %p224 = scmp.ne.s32.totalorder %s209, %s223
      %p225 = scmp.eq.s32.totalorder %s31, 0
      %p226 = por %p224, %p225
      %s228 = sadd.s32 %s227, 1
      %p231 = scmp.eq.s32.totalorder %s25, 1
      %p232 = scmp.ne.s32.totalorder %s227, %s229
      %p233 = scmp.eq.s32.totalorder %s25, 0
      %p234 = por %p232, %p233
      %p235 = scmp.ne.s32.totalorder %s227, %s229
      %p236 = scmp.eq.s32.totalorder %s30, 1
      %p237 = por %p235, %p236
      %p238 = scmp.ne.s32.totalorder %s229, %s230
      %p239 = scmp.eq.s32.totalorder %s30, 0
      %p240 = por %p238, %p239
      %p241 = scmp.ne.s32.totalorder %s229, %s230
      %p242 = scmp.eq.s32.totalorder %s31, 1
      %p243 = por %p241, %p242
      %p245 = scmp.ne.s32.totalorder %s230, %s244
      %p246 = scmp.eq.s32.totalorder %s31, 0
      %p247 = por %p245, %p246
      %s249 = sadd.s32 %s248, 1
      %p252 = scmp.eq.s32.totalorder %s25, 1
      %p253 = scmp.ne.s32.totalorder %s248, %s250
      %p254 = scmp.eq.s32.totalorder %s25, 0
      %p255 = por %p253, %p254
      %p256 = scmp.ne.s32.totalorder %s248, %s250
      %p257 = scmp.eq.s32.totalorder %s30, 1
      %p258 = por %p256, %p257
      %p259 = scmp.ne.s32.totalorder %s250, %s251
      %p260 = scmp.eq.s32.totalorder %s30, 0
      %p261 = por %p259, %p260
      %p262 = scmp.ne.s32.totalorder %s250, %s251
      %p263 = scmp.eq.s32.totalorder %s31, 1
      %p264 = por %p262, %p263
      %p266 = scmp.ne.s32.totalorder %s251, %s265
      %p267 = scmp.eq.s32.totalorder %s31, 0
      %p268 = por %p266, %p267
      %s269 = ssub.s32 %s25, %s32
      %p270 = scmp.eq.s32.totalorder %s269, 0
      %s272 = sadd.s32 %s271, 1
      %s273 = scalar_select %p270, %s271, %s272
      %p276 = pneg %p270
      %p277 = scmp.eq.s32.totalorder %s25, 1
      %p278 = por %p276, %p277
      %p279 = scmp.ne.s32.totalorder %s271, %s274
      %p280 = scmp.eq.s32.totalorder %s25, 0
      %p281 = por %p279, %p280
      %p282 = scmp.ne.s32.totalorder %s271, %s274
      %p283 = scmp.eq.s32.totalorder %s30, 1
      %p284 = por %p282, %p283
      %p285 = scmp.ne.s32.totalorder %s274, %s275
      %p286 = scmp.eq.s32.totalorder %s30, 0
      %p287 = por %p285, %p286
      %p288 = scmp.ne.s32.totalorder %s274, %s275
      %p289 = scmp.eq.s32.totalorder %s31, 1
      %p290 = por %p288, %p289
      %p292 = scmp.ne.s32.totalorder %s275, %s291
      %p293 = scmp.eq.s32.totalorder %s31, 0
      %p294 = por %p292, %p293
      %p295 = scmp.le.s32.totalorder 1, %s25
      %p296 = scmp.lt.s32.totalorder %s25, 3
      %p297 = pnand %p295, %p296
      %p298 = pneg %p297
      // Predicated region
      $region9: #{tpu_custom_call.1} parent=5 // pred_check
        _
      $region10: #{tpu_custom_call.1} parent=5 // pred_check_branch
        %300 = sbr.rel (%p297) target = $region12
      $region11: #{tpu_custom_call.1} parent=5 // pred_region
        %s301 = ssub.s32 %s25, 1
        // Predicated region
        $region13: #{tpu_custom_call.1} parent=11 // pred_check
          %p302 = pneg %p72
        $region14: #{tpu_custom_call.1} parent=11 // pred_check_branch
          %304 = sbr.rel (%p302) target = $region16
        $region15: #{tpu_custom_call.1} parent=11 // pred_region
          %s306 = ssub.s32 896, 896
          %307 = vsyncadd [#allocation7], %s306
          %s308 = sshll.u32 [#allocation6], 4
          %s309 = int_to_ptr.vmem [resolvable:$true] %s308
          %314 = dma.hbm_to_vmem [thread:$0]  %s1, 896, %s309, [#allocation7], 128, 128, 8
        $region16: #{tpu_custom_call.1} parent=11 // pred_fallthru
          _
        // Predicated region
        $region17: #{tpu_custom_call.1} parent=11 // pred_check
          %p315 = pneg %p93
        $region18: #{tpu_custom_call.1} parent=11 // pred_check_branch
          %317 = sbr.rel (%p315) target = $region20
        $region19: #{tpu_custom_call.1} parent=11 // pred_region
          _
        $region20: #{tpu_custom_call.1} parent=11 // pred_fallthru
          _
        // Predicated region
        $region21: #{tpu_custom_call.1} parent=11 // pred_check
          %p318 = pneg %p114
        $region22: #{tpu_custom_call.1} parent=11 // pred_check_branch
          %320 = sbr.rel (%p318) target = $region24
        $region23: #{tpu_custom_call.1} parent=11 // pred_region
          _
        $region24: #{tpu_custom_call.1} parent=11 // pred_fallthru
          _
        // Predicated region
        $region25: #{tpu_custom_call.1} parent=11 // pred_check
          %p321 = pneg %p135
        $region26: #{tpu_custom_call.1} parent=11 // pred_check_branch
          %323 = sbr.rel (%p321) target = $region28
        $region27: #{tpu_custom_call.1} parent=11 // pred_region
          _
        $region28: #{tpu_custom_call.1} parent=11 // pred_fallthru
          _
        // Predicated region
        $region29: #{tpu_custom_call.1} parent=11 // pred_check
          %p324 = pneg %p156
        $region30: #{tpu_custom_call.1} parent=11 // pred_check_branch
          %326 = sbr.rel (%p324) target = $region32
        $region31: #{tpu_custom_call.1} parent=11 // pred_region
          %s328 = ssub.s32 1024, 1024
          %329 = vsyncadd [#allocation7], %s328
          %s330 = sshll.u32 [#allocation8], 4
          %s331 = int_to_ptr.vmem [resolvable:$true] %s330
          %336 = dma.hbm_to_vmem [thread:$0]  %s5, 1024, %s331, [#allocation7], 64, 64, 4
        $region32: #{tpu_custom_call.1} parent=11 // pred_fallthru
          _
        // Predicated region
        $region33: #{tpu_custom_call.1} parent=11 // pred_check
          %p337 = pneg %p177
        $region34: #{tpu_custom_call.1} parent=11 // pred_check_branch
          %339 = sbr.rel (%p337) target = $region36
        $region35: #{tpu_custom_call.1} parent=11 // pred_region
          _
        $region36: #{tpu_custom_call.1} parent=11 // pred_fallthru
          _
        // Predicated region
        $region37: #{tpu_custom_call.1} parent=11 // pred_check
          %p340 = pneg %p198
        $region38: #{tpu_custom_call.1} parent=11 // pred_check_branch
          %342 = sbr.rel (%p340) target = $region40
        $region39: #{tpu_custom_call.1} parent=11 // pred_region
          _
        $region40: #{tpu_custom_call.1} parent=11 // pred_fallthru
          _
        // Predicated region
        $region41: #{tpu_custom_call.1} parent=11 // pred_check
          %p343 = pneg %p219
        $region42: #{tpu_custom_call.1} parent=11 // pred_check_branch
          %345 = sbr.rel (%p343) target = $region44
        $region43: #{tpu_custom_call.1} parent=11 // pred_region
          _
        $region44: #{tpu_custom_call.1} parent=11 // pred_fallthru
          _
        // Predicated region
        $region45: #{tpu_custom_call.1} parent=11 // pred_check
          %p346 = pneg %p240
        $region46: #{tpu_custom_call.1} parent=11 // pred_check_branch
          %348 = sbr.rel (%p346) target = $region48
        $region47: #{tpu_custom_call.1} parent=11 // pred_region
          %s350 = ssub.s32 1024, 1024
          %351 = vsyncadd [#allocation10], %s350
          %s352 = sshll.u32 [#allocation9], 4
          %s353 = int_to_ptr.vmem [resolvable:$true] %s352
          %358 = dma.hbm_to_vmem [thread:$0]  %s9, 1024, %s353, [#allocation10], 64, 64, 4
        $region48: #{tpu_custom_call.1} parent=11 // pred_fallthru
          _
        // Predicated region
        $region49: #{tpu_custom_call.1} parent=11 // pred_check
          %p359 = pneg %p261
        $region50: #{tpu_custom_call.1} parent=11 // pred_check_branch
          %361 = sbr.rel (%p359) target = $region52
        $region51: #{tpu_custom_call.1} parent=11 // pred_region
          _
        $region52: #{tpu_custom_call.1} parent=11 // pred_fallthru
          _
      $region12: #{tpu_custom_call.1} parent=5 // pred_fallthru
        _
      %p362 = scmp.lt.s32.totalorder %s25, 2
      // Predicated region
      $region53: #{tpu_custom_call.1} parent=5 // pred_check
        %p363 = pneg %p362
      $region54: #{tpu_custom_call.1} parent=5 // pred_check_branch
        %365 = sbr.rel (%p363) target = $region56
      $region55: #{tpu_custom_call.1} parent=5 // pred_region
        // Predicated region
        $region57: #{tpu_custom_call.1} parent=55 // pred_check
          %p366 = pneg %p45
        $region58: #{tpu_custom_call.1} parent=55 // pred_check_branch
          %368 = sbr.rel (%p366) target = $region60
        $region59: #{tpu_custom_call.1} parent=55 // pred_region
          %s369 = sand.u32 %s35, 1
          %s370 = scalar_lea.sflag [#allocation4], %s369
          %s371 = sand.u32 %s35, 1
          %s372 = smul.addr %s371, 256
          %s373 = scalar_lea.vmem [#allocation3], %s372
          %s375 = ssub.s32 4096, 4096
          %376 = vsyncadd %s370, %s375
          %s377 = smul.addr %s25, 32
          %s378 = smul.addr %s377, 128
          %s379 = scalar_lea.hbm %s0, %s378
          %s380 = sshll.u32 %s373, 4
          %s381 = int_to_ptr.vmem [resolvable:$true] %s380
          %386 = dma.hbm_to_vmem [thread:$0]  %s379, 4096, %s381, %s370, 128, 128, 8
        $region60: #{tpu_custom_call.1} parent=55 // pred_fallthru
          _
      $region56: #{tpu_custom_call.1} parent=5 // pred_fallthru
        _
      %p387 = scmp.le.s32.totalorder 1, %s25
      %p388 = scmp.lt.s32.totalorder %s25, 3
      %p389 = pnand %p387, %p388
      %p390 = pneg %p389
      // Predicated region
      $region61: #{tpu_custom_call.1} parent=5 // pred_check
        _
      $region62: #{tpu_custom_call.1} parent=5 // pred_check_branch
        %392 = sbr.rel (%p389) target = $region64
      $region63: #{tpu_custom_call.1} parent=5 // pred_region
        %s393 = ssub.s32 %s25, 1
        %s394 = sand.u32 %s38, 1
        %s395 = scalar_lea.sflag [#allocation4], %s394
        %s396 = sand.u32 %s38, 1
        %s397 = smul.addr %s396, 256
        %s398 = scalar_lea.vmem [#allocation3], %s397
        // Predicated region
        $region65: #{tpu_custom_call.1} parent=63 // pred_check
          %p399 = pneg %p51
        $region66: #{tpu_custom_call.1} parent=63 // pred_check_branch
          %401 = sbr.rel (%p399) target = $region68
        $region67: #{tpu_custom_call.1} parent=63 // pred_region
          %402 = dma.done %s395, 4096
        $region68: #{tpu_custom_call.1} parent=63 // pred_fallthru
          _
        // Predicated region
        $region69: #{tpu_custom_call.1} parent=63 // pred_check
          %p403 = pneg %p72
        $region70: #{tpu_custom_call.1} parent=63 // pred_check_branch
          %405 = sbr.rel (%p403) target = $region72
        $region71: #{tpu_custom_call.1} parent=63 // pred_region
          %406 = dma.done [#allocation7], 896
        $region72: #{tpu_custom_call.1} parent=63 // pred_fallthru
          _
        // Predicated region
        $region73: #{tpu_custom_call.1} parent=63 // pred_check
          %p407 = pneg %p156
        $region74: #{tpu_custom_call.1} parent=63 // pred_check_branch
          %409 = sbr.rel (%p407) target = $region76
        $region75: #{tpu_custom_call.1} parent=63 // pred_region
          %410 = dma.done [#allocation7], 1024
        $region76: #{tpu_custom_call.1} parent=63 // pred_fallthru
          _
        // Predicated region
        $region77: #{tpu_custom_call.1} parent=63 // pred_check
          %p411 = pneg %p240
        $region78: #{tpu_custom_call.1} parent=63 // pred_check_branch
          %413 = sbr.rel (%p411) target = $region80
        $region79: #{tpu_custom_call.1} parent=63 // pred_region
          %414 = dma.done [#allocation10], 1024
        $region80: #{tpu_custom_call.1} parent=63 // pred_fallthru
          _
        %s415 = sand.u32 %s38, 1
        %s416 = scalar_lea.sflag [#allocation4], %s415
        %s417 = sand.u32 %s38, 1
        %s418 = smul.addr %s417, 256
        %s419 = scalar_lea.vmem [#allocation3], %s418
        %p420 = pneg %p51
        %p421 = pneg %p48
        %p422 = pneg %p72
        %p423 = pneg %p69
        %p424 = pneg %p93
        %p425 = pneg %p90
        %p426 = pneg %p114
        %p427 = pneg %p111
        %p428 = pneg %p135
        %p429 = pneg %p132
        %p430 = pneg %p156
        %p431 = pneg %p153
        %p432 = pneg %p177
        %p433 = pneg %p174
        %p434 = pneg %p198
        %p435 = pneg %p195
        %p436 = pneg %p219
        %p437 = pneg %p216
        %p438 = pneg %p240
        %p439 = pneg %p237
        %p440 = pneg %p261
        %p441 = pneg %p258
        %p442 = pneg %p287
        %p443 = pneg %p284
        %s444 = sand.u32 %s274, 1
        %s445 = scalar_lea.sflag [#allocation5], %s444
        %s446 = sand.u32 %s274, 1
        %s447 = smul.addr %s446, 256
        %s448 = scalar_lea.vmem [#allocation11], %s447
        %450 = vst [vmem:[#allocation2] sm:$0xff] 0.0
        %451 = vst [vmem:[#allocation2 + $0x8] sm:$0xff] 0.0
        %452 = vst [vmem:[#allocation2 + $0x10] sm:$0x3f] 0.0
        %453 = vst [vmem:[#allocation2 + $0x18] sm:$0xff] 0.0
        %454 = vst [vmem:[#allocation2 + $0x20] sm:$0xff] 0.0
        %455 = vst [vmem:[#allocation2 + $0x28] sm:$0x3f] 0.0
        %456 = vst [vmem:[#allocation2 + $0x30] sm:$0xff] 0.0
        %457 = vst [vmem:[#allocation2 + $0x38] sm:$0xff] 0.0
        %458 = vst [vmem:[#allocation2 + $0x40] sm:$0x3f] 0.0
        %s459 = scalar_lea.vmem [#allocation2], 456
        %460 = vst [vmem:[%s459] sm:$0xff] 0.0
        %461 = vst [vmem:[%s459 + $0x8] sm:$0xff] 0.0
        %462 = vst [vmem:[%s459 + $0x10] sm:$0x3f] 0.0
        %463 = vst [vmem:[%s459 + $0x18] sm:$0xff] 0.0
        %464 = vst [vmem:[%s459 + $0x20] sm:$0xff] 0.0
        %465 = vst [vmem:[%s459 + $0x28] sm:$0x3f] 0.0
        %466 = vst [vmem:[%s459 + $0x30] sm:$0xff] 0.0
        %467 = vst [vmem:[%s459 + $0x38] sm:$0xff] 0.0
        %468 = vst [vmem:[%s459 + $0x40] sm:$0x3f] 0.0
        %s469 = scalar_lea.vmem [#allocation2], 72
        %470 = vst [vmem:[%s469] sm:$0x7] 0.0
        %471 = vst [vmem:[%s469 + $0x18] sm:$0x7] 0.0
        %472 = vst [vmem:[%s469 + $0x30] sm:$0x7] 0.0
        %473 = vst [vmem:[%s469 + $0x48] sm:$0x7] 0.0
        %474 = vst [vmem:[%s469 + $0x60] sm:$0x7] 0.0
        %475 = vst [vmem:[%s469 + $0x78] sm:$0x7] 0.0
        %476 = vst [vmem:[%s469 + $0x90] sm:$0x7] 0.0
        %477 = vst [vmem:[%s469 + $0xa8] sm:$0x7] 0.0
        %478 = vst [vmem:[%s469 + $0xc0] sm:$0x7] 0.0
        %479 = vst [vmem:[%s469 + $0xd8] sm:$0x7] 0.0
        %480 = vst [vmem:[%s469 + $0xf0] sm:$0x7] 0.0
        %481 = vst [vmem:[%s469 + $0x108] sm:$0x7] 0.0
        %482 = vst [vmem:[%s469 + $0x120] sm:$0x7] 0.0
        %483 = vst [vmem:[%s469 + $0x138] sm:$0x7] 0.0
        %484 = vst [vmem:[%s469 + $0x150] sm:$0x7] 0.0
        %485 = vst [vmem:[%s469 + $0x168] sm:$0x7] 0.0
        %486 = vst [vmem:[%s469 + $0x13] sm:$0x7] 0.0
        %487 = vst [vmem:[%s469 + $0x2b] sm:$0x7] 0.0
        %488 = vst [vmem:[%s469 + $0x43] sm:$0x7] 0.0
        %489 = vst [vmem:[%s469 + $0x5b] sm:$0x7] 0.0
        %490 = vst [vmem:[%s469 + $0x73] sm:$0x7] 0.0
        %491 = vst [vmem:[%s469 + $0x8b] sm:$0x7] 0.0
        %492 = vst [vmem:[%s469 + $0xa3] sm:$0x7] 0.0
        %493 = vst [vmem:[%s469 + $0xbb] sm:$0x7] 0.0
        %494 = vst [vmem:[%s469 + $0xd3] sm:$0x7] 0.0
        %495 = vst [vmem:[%s469 + $0xeb] sm:$0x7] 0.0
        %496 = vst [vmem:[%s469 + $0x103] sm:$0x7] 0.0
        %497 = vst [vmem:[%s469 + $0x11b] sm:$0x7] 0.0
        %498 = vst [vmem:[%s469 + $0x133] sm:$0x7] 0.0
        %499 = vst [vmem:[%s469 + $0x14b] sm:$0x7] 0.0
        %500 = vst [vmem:[%s469 + $0x163] sm:$0x7] 0.0
        %501 = vst [vmem:[%s469 + $0x17b] sm:$0x7] 0.0
        %v502 = vld [vmem:[%s398] sm:$0xff]
        %v503 = vld [vmem:[%s398 + $0x8] sm:$0xff]
        %v504 = vld [vmem:[%s398 + $0x10] sm:$0xff]
        %v505 = vld [vmem:[%s398 + $0x18] sm:$0xff]
        %v506 = vld [vmem:[%s398 + $0x20] sm:$0xff]
        %v507 = vld [vmem:[%s398 + $0x28] sm:$0xff]
        %v508 = vld [vmem:[%s398 + $0x30] sm:$0xff]
        %v509 = vld [vmem:[%s398 + $0x38] sm:$0xff]
        %v510 = vld [vmem:[%s398 + $0x40] sm:$0xff]
        %v511 = vld [vmem:[%s398 + $0x48] sm:$0xff]
        %v512 = vld [vmem:[%s398 + $0x50] sm:$0xff]
        %v513 = vld [vmem:[%s398 + $0x58] sm:$0xff]
        %v514 = vld [vmem:[%s398 + $0x60] sm:$0xff]
        %v515 = vld [vmem:[%s398 + $0x68] sm:$0xff]
        %v516 = vld [vmem:[%s398 + $0x70] sm:$0xff]
        %v517 = vld [vmem:[%s398 + $0x78] sm:$0xff]
        %v518 = vld [vmem:[%s398 + $0x80] sm:$0xff]
        %v519 = vld [vmem:[%s398 + $0x88] sm:$0xff]
        %v520 = vld [vmem:[%s398 + $0x90] sm:$0xff]
        %v521 = vld [vmem:[%s398 + $0x98] sm:$0xff]
        %v522 = vld [vmem:[%s398 + $0xa0] sm:$0xff]
        %v523 = vld [vmem:[%s398 + $0xa8] sm:$0xff]
        %v524 = vld [vmem:[%s398 + $0xb0] sm:$0xff]
        %v525 = vld [vmem:[%s398 + $0xb8] sm:$0xff]
        %v526 = vld [vmem:[%s398 + $0xc0] sm:$0xff]
        %v527 = vld [vmem:[%s398 + $0xc8] sm:$0xff]
        %v528 = vld [vmem:[%s398 + $0xd0] sm:$0xff]
        %v529 = vld [vmem:[%s398 + $0xd8] sm:$0xff]
        %v530 = vld [vmem:[%s398 + $0xe0] sm:$0xff]
        %v531 = vld [vmem:[%s398 + $0xe8] sm:$0xff]
        %v532 = vld [vmem:[%s398 + $0xf0] sm:$0xff]
        %v533 = vld [vmem:[%s398 + $0xf8] sm:$0xff]
        %534 = vst [vmem:[%s469 + $0x3] sm:$0xff] %v502
        %535 = vst [vmem:[%s469 + $0xb] sm:$0xff] %v503
        %536 = vst [vmem:[%s469 + $0x1b] sm:$0xff] %v504
        %537 = vst [vmem:[%s469 + $0x23] sm:$0xff] %v505
        %538 = vst [vmem:[%s469 + $0x33] sm:$0xff] %v506
        %539 = vst [vmem:[%s469 + $0x3b] sm:$0xff] %v507
        %540 = vst [vmem:[%s469 + $0x4b] sm:$0xff] %v508
        %541 = vst [vmem:[%s469 + $0x53] sm:$0xff] %v509
        %542 = vst [vmem:[%s469 + $0x63] sm:$0xff] %v510
        %543 = vst [vmem:[%s469 + $0x6b] sm:$0xff] %v511
        %544 = vst [vmem:[%s469 + $0x7b] sm:$0xff] %v512
        %545 = vst [vmem:[%s469 + $0x83] sm:$0xff] %v513
        %546 = vst [vmem:[%s469 + $0x93] sm:$0xff] %v514
        %547 = vst [vmem:[%s469 + $0x9b] sm:$0xff] %v515
        %548 = vst [vmem:[%s469 + $0xab] sm:$0xff] %v516
        %549 = vst [vmem:[%s469 + $0xb3] sm:$0xff] %v517
        %550 = vst [vmem:[%s469 + $0xc3] sm:$0xff] %v518
        %551 = vst [vmem:[%s469 + $0xcb] sm:$0xff] %v519
        %552 = vst [vmem:[%s469 + $0xdb] sm:$0xff] %v520
        %553 = vst [vmem:[%s469 + $0xe3] sm:$0xff] %v521
        %554 = vst [vmem:[%s469 + $0xf3] sm:$0xff] %v522
        %555 = vst [vmem:[%s469 + $0xfb] sm:$0xff] %v523
        %556 = vst [vmem:[%s469 + $0x10b] sm:$0xff] %v524
        %557 = vst [vmem:[%s469 + $0x113] sm:$0xff] %v525
        %558 = vst [vmem:[%s469 + $0x123] sm:$0xff] %v526
        %559 = vst [vmem:[%s469 + $0x12b] sm:$0xff] %v527
        %560 = vst [vmem:[%s469 + $0x13b] sm:$0xff] %v528
        %561 = vst [vmem:[%s469 + $0x143] sm:$0xff] %v529
        %562 = vst [vmem:[%s469 + $0x153] sm:$0xff] %v530
        %563 = vst [vmem:[%s469 + $0x15b] sm:$0xff] %v531
        %564 = vst [vmem:[%s469 + $0x16b] sm:$0xff] %v532
        %565 = vst [vmem:[%s469 + $0x173] sm:$0xff] %v533
        %v566 = vld [vmem:[%s2] sm:$0x1]
        %v568 = vlaneseq
        %v569 = vshrl.u32 %v568, 7
        %v570 = vsub.s32 0, %v569
        %v571 = vrot.slane %v566, %v570
        %v573 = vadd.f32 %v571, 0.0
        %v574 = vld [vmem:[#allocation2] sm:$0xff]
        %v575 = vld [vmem:[#allocation2 + $0x8] sm:$0xff]
        %v576 = vld [vmem:[#allocation2 + $0x18] sm:$0xff]
        %v577 = vld [vmem:[#allocation2 + $0x20] sm:$0xff]
        %v578 = vld [vmem:[#allocation2 + $0x30] sm:$0xff]
        %v579 = vld [vmem:[#allocation2 + $0x38] sm:$0xff]
        %v580 = vld [vmem:[#allocation2 + $0x48] sm:$0xff]
        %v581 = vld [vmem:[#allocation2 + $0x50] sm:$0xff]
        %v582 = vld [vmem:[#allocation2 + $0x60] sm:$0xff]
        %v583 = vld [vmem:[#allocation2 + $0x68] sm:$0xff]
        %v584 = vld [vmem:[#allocation2 + $0x78] sm:$0xff]
        %v585 = vld [vmem:[#allocation2 + $0x80] sm:$0xff]
        %v586 = vld [vmem:[#allocation2 + $0x90] sm:$0xff]
        %v587 = vld [vmem:[#allocation2 + $0x98] sm:$0xff]
        %v588 = vld [vmem:[#allocation2 + $0xa8] sm:$0xff]
        %v589 = vld [vmem:[#allocation2 + $0xb0] sm:$0xff]
        %v590 = vld [vmem:[#allocation2 + $0xc0] sm:$0xff]
        %v591 = vld [vmem:[#allocation2 + $0xc8] sm:$0xff]
        %v592 = vld [vmem:[#allocation2 + $0xd8] sm:$0xff]
        %v593 = vld [vmem:[#allocation2 + $0xe0] sm:$0xff]
        %v594 = vld [vmem:[#allocation2 + $0xf0] sm:$0xff]
        %v595 = vld [vmem:[#allocation2 + $0xf8] sm:$0xff]
        %v596 = vld [vmem:[#allocation2 + $0x108] sm:$0xff]
        %v597 = vld [vmem:[#allocation2 + $0x110] sm:$0xff]
        %v598 = vld [vmem:[#allocation2 + $0x120] sm:$0xff]
        %v599 = vld [vmem:[#allocation2 + $0x128] sm:$0xff]
        %v600 = vld [vmem:[#allocation2 + $0x138] sm:$0xff]
        %v601 = vld [vmem:[#allocation2 + $0x140] sm:$0xff]
        %v602 = vld [vmem:[#allocation2 + $0x150] sm:$0xff]
        %v603 = vld [vmem:[#allocation2 + $0x158] sm:$0xff]
        %v604 = vld [vmem:[#allocation2 + $0x168] sm:$0xff]
        %v605 = vld [vmem:[#allocation2 + $0x170] sm:$0xff]
        %v606 = vld [vmem:[#allocation2 + $0x180] sm:$0xff]
        %v607 = vld [vmem:[#allocation2 + $0x188] sm:$0xff]
        %v608 = vld [vmem:[#allocation2 + $0x198] sm:$0xff]
        %v609 = vld [vmem:[#allocation2 + $0x1a0] sm:$0xff]
        %v610 = vld [vmem:[#allocation2 + $0x1b0] sm:$0xff]
        %v611 = vld [vmem:[#allocation2 + $0x1b8] sm:$0xff]
        %v612 = vld [vmem:[#allocation2 + $0x1c8] sm:$0xff]
        %v613 = vld [vmem:[#allocation2 + $0x1d0] sm:$0xff]
        %v614 = vld [vmem:[#allocation2 + $0x1e0] sm:$0xff]
        %v615 = vld [vmem:[#allocation2 + $0x1e8] sm:$0xff]
        %v616 = vld [vmem:[#allocation2 + $0x1f8] sm:$0xff]
        %v617 = vld [vmem:[#allocation2 + $0x200] sm:$0xff]
        %v618 = vld [vmem:[#allocation6] sm:$0x1]
        %v619 = vlaneseq
        %v620 = vshrl.u32 %v619, 7
        %v621 = vsub.s32 0, %v620
        %v622 = vrot.slane %v618, %v621
        %v623 = vmul.f32 %v574, %v622
        %v624 = vmul.f32 %v575, %v622
        %v625 = vmul.f32 %v576, %v622
        %v626 = vmul.f32 %v577, %v622
        %v627 = vmul.f32 %v578, %v622
        %v628 = vmul.f32 %v579, %v622
        %v629 = vmul.f32 %v580, %v622
        %v630 = vmul.f32 %v581, %v622
        %v631 = vmul.f32 %v582, %v622
        %v632 = vmul.f32 %v583, %v622
        %v633 = vmul.f32 %v584, %v622
        %v634 = vmul.f32 %v585, %v622
        %v635 = vmul.f32 %v586, %v622
        %v636 = vmul.f32 %v587, %v622
        %v637 = vmul.f32 %v588, %v622
        %v638 = vmul.f32 %v589, %v622
        %v639 = vmul.f32 %v590, %v622
        %v640 = vmul.f32 %v591, %v622
        %v641 = vmul.f32 %v592, %v622
        %v642 = vmul.f32 %v593, %v622
        %v643 = vmul.f32 %v594, %v622
        %v644 = vmul.f32 %v595, %v622
        %v645 = vmul.f32 %v596, %v622
        %v646 = vmul.f32 %v597, %v622
        %v647 = vmul.f32 %v598, %v622
        %v648 = vmul.f32 %v599, %v622
        %v649 = vmul.f32 %v600, %v622
        %v650 = vmul.f32 %v601, %v622
        %v651 = vmul.f32 %v602, %v622
        %v652 = vmul.f32 %v603, %v622
        %v653 = vmul.f32 %v604, %v622
        %v654 = vmul.f32 %v605, %v622
        %v655 = vadd.f32 %v573, %v623
        %v656 = vadd.f32 %v573, %v624
        %v657 = vadd.f32 %v573, %v625
        %v658 = vadd.f32 %v573, %v626
        %v659 = vadd.f32 %v573, %v627
        %v660 = vadd.f32 %v573, %v628
        %v661 = vadd.f32 %v573, %v629
        %v662 = vadd.f32 %v573, %v630
        %v663 = vadd.f32 %v573, %v631
        %v664 = vadd.f32 %v573, %v632
        %v665 = vadd.f32 %v573, %v633
        %v666 = vadd.f32 %v573, %v634
        %v667 = vadd.f32 %v573, %v635
        %v668 = vadd.f32 %v573, %v636
        %v669 = vadd.f32 %v573, %v637
        %v670 = vadd.f32 %v573, %v638
        %v671 = vadd.f32 %v573, %v639
        %v672 = vadd.f32 %v573, %v640
        %v673 = vadd.f32 %v573, %v641
        %v674 = vadd.f32 %v573, %v642
        %v675 = vadd.f32 %v573, %v643
        %v676 = vadd.f32 %v573, %v644
        %v677 = vadd.f32 %v573, %v645
        %v678 = vadd.f32 %v573, %v646
        %v679 = vadd.f32 %v573, %v647
        %v680 = vadd.f32 %v573, %v648
        %v681 = vadd.f32 %v573, %v649
        %v682 = vadd.f32 %v573, %v650
        %v683 = vadd.f32 %v573, %v651
        %v684 = vadd.f32 %v573, %v652
        %v685 = vadd.f32 %v573, %v653
        %v686 = vadd.f32 %v573, %v654
        %v687 = vld [vmem:[#allocation6 + $0x7] sm:$0x1]
        %v688 = vlaneseq
        %v689 = vshrl.u32 %v688, 7
        %v690 = vsub.s32 0, %v689
        %v691 = vrot.slane %v687, %v690
        %v692 = vmul.f32 %v576, %v691
        %v693 = vmul.f32 %v577, %v691
        %v694 = vmul.f32 %v578, %v691
        %v695 = vmul.f32 %v579, %v691
        %v696 = vmul.f32 %v580, %v691
        %v697 = vmul.f32 %v581, %v691
        %v698 = vmul.f32 %v582, %v691
        %v699 = vmul.f32 %v583, %v691
        %v700 = vmul.f32 %v584, %v691
        %v701 = vmul.f32 %v585, %v691
        %v702 = vmul.f32 %v586, %v691
        %v703 = vmul.f32 %v587, %v691
        %v704 = vmul.f32 %v588, %v691
        %v705 = vmul.f32 %v589, %v691
        %v706 = vmul.f32 %v590, %v691
        %v707 = vmul.f32 %v591, %v691
        %v708 = vmul.f32 %v592, %v691
        %v709 = vmul.f32 %v593, %v691
        %v710 = vmul.f32 %v594, %v691
        %v711 = vmul.f32 %v595, %v691
        %v712 = vmul.f32 %v596, %v691
        %v713 = vmul.f32 %v597, %v691
        %v714 = vmul.f32 %v598, %v691
        %v715 = vmul.f32 %v599, %v691
        %v716 = vmul.f32 %v600, %v691
        %v717 = vmul.f32 %v601, %v691
        %v718 = vmul.f32 %v602, %v691
        %v719 = vmul.f32 %v603, %v691
        %v720 = vmul.f32 %v604, %v691
        %v721 = vmul.f32 %v605, %v691
        %v722 = vmul.f32 %v606, %v691
        %v723 = vmul.f32 %v607, %v691
        %v724 = vadd.f32 %v655, %v692
        %v725 = vadd.f32 %v656, %v693
        %v726 = vadd.f32 %v657, %v694
        %v727 = vadd.f32 %v658, %v695
        %v728 = vadd.f32 %v659, %v696
        %v729 = vadd.f32 %v660, %v697
        %v730 = vadd.f32 %v661, %v698
        %v731 = vadd.f32 %v662, %v699
        %v732 = vadd.f32 %v663, %v700
        %v733 = vadd.f32 %v664, %v701
        %v734 = vadd.f32 %v665, %v702
        %v735 = vadd.f32 %v666, %v703
        %v736 = vadd.f32 %v667, %v704
        %v737 = vadd.f32 %v668, %v705
        %v738 = vadd.f32 %v669, %v706
        %v739 = vadd.f32 %v670, %v707
        %v740 = vadd.f32 %v671, %v708
        %v741 = vadd.f32 %v672, %v709
        %v742 = vadd.f32 %v673, %v710
        %v743 = vadd.f32 %v674, %v711
        %v744 = vadd.f32 %v675, %v712
        %v745 = vadd.f32 %v676, %v713
        %v746 = vadd.f32 %v677, %v714
        %v747 = vadd.f32 %v678, %v715
        %v748 = vadd.f32 %v679, %v716
        %v749 = vadd.f32 %v680, %v717
        %v750 = vadd.f32 %v681, %v718
        %v751 = vadd.f32 %v682, %v719
        %v752 = vadd.f32 %v683, %v720
        %v753 = vadd.f32 %v684, %v721
        %v754 = vadd.f32 %v685, %v722
        %v755 = vadd.f32 %v686, %v723
        %v756 = vld [vmem:[#allocation6 + $0xe] sm:$0x1]
        %v757 = vlaneseq
        %v758 = vshrl.u32 %v757, 7
        %v759 = vsub.s32 0, %v758
        %v760 = vrot.slane %v756, %v759
        %v761 = vmul.f32 %v578, %v760
        %v762 = vmul.f32 %v579, %v760
        %v763 = vmul.f32 %v580, %v760
        %v764 = vmul.f32 %v581, %v760
        %v765 = vmul.f32 %v582, %v760
        %v766 = vmul.f32 %v583, %v760
        %v767 = vmul.f32 %v584, %v760
        %v768 = vmul.f32 %v585, %v760
        %v769 = vmul.f32 %v586, %v760
        %v770 = vmul.f32 %v587, %v760
        %v771 = vmul.f32 %v588, %v760
        %v772 = vmul.f32 %v589, %v760
        %v773 = vmul.f32 %v590, %v760
        %v774 = vmul.f32 %v591, %v760
        %v775 = vmul.f32 %v592, %v760
        %v776 = vmul.f32 %v593, %v760
        %v777 = vmul.f32 %v594, %v760
        %v778 = vmul.f32 %v595, %v760
        %v779 = vmul.f32 %v596, %v760
        %v780 = vmul.f32 %v597, %v760
        %v781 = vmul.f32 %v598, %v760
        %v782 = vmul.f32 %v599, %v760
        %v783 = vmul.f32 %v600, %v760
        %v784 = vmul.f32 %v601, %v760
        %v785 = vmul.f32 %v602, %v760
        %v786 = vmul.f32 %v603, %v760
        %v787 = vmul.f32 %v604, %v760
        %v788 = vmul.f32 %v605, %v760
        %v789 = vmul.f32 %v606, %v760
        %v790 = vmul.f32 %v607, %v760
        %v791 = vmul.f32 %v608, %v760
        %v792 = vmul.f32 %v609, %v760
        %v793 = vadd.f32 %v724, %v761
        %v794 = vadd.f32 %v725, %v762
        %v795 = vadd.f32 %v726, %v763
        %v796 = vadd.f32 %v727, %v764
        %v797 = vadd.f32 %v728, %v765
        %v798 = vadd.f32 %v729, %v766
        %v799 = vadd.f32 %v730, %v767
        %v800 = vadd.f32 %v731, %v768
        %v801 = vadd.f32 %v732, %v769
        %v802 = vadd.f32 %v733, %v770
        %v803 = vadd.f32 %v734, %v771
        %v804 = vadd.f32 %v735, %v772
        %v805 = vadd.f32 %v736, %v773
        %v806 = vadd.f32 %v737, %v774
        %v807 = vadd.f32 %v738, %v775
        %v808 = vadd.f32 %v739, %v776
        %v809 = vadd.f32 %v740, %v777
        %v810 = vadd.f32 %v741, %v778
        %v811 = vadd.f32 %v742, %v779
        %v812 = vadd.f32 %v743, %v780
        %v813 = vadd.f32 %v744, %v781
        %v814 = vadd.f32 %v745, %v782
        %v815 = vadd.f32 %v746, %v783
        %v816 = vadd.f32 %v747, %v784
        %v817 = vadd.f32 %v748, %v785
        %v818 = vadd.f32 %v749, %v786
        %v819 = vadd.f32 %v750, %v787
        %v820 = vadd.f32 %v751, %v788
        %v821 = vadd.f32 %v752, %v789
        %v822 = vadd.f32 %v753, %v790
        %v823 = vadd.f32 %v754, %v791
        %v824 = vadd.f32 %v755, %v792
        %v825 = vld [vmem:[#allocation6 + $0x15] sm:$0x1]
        %v826 = vlaneseq
        %v827 = vshrl.u32 %v826, 7
        %v828 = vsub.s32 0, %v827
        %v829 = vrot.slane %v825, %v828
        %v830 = vmul.f32 %v580, %v829
        %v831 = vmul.f32 %v581, %v829
        %v832 = vmul.f32 %v582, %v829
        %v833 = vmul.f32 %v583, %v829
        %v834 = vmul.f32 %v584, %v829
        %v835 = vmul.f32 %v585, %v829
        %v836 = vmul.f32 %v586, %v829
        %v837 = vmul.f32 %v587, %v829
        %v838 = vmul.f32 %v588, %v829
        %v839 = vmul.f32 %v589, %v829
        %v840 = vmul.f32 %v590, %v829
        %v841 = vmul.f32 %v591, %v829
        %v842 = vmul.f32 %v592, %v829
        %v843 = vmul.f32 %v593, %v829
        %v844 = vmul.f32 %v594, %v829
        %v845 = vmul.f32 %v595, %v829
        %v846 = vmul.f32 %v596, %v829
        %v847 = vmul.f32 %v597, %v829
        %v848 = vmul.f32 %v598, %v829
        %v849 = vmul.f32 %v599, %v829
        %v850 = vmul.f32 %v600, %v829
        %v851 = vmul.f32 %v601, %v829
        %v852 = vmul.f32 %v602, %v829
        %v853 = vmul.f32 %v603, %v829
        %v854 = vmul.f32 %v604, %v829
        %v855 = vmul.f32 %v605, %v829
        %v856 = vmul.f32 %v606, %v829
        %v857 = vmul.f32 %v607, %v829
        %v858 = vmul.f32 %v608, %v829
        %v859 = vmul.f32 %v609, %v829
        %v860 = vmul.f32 %v610, %v829
        %v861 = vmul.f32 %v611, %v829
        %v862 = vadd.f32 %v793, %v830
        %v863 = vadd.f32 %v794, %v831
        %v864 = vadd.f32 %v795, %v832
        %v865 = vadd.f32 %v796, %v833
        %v866 = vadd.f32 %v797, %v834
        %v867 = vadd.f32 %v798, %v835
        %v868 = vadd.f32 %v799, %v836
        %v869 = vadd.f32 %v800, %v837
        %v870 = vadd.f32 %v801, %v838
        %v871 = vadd.f32 %v802, %v839
        %v872 = vadd.f32 %v803, %v840
        %v873 = vadd.f32 %v804, %v841
        %v874 = vadd.f32 %v805, %v842
        %v875 = vadd.f32 %v806, %v843
        %v876 = vadd.f32 %v807, %v844
        %v877 = vadd.f32 %v808, %v845
        %v878 = vadd.f32 %v809, %v846
        %v879 = vadd.f32 %v810, %v847
        %v880 = vadd.f32 %v811, %v848
        %v881 = vadd.f32 %v812, %v849
        %v882 = vadd.f32 %v813, %v850
        %v883 = vadd.f32 %v814, %v851
        %v884 = vadd.f32 %v815, %v852
        %v885 = vadd.f32 %v816, %v853
        %v886 = vadd.f32 %v817, %v854
        %v887 = vadd.f32 %v818, %v855
        %v888 = vadd.f32 %v819, %v856
        %v889 = vadd.f32 %v820, %v857
        %v890 = vadd.f32 %v821, %v858
        %v891 = vadd.f32 %v822, %v859
        %v892 = vadd.f32 %v823, %v860
        %v893 = vadd.f32 %v824, %v861
        %v894 = vld [vmem:[#allocation6 + $0x1c] sm:$0x1]
        %v895 = vlaneseq
        %v896 = vshrl.u32 %v895, 7
        %v897 = vsub.s32 0, %v896
        %v898 = vrot.slane %v894, %v897
        %v899 = vmul.f32 %v582, %v898
        %v900 = vmul.f32 %v583, %v898
        %v901 = vmul.f32 %v584, %v898
        %v902 = vmul.f32 %v585, %v898
        %v903 = vmul.f32 %v586, %v898
        %v904 = vmul.f32 %v587, %v898
        %v905 = vmul.f32 %v588, %v898
        %v906 = vmul.f32 %v589, %v898
        %v907 = vmul.f32 %v590, %v898
        %v908 = vmul.f32 %v591, %v898
        %v909 = vmul.f32 %v592, %v898
        %v910 = vmul.f32 %v593, %v898
        %v911 = vmul.f32 %v594, %v898
        %v912 = vmul.f32 %v595, %v898
        %v913 = vmul.f32 %v596, %v898
        %v914 = vmul.f32 %v597, %v898
        %v915 = vmul.f32 %v598, %v898
        %v916 = vmul.f32 %v599, %v898
        %v917 = vmul.f32 %v600, %v898
        %v918 = vmul.f32 %v601, %v898
        %v919 = vmul.f32 %v602, %v898
        %v920 = vmul.f32 %v603, %v898
        %v921 = vmul.f32 %v604, %v898
        %v922 = vmul.f32 %v605, %v898
        %v923 = vmul.f32 %v606, %v898
        %v924 = vmul.f32 %v607, %v898
        %v925 = vmul.f32 %v608, %v898
        %v926 = vmul.f32 %v609, %v898
        %v927 = vmul.f32 %v610, %v898
        %v928 = vmul.f32 %v611, %v898
        %v929 = vmul.f32 %v612, %v898
        %v930 = vmul.f32 %v613, %v898
        %v931 = vadd.f32 %v862, %v899
        %v932 = vadd.f32 %v863, %v900
        %v933 = vadd.f32 %v864, %v901
        %v934 = vadd.f32 %v865, %v902
        %v935 = vadd.f32 %v866, %v903
        %v936 = vadd.f32 %v867, %v904
        %v937 = vadd.f32 %v868, %v905
        %v938 = vadd.f32 %v869, %v906
        %v939 = vadd.f32 %v870, %v907
        %v940 = vadd.f32 %v871, %v908
        %v941 = vadd.f32 %v872, %v909
        %v942 = vadd.f32 %v873, %v910
        %v943 = vadd.f32 %v874, %v911
        %v944 = vadd.f32 %v875, %v912
        %v945 = vadd.f32 %v876, %v913
        %v946 = vadd.f32 %v877, %v914
        %v947 = vadd.f32 %v878, %v915
        %v948 = vadd.f32 %v879, %v916
        %v949 = vadd.f32 %v880, %v917
        %v950 = vadd.f32 %v881, %v918
        %v951 = vadd.f32 %v882, %v919
        %v952 = vadd.f32 %v883, %v920
        %v953 = vadd.f32 %v884, %v921
        %v954 = vadd.f32 %v885, %v922
        %v955 = vadd.f32 %v886, %v923
        %v956 = vadd.f32 %v887, %v924
        %v957 = vadd.f32 %v888, %v925
        %v958 = vadd.f32 %v889, %v926
        %v959 = vadd.f32 %v890, %v927
        %v960 = vadd.f32 %v891, %v928
        %v961 = vadd.f32 %v892, %v929
        %v962 = vadd.f32 %v893, %v930
        %v963 = vld [vmem:[#allocation6 + $0x23] sm:$0x1]
        %v964 = vlaneseq
        %v965 = vshrl.u32 %v964, 7
        %v966 = vsub.s32 0, %v965
        %v967 = vrot.slane %v963, %v966
        %v968 = vmul.f32 %v584, %v967
        %v969 = vmul.f32 %v585, %v967
        %v970 = vmul.f32 %v586, %v967
        %v971 = vmul.f32 %v587, %v967
        %v972 = vmul.f32 %v588, %v967
        %v973 = vmul.f32 %v589, %v967
        %v974 = vmul.f32 %v590, %v967
        %v975 = vmul.f32 %v591, %v967
        %v976 = vmul.f32 %v592, %v967
        %v977 = vmul.f32 %v593, %v967
        %v978 = vmul.f32 %v594, %v967
        %v979 = vmul.f32 %v595, %v967
        %v980 = vmul.f32 %v596, %v967
        %v981 = vmul.f32 %v597, %v967
        %v982 = vmul.f32 %v598, %v967
        %v983 = vmul.f32 %v599, %v967
        %v984 = vmul.f32 %v600, %v967
        %v985 = vmul.f32 %v601, %v967
        %v986 = vmul.f32 %v602, %v967
        %v987 = vmul.f32 %v603, %v967
        %v988 = vmul.f32 %v604, %v967
        %v989 = vmul.f32 %v605, %v967
        %v990 = vmul.f32 %v606, %v967
        %v991 = vmul.f32 %v607, %v967
        %v992 = vmul.f32 %v608, %v967
        %v993 = vmul.f32 %v609, %v967
        %v994 = vmul.f32 %v610, %v967
        %v995 = vmul.f32 %v611, %v967
        %v996 = vmul.f32 %v612, %v967
        %v997 = vmul.f32 %v613, %v967
        %v998 = vmul.f32 %v614, %v967
        %v999 = vmul.f32 %v615, %v967
        %v1000 = vadd.f32 %v931, %v968
        %v1001 = vadd.f32 %v932, %v969
        %v1002 = vadd.f32 %v933, %v970
        %v1003 = vadd.f32 %v934, %v971
        %v1004 = vadd.f32 %v935, %v972
        %v1005 = vadd.f32 %v936, %v973
        %v1006 = vadd.f32 %v937, %v974
        %v1007 = vadd.f32 %v938, %v975
        %v1008 = vadd.f32 %v939, %v976
        %v1009 = vadd.f32 %v940, %v977
        %v1010 = vadd.f32 %v941, %v978
        %v1011 = vadd.f32 %v942, %v979
        %v1012 = vadd.f32 %v943, %v980
        %v1013 = vadd.f32 %v944, %v981
        %v1014 = vadd.f32 %v945, %v982
        %v1015 = vadd.f32 %v946, %v983
        %v1016 = vadd.f32 %v947, %v984
        %v1017 = vadd.f32 %v948, %v985
        %v1018 = vadd.f32 %v949, %v986
        %v1019 = vadd.f32 %v950, %v987
        %v1020 = vadd.f32 %v951, %v988
        %v1021 = vadd.f32 %v952, %v989
        %v1022 = vadd.f32 %v953, %v990
        %v1023 = vadd.f32 %v954, %v991
        %v1024 = vadd.f32 %v955, %v992
        %v1025 = vadd.f32 %v956, %v993
        %v1026 = vadd.f32 %v957, %v994
        %v1027 = vadd.f32 %v958, %v995
        %v1028 = vadd.f32 %v959, %v996
        %v1029 = vadd.f32 %v960, %v997
        %v1030 = vadd.f32 %v961, %v998
        %v1031 = vadd.f32 %v962, %v999
        %v1032 = vld [vmem:[#allocation6 + $0x2a] sm:$0x1]
        %v1033 = vlaneseq
        %v1034 = vshrl.u32 %v1033, 7
        %v1035 = vsub.s32 0, %v1034
        %v1036 = vrot.slane %v1032, %v1035
        %v1037 = vmul.f32 %v586, %v1036
        %v1038 = vmul.f32 %v587, %v1036
        %v1039 = vmul.f32 %v588, %v1036
        %v1040 = vmul.f32 %v589, %v1036
        %v1041 = vmul.f32 %v590, %v1036
        %v1042 = vmul.f32 %v591, %v1036
        %v1043 = vmul.f32 %v592, %v1036
        %v1044 = vmul.f32 %v593, %v1036
        %v1045 = vmul.f32 %v594, %v1036
        %v1046 = vmul.f32 %v595, %v1036
        %v1047 = vmul.f32 %v596, %v1036
        %v1048 = vmul.f32 %v597, %v1036
        %v1049 = vmul.f32 %v598, %v1036
        %v1050 = vmul.f32 %v599, %v1036
        %v1051 = vmul.f32 %v600, %v1036
        %v1052 = vmul.f32 %v601, %v1036
        %v1053 = vmul.f32 %v602, %v1036
        %v1054 = vmul.f32 %v603, %v1036
        %v1055 = vmul.f32 %v604, %v1036
        %v1056 = vmul.f32 %v605, %v1036
        %v1057 = vmul.f32 %v606, %v1036
        %v1058 = vmul.f32 %v607, %v1036
        %v1059 = vmul.f32 %v608, %v1036
        %v1060 = vmul.f32 %v609, %v1036
        %v1061 = vmul.f32 %v610, %v1036
        %v1062 = vmul.f32 %v611, %v1036
        %v1063 = vmul.f32 %v612, %v1036
        %v1064 = vmul.f32 %v613, %v1036
        %v1065 = vmul.f32 %v614, %v1036
        %v1066 = vmul.f32 %v615, %v1036
        %v1067 = vmul.f32 %v616, %v1036
        %v1068 = vmul.f32 %v617, %v1036
        %v1069 = vadd.f32 %v1000, %v1037
        %v1070 = vadd.f32 %v1001, %v1038
        %v1071 = vadd.f32 %v1002, %v1039
        %v1072 = vadd.f32 %v1003, %v1040
        %v1073 = vadd.f32 %v1004, %v1041
        %v1074 = vadd.f32 %v1005, %v1042
        %v1075 = vadd.f32 %v1006, %v1043
        %v1076 = vadd.f32 %v1007, %v1044
        %v1077 = vadd.f32 %v1008, %v1045
        %v1078 = vadd.f32 %v1009, %v1046
        %v1079 = vadd.f32 %v1010, %v1047
        %v1080 = vadd.f32 %v1011, %v1048
        %v1081 = vadd.f32 %v1012, %v1049
        %v1082 = vadd.f32 %v1013, %v1050
        %v1083 = vadd.f32 %v1014, %v1051
        %v1084 = vadd.f32 %v1015, %v1052
        %v1085 = vadd.f32 %v1016, %v1053
        %v1086 = vadd.f32 %v1017, %v1054
        %v1087 = vadd.f32 %v1018, %v1055
        %v1088 = vadd.f32 %v1019, %v1056
        %v1089 = vadd.f32 %v1020, %v1057
        %v1090 = vadd.f32 %v1021, %v1058
        %v1091 = vadd.f32 %v1022, %v1059
        %v1092 = vadd.f32 %v1023, %v1060
        %v1093 = vadd.f32 %v1024, %v1061
        %v1094 = vadd.f32 %v1025, %v1062
        %v1095 = vadd.f32 %v1026, %v1063
        %v1096 = vadd.f32 %v1027, %v1064
        %v1097 = vadd.f32 %v1028, %v1065
        %v1098 = vadd.f32 %v1029, %v1066
        %v1099 = vadd.f32 %v1030, %v1067
        %v1100 = vadd.f32 %v1031, %v1068
        %v1101 = vld [vmem:[#allocation2 + $0x1] sm:$0xff]
        %v1102 = vld [vmem:[#allocation2 + $0x9] sm:$0xff]
        %v1103 = vld [vmem:[#allocation2 + $0x19] sm:$0xff]
        %v1104 = vld [vmem:[#allocation2 + $0x21] sm:$0xff]
        %v1105 = vld [vmem:[#allocation2 + $0x31] sm:$0xff]
        %v1106 = vld [vmem:[#allocation2 + $0x39] sm:$0xff]
        %v1107 = vld [vmem:[#allocation2 + $0x49] sm:$0xff]
        %v1108 = vld [vmem:[#allocation2 + $0x51] sm:$0xff]
        %v1109 = vld [vmem:[#allocation2 + $0x61] sm:$0xff]
        %v1110 = vld [vmem:[#allocation2 + $0x69] sm:$0xff]
        %v1111 = vld [vmem:[#allocation2 + $0x79] sm:$0xff]
        %v1112 = vld [vmem:[#allocation2 + $0x81] sm:$0xff]
        %v1113 = vld [vmem:[#allocation2 + $0x91] sm:$0xff]
        %v1114 = vld [vmem:[#allocation2 + $0x99] sm:$0xff]
        %v1115 = vld [vmem:[#allocation2 + $0xa9] sm:$0xff]
        %v1116 = vld [vmem:[#allocation2 + $0xb1] sm:$0xff]
        %v1117 = vld [vmem:[#allocation2 + $0xc1] sm:$0xff]
        %v1118 = vld [vmem:[#allocation2 + $0xc9] sm:$0xff]
        %v1119 = vld [vmem:[#allocation2 + $0xd9] sm:$0xff]
        %v1120 = vld [vmem:[#allocation2 + $0xe1] sm:$0xff]
        %v1121 = vld [vmem:[#allocation2 + $0xf1] sm:$0xff]
        %v1122 = vld [vmem:[#allocation2 + $0xf9] sm:$0xff]
        %v1123 = vld [vmem:[#allocation2 + $0x109] sm:$0xff]
        %v1124 = vld [vmem:[#allocation2 + $0x111] sm:$0xff]
        %v1125 = vld [vmem:[#allocation2 + $0x121] sm:$0xff]
        %v1126 = vld [vmem:[#allocation2 + $0x129] sm:$0xff]
        %v1127 = vld [vmem:[#allocation2 + $0x139] sm:$0xff]
        %v1128 = vld [vmem:[#allocation2 + $0x141] sm:$0xff]
        %v1129 = vld [vmem:[#allocation2 + $0x151] sm:$0xff]
        %v1130 = vld [vmem:[#allocation2 + $0x159] sm:$0xff]
        %v1131 = vld [vmem:[#allocation2 + $0x169] sm:$0xff]
        %v1132 = vld [vmem:[#allocation2 + $0x171] sm:$0xff]
        %v1133 = vld [vmem:[#allocation2 + $0x181] sm:$0xff]
        %v1134 = vld [vmem:[#allocation2 + $0x189] sm:$0xff]
        %v1135 = vld [vmem:[#allocation2 + $0x199] sm:$0xff]
        %v1136 = vld [vmem:[#allocation2 + $0x1a1] sm:$0xff]
        %v1137 = vld [vmem:[#allocation2 + $0x1b1] sm:$0xff]
        %v1138 = vld [vmem:[#allocation2 + $0x1b9] sm:$0xff]
        %v1139 = vld [vmem:[#allocation2 + $0x1c9] sm:$0xff]
        %v1140 = vld [vmem:[#allocation2 + $0x1d1] sm:$0xff]
        %v1141 = vld [vmem:[#allocation2 + $0x1e1] sm:$0xff]
        %v1142 = vld [vmem:[#allocation2 + $0x1e9] sm:$0xff]
        %v1143 = vld [vmem:[#allocation2 + $0x1f9] sm:$0xff]
        %v1144 = vld [vmem:[#allocation2 + $0x201] sm:$0xff]
        %v1145 = vld [vmem:[#allocation6 + $0x1] sm:$0x1]
        %v1146 = vlaneseq
        %v1147 = vshrl.u32 %v1146, 7
        %v1148 = vsub.s32 0, %v1147
        %v1149 = vrot.slane %v1145, %v1148
        %v1150 = vmul.f32 %v1101, %v1149
        %v1151 = vmul.f32 %v1102, %v1149
        %v1152 = vmul.f32 %v1103, %v1149
        %v1153 = vmul.f32 %v1104, %v1149
        %v1154 = vmul.f32 %v1105, %v1149
        %v1155 = vmul.f32 %v1106, %v1149
        %v1156 = vmul.f32 %v1107, %v1149
        %v1157 = vmul.f32 %v1108, %v1149
        %v1158 = vmul.f32 %v1109, %v1149
        %v1159 = vmul.f32 %v1110, %v1149
        %v1160 = vmul.f32 %v1111, %v1149
        %v1161 = vmul.f32 %v1112, %v1149
        %v1162 = vmul.f32 %v1113, %v1149
        %v1163 = vmul.f32 %v1114, %v1149
        %v1164 = vmul.f32 %v1115, %v1149
        %v1165 = vmul.f32 %v1116, %v1149
        %v1166 = vmul.f32 %v1117, %v1149
        %v1167 = vmul.f32 %v1118, %v1149
        %v1168 = vmul.f32 %v1119, %v1149
        %v1169 = vmul.f32 %v1120, %v1149
        %v1170 = vmul.f32 %v1121, %v1149
        %v1171 = vmul.f32 %v1122, %v1149
        %v1172 = vmul.f32 %v1123, %v1149
        %v1173 = vmul.f32 %v1124, %v1149
        %v1174 = vmul.f32 %v1125, %v1149
        %v1175 = vmul.f32 %v1126, %v1149
        %v1176 = vmul.f32 %v1127, %v1149
        %v1177 = vmul.f32 %v1128, %v1149
        %v1178 = vmul.f32 %v1129, %v1149
        %v1179 = vmul.f32 %v1130, %v1149
        %v1180 = vmul.f32 %v1131, %v1149
        %v1181 = vmul.f32 %v1132, %v1149
        %v1182 = vadd.f32 %v1069, %v1150
        %v1183 = vadd.f32 %v1070, %v1151
        %v1184 = vadd.f32 %v1071, %v1152
        %v1185 = vadd.f32 %v1072, %v1153
        %v1186 = vadd.f32 %v1073, %v1154
        %v1187 = vadd.f32 %v1074, %v1155
        %v1188 = vadd.f32 %v1075, %v1156
        %v1189 = vadd.f32 %v1076, %v1157
        %v1190 = vadd.f32 %v1077, %v1158
        %v1191 = vadd.f32 %v1078, %v1159
        %v1192 = vadd.f32 %v1079, %v1160
        %v1193 = vadd.f32 %v1080, %v1161
        %v1194 = vadd.f32 %v1081, %v1162
        %v1195 = vadd.f32 %v1082, %v1163
        %v1196 = vadd.f32 %v1083, %v1164
        %v1197 = vadd.f32 %v1084, %v1165
        %v1198 = vadd.f32 %v1085, %v1166
        %v1199 = vadd.f32 %v1086, %v1167
        %v1200 = vadd.f32 %v1087, %v1168
        %v1201 = vadd.f32 %v1088, %v1169
        %v1202 = vadd.f32 %v1089, %v1170
        %v1203 = vadd.f32 %v1090, %v1171
        %v1204 = vadd.f32 %v1091, %v1172
        %v1205 = vadd.f32 %v1092, %v1173
        %v1206 = vadd.f32 %v1093, %v1174
        %v1207 = vadd.f32 %v1094, %v1175
        %v1208 = vadd.f32 %v1095, %v1176
        %v1209 = vadd.f32 %v1096, %v1177
        %v1210 = vadd.f32 %v1097, %v1178
        %v1211 = vadd.f32 %v1098, %v1179
        %v1212 = vadd.f32 %v1099, %v1180
        %v1213 = vadd.f32 %v1100, %v1181
        %v1214 = vld [vmem:[#allocation6 + $0x8] sm:$0x1]
        %v1215 = vlaneseq
        %v1216 = vshrl.u32 %v1215, 7
        %v1217 = vsub.s32 0, %v1216
        %v1218 = vrot.slane %v1214, %v1217
        %v1219 = vmul.f32 %v1103, %v1218
        %v1220 = vmul.f32 %v1104, %v1218
        %v1221 = vmul.f32 %v1105, %v1218
        %v1222 = vmul.f32 %v1106, %v1218
        %v1223 = vmul.f32 %v1107, %v1218
        %v1224 = vmul.f32 %v1108, %v1218
        %v1225 = vmul.f32 %v1109, %v1218
        %v1226 = vmul.f32 %v1110, %v1218
        %v1227 = vmul.f32 %v1111, %v1218
        %v1228 = vmul.f32 %v1112, %v1218
        %v1229 = vmul.f32 %v1113, %v1218
        %v1230 = vmul.f32 %v1114, %v1218
        %v1231 = vmul.f32 %v1115, %v1218
        %v1232 = vmul.f32 %v1116, %v1218
        %v1233 = vmul.f32 %v1117, %v1218
        %v1234 = vmul.f32 %v1118, %v1218
        %v1235 = vmul.f32 %v1119, %v1218
        %v1236 = vmul.f32 %v1120, %v1218
        %v1237 = vmul.f32 %v1121, %v1218
        %v1238 = vmul.f32 %v1122, %v1218
        %v1239 = vmul.f32 %v1123, %v1218
        %v1240 = vmul.f32 %v1124, %v1218
        %v1241 = vmul.f32 %v1125, %v1218
        %v1242 = vmul.f32 %v1126, %v1218
        %v1243 = vmul.f32 %v1127, %v1218
        %v1244 = vmul.f32 %v1128, %v1218
        %v1245 = vmul.f32 %v1129, %v1218
        %v1246 = vmul.f32 %v1130, %v1218
        %v1247 = vmul.f32 %v1131, %v1218
        %v1248 = vmul.f32 %v1132, %v1218
        %v1249 = vmul.f32 %v1133, %v1218
        %v1250 = vmul.f32 %v1134, %v1218
        %v1251 = vadd.f32 %v1182, %v1219
        %v1252 = vadd.f32 %v1183, %v1220
        %v1253 = vadd.f32 %v1184, %v1221
        %v1254 = vadd.f32 %v1185, %v1222
        %v1255 = vadd.f32 %v1186, %v1223
        %v1256 = vadd.f32 %v1187, %v1224
        %v1257 = vadd.f32 %v1188, %v1225
        %v1258 = vadd.f32 %v1189, %v1226
        %v1259 = vadd.f32 %v1190, %v1227
        %v1260 = vadd.f32 %v1191, %v1228
        %v1261 = vadd.f32 %v1192, %v1229
        %v1262 = vadd.f32 %v1193, %v1230
        %v1263 = vadd.f32 %v1194, %v1231
        %v1264 = vadd.f32 %v1195, %v1232
        %v1265 = vadd.f32 %v1196, %v1233
        %v1266 = vadd.f32 %v1197, %v1234
        %v1267 = vadd.f32 %v1198, %v1235
        %v1268 = vadd.f32 %v1199, %v1236
        %v1269 = vadd.f32 %v1200, %v1237
        %v1270 = vadd.f32 %v1201, %v1238
        %v1271 = vadd.f32 %v1202, %v1239
        %v1272 = vadd.f32 %v1203, %v1240
        %v1273 = vadd.f32 %v1204, %v1241
        %v1274 = vadd.f32 %v1205, %v1242
        %v1275 = vadd.f32 %v1206, %v1243
        %v1276 = vadd.f32 %v1207, %v1244
        %v1277 = vadd.f32 %v1208, %v1245
        %v1278 = vadd.f32 %v1209, %v1246
        %v1279 = vadd.f32 %v1210, %v1247
        %v1280 = vadd.f32 %v1211, %v1248
        %v1281 = vadd.f32 %v1212, %v1249
        %v1282 = vadd.f32 %v1213, %v1250
        %v1283 = vld [vmem:[#allocation6 + $0xf] sm:$0x1]
        %v1284 = vlaneseq
        %v1285 = vshrl.u32 %v1284, 7
        %v1286 = vsub.s32 0, %v1285
        %v1287 = vrot.slane %v1283, %v1286
        %v1288 = vmul.f32 %v1105, %v1287
        %v1289 = vmul.f32 %v1106, %v1287
        %v1290 = vmul.f32 %v1107, %v1287
        %v1291 = vmul.f32 %v1108, %v1287
        %v1292 = vmul.f32 %v1109, %v1287
        %v1293 = vmul.f32 %v1110, %v1287
        %v1294 = vmul.f32 %v1111, %v1287
        %v1295 = vmul.f32 %v1112, %v1287
        %v1296 = vmul.f32 %v1113, %v1287
        %v1297 = vmul.f32 %v1114, %v1287
        %v1298 = vmul.f32 %v1115, %v1287
        %v1299 = vmul.f32 %v1116, %v1287
        %v1300 = vmul.f32 %v1117, %v1287
        %v1301 = vmul.f32 %v1118, %v1287
        %v1302 = vmul.f32 %v1119, %v1287
        %v1303 = vmul.f32 %v1120, %v1287
        %v1304 = vmul.f32 %v1121, %v1287
        %v1305 = vmul.f32 %v1122, %v1287
        %v1306 = vmul.f32 %v1123, %v1287
        %v1307 = vmul.f32 %v1124, %v1287
        %v1308 = vmul.f32 %v1125, %v1287
        %v1309 = vmul.f32 %v1126, %v1287
        %v1310 = vmul.f32 %v1127, %v1287
        %v1311 = vmul.f32 %v1128, %v1287
        %v1312 = vmul.f32 %v1129, %v1287
        %v1313 = vmul.f32 %v1130, %v1287
        %v1314 = vmul.f32 %v1131, %v1287
        %v1315 = vmul.f32 %v1132, %v1287
        %v1316 = vmul.f32 %v1133, %v1287
        %v1317 = vmul.f32 %v1134, %v1287
        %v1318 = vmul.f32 %v1135, %v1287
        %v1319 = vmul.f32 %v1136, %v1287
        %v1320 = vadd.f32 %v1251, %v1288
        %v1321 = vadd.f32 %v1252, %v1289
        %v1322 = vadd.f32 %v1253, %v1290
        %v1323 = vadd.f32 %v1254, %v1291
        %v1324 = vadd.f32 %v1255, %v1292
        %v1325 = vadd.f32 %v1256, %v1293
        %v1326 = vadd.f32 %v1257, %v1294
        %v1327 = vadd.f32 %v1258, %v1295
        %v1328 = vadd.f32 %v1259, %v1296
        %v1329 = vadd.f32 %v1260, %v1297
        %v1330 = vadd.f32 %v1261, %v1298
        %v1331 = vadd.f32 %v1262, %v1299
        %v1332 = vadd.f32 %v1263, %v1300
        %v1333 = vadd.f32 %v1264, %v1301
        %v1334 = vadd.f32 %v1265, %v1302
        %v1335 = vadd.f32 %v1266, %v1303
        %v1336 = vadd.f32 %v1267, %v1304
        %v1337 = vadd.f32 %v1268, %v1305
        %v1338 = vadd.f32 %v1269, %v1306
        %v1339 = vadd.f32 %v1270, %v1307
        %v1340 = vadd.f32 %v1271, %v1308
        %v1341 = vadd.f32 %v1272, %v1309
        %v1342 = vadd.f32 %v1273, %v1310
        %v1343 = vadd.f32 %v1274, %v1311
        %v1344 = vadd.f32 %v1275, %v1312
        %v1345 = vadd.f32 %v1276, %v1313
        %v1346 = vadd.f32 %v1277, %v1314
        %v1347 = vadd.f32 %v1278, %v1315
        %v1348 = vadd.f32 %v1279, %v1316
        %v1349 = vadd.f32 %v1280, %v1317
        %v1350 = vadd.f32 %v1281, %v1318
        %v1351 = vadd.f32 %v1282, %v1319
        %v1352 = vld [vmem:[#allocation6 + $0x16] sm:$0x1]
        %v1353 = vlaneseq
        %v1354 = vshrl.u32 %v1353, 7
        %v1355 = vsub.s32 0, %v1354
        %v1356 = vrot.slane %v1352, %v1355
        %v1357 = vmul.f32 %v1107, %v1356
        %v1358 = vmul.f32 %v1108, %v1356
        %v1359 = vmul.f32 %v1109, %v1356
        %v1360 = vmul.f32 %v1110, %v1356
        %v1361 = vmul.f32 %v1111, %v1356
        %v1362 = vmul.f32 %v1112, %v1356
        %v1363 = vmul.f32 %v1113, %v1356
        %v1364 = vmul.f32 %v1114, %v1356
        %v1365 = vmul.f32 %v1115, %v1356
        %v1366 = vmul.f32 %v1116, %v1356
        %v1367 = vmul.f32 %v1117, %v1356
        %v1368 = vmul.f32 %v1118, %v1356
        %v1369 = vmul.f32 %v1119, %v1356
        %v1370 = vmul.f32 %v1120, %v1356
        %v1371 = vmul.f32 %v1121, %v1356
        %v1372 = vmul.f32 %v1122, %v1356
        %v1373 = vmul.f32 %v1123, %v1356
        %v1374 = vmul.f32 %v1124, %v1356
        %v1375 = vmul.f32 %v1125, %v1356
        %v1376 = vmul.f32 %v1126, %v1356
        %v1377 = vmul.f32 %v1127, %v1356
        %v1378 = vmul.f32 %v1128, %v1356
        %v1379 = vmul.f32 %v1129, %v1356
        %v1380 = vmul.f32 %v1130, %v1356
        %v1381 = vmul.f32 %v1131, %v1356
        %v1382 = vmul.f32 %v1132, %v1356
        %v1383 = vmul.f32 %v1133, %v1356
        %v1384 = vmul.f32 %v1134, %v1356
        %v1385 = vmul.f32 %v1135, %v1356
        %v1386 = vmul.f32 %v1136, %v1356
        %v1387 = vmul.f32 %v1137, %v1356
        %v1388 = vmul.f32 %v1138, %v1356
        %v1389 = vadd.f32 %v1320, %v1357
        %v1390 = vadd.f32 %v1321, %v1358
        %v1391 = vadd.f32 %v1322, %v1359
        %v1392 = vadd.f32 %v1323, %v1360
        %v1393 = vadd.f32 %v1324, %v1361
        %v1394 = vadd.f32 %v1325, %v1362
        %v1395 = vadd.f32 %v1326, %v1363
        %v1396 = vadd.f32 %v1327, %v1364
        %v1397 = vadd.f32 %v1328, %v1365
        %v1398 = vadd.f32 %v1329, %v1366
        %v1399 = vadd.f32 %v1330, %v1367
        %v1400 = vadd.f32 %v1331, %v1368
        %v1401 = vadd.f32 %v1332, %v1369
        %v1402 = vadd.f32 %v1333, %v1370
        %v1403 = vadd.f32 %v1334, %v1371
        %v1404 = vadd.f32 %v1335, %v1372
        %v1405 = vadd.f32 %v1336, %v1373
        %v1406 = vadd.f32 %v1337, %v1374
        %v1407 = vadd.f32 %v1338, %v1375
        %v1408 = vadd.f32 %v1339, %v1376
        %v1409 = vadd.f32 %v1340, %v1377
        %v1410 = vadd.f32 %v1341, %v1378
        %v1411 = vadd.f32 %v1342, %v1379
        %v1412 = vadd.f32 %v1343, %v1380
        %v1413 = vadd.f32 %v1344, %v1381
        %v1414 = vadd.f32 %v1345, %v1382
        %v1415 = vadd.f32 %v1346, %v1383
        %v1416 = vadd.f32 %v1347, %v1384
        %v1417 = vadd.f32 %v1348, %v1385
        %v1418 = vadd.f32 %v1349, %v1386
        %v1419 = vadd.f32 %v1350, %v1387
        %v1420 = vadd.f32 %v1351, %v1388
        %v1421 = vld [vmem:[#allocation6 + $0x1d] sm:$0x1]
        %v1422 = vlaneseq
        %v1423 = vshrl.u32 %v1422, 7
        %v1424 = vsub.s32 0, %v1423
        %v1425 = vrot.slane %v1421, %v1424
        %v1426 = vmul.f32 %v1109, %v1425
        %v1427 = vmul.f32 %v1110, %v1425
        %v1428 = vmul.f32 %v1111, %v1425
        %v1429 = vmul.f32 %v1112, %v1425
        %v1430 = vmul.f32 %v1113, %v1425
        %v1431 = vmul.f32 %v1114, %v1425
        %v1432 = vmul.f32 %v1115, %v1425
        %v1433 = vmul.f32 %v1116, %v1425
        %v1434 = vmul.f32 %v1117, %v1425
        %v1435 = vmul.f32 %v1118, %v1425
        %v1436 = vmul.f32 %v1119, %v1425
        %v1437 = vmul.f32 %v1120, %v1425
        %v1438 = vmul.f32 %v1121, %v1425
        %v1439 = vmul.f32 %v1122, %v1425
        %v1440 = vmul.f32 %v1123, %v1425
        %v1441 = vmul.f32 %v1124, %v1425
        %v1442 = vmul.f32 %v1125, %v1425
        %v1443 = vmul.f32 %v1126, %v1425
        %v1444 = vmul.f32 %v1127, %v1425
        %v1445 = vmul.f32 %v1128, %v1425
        %v1446 = vmul.f32 %v1129, %v1425
        %v1447 = vmul.f32 %v1130, %v1425
        %v1448 = vmul.f32 %v1131, %v1425
        %v1449 = vmul.f32 %v1132, %v1425
        %v1450 = vmul.f32 %v1133, %v1425
        %v1451 = vmul.f32 %v1134, %v1425
        %v1452 = vmul.f32 %v1135, %v1425
        %v1453 = vmul.f32 %v1136, %v1425
        %v1454 = vmul.f32 %v1137, %v1425
        %v1455 = vmul.f32 %v1138, %v1425
        %v1456 = vmul.f32 %v1139, %v1425
        %v1457 = vmul.f32 %v1140, %v1425
        %v1458 = vadd.f32 %v1389, %v1426
        %v1459 = vadd.f32 %v1390, %v1427
        %v1460 = vadd.f32 %v1391, %v1428
        %v1461 = vadd.f32 %v1392, %v1429
        %v1462 = vadd.f32 %v1393, %v1430
        %v1463 = vadd.f32 %v1394, %v1431
        %v1464 = vadd.f32 %v1395, %v1432
        %v1465 = vadd.f32 %v1396, %v1433
        %v1466 = vadd.f32 %v1397, %v1434
        %v1467 = vadd.f32 %v1398, %v1435
        %v1468 = vadd.f32 %v1399, %v1436
        %v1469 = vadd.f32 %v1400, %v1437
        %v1470 = vadd.f32 %v1401, %v1438
        %v1471 = vadd.f32 %v1402, %v1439
        %v1472 = vadd.f32 %v1403, %v1440
        %v1473 = vadd.f32 %v1404, %v1441
        %v1474 = vadd.f32 %v1405, %v1442
        %v1475 = vadd.f32 %v1406, %v1443
        %v1476 = vadd.f32 %v1407, %v1444
        %v1477 = vadd.f32 %v1408, %v1445
        %v1478 = vadd.f32 %v1409, %v1446
        %v1479 = vadd.f32 %v1410, %v1447
        %v1480 = vadd.f32 %v1411, %v1448
        %v1481 = vadd.f32 %v1412, %v1449
        %v1482 = vadd.f32 %v1413, %v1450
        %v1483 = vadd.f32 %v1414, %v1451
        %v1484 = vadd.f32 %v1415, %v1452
        %v1485 = vadd.f32 %v1416, %v1453
        %v1486 = vadd.f32 %v1417, %v1454
        %v1487 = vadd.f32 %v1418, %v1455
        %v1488 = vadd.f32 %v1419, %v1456
        %v1489 = vadd.f32 %v1420, %v1457
        %v1490 = vld [vmem:[#allocation6 + $0x24] sm:$0x1]
        %v1491 = vlaneseq
        %v1492 = vshrl.u32 %v1491, 7
        %v1493 = vsub.s32 0, %v1492
        %v1494 = vrot.slane %v1490, %v1493
        %v1495 = vmul.f32 %v1111, %v1494
        %v1496 = vmul.f32 %v1112, %v1494
        %v1497 = vmul.f32 %v1113, %v1494
        %v1498 = vmul.f32 %v1114, %v1494
        %v1499 = vmul.f32 %v1115, %v1494
        %v1500 = vmul.f32 %v1116, %v1494
        %v1501 = vmul.f32 %v1117, %v1494
        %v1502 = vmul.f32 %v1118, %v1494
        %v1503 = vmul.f32 %v1119, %v1494
        %v1504 = vmul.f32 %v1120, %v1494
        %v1505 = vmul.f32 %v1121, %v1494
        %v1506 = vmul.f32 %v1122, %v1494
        %v1507 = vmul.f32 %v1123, %v1494
        %v1508 = vmul.f32 %v1124, %v1494
        %v1509 = vmul.f32 %v1125, %v1494
        %v1510 = vmul.f32 %v1126, %v1494
        %v1511 = vmul.f32 %v1127, %v1494
        %v1512 = vmul.f32 %v1128, %v1494
        %v1513 = vmul.f32 %v1129, %v1494
        %v1514 = vmul.f32 %v1130, %v1494
        %v1515 = vmul.f32 %v1131, %v1494
        %v1516 = vmul.f32 %v1132, %v1494
        %v1517 = vmul.f32 %v1133, %v1494
        %v1518 = vmul.f32 %v1134, %v1494
        %v1519 = vmul.f32 %v1135, %v1494
        %v1520 = vmul.f32 %v1136, %v1494
        %v1521 = vmul.f32 %v1137, %v1494
        %v1522 = vmul.f32 %v1138, %v1494
        %v1523 = vmul.f32 %v1139, %v1494
        %v1524 = vmul.f32 %v1140, %v1494
        %v1525 = vmul.f32 %v1141, %v1494
        %v1526 = vmul.f32 %v1142, %v1494
        %v1527 = vadd.f32 %v1458, %v1495
        %v1528 = vadd.f32 %v1459, %v1496
        %v1529 = vadd.f32 %v1460, %v1497
        %v1530 = vadd.f32 %v1461, %v1498
        %v1531 = vadd.f32 %v1462, %v1499
        %v1532 = vadd.f32 %v1463, %v1500
        %v1533 = vadd.f32 %v1464, %v1501
        %v1534 = vadd.f32 %v1465, %v1502
        %v1535 = vadd.f32 %v1466, %v1503
        %v1536 = vadd.f32 %v1467, %v1504
        %v1537 = vadd.f32 %v1468, %v1505
        %v1538 = vadd.f32 %v1469, %v1506
        %v1539 = vadd.f32 %v1470, %v1507
        %v1540 = vadd.f32 %v1471, %v1508
        %v1541 = vadd.f32 %v1472, %v1509
        %v1542 = vadd.f32 %v1473, %v1510
        %v1543 = vadd.f32 %v1474, %v1511
        %v1544 = vadd.f32 %v1475, %v1512
        %v1545 = vadd.f32 %v1476, %v1513
        %v1546 = vadd.f32 %v1477, %v1514
        %v1547 = vadd.f32 %v1478, %v1515
        %v1548 = vadd.f32 %v1479, %v1516
        %v1549 = vadd.f32 %v1480, %v1517
        %v1550 = vadd.f32 %v1481, %v1518
        %v1551 = vadd.f32 %v1482, %v1519
        %v1552 = vadd.f32 %v1483, %v1520
        %v1553 = vadd.f32 %v1484, %v1521
        %v1554 = vadd.f32 %v1485, %v1522
        %v1555 = vadd.f32 %v1486, %v1523
        %v1556 = vadd.f32 %v1487, %v1524
        %v1557 = vadd.f32 %v1488, %v1525
        %v1558 = vadd.f32 %v1489, %v1526
        %v1559 = vld [vmem:[#allocation6 + $0x2b] sm:$0x1]
        %v1560 = vlaneseq
        %v1561 = vshrl.u32 %v1560, 7
        %v1562 = vsub.s32 0, %v1561
        %v1563 = vrot.slane %v1559, %v1562
        %v1564 = vmul.f32 %v1113, %v1563
        %v1565 = vmul.f32 %v1114, %v1563
        %v1566 = vmul.f32 %v1115, %v1563
        %v1567 = vmul.f32 %v1116, %v1563
        %v1568 = vmul.f32 %v1117, %v1563
        %v1569 = vmul.f32 %v1118, %v1563
        %v1570 = vmul.f32 %v1119, %v1563
        %v1571 = vmul.f32 %v1120, %v1563
        %v1572 = vmul.f32 %v1121, %v1563
        %v1573 = vmul.f32 %v1122, %v1563
        %v1574 = vmul.f32 %v1123, %v1563
        %v1575 = vmul.f32 %v1124, %v1563
        %v1576 = vmul.f32 %v1125, %v1563
        %v1577 = vmul.f32 %v1126, %v1563
        %v1578 = vmul.f32 %v1127, %v1563
        %v1579 = vmul.f32 %v1128, %v1563
        %v1580 = vmul.f32 %v1129, %v1563
        %v1581 = vmul.f32 %v1130, %v1563
        %v1582 = vmul.f32 %v1131, %v1563
        %v1583 = vmul.f32 %v1132, %v1563
        %v1584 = vmul.f32 %v1133, %v1563
        %v1585 = vmul.f32 %v1134, %v1563
        %v1586 = vmul.f32 %v1135, %v1563
        %v1587 = vmul.f32 %v1136, %v1563
        %v1588 = vmul.f32 %v1137, %v1563
        %v1589 = vmul.f32 %v1138, %v1563
        %v1590 = vmul.f32 %v1139, %v1563
        %v1591 = vmul.f32 %v1140, %v1563
        %v1592 = vmul.f32 %v1141, %v1563
        %v1593 = vmul.f32 %v1142, %v1563
        %v1594 = vmul.f32 %v1143, %v1563
        %v1595 = vmul.f32 %v1144, %v1563
        %v1596 = vadd.f32 %v1527, %v1564
        %v1597 = vadd.f32 %v1528, %v1565
        %v1598 = vadd.f32 %v1529, %v1566
        %v1599 = vadd.f32 %v1530, %v1567
        %v1600 = vadd.f32 %v1531, %v1568
        %v1601 = vadd.f32 %v1532, %v1569
        %v1602 = vadd.f32 %v1533, %v1570
        %v1603 = vadd.f32 %v1534, %v1571
        %v1604 = vadd.f32 %v1535, %v1572
        %v1605 = vadd.f32 %v1536, %v1573
        %v1606 = vadd.f32 %v1537, %v1574
        %v1607 = vadd.f32 %v1538, %v1575
        %v1608 = vadd.f32 %v1539, %v1576
        %v1609 = vadd.f32 %v1540, %v1577
        %v1610 = vadd.f32 %v1541, %v1578
        %v1611 = vadd.f32 %v1542, %v1579
        %v1612 = vadd.f32 %v1543, %v1580
        %v1613 = vadd.f32 %v1544, %v1581
        %v1614 = vadd.f32 %v1545, %v1582
        %v1615 = vadd.f32 %v1546, %v1583
        %v1616 = vadd.f32 %v1547, %v1584
        %v1617 = vadd.f32 %v1548, %v1585
        %v1618 = vadd.f32 %v1549, %v1586
        %v1619 = vadd.f32 %v1550, %v1587
        %v1620 = vadd.f32 %v1551, %v1588
        %v1621 = vadd.f32 %v1552, %v1589
        %v1622 = vadd.f32 %v1553, %v1590
        %v1623 = vadd.f32 %v1554, %v1591
        %v1624 = vadd.f32 %v1555, %v1592
        %v1625 = vadd.f32 %v1556, %v1593
        %v1626 = vadd.f32 %v1557, %v1594
        %v1627 = vadd.f32 %v1558, %v1595
        %v1628 = vld [vmem:[#allocation2 + $0x2] sm:$0xff]
        %v1629 = vld [vmem:[#allocation2 + $0xa] sm:$0xff]
        %v1630 = vld [vmem:[#allocation2 + $0x1a] sm:$0xff]
        %v1631 = vld [vmem:[#allocation2 + $0x22] sm:$0xff]
        %v1632 = vld [vmem:[#allocation2 + $0x32] sm:$0xff]
        %v1633 = vld [vmem:[#allocation2 + $0x3a] sm:$0xff]
        %v1634 = vld [vmem:[#allocation2 + $0x4a] sm:$0xff]
        %v1635 = vld [vmem:[#allocation2 + $0x52] sm:$0xff]
        %v1636 = vld [vmem:[#allocation2 + $0x62] sm:$0xff]
        %v1637 = vld [vmem:[#allocation2 + $0x6a] sm:$0xff]
        %v1638 = vld [vmem:[#allocation2 + $0x7a] sm:$0xff]
        %v1639 = vld [vmem:[#allocation2 + $0x82] sm:$0xff]
        %v1640 = vld [vmem:[#allocation2 + $0x92] sm:$0xff]
        %v1641 = vld [vmem:[#allocation2 + $0x9a] sm:$0xff]
        %v1642 = vld [vmem:[#allocation2 + $0xaa] sm:$0xff]
        %v1643 = vld [vmem:[#allocation2 + $0xb2] sm:$0xff]
        %v1644 = vld [vmem:[#allocation2 + $0xc2] sm:$0xff]
        %v1645 = vld [vmem:[#allocation2 + $0xca] sm:$0xff]
        %v1646 = vld [vmem:[#allocation2 + $0xda] sm:$0xff]
        %v1647 = vld [vmem:[#allocation2 + $0xe2] sm:$0xff]
        %v1648 = vld [vmem:[#allocation2 + $0xf2] sm:$0xff]
        %v1649 = vld [vmem:[#allocation2 + $0xfa] sm:$0xff]
        %v1650 = vld [vmem:[#allocation2 + $0x10a] sm:$0xff]
        %v1651 = vld [vmem:[#allocation2 + $0x112] sm:$0xff]
        %v1652 = vld [vmem:[#allocation2 + $0x122] sm:$0xff]
        %v1653 = vld [vmem:[#allocation2 + $0x12a] sm:$0xff]
        %v1654 = vld [vmem:[#allocation2 + $0x13a] sm:$0xff]
        %v1655 = vld [vmem:[#allocation2 + $0x142] sm:$0xff]
        %v1656 = vld [vmem:[#allocation2 + $0x152] sm:$0xff]
        %v1657 = vld [vmem:[#allocation2 + $0x15a] sm:$0xff]
        %v1658 = vld [vmem:[#allocation2 + $0x16a] sm:$0xff]
        %v1659 = vld [vmem:[#allocation2 + $0x172] sm:$0xff]
        %v1660 = vld [vmem:[#allocation2 + $0x182] sm:$0xff]
        %v1661 = vld [vmem:[#allocation2 + $0x18a] sm:$0xff]
        %v1662 = vld [vmem:[#allocation2 + $0x19a] sm:$0xff]
        %v1663 = vld [vmem:[#allocation2 + $0x1a2] sm:$0xff]
        %v1664 = vld [vmem:[#allocation2 + $0x1b2] sm:$0xff]
        %v1665 = vld [vmem:[#allocation2 + $0x1ba] sm:$0xff]
        %v1666 = vld [vmem:[#allocation2 + $0x1ca] sm:$0xff]
        %v1667 = vld [vmem:[#allocation2 + $0x1d2] sm:$0xff]
        %v1668 = vld [vmem:[#allocation2 + $0x1e2] sm:$0xff]
        %v1669 = vld [vmem:[#allocation2 + $0x1ea] sm:$0xff]
        %v1670 = vld [vmem:[#allocation2 + $0x1fa] sm:$0xff]
        %v1671 = vld [vmem:[#allocation2 + $0x202] sm:$0xff]
        %v1672 = vld [vmem:[#allocation6 + $0x2] sm:$0x1]
        %v1673 = vlaneseq
        %v1674 = vshrl.u32 %v1673, 7
        %v1675 = vsub.s32 0, %v1674
        %v1676 = vrot.slane %v1672, %v1675
        %v1677 = vmul.f32 %v1628, %v1676
        %v1678 = vmul.f32 %v1629, %v1676
        %v1679 = vmul.f32 %v1630, %v1676
        %v1680 = vmul.f32 %v1631, %v1676
        %v1681 = vmul.f32 %v1632, %v1676
        %v1682 = vmul.f32 %v1633, %v1676
        %v1683 = vmul.f32 %v1634, %v1676
        %v1684 = vmul.f32 %v1635, %v1676
        %v1685 = vmul.f32 %v1636, %v1676
        %v1686 = vmul.f32 %v1637, %v1676
        %v1687 = vmul.f32 %v1638, %v1676
        %v1688 = vmul.f32 %v1639, %v1676
        %v1689 = vmul.f32 %v1640, %v1676
        %v1690 = vmul.f32 %v1641, %v1676
        %v1691 = vmul.f32 %v1642, %v1676
        %v1692 = vmul.f32 %v1643, %v1676
        %v1693 = vmul.f32 %v1644, %v1676
        %v1694 = vmul.f32 %v1645, %v1676
        %v1695 = vmul.f32 %v1646, %v1676
        %v1696 = vmul.f32 %v1647, %v1676
        %v1697 = vmul.f32 %v1648, %v1676
        %v1698 = vmul.f32 %v1649, %v1676
        %v1699 = vmul.f32 %v1650, %v1676
        %v1700 = vmul.f32 %v1651, %v1676
        %v1701 = vmul.f32 %v1652, %v1676
        %v1702 = vmul.f32 %v1653, %v1676
        %v1703 = vmul.f32 %v1654, %v1676
        %v1704 = vmul.f32 %v1655, %v1676
        %v1705 = vmul.f32 %v1656, %v1676
        %v1706 = vmul.f32 %v1657, %v1676
        %v1707 = vmul.f32 %v1658, %v1676
        %v1708 = vmul.f32 %v1659, %v1676
        %v1709 = vadd.f32 %v1596, %v1677
        %v1710 = vadd.f32 %v1597, %v1678
        %v1711 = vadd.f32 %v1598, %v1679
        %v1712 = vadd.f32 %v1599, %v1680
        %v1713 = vadd.f32 %v1600, %v1681
        %v1714 = vadd.f32 %v1601, %v1682
        %v1715 = vadd.f32 %v1602, %v1683
        %v1716 = vadd.f32 %v1603, %v1684
        %v1717 = vadd.f32 %v1604, %v1685
        %v1718 = vadd.f32 %v1605, %v1686
        %v1719 = vadd.f32 %v1606, %v1687
        %v1720 = vadd.f32 %v1607, %v1688
        %v1721 = vadd.f32 %v1608, %v1689
        %v1722 = vadd.f32 %v1609, %v1690
        %v1723 = vadd.f32 %v1610, %v1691
        %v1724 = vadd.f32 %v1611, %v1692
        %v1725 = vadd.f32 %v1612, %v1693
        %v1726 = vadd.f32 %v1613, %v1694
        %v1727 = vadd.f32 %v1614, %v1695
        %v1728 = vadd.f32 %v1615, %v1696
        %v1729 = vadd.f32 %v1616, %v1697
        %v1730 = vadd.f32 %v1617, %v1698
        %v1731 = vadd.f32 %v1618, %v1699
        %v1732 = vadd.f32 %v1619, %v1700
        %v1733 = vadd.f32 %v1620, %v1701
        %v1734 = vadd.f32 %v1621, %v1702
        %v1735 = vadd.f32 %v1622, %v1703
        %v1736 = vadd.f32 %v1623, %v1704
        %v1737 = vadd.f32 %v1624, %v1705
        %v1738 = vadd.f32 %v1625, %v1706
        %v1739 = vadd.f32 %v1626, %v1707
        %v1740 = vadd.f32 %v1627, %v1708
        %v1741 = vld [vmem:[#allocation6 + $0x9] sm:$0x1]
        %v1742 = vlaneseq
        %v1743 = vshrl.u32 %v1742, 7
        %v1744 = vsub.s32 0, %v1743
        %v1745 = vrot.slane %v1741, %v1744
        %v1746 = vmul.f32 %v1630, %v1745
        %v1747 = vmul.f32 %v1631, %v1745
        %v1748 = vmul.f32 %v1632, %v1745
        %v1749 = vmul.f32 %v1633, %v1745
        %v1750 = vmul.f32 %v1634, %v1745
        %v1751 = vmul.f32 %v1635, %v1745
        %v1752 = vmul.f32 %v1636, %v1745
        %v1753 = vmul.f32 %v1637, %v1745
        %v1754 = vmul.f32 %v1638, %v1745
        %v1755 = vmul.f32 %v1639, %v1745
        %v1756 = vmul.f32 %v1640, %v1745
        %v1757 = vmul.f32 %v1641, %v1745
        %v1758 = vmul.f32 %v1642, %v1745
        %v1759 = vmul.f32 %v1643, %v1745
        %v1760 = vmul.f32 %v1644, %v1745
        %v1761 = vmul.f32 %v1645, %v1745
        %v1762 = vmul.f32 %v1646, %v1745
        %v1763 = vmul.f32 %v1647, %v1745
        %v1764 = vmul.f32 %v1648, %v1745
        %v1765 = vmul.f32 %v1649, %v1745
        %v1766 = vmul.f32 %v1650, %v1745
        %v1767 = vmul.f32 %v1651, %v1745
        %v1768 = vmul.f32 %v1652, %v1745
        %v1769 = vmul.f32 %v1653, %v1745
        %v1770 = vmul.f32 %v1654, %v1745
        %v1771 = vmul.f32 %v1655, %v1745
        %v1772 = vmul.f32 %v1656, %v1745
        %v1773 = vmul.f32 %v1657, %v1745
        %v1774 = vmul.f32 %v1658, %v1745
        %v1775 = vmul.f32 %v1659, %v1745
        %v1776 = vmul.f32 %v1660, %v1745
        %v1777 = vmul.f32 %v1661, %v1745
        %v1778 = vadd.f32 %v1709, %v1746
        %v1779 = vadd.f32 %v1710, %v1747
        %v1780 = vadd.f32 %v1711, %v1748
        %v1781 = vadd.f32 %v1712, %v1749
        %v1782 = vadd.f32 %v1713, %v1750
        %v1783 = vadd.f32 %v1714, %v1751
        %v1784 = vadd.f32 %v1715, %v1752
        %v1785 = vadd.f32 %v1716, %v1753
        %v1786 = vadd.f32 %v1717, %v1754
        %v1787 = vadd.f32 %v1718, %v1755
        %v1788 = vadd.f32 %v1719, %v1756
        %v1789 = vadd.f32 %v1720, %v1757
        %v1790 = vadd.f32 %v1721, %v1758
        %v1791 = vadd.f32 %v1722, %v1759
        %v1792 = vadd.f32 %v1723, %v1760
        %v1793 = vadd.f32 %v1724, %v1761
        %v1794 = vadd.f32 %v1725, %v1762
        %v1795 = vadd.f32 %v1726, %v1763
        %v1796 = vadd.f32 %v1727, %v1764
        %v1797 = vadd.f32 %v1728, %v1765
        %v1798 = vadd.f32 %v1729, %v1766
        %v1799 = vadd.f32 %v1730, %v1767
        %v1800 = vadd.f32 %v1731, %v1768
        %v1801 = vadd.f32 %v1732, %v1769
        %v1802 = vadd.f32 %v1733, %v1770
        %v1803 = vadd.f32 %v1734, %v1771
        %v1804 = vadd.f32 %v1735, %v1772
        %v1805 = vadd.f32 %v1736, %v1773
        %v1806 = vadd.f32 %v1737, %v1774
        %v1807 = vadd.f32 %v1738, %v1775
        %v1808 = vadd.f32 %v1739, %v1776
        %v1809 = vadd.f32 %v1740, %v1777
        %v1810 = vld [vmem:[#allocation6 + $0x10] sm:$0x1]
        %v1811 = vlaneseq
        %v1812 = vshrl.u32 %v1811, 7
        %v1813 = vsub.s32 0, %v1812
        %v1814 = vrot.slane %v1810, %v1813
        %v1815 = vmul.f32 %v1632, %v1814
        %v1816 = vmul.f32 %v1633, %v1814
        %v1817 = vmul.f32 %v1634, %v1814
        %v1818 = vmul.f32 %v1635, %v1814
        %v1819 = vmul.f32 %v1636, %v1814
        %v1820 = vmul.f32 %v1637, %v1814
        %v1821 = vmul.f32 %v1638, %v1814
        %v1822 = vmul.f32 %v1639, %v1814
        %v1823 = vmul.f32 %v1640, %v1814
        %v1824 = vmul.f32 %v1641, %v1814
        %v1825 = vmul.f32 %v1642, %v1814
        %v1826 = vmul.f32 %v1643, %v1814
        %v1827 = vmul.f32 %v1644, %v1814
        %v1828 = vmul.f32 %v1645, %v1814
        %v1829 = vmul.f32 %v1646, %v1814
        %v1830 = vmul.f32 %v1647, %v1814
        %v1831 = vmul.f32 %v1648, %v1814
        %v1832 = vmul.f32 %v1649, %v1814
        %v1833 = vmul.f32 %v1650, %v1814
        %v1834 = vmul.f32 %v1651, %v1814
        %v1835 = vmul.f32 %v1652, %v1814
        %v1836 = vmul.f32 %v1653, %v1814
        %v1837 = vmul.f32 %v1654, %v1814
        %v1838 = vmul.f32 %v1655, %v1814
        %v1839 = vmul.f32 %v1656, %v1814
        %v1840 = vmul.f32 %v1657, %v1814
        %v1841 = vmul.f32 %v1658, %v1814
        %v1842 = vmul.f32 %v1659, %v1814
        %v1843 = vmul.f32 %v1660, %v1814
        %v1844 = vmul.f32 %v1661, %v1814
        %v1845 = vmul.f32 %v1662, %v1814
        %v1846 = vmul.f32 %v1663, %v1814
        %v1847 = vadd.f32 %v1778, %v1815
        %v1848 = vadd.f32 %v1779, %v1816
        %v1849 = vadd.f32 %v1780, %v1817
        %v1850 = vadd.f32 %v1781, %v1818
        %v1851 = vadd.f32 %v1782, %v1819
        %v1852 = vadd.f32 %v1783, %v1820
        %v1853 = vadd.f32 %v1784, %v1821
        %v1854 = vadd.f32 %v1785, %v1822
        %v1855 = vadd.f32 %v1786, %v1823
        %v1856 = vadd.f32 %v1787, %v1824
        %v1857 = vadd.f32 %v1788, %v1825
        %v1858 = vadd.f32 %v1789, %v1826
        %v1859 = vadd.f32 %v1790, %v1827
        %v1860 = vadd.f32 %v1791, %v1828
        %v1861 = vadd.f32 %v1792, %v1829
        %v1862 = vadd.f32 %v1793, %v1830
        %v1863 = vadd.f32 %v1794, %v1831
        %v1864 = vadd.f32 %v1795, %v1832
        %v1865 = vadd.f32 %v1796, %v1833
        %v1866 = vadd.f32 %v1797, %v1834
        %v1867 = vadd.f32 %v1798, %v1835
        %v1868 = vadd.f32 %v1799, %v1836
        %v1869 = vadd.f32 %v1800, %v1837
        %v1870 = vadd.f32 %v1801, %v1838
        %v1871 = vadd.f32 %v1802, %v1839
        %v1872 = vadd.f32 %v1803, %v1840
        %v1873 = vadd.f32 %v1804, %v1841
        %v1874 = vadd.f32 %v1805, %v1842
        %v1875 = vadd.f32 %v1806, %v1843
        %v1876 = vadd.f32 %v1807, %v1844
        %v1877 = vadd.f32 %v1808, %v1845
        %v1878 = vadd.f32 %v1809, %v1846
        %v1879 = vld [vmem:[#allocation6 + $0x17] sm:$0x1]
        %v1880 = vlaneseq
        %v1881 = vshrl.u32 %v1880, 7
        %v1882 = vsub.s32 0, %v1881
        %v1883 = vrot.slane %v1879, %v1882
        %v1884 = vmul.f32 %v1634, %v1883
        %v1885 = vmul.f32 %v1635, %v1883
        %v1886 = vmul.f32 %v1636, %v1883
        %v1887 = vmul.f32 %v1637, %v1883
        %v1888 = vmul.f32 %v1638, %v1883
        %v1889 = vmul.f32 %v1639, %v1883
        %v1890 = vmul.f32 %v1640, %v1883
        %v1891 = vmul.f32 %v1641, %v1883
        %v1892 = vmul.f32 %v1642, %v1883
        %v1893 = vmul.f32 %v1643, %v1883
        %v1894 = vmul.f32 %v1644, %v1883
        %v1895 = vmul.f32 %v1645, %v1883
        %v1896 = vmul.f32 %v1646, %v1883
        %v1897 = vmul.f32 %v1647, %v1883
        %v1898 = vmul.f32 %v1648, %v1883
        %v1899 = vmul.f32 %v1649, %v1883
        %v1900 = vmul.f32 %v1650, %v1883
        %v1901 = vmul.f32 %v1651, %v1883
        %v1902 = vmul.f32 %v1652, %v1883
        %v1903 = vmul.f32 %v1653, %v1883
        %v1904 = vmul.f32 %v1654, %v1883
        %v1905 = vmul.f32 %v1655, %v1883
        %v1906 = vmul.f32 %v1656, %v1883
        %v1907 = vmul.f32 %v1657, %v1883
        %v1908 = vmul.f32 %v1658, %v1883
        %v1909 = vmul.f32 %v1659, %v1883
        %v1910 = vmul.f32 %v1660, %v1883
        %v1911 = vmul.f32 %v1661, %v1883
        %v1912 = vmul.f32 %v1662, %v1883
        %v1913 = vmul.f32 %v1663, %v1883
        %v1914 = vmul.f32 %v1664, %v1883
        %v1915 = vmul.f32 %v1665, %v1883
        %v1916 = vadd.f32 %v1847, %v1884
        %v1917 = vadd.f32 %v1848, %v1885
        %v1918 = vadd.f32 %v1849, %v1886
        %v1919 = vadd.f32 %v1850, %v1887
        %v1920 = vadd.f32 %v1851, %v1888
        %v1921 = vadd.f32 %v1852, %v1889
        %v1922 = vadd.f32 %v1853, %v1890
        %v1923 = vadd.f32 %v1854, %v1891
        %v1924 = vadd.f32 %v1855, %v1892
        %v1925 = vadd.f32 %v1856, %v1893
        %v1926 = vadd.f32 %v1857, %v1894
        %v1927 = vadd.f32 %v1858, %v1895
        %v1928 = vadd.f32 %v1859, %v1896
        %v1929 = vadd.f32 %v1860, %v1897
        %v1930 = vadd.f32 %v1861, %v1898
        %v1931 = vadd.f32 %v1862, %v1899
        %v1932 = vadd.f32 %v1863, %v1900
        %v1933 = vadd.f32 %v1864, %v1901
        %v1934 = vadd.f32 %v1865, %v1902
        %v1935 = vadd.f32 %v1866, %v1903
        %v1936 = vadd.f32 %v1867, %v1904
        %v1937 = vadd.f32 %v1868, %v1905
        %v1938 = vadd.f32 %v1869, %v1906
        %v1939 = vadd.f32 %v1870, %v1907
        %v1940 = vadd.f32 %v1871, %v1908
        %v1941 = vadd.f32 %v1872, %v1909
        %v1942 = vadd.f32 %v1873, %v1910
        %v1943 = vadd.f32 %v1874, %v1911
        %v1944 = vadd.f32 %v1875, %v1912
        %v1945 = vadd.f32 %v1876, %v1913
        %v1946 = vadd.f32 %v1877, %v1914
        %v1947 = vadd.f32 %v1878, %v1915
        %v1948 = vld [vmem:[#allocation6 + $0x1e] sm:$0x1]
        %v1949 = vlaneseq
        %v1950 = vshrl.u32 %v1949, 7
        %v1951 = vsub.s32 0, %v1950
        %v1952 = vrot.slane %v1948, %v1951
        %v1953 = vmul.f32 %v1636, %v1952
        %v1954 = vmul.f32 %v1637, %v1952
        %v1955 = vmul.f32 %v1638, %v1952
        %v1956 = vmul.f32 %v1639, %v1952
        %v1957 = vmul.f32 %v1640, %v1952
        %v1958 = vmul.f32 %v1641, %v1952
        %v1959 = vmul.f32 %v1642, %v1952
        %v1960 = vmul.f32 %v1643, %v1952
        %v1961 = vmul.f32 %v1644, %v1952
        %v1962 = vmul.f32 %v1645, %v1952
        %v1963 = vmul.f32 %v1646, %v1952
        %v1964 = vmul.f32 %v1647, %v1952
        %v1965 = vmul.f32 %v1648, %v1952
        %v1966 = vmul.f32 %v1649, %v1952
        %v1967 = vmul.f32 %v1650, %v1952
        %v1968 = vmul.f32 %v1651, %v1952
        %v1969 = vmul.f32 %v1652, %v1952
        %v1970 = vmul.f32 %v1653, %v1952
        %v1971 = vmul.f32 %v1654, %v1952
        %v1972 = vmul.f32 %v1655, %v1952
        %v1973 = vmul.f32 %v1656, %v1952
        %v1974 = vmul.f32 %v1657, %v1952
        %v1975 = vmul.f32 %v1658, %v1952
        %v1976 = vmul.f32 %v1659, %v1952
        %v1977 = vmul.f32 %v1660, %v1952
        %v1978 = vmul.f32 %v1661, %v1952
        %v1979 = vmul.f32 %v1662, %v1952
        %v1980 = vmul.f32 %v1663, %v1952
        %v1981 = vmul.f32 %v1664, %v1952
        %v1982 = vmul.f32 %v1665, %v1952
        %v1983 = vmul.f32 %v1666, %v1952
        %v1984 = vmul.f32 %v1667, %v1952
        %v1985 = vadd.f32 %v1916, %v1953
        %v1986 = vadd.f32 %v1917, %v1954
        %v1987 = vadd.f32 %v1918, %v1955
        %v1988 = vadd.f32 %v1919, %v1956
        %v1989 = vadd.f32 %v1920, %v1957
        %v1990 = vadd.f32 %v1921, %v1958
        %v1991 = vadd.f32 %v1922, %v1959
        %v1992 = vadd.f32 %v1923, %v1960
        %v1993 = vadd.f32 %v1924, %v1961
        %v1994 = vadd.f32 %v1925, %v1962
        %v1995 = vadd.f32 %v1926, %v1963
        %v1996 = vadd.f32 %v1927, %v1964
        %v1997 = vadd.f32 %v1928, %v1965
        %v1998 = vadd.f32 %v1929, %v1966
        %v1999 = vadd.f32 %v1930, %v1967
        %v2000 = vadd.f32 %v1931, %v1968
        %v2001 = vadd.f32 %v1932, %v1969
        %v2002 = vadd.f32 %v1933, %v1970
        %v2003 = vadd.f32 %v1934, %v1971
        %v2004 = vadd.f32 %v1935, %v1972
        %v2005 = vadd.f32 %v1936, %v1973
        %v2006 = vadd.f32 %v1937, %v1974
        %v2007 = vadd.f32 %v1938, %v1975
        %v2008 = vadd.f32 %v1939, %v1976
        %v2009 = vadd.f32 %v1940, %v1977
        %v2010 = vadd.f32 %v1941, %v1978
        %v2011 = vadd.f32 %v1942, %v1979
        %v2012 = vadd.f32 %v1943, %v1980
        %v2013 = vadd.f32 %v1944, %v1981
        %v2014 = vadd.f32 %v1945, %v1982
        %v2015 = vadd.f32 %v1946, %v1983
        %v2016 = vadd.f32 %v1947, %v1984
        %v2017 = vld [vmem:[#allocation6 + $0x25] sm:$0x1]
        %v2018 = vlaneseq
        %v2019 = vshrl.u32 %v2018, 7
        %v2020 = vsub.s32 0, %v2019
        %v2021 = vrot.slane %v2017, %v2020
        %v2022 = vmul.f32 %v1638, %v2021
        %v2023 = vmul.f32 %v1639, %v2021
        %v2024 = vmul.f32 %v1640, %v2021
        %v2025 = vmul.f32 %v1641, %v2021
        %v2026 = vmul.f32 %v1642, %v2021
        %v2027 = vmul.f32 %v1643, %v2021
        %v2028 = vmul.f32 %v1644, %v2021
        %v2029 = vmul.f32 %v1645, %v2021
        %v2030 = vmul.f32 %v1646, %v2021
        %v2031 = vmul.f32 %v1647, %v2021
        %v2032 = vmul.f32 %v1648, %v2021
        %v2033 = vmul.f32 %v1649, %v2021
        %v2034 = vmul.f32 %v1650, %v2021
        %v2035 = vmul.f32 %v1651, %v2021
        %v2036 = vmul.f32 %v1652, %v2021
        %v2037 = vmul.f32 %v1653, %v2021
        %v2038 = vmul.f32 %v1654, %v2021
        %v2039 = vmul.f32 %v1655, %v2021
        %v2040 = vmul.f32 %v1656, %v2021
        %v2041 = vmul.f32 %v1657, %v2021
        %v2042 = vmul.f32 %v1658, %v2021
        %v2043 = vmul.f32 %v1659, %v2021
        %v2044 = vmul.f32 %v1660, %v2021
        %v2045 = vmul.f32 %v1661, %v2021
        %v2046 = vmul.f32 %v1662, %v2021
        %v2047 = vmul.f32 %v1663, %v2021
        %v2048 = vmul.f32 %v1664, %v2021
        %v2049 = vmul.f32 %v1665, %v2021
        %v2050 = vmul.f32 %v1666, %v2021
        %v2051 = vmul.f32 %v1667, %v2021
        %v2052 = vmul.f32 %v1668, %v2021
        %v2053 = vmul.f32 %v1669, %v2021
        %v2054 = vadd.f32 %v1985, %v2022
        %v2055 = vadd.f32 %v1986, %v2023
        %v2056 = vadd.f32 %v1987, %v2024
        %v2057 = vadd.f32 %v1988, %v2025
        %v2058 = vadd.f32 %v1989, %v2026
        %v2059 = vadd.f32 %v1990, %v2027
        %v2060 = vadd.f32 %v1991, %v2028
        %v2061 = vadd.f32 %v1992, %v2029
        %v2062 = vadd.f32 %v1993, %v2030
        %v2063 = vadd.f32 %v1994, %v2031
        %v2064 = vadd.f32 %v1995, %v2032
        %v2065 = vadd.f32 %v1996, %v2033
        %v2066 = vadd.f32 %v1997, %v2034
        %v2067 = vadd.f32 %v1998, %v2035
        %v2068 = vadd.f32 %v1999, %v2036
        %v2069 = vadd.f32 %v2000, %v2037
        %v2070 = vadd.f32 %v2001, %v2038
        %v2071 = vadd.f32 %v2002, %v2039
        %v2072 = vadd.f32 %v2003, %v2040
        %v2073 = vadd.f32 %v2004, %v2041
        %v2074 = vadd.f32 %v2005, %v2042
        %v2075 = vadd.f32 %v2006, %v2043
        %v2076 = vadd.f32 %v2007, %v2044
        %v2077 = vadd.f32 %v2008, %v2045
        %v2078 = vadd.f32 %v2009, %v2046
        %v2079 = vadd.f32 %v2010, %v2047
        %v2080 = vadd.f32 %v2011, %v2048
        %v2081 = vadd.f32 %v2012, %v2049
        %v2082 = vadd.f32 %v2013, %v2050
        %v2083 = vadd.f32 %v2014, %v2051
        %v2084 = vadd.f32 %v2015, %v2052
        %v2085 = vadd.f32 %v2016, %v2053
        %v2086 = vld [vmem:[#allocation6 + $0x2c] sm:$0x1]
        %v2087 = vlaneseq
        %v2088 = vshrl.u32 %v2087, 7
        %v2089 = vsub.s32 0, %v2088
        %v2090 = vrot.slane %v2086, %v2089
        %v2091 = vmul.f32 %v1640, %v2090
        %v2092 = vmul.f32 %v1641, %v2090
        %v2093 = vmul.f32 %v1642, %v2090
        %v2094 = vmul.f32 %v1643, %v2090
        %v2095 = vmul.f32 %v1644, %v2090
        %v2096 = vmul.f32 %v1645, %v2090
        %v2097 = vmul.f32 %v1646, %v2090
        %v2098 = vmul.f32 %v1647, %v2090
        %v2099 = vmul.f32 %v1648, %v2090
        %v2100 = vmul.f32 %v1649, %v2090
        %v2101 = vmul.f32 %v1650, %v2090
        %v2102 = vmul.f32 %v1651, %v2090
        %v2103 = vmul.f32 %v1652, %v2090
        %v2104 = vmul.f32 %v1653, %v2090
        %v2105 = vmul.f32 %v1654, %v2090
        %v2106 = vmul.f32 %v1655, %v2090
        %v2107 = vmul.f32 %v1656, %v2090
        %v2108 = vmul.f32 %v1657, %v2090
        %v2109 = vmul.f32 %v1658, %v2090
        %v2110 = vmul.f32 %v1659, %v2090
        %v2111 = vmul.f32 %v1660, %v2090
        %v2112 = vmul.f32 %v1661, %v2090
        %v2113 = vmul.f32 %v1662, %v2090
        %v2114 = vmul.f32 %v1663, %v2090
        %v2115 = vmul.f32 %v1664, %v2090
        %v2116 = vmul.f32 %v1665, %v2090
        %v2117 = vmul.f32 %v1666, %v2090
        %v2118 = vmul.f32 %v1667, %v2090
        %v2119 = vmul.f32 %v1668, %v2090
        %v2120 = vmul.f32 %v1669, %v2090
        %v2121 = vmul.f32 %v1670, %v2090
        %v2122 = vmul.f32 %v1671, %v2090
        %v2123 = vadd.f32 %v2054, %v2091
        %v2124 = vadd.f32 %v2055, %v2092
        %v2125 = vadd.f32 %v2056, %v2093
        %v2126 = vadd.f32 %v2057, %v2094
        %v2127 = vadd.f32 %v2058, %v2095
        %v2128 = vadd.f32 %v2059, %v2096
        %v2129 = vadd.f32 %v2060, %v2097
        %v2130 = vadd.f32 %v2061, %v2098
        %v2131 = vadd.f32 %v2062, %v2099
        %v2132 = vadd.f32 %v2063, %v2100
        %v2133 = vadd.f32 %v2064, %v2101
        %v2134 = vadd.f32 %v2065, %v2102
        %v2135 = vadd.f32 %v2066, %v2103
        %v2136 = vadd.f32 %v2067, %v2104
        %v2137 = vadd.f32 %v2068, %v2105
        %v2138 = vadd.f32 %v2069, %v2106
        %v2139 = vadd.f32 %v2070, %v2107
        %v2140 = vadd.f32 %v2071, %v2108
        %v2141 = vadd.f32 %v2072, %v2109
        %v2142 = vadd.f32 %v2073, %v2110
        %v2143 = vadd.f32 %v2074, %v2111
        %v2144 = vadd.f32 %v2075, %v2112
        %v2145 = vadd.f32 %v2076, %v2113
        %v2146 = vadd.f32 %v2077, %v2114
        %v2147 = vadd.f32 %v2078, %v2115
        %v2148 = vadd.f32 %v2079, %v2116
        %v2149 = vadd.f32 %v2080, %v2117
        %v2150 = vadd.f32 %v2081, %v2118
        %v2151 = vadd.f32 %v2082, %v2119
        %v2152 = vadd.f32 %v2083, %v2120
        %v2153 = vadd.f32 %v2084, %v2121
        %v2154 = vadd.f32 %v2085, %v2122
        %v2155 = vld [vmem:[#allocation2 + $0x3] sm:$0xff]
        %v2156 = vld [vmem:[#allocation2 + $0xb] sm:$0xff]
        %v2157 = vld [vmem:[#allocation2 + $0x1b] sm:$0xff]
        %v2158 = vld [vmem:[#allocation2 + $0x23] sm:$0xff]
        %v2159 = vld [vmem:[#allocation2 + $0x33] sm:$0xff]
        %v2160 = vld [vmem:[#allocation2 + $0x3b] sm:$0xff]
        %v2161 = vld [vmem:[#allocation2 + $0x4b] sm:$0xff]
        %v2162 = vld [vmem:[#allocation2 + $0x53] sm:$0xff]
        %v2163 = vld [vmem:[#allocation2 + $0x63] sm:$0xff]
        %v2164 = vld [vmem:[#allocation2 + $0x6b] sm:$0xff]
        %v2165 = vld [vmem:[#allocation2 + $0x7b] sm:$0xff]
        %v2166 = vld [vmem:[#allocation2 + $0x83] sm:$0xff]
        %v2167 = vld [vmem:[#allocation2 + $0x93] sm:$0xff]
        %v2168 = vld [vmem:[#allocation2 + $0x9b] sm:$0xff]
        %v2169 = vld [vmem:[#allocation2 + $0xab] sm:$0xff]
        %v2170 = vld [vmem:[#allocation2 + $0xb3] sm:$0xff]
        %v2171 = vld [vmem:[#allocation2 + $0xc3] sm:$0xff]
        %v2172 = vld [vmem:[#allocation2 + $0xcb] sm:$0xff]
        %v2173 = vld [vmem:[#allocation2 + $0xdb] sm:$0xff]
        %v2174 = vld [vmem:[#allocation2 + $0xe3] sm:$0xff]
        %v2175 = vld [vmem:[#allocation2 + $0xf3] sm:$0xff]
        %v2176 = vld [vmem:[#allocation2 + $0xfb] sm:$0xff]
        %v2177 = vld [vmem:[#allocation2 + $0x10b] sm:$0xff]
        %v2178 = vld [vmem:[#allocation2 + $0x113] sm:$0xff]
        %v2179 = vld [vmem:[#allocation2 + $0x123] sm:$0xff]
        %v2180 = vld [vmem:[#allocation2 + $0x12b] sm:$0xff]
        %v2181 = vld [vmem:[#allocation2 + $0x13b] sm:$0xff]
        %v2182 = vld [vmem:[#allocation2 + $0x143] sm:$0xff]
        %v2183 = vld [vmem:[#allocation2 + $0x153] sm:$0xff]
        %v2184 = vld [vmem:[#allocation2 + $0x15b] sm:$0xff]
        %v2185 = vld [vmem:[#allocation2 + $0x16b] sm:$0xff]
        %v2186 = vld [vmem:[#allocation2 + $0x173] sm:$0xff]
        %v2187 = vld [vmem:[#allocation2 + $0x183] sm:$0xff]
        %v2188 = vld [vmem:[#allocation2 + $0x18b] sm:$0xff]
        %v2189 = vld [vmem:[#allocation2 + $0x19b] sm:$0xff]
        %v2190 = vld [vmem:[#allocation2 + $0x1a3] sm:$0xff]
        %v2191 = vld [vmem:[#allocation2 + $0x1b3] sm:$0xff]
        %v2192 = vld [vmem:[#allocation2 + $0x1bb] sm:$0xff]
        %v2193 = vld [vmem:[#allocation2 + $0x1cb] sm:$0xff]
        %v2194 = vld [vmem:[#allocation2 + $0x1d3] sm:$0xff]
        %v2195 = vld [vmem:[#allocation2 + $0x1e3] sm:$0xff]
        %v2196 = vld [vmem:[#allocation2 + $0x1eb] sm:$0xff]
        %v2197 = vld [vmem:[#allocation2 + $0x1fb] sm:$0xff]
        %v2198 = vld [vmem:[#allocation2 + $0x203] sm:$0xff]
        %v2199 = vld [vmem:[#allocation6 + $0x3] sm:$0x1]
        %v2200 = vlaneseq
        %v2201 = vshrl.u32 %v2200, 7
        %v2202 = vsub.s32 0, %v2201
        %v2203 = vrot.slane %v2199, %v2202
        %v2204 = vmul.f32 %v2155, %v2203
        %v2205 = vmul.f32 %v2156, %v2203
        %v2206 = vmul.f32 %v2157, %v2203
        %v2207 = vmul.f32 %v2158, %v2203
        %v2208 = vmul.f32 %v2159, %v2203
        %v2209 = vmul.f32 %v2160, %v2203
        %v2210 = vmul.f32 %v2161, %v2203
        %v2211 = vmul.f32 %v2162, %v2203
        %v2212 = vmul.f32 %v2163, %v2203
        %v2213 = vmul.f32 %v2164, %v2203
        %v2214 = vmul.f32 %v2165, %v2203
        %v2215 = vmul.f32 %v2166, %v2203
        %v2216 = vmul.f32 %v2167, %v2203
        %v2217 = vmul.f32 %v2168, %v2203
        %v2218 = vmul.f32 %v2169, %v2203
        %v2219 = vmul.f32 %v2170, %v2203
        %v2220 = vmul.f32 %v2171, %v2203
        %v2221 = vmul.f32 %v2172, %v2203
        %v2222 = vmul.f32 %v2173, %v2203
        %v2223 = vmul.f32 %v2174, %v2203
        %v2224 = vmul.f32 %v2175, %v2203
        %v2225 = vmul.f32 %v2176, %v2203
        %v2226 = vmul.f32 %v2177, %v2203
        %v2227 = vmul.f32 %v2178, %v2203
        %v2228 = vmul.f32 %v2179, %v2203
        %v2229 = vmul.f32 %v2180, %v2203
        %v2230 = vmul.f32 %v2181, %v2203
        %v2231 = vmul.f32 %v2182, %v2203
        %v2232 = vmul.f32 %v2183, %v2203
        %v2233 = vmul.f32 %v2184, %v2203
        %v2234 = vmul.f32 %v2185, %v2203
        %v2235 = vmul.f32 %v2186, %v2203
        %v2236 = vadd.f32 %v2123, %v2204
        %v2237 = vadd.f32 %v2124, %v2205
        %v2238 = vadd.f32 %v2125, %v2206
        %v2239 = vadd.f32 %v2126, %v2207
        %v2240 = vadd.f32 %v2127, %v2208
        %v2241 = vadd.f32 %v2128, %v2209
        %v2242 = vadd.f32 %v2129, %v2210
        %v2243 = vadd.f32 %v2130, %v2211
        %v2244 = vadd.f32 %v2131, %v2212
        %v2245 = vadd.f32 %v2132, %v2213
        %v2246 = vadd.f32 %v2133, %v2214
        %v2247 = vadd.f32 %v2134, %v2215
        %v2248 = vadd.f32 %v2135, %v2216
        %v2249 = vadd.f32 %v2136, %v2217
        %v2250 = vadd.f32 %v2137, %v2218
        %v2251 = vadd.f32 %v2138, %v2219
        %v2252 = vadd.f32 %v2139, %v2220
        %v2253 = vadd.f32 %v2140, %v2221
        %v2254 = vadd.f32 %v2141, %v2222
        %v2255 = vadd.f32 %v2142, %v2223
        %v2256 = vadd.f32 %v2143, %v2224
        %v2257 = vadd.f32 %v2144, %v2225
        %v2258 = vadd.f32 %v2145, %v2226
        %v2259 = vadd.f32 %v2146, %v2227
        %v2260 = vadd.f32 %v2147, %v2228
        %v2261 = vadd.f32 %v2148, %v2229
        %v2262 = vadd.f32 %v2149, %v2230
        %v2263 = vadd.f32 %v2150, %v2231
        %v2264 = vadd.f32 %v2151, %v2232
        %v2265 = vadd.f32 %v2152, %v2233
        %v2266 = vadd.f32 %v2153, %v2234
        %v2267 = vadd.f32 %v2154, %v2235
        %v2268 = vld [vmem:[#allocation6 + $0xa] sm:$0x1]
        %v2269 = vlaneseq
        %v2270 = vshrl.u32 %v2269, 7
        %v2271 = vsub.s32 0, %v2270
        %v2272 = vrot.slane %v2268, %v2271
        %v2273 = vmul.f32 %v2157, %v2272
        %v2274 = vmul.f32 %v2158, %v2272
        %v2275 = vmul.f32 %v2159, %v2272
        %v2276 = vmul.f32 %v2160, %v2272
        %v2277 = vmul.f32 %v2161, %v2272
        %v2278 = vmul.f32 %v2162, %v2272
        %v2279 = vmul.f32 %v2163, %v2272
        %v2280 = vmul.f32 %v2164, %v2272
        %v2281 = vmul.f32 %v2165, %v2272
        %v2282 = vmul.f32 %v2166, %v2272
        %v2283 = vmul.f32 %v2167, %v2272
        %v2284 = vmul.f32 %v2168, %v2272
        %v2285 = vmul.f32 %v2169, %v2272
        %v2286 = vmul.f32 %v2170, %v2272
        %v2287 = vmul.f32 %v2171, %v2272
        %v2288 = vmul.f32 %v2172, %v2272
        %v2289 = vmul.f32 %v2173, %v2272
        %v2290 = vmul.f32 %v2174, %v2272
        %v2291 = vmul.f32 %v2175, %v2272
        %v2292 = vmul.f32 %v2176, %v2272
        %v2293 = vmul.f32 %v2177, %v2272
        %v2294 = vmul.f32 %v2178, %v2272
        %v2295 = vmul.f32 %v2179, %v2272
        %v2296 = vmul.f32 %v2180, %v2272
        %v2297 = vmul.f32 %v2181, %v2272
        %v2298 = vmul.f32 %v2182, %v2272
        %v2299 = vmul.f32 %v2183, %v2272
        %v2300 = vmul.f32 %v2184, %v2272
        %v2301 = vmul.f32 %v2185, %v2272
        %v2302 = vmul.f32 %v2186, %v2272
        %v2303 = vmul.f32 %v2187, %v2272
        %v2304 = vmul.f32 %v2188, %v2272
        %v2305 = vadd.f32 %v2236, %v2273
        %v2306 = vadd.f32 %v2237, %v2274
        %v2307 = vadd.f32 %v2238, %v2275
        %v2308 = vadd.f32 %v2239, %v2276
        %v2309 = vadd.f32 %v2240, %v2277
        %v2310 = vadd.f32 %v2241, %v2278
        %v2311 = vadd.f32 %v2242, %v2279
        %v2312 = vadd.f32 %v2243, %v2280
        %v2313 = vadd.f32 %v2244, %v2281
        %v2314 = vadd.f32 %v2245, %v2282
        %v2315 = vadd.f32 %v2246, %v2283
        %v2316 = vadd.f32 %v2247, %v2284
        %v2317 = vadd.f32 %v2248, %v2285
        %v2318 = vadd.f32 %v2249, %v2286
        %v2319 = vadd.f32 %v2250, %v2287
        %v2320 = vadd.f32 %v2251, %v2288
        %v2321 = vadd.f32 %v2252, %v2289
        %v2322 = vadd.f32 %v2253, %v2290
        %v2323 = vadd.f32 %v2254, %v2291
        %v2324 = vadd.f32 %v2255, %v2292
        %v2325 = vadd.f32 %v2256, %v2293
        %v2326 = vadd.f32 %v2257, %v2294
        %v2327 = vadd.f32 %v2258, %v2295
        %v2328 = vadd.f32 %v2259, %v2296
        %v2329 = vadd.f32 %v2260, %v2297
        %v2330 = vadd.f32 %v2261, %v2298
        %v2331 = vadd.f32 %v2262, %v2299
        %v2332 = vadd.f32 %v2263, %v2300
        %v2333 = vadd.f32 %v2264, %v2301
        %v2334 = vadd.f32 %v2265, %v2302
        %v2335 = vadd.f32 %v2266, %v2303
        %v2336 = vadd.f32 %v2267, %v2304
        %v2337 = vld [vmem:[#allocation6 + $0x11] sm:$0x1]
        %v2338 = vlaneseq
        %v2339 = vshrl.u32 %v2338, 7
        %v2340 = vsub.s32 0, %v2339
        %v2341 = vrot.slane %v2337, %v2340
        %v2342 = vmul.f32 %v2159, %v2341
        %v2343 = vmul.f32 %v2160, %v2341
        %v2344 = vmul.f32 %v2161, %v2341
        %v2345 = vmul.f32 %v2162, %v2341
        %v2346 = vmul.f32 %v2163, %v2341
        %v2347 = vmul.f32 %v2164, %v2341
        %v2348 = vmul.f32 %v2165, %v2341
        %v2349 = vmul.f32 %v2166, %v2341
        %v2350 = vmul.f32 %v2167, %v2341
        %v2351 = vmul.f32 %v2168, %v2341
        %v2352 = vmul.f32 %v2169, %v2341
        %v2353 = vmul.f32 %v2170, %v2341
        %v2354 = vmul.f32 %v2171, %v2341
        %v2355 = vmul.f32 %v2172, %v2341
        %v2356 = vmul.f32 %v2173, %v2341
        %v2357 = vmul.f32 %v2174, %v2341
        %v2358 = vmul.f32 %v2175, %v2341
        %v2359 = vmul.f32 %v2176, %v2341
        %v2360 = vmul.f32 %v2177, %v2341
        %v2361 = vmul.f32 %v2178, %v2341
        %v2362 = vmul.f32 %v2179, %v2341
        %v2363 = vmul.f32 %v2180, %v2341
        %v2364 = vmul.f32 %v2181, %v2341
        %v2365 = vmul.f32 %v2182, %v2341
        %v2366 = vmul.f32 %v2183, %v2341
        %v2367 = vmul.f32 %v2184, %v2341
        %v2368 = vmul.f32 %v2185, %v2341
        %v2369 = vmul.f32 %v2186, %v2341
        %v2370 = vmul.f32 %v2187, %v2341
        %v2371 = vmul.f32 %v2188, %v2341
        %v2372 = vmul.f32 %v2189, %v2341
        %v2373 = vmul.f32 %v2190, %v2341
        %v2374 = vadd.f32 %v2305, %v2342
        %v2375 = vadd.f32 %v2306, %v2343
        %v2376 = vadd.f32 %v2307, %v2344
        %v2377 = vadd.f32 %v2308, %v2345
        %v2378 = vadd.f32 %v2309, %v2346
        %v2379 = vadd.f32 %v2310, %v2347
        %v2380 = vadd.f32 %v2311, %v2348
        %v2381 = vadd.f32 %v2312, %v2349
        %v2382 = vadd.f32 %v2313, %v2350
        %v2383 = vadd.f32 %v2314, %v2351
        %v2384 = vadd.f32 %v2315, %v2352
        %v2385 = vadd.f32 %v2316, %v2353
        %v2386 = vadd.f32 %v2317, %v2354
        %v2387 = vadd.f32 %v2318, %v2355
        %v2388 = vadd.f32 %v2319, %v2356
        %v2389 = vadd.f32 %v2320, %v2357
        %v2390 = vadd.f32 %v2321, %v2358
        %v2391 = vadd.f32 %v2322, %v2359
        %v2392 = vadd.f32 %v2323, %v2360
        %v2393 = vadd.f32 %v2324, %v2361
        %v2394 = vadd.f32 %v2325, %v2362
        %v2395 = vadd.f32 %v2326, %v2363
        %v2396 = vadd.f32 %v2327, %v2364
        %v2397 = vadd.f32 %v2328, %v2365
        %v2398 = vadd.f32 %v2329, %v2366
        %v2399 = vadd.f32 %v2330, %v2367
        %v2400 = vadd.f32 %v2331, %v2368
        %v2401 = vadd.f32 %v2332, %v2369
        %v2402 = vadd.f32 %v2333, %v2370
        %v2403 = vadd.f32 %v2334, %v2371
        %v2404 = vadd.f32 %v2335, %v2372
        %v2405 = vadd.f32 %v2336, %v2373
        %v2406 = vld [vmem:[#allocation6 + $0x18] sm:$0x1]
        %v2407 = vlaneseq
        %v2408 = vshrl.u32 %v2407, 7
        %v2409 = vsub.s32 0, %v2408
        %v2410 = vrot.slane %v2406, %v2409
        %v2411 = vmul.f32 %v2161, %v2410
        %v2412 = vmul.f32 %v2162, %v2410
        %v2413 = vmul.f32 %v2163, %v2410
        %v2414 = vmul.f32 %v2164, %v2410
        %v2415 = vmul.f32 %v2165, %v2410
        %v2416 = vmul.f32 %v2166, %v2410
        %v2417 = vmul.f32 %v2167, %v2410
        %v2418 = vmul.f32 %v2168, %v2410
        %v2419 = vmul.f32 %v2169, %v2410
        %v2420 = vmul.f32 %v2170, %v2410
        %v2421 = vmul.f32 %v2171, %v2410
        %v2422 = vmul.f32 %v2172, %v2410
        %v2423 = vmul.f32 %v2173, %v2410
        %v2424 = vmul.f32 %v2174, %v2410
        %v2425 = vmul.f32 %v2175, %v2410
        %v2426 = vmul.f32 %v2176, %v2410
        %v2427 = vmul.f32 %v2177, %v2410
        %v2428 = vmul.f32 %v2178, %v2410
        %v2429 = vmul.f32 %v2179, %v2410
        %v2430 = vmul.f32 %v2180, %v2410
        %v2431 = vmul.f32 %v2181, %v2410
        %v2432 = vmul.f32 %v2182, %v2410
        %v2433 = vmul.f32 %v2183, %v2410
        %v2434 = vmul.f32 %v2184, %v2410
        %v2435 = vmul.f32 %v2185, %v2410
        %v2436 = vmul.f32 %v2186, %v2410
        %v2437 = vmul.f32 %v2187, %v2410
        %v2438 = vmul.f32 %v2188, %v2410
        %v2439 = vmul.f32 %v2189, %v2410
        %v2440 = vmul.f32 %v2190, %v2410
        %v2441 = vmul.f32 %v2191, %v2410
        %v2442 = vmul.f32 %v2192, %v2410
        %v2443 = vadd.f32 %v2374, %v2411
        %v2444 = vadd.f32 %v2375, %v2412
        %v2445 = vadd.f32 %v2376, %v2413
        %v2446 = vadd.f32 %v2377, %v2414
        %v2447 = vadd.f32 %v2378, %v2415
        %v2448 = vadd.f32 %v2379, %v2416
        %v2449 = vadd.f32 %v2380, %v2417
        %v2450 = vadd.f32 %v2381, %v2418
        %v2451 = vadd.f32 %v2382, %v2419
        %v2452 = vadd.f32 %v2383, %v2420
        %v2453 = vadd.f32 %v2384, %v2421
        %v2454 = vadd.f32 %v2385, %v2422
        %v2455 = vadd.f32 %v2386, %v2423
        %v2456 = vadd.f32 %v2387, %v2424
        %v2457 = vadd.f32 %v2388, %v2425
        %v2458 = vadd.f32 %v2389, %v2426
        %v2459 = vadd.f32 %v2390, %v2427
        %v2460 = vadd.f32 %v2391, %v2428
        %v2461 = vadd.f32 %v2392, %v2429
        %v2462 = vadd.f32 %v2393, %v2430
        %v2463 = vadd.f32 %v2394, %v2431
        %v2464 = vadd.f32 %v2395, %v2432
        %v2465 = vadd.f32 %v2396, %v2433
        %v2466 = vadd.f32 %v2397, %v2434
        %v2467 = vadd.f32 %v2398, %v2435
        %v2468 = vadd.f32 %v2399, %v2436
        %v2469 = vadd.f32 %v2400, %v2437
        %v2470 = vadd.f32 %v2401, %v2438
        %v2471 = vadd.f32 %v2402, %v2439
        %v2472 = vadd.f32 %v2403, %v2440
        %v2473 = vadd.f32 %v2404, %v2441
        %v2474 = vadd.f32 %v2405, %v2442
        %v2475 = vld [vmem:[#allocation6 + $0x1f] sm:$0x1]
        %v2476 = vlaneseq
        %v2477 = vshrl.u32 %v2476, 7
        %v2478 = vsub.s32 0, %v2477
        %v2479 = vrot.slane %v2475, %v2478
        %v2480 = vmul.f32 %v2163, %v2479
        %v2481 = vmul.f32 %v2164, %v2479
        %v2482 = vmul.f32 %v2165, %v2479
        %v2483 = vmul.f32 %v2166, %v2479
        %v2484 = vmul.f32 %v2167, %v2479
        %v2485 = vmul.f32 %v2168, %v2479
        %v2486 = vmul.f32 %v2169, %v2479
        %v2487 = vmul.f32 %v2170, %v2479
        %v2488 = vmul.f32 %v2171, %v2479
        %v2489 = vmul.f32 %v2172, %v2479
        %v2490 = vmul.f32 %v2173, %v2479
        %v2491 = vmul.f32 %v2174, %v2479
        %v2492 = vmul.f32 %v2175, %v2479
        %v2493 = vmul.f32 %v2176, %v2479
        %v2494 = vmul.f32 %v2177, %v2479
        %v2495 = vmul.f32 %v2178, %v2479
        %v2496 = vmul.f32 %v2179, %v2479
        %v2497 = vmul.f32 %v2180, %v2479
        %v2498 = vmul.f32 %v2181, %v2479
        %v2499 = vmul.f32 %v2182, %v2479
        %v2500 = vmul.f32 %v2183, %v2479
        %v2501 = vmul.f32 %v2184, %v2479
        %v2502 = vmul.f32 %v2185, %v2479
        %v2503 = vmul.f32 %v2186, %v2479
        %v2504 = vmul.f32 %v2187, %v2479
        %v2505 = vmul.f32 %v2188, %v2479
        %v2506 = vmul.f32 %v2189, %v2479
        %v2507 = vmul.f32 %v2190, %v2479
        %v2508 = vmul.f32 %v2191, %v2479
        %v2509 = vmul.f32 %v2192, %v2479
        %v2510 = vmul.f32 %v2193, %v2479
        %v2511 = vmul.f32 %v2194, %v2479
        %v2512 = vadd.f32 %v2443, %v2480
        %v2513 = vadd.f32 %v2444, %v2481
        %v2514 = vadd.f32 %v2445, %v2482
        %v2515 = vadd.f32 %v2446, %v2483
        %v2516 = vadd.f32 %v2447, %v2484
        %v2517 = vadd.f32 %v2448, %v2485
        %v2518 = vadd.f32 %v2449, %v2486
        %v2519 = vadd.f32 %v2450, %v2487
        %v2520 = vadd.f32 %v2451, %v2488
        %v2521 = vadd.f32 %v2452, %v2489
        %v2522 = vadd.f32 %v2453, %v2490
        %v2523 = vadd.f32 %v2454, %v2491
        %v2524 = vadd.f32 %v2455, %v2492
        %v2525 = vadd.f32 %v2456, %v2493
        %v2526 = vadd.f32 %v2457, %v2494
        %v2527 = vadd.f32 %v2458, %v2495
        %v2528 = vadd.f32 %v2459, %v2496
        %v2529 = vadd.f32 %v2460, %v2497
        %v2530 = vadd.f32 %v2461, %v2498
        %v2531 = vadd.f32 %v2462, %v2499
        %v2532 = vadd.f32 %v2463, %v2500
        %v2533 = vadd.f32 %v2464, %v2501
        %v2534 = vadd.f32 %v2465, %v2502
        %v2535 = vadd.f32 %v2466, %v2503
        %v2536 = vadd.f32 %v2467, %v2504
        %v2537 = vadd.f32 %v2468, %v2505
        %v2538 = vadd.f32 %v2469, %v2506
        %v2539 = vadd.f32 %v2470, %v2507
        %v2540 = vadd.f32 %v2471, %v2508
        %v2541 = vadd.f32 %v2472, %v2509
        %v2542 = vadd.f32 %v2473, %v2510
        %v2543 = vadd.f32 %v2474, %v2511
        %v2544 = vld [vmem:[#allocation6 + $0x26] sm:$0x1]
        %v2545 = vlaneseq
        %v2546 = vshrl.u32 %v2545, 7
        %v2547 = vsub.s32 0, %v2546
        %v2548 = vrot.slane %v2544, %v2547
        %v2549 = vmul.f32 %v2165, %v2548
        %v2550 = vmul.f32 %v2166, %v2548
        %v2551 = vmul.f32 %v2167, %v2548
        %v2552 = vmul.f32 %v2168, %v2548
        %v2553 = vmul.f32 %v2169, %v2548
        %v2554 = vmul.f32 %v2170, %v2548
        %v2555 = vmul.f32 %v2171, %v2548
        %v2556 = vmul.f32 %v2172, %v2548
        %v2557 = vmul.f32 %v2173, %v2548
        %v2558 = vmul.f32 %v2174, %v2548
        %v2559 = vmul.f32 %v2175, %v2548
        %v2560 = vmul.f32 %v2176, %v2548
        %v2561 = vmul.f32 %v2177, %v2548
        %v2562 = vmul.f32 %v2178, %v2548
        %v2563 = vmul.f32 %v2179, %v2548
        %v2564 = vmul.f32 %v2180, %v2548
        %v2565 = vmul.f32 %v2181, %v2548
        %v2566 = vmul.f32 %v2182, %v2548
        %v2567 = vmul.f32 %v2183, %v2548
        %v2568 = vmul.f32 %v2184, %v2548
        %v2569 = vmul.f32 %v2185, %v2548
        %v2570 = vmul.f32 %v2186, %v2548
        %v2571 = vmul.f32 %v2187, %v2548
        %v2572 = vmul.f32 %v2188, %v2548
        %v2573 = vmul.f32 %v2189, %v2548
        %v2574 = vmul.f32 %v2190, %v2548
        %v2575 = vmul.f32 %v2191, %v2548
        %v2576 = vmul.f32 %v2192, %v2548
        %v2577 = vmul.f32 %v2193, %v2548
        %v2578 = vmul.f32 %v2194, %v2548
        %v2579 = vmul.f32 %v2195, %v2548
        %v2580 = vmul.f32 %v2196, %v2548
        %v2581 = vadd.f32 %v2512, %v2549
        %v2582 = vadd.f32 %v2513, %v2550
        %v2583 = vadd.f32 %v2514, %v2551
        %v2584 = vadd.f32 %v2515, %v2552
        %v2585 = vadd.f32 %v2516, %v2553
        %v2586 = vadd.f32 %v2517, %v2554
        %v2587 = vadd.f32 %v2518, %v2555
        %v2588 = vadd.f32 %v2519, %v2556
        %v2589 = vadd.f32 %v2520, %v2557
        %v2590 = vadd.f32 %v2521, %v2558
        %v2591 = vadd.f32 %v2522, %v2559
        %v2592 = vadd.f32 %v2523, %v2560
        %v2593 = vadd.f32 %v2524, %v2561
        %v2594 = vadd.f32 %v2525, %v2562
        %v2595 = vadd.f32 %v2526, %v2563
        %v2596 = vadd.f32 %v2527, %v2564
        %v2597 = vadd.f32 %v2528, %v2565
        %v2598 = vadd.f32 %v2529, %v2566
        %v2599 = vadd.f32 %v2530, %v2567
        %v2600 = vadd.f32 %v2531, %v2568
        %v2601 = vadd.f32 %v2532, %v2569
        %v2602 = vadd.f32 %v2533, %v2570
        %v2603 = vadd.f32 %v2534, %v2571
        %v2604 = vadd.f32 %v2535, %v2572
        %v2605 = vadd.f32 %v2536, %v2573
        %v2606 = vadd.f32 %v2537, %v2574
        %v2607 = vadd.f32 %v2538, %v2575
        %v2608 = vadd.f32 %v2539, %v2576
        %v2609 = vadd.f32 %v2540, %v2577
        %v2610 = vadd.f32 %v2541, %v2578
        %v2611 = vadd.f32 %v2542, %v2579
        %v2612 = vadd.f32 %v2543, %v2580
        %v2613 = vld [vmem:[#allocation6 + $0x2d] sm:$0x1]
        %v2614 = vlaneseq
        %v2615 = vshrl.u32 %v2614, 7
        %v2616 = vsub.s32 0, %v2615
        %v2617 = vrot.slane %v2613, %v2616
        %v2618 = vmul.f32 %v2167, %v2617
        %v2619 = vmul.f32 %v2168, %v2617
        %v2620 = vmul.f32 %v2169, %v2617
        %v2621 = vmul.f32 %v2170, %v2617
        %v2622 = vmul.f32 %v2171, %v2617
        %v2623 = vmul.f32 %v2172, %v2617
        %v2624 = vmul.f32 %v2173, %v2617
        %v2625 = vmul.f32 %v2174, %v2617
        %v2626 = vmul.f32 %v2175, %v2617
        %v2627 = vmul.f32 %v2176, %v2617
        %v2628 = vmul.f32 %v2177, %v2617
        %v2629 = vmul.f32 %v2178, %v2617
        %v2630 = vmul.f32 %v2179, %v2617
        %v2631 = vmul.f32 %v2180, %v2617
        %v2632 = vmul.f32 %v2181, %v2617
        %v2633 = vmul.f32 %v2182, %v2617
        %v2634 = vmul.f32 %v2183, %v2617
        %v2635 = vmul.f32 %v2184, %v2617
        %v2636 = vmul.f32 %v2185, %v2617
        %v2637 = vmul.f32 %v2186, %v2617
        %v2638 = vmul.f32 %v2187, %v2617
        %v2639 = vmul.f32 %v2188, %v2617
        %v2640 = vmul.f32 %v2189, %v2617
        %v2641 = vmul.f32 %v2190, %v2617
        %v2642 = vmul.f32 %v2191, %v2617
        %v2643 = vmul.f32 %v2192, %v2617
        %v2644 = vmul.f32 %v2193, %v2617
        %v2645 = vmul.f32 %v2194, %v2617
        %v2646 = vmul.f32 %v2195, %v2617
        %v2647 = vmul.f32 %v2196, %v2617
        %v2648 = vmul.f32 %v2197, %v2617
        %v2649 = vmul.f32 %v2198, %v2617
        %v2650 = vadd.f32 %v2581, %v2618
        %v2651 = vadd.f32 %v2582, %v2619
        %v2652 = vadd.f32 %v2583, %v2620
        %v2653 = vadd.f32 %v2584, %v2621
        %v2654 = vadd.f32 %v2585, %v2622
        %v2655 = vadd.f32 %v2586, %v2623
        %v2656 = vadd.f32 %v2587, %v2624
        %v2657 = vadd.f32 %v2588, %v2625
        %v2658 = vadd.f32 %v2589, %v2626
        %v2659 = vadd.f32 %v2590, %v2627
        %v2660 = vadd.f32 %v2591, %v2628
        %v2661 = vadd.f32 %v2592, %v2629
        %v2662 = vadd.f32 %v2593, %v2630
        %v2663 = vadd.f32 %v2594, %v2631
        %v2664 = vadd.f32 %v2595, %v2632
        %v2665 = vadd.f32 %v2596, %v2633
        %v2666 = vadd.f32 %v2597, %v2634
        %v2667 = vadd.f32 %v2598, %v2635
        %v2668 = vadd.f32 %v2599, %v2636
        %v2669 = vadd.f32 %v2600, %v2637
        %v2670 = vadd.f32 %v2601, %v2638
        %v2671 = vadd.f32 %v2602, %v2639
        %v2672 = vadd.f32 %v2603, %v2640
        %v2673 = vadd.f32 %v2604, %v2641
        %v2674 = vadd.f32 %v2605, %v2642
        %v2675 = vadd.f32 %v2606, %v2643
        %v2676 = vadd.f32 %v2607, %v2644
        %v2677 = vadd.f32 %v2608, %v2645
        %v2678 = vadd.f32 %v2609, %v2646
        %v2679 = vadd.f32 %v2610, %v2647
        %v2680 = vadd.f32 %v2611, %v2648
        %v2681 = vadd.f32 %v2612, %v2649
        %v2682 = vld [vmem:[#allocation2 + $0x4] sm:$0xff]
        %v2683 = vld [vmem:[#allocation2 + $0xc] sm:$0xff]
        %v2684 = vld [vmem:[#allocation2 + $0x1c] sm:$0xff]
        %v2685 = vld [vmem:[#allocation2 + $0x24] sm:$0xff]
        %v2686 = vld [vmem:[#allocation2 + $0x34] sm:$0xff]
        %v2687 = vld [vmem:[#allocation2 + $0x3c] sm:$0xff]
        %v2688 = vld [vmem:[#allocation2 + $0x4c] sm:$0xff]
        %v2689 = vld [vmem:[#allocation2 + $0x54] sm:$0xff]
        %v2690 = vld [vmem:[#allocation2 + $0x64] sm:$0xff]
        %v2691 = vld [vmem:[#allocation2 + $0x6c] sm:$0xff]
        %v2692 = vld [vmem:[#allocation2 + $0x7c] sm:$0xff]
        %v2693 = vld [vmem:[#allocation2 + $0x84] sm:$0xff]
        %v2694 = vld [vmem:[#allocation2 + $0x94] sm:$0xff]
        %v2695 = vld [vmem:[#allocation2 + $0x9c] sm:$0xff]
        %v2696 = vld [vmem:[#allocation2 + $0xac] sm:$0xff]
        %v2697 = vld [vmem:[#allocation2 + $0xb4] sm:$0xff]
        %v2698 = vld [vmem:[#allocation2 + $0xc4] sm:$0xff]
        %v2699 = vld [vmem:[#allocation2 + $0xcc] sm:$0xff]
        %v2700 = vld [vmem:[#allocation2 + $0xdc] sm:$0xff]
        %v2701 = vld [vmem:[#allocation2 + $0xe4] sm:$0xff]
        %v2702 = vld [vmem:[#allocation2 + $0xf4] sm:$0xff]
        %v2703 = vld [vmem:[#allocation2 + $0xfc] sm:$0xff]
        %v2704 = vld [vmem:[#allocation2 + $0x10c] sm:$0xff]
        %v2705 = vld [vmem:[#allocation2 + $0x114] sm:$0xff]
        %v2706 = vld [vmem:[#allocation2 + $0x124] sm:$0xff]
        %v2707 = vld [vmem:[#allocation2 + $0x12c] sm:$0xff]
        %v2708 = vld [vmem:[#allocation2 + $0x13c] sm:$0xff]
        %v2709 = vld [vmem:[#allocation2 + $0x144] sm:$0xff]
        %v2710 = vld [vmem:[#allocation2 + $0x154] sm:$0xff]
        %v2711 = vld [vmem:[#allocation2 + $0x15c] sm:$0xff]
        %v2712 = vld [vmem:[#allocation2 + $0x16c] sm:$0xff]
        %v2713 = vld [vmem:[#allocation2 + $0x174] sm:$0xff]
        %v2714 = vld [vmem:[#allocation2 + $0x184] sm:$0xff]
        %v2715 = vld [vmem:[#allocation2 + $0x18c] sm:$0xff]
        %v2716 = vld [vmem:[#allocation2 + $0x19c] sm:$0xff]
        %v2717 = vld [vmem:[#allocation2 + $0x1a4] sm:$0xff]
        %v2718 = vld [vmem:[#allocation2 + $0x1b4] sm:$0xff]
        %v2719 = vld [vmem:[#allocation2 + $0x1bc] sm:$0xff]
        %v2720 = vld [vmem:[#allocation2 + $0x1cc] sm:$0xff]
        %v2721 = vld [vmem:[#allocation2 + $0x1d4] sm:$0xff]
        %v2722 = vld [vmem:[#allocation2 + $0x1e4] sm:$0xff]
        %v2723 = vld [vmem:[#allocation2 + $0x1ec] sm:$0xff]
        %v2724 = vld [vmem:[#allocation2 + $0x1fc] sm:$0xff]
        %v2725 = vld [vmem:[#allocation2 + $0x204] sm:$0xff]
        %v2726 = vld [vmem:[#allocation6 + $0x4] sm:$0x1]
        %v2727 = vlaneseq
        %v2728 = vshrl.u32 %v2727, 7
        %v2729 = vsub.s32 0, %v2728
        %v2730 = vrot.slane %v2726, %v2729
        %v2731 = vmul.f32 %v2682, %v2730
        %v2732 = vmul.f32 %v2683, %v2730
        %v2733 = vmul.f32 %v2684, %v2730
        %v2734 = vmul.f32 %v2685, %v2730
        %v2735 = vmul.f32 %v2686, %v2730
        %v2736 = vmul.f32 %v2687, %v2730
        %v2737 = vmul.f32 %v2688, %v2730
        %v2738 = vmul.f32 %v2689, %v2730
        %v2739 = vmul.f32 %v2690, %v2730
        %v2740 = vmul.f32 %v2691, %v2730
        %v2741 = vmul.f32 %v2692, %v2730
        %v2742 = vmul.f32 %v2693, %v2730
        %v2743 = vmul.f32 %v2694, %v2730
        %v2744 = vmul.f32 %v2695, %v2730
        %v2745 = vmul.f32 %v2696, %v2730
        %v2746 = vmul.f32 %v2697, %v2730
        %v2747 = vmul.f32 %v2698, %v2730
        %v2748 = vmul.f32 %v2699, %v2730
        %v2749 = vmul.f32 %v2700, %v2730
        %v2750 = vmul.f32 %v2701, %v2730
        %v2751 = vmul.f32 %v2702, %v2730
        %v2752 = vmul.f32 %v2703, %v2730
        %v2753 = vmul.f32 %v2704, %v2730
        %v2754 = vmul.f32 %v2705, %v2730
        %v2755 = vmul.f32 %v2706, %v2730
        %v2756 = vmul.f32 %v2707, %v2730
        %v2757 = vmul.f32 %v2708, %v2730
        %v2758 = vmul.f32 %v2709, %v2730
        %v2759 = vmul.f32 %v2710, %v2730
        %v2760 = vmul.f32 %v2711, %v2730
        %v2761 = vmul.f32 %v2712, %v2730
        %v2762 = vmul.f32 %v2713, %v2730
        %v2763 = vadd.f32 %v2650, %v2731
        %v2764 = vadd.f32 %v2651, %v2732
        %v2765 = vadd.f32 %v2652, %v2733
        %v2766 = vadd.f32 %v2653, %v2734
        %v2767 = vadd.f32 %v2654, %v2735
        %v2768 = vadd.f32 %v2655, %v2736
        %v2769 = vadd.f32 %v2656, %v2737
        %v2770 = vadd.f32 %v2657, %v2738
        %v2771 = vadd.f32 %v2658, %v2739
        %v2772 = vadd.f32 %v2659, %v2740
        %v2773 = vadd.f32 %v2660, %v2741
        %v2774 = vadd.f32 %v2661, %v2742
        %v2775 = vadd.f32 %v2662, %v2743
        %v2776 = vadd.f32 %v2663, %v2744
        %v2777 = vadd.f32 %v2664, %v2745
        %v2778 = vadd.f32 %v2665, %v2746
        %v2779 = vadd.f32 %v2666, %v2747
        %v2780 = vadd.f32 %v2667, %v2748
        %v2781 = vadd.f32 %v2668, %v2749
        %v2782 = vadd.f32 %v2669, %v2750
        %v2783 = vadd.f32 %v2670, %v2751
        %v2784 = vadd.f32 %v2671, %v2752
        %v2785 = vadd.f32 %v2672, %v2753
        %v2786 = vadd.f32 %v2673, %v2754
        %v2787 = vadd.f32 %v2674, %v2755
        %v2788 = vadd.f32 %v2675, %v2756
        %v2789 = vadd.f32 %v2676, %v2757
        %v2790 = vadd.f32 %v2677, %v2758
        %v2791 = vadd.f32 %v2678, %v2759
        %v2792 = vadd.f32 %v2679, %v2760
        %v2793 = vadd.f32 %v2680, %v2761
        %v2794 = vadd.f32 %v2681, %v2762
        %v2795 = vld [vmem:[#allocation6 + $0xb] sm:$0x1]
        %v2796 = vlaneseq
        %v2797 = vshrl.u32 %v2796, 7
        %v2798 = vsub.s32 0, %v2797
        %v2799 = vrot.slane %v2795, %v2798
        %v2800 = vmul.f32 %v2684, %v2799
        %v2801 = vmul.f32 %v2685, %v2799
        %v2802 = vmul.f32 %v2686, %v2799
        %v2803 = vmul.f32 %v2687, %v2799
        %v2804 = vmul.f32 %v2688, %v2799
        %v2805 = vmul.f32 %v2689, %v2799
        %v2806 = vmul.f32 %v2690, %v2799
        %v2807 = vmul.f32 %v2691, %v2799
        %v2808 = vmul.f32 %v2692, %v2799
        %v2809 = vmul.f32 %v2693, %v2799
        %v2810 = vmul.f32 %v2694, %v2799
        %v2811 = vmul.f32 %v2695, %v2799
        %v2812 = vmul.f32 %v2696, %v2799
        %v2813 = vmul.f32 %v2697, %v2799
        %v2814 = vmul.f32 %v2698, %v2799
        %v2815 = vmul.f32 %v2699, %v2799
        %v2816 = vmul.f32 %v2700, %v2799
        %v2817 = vmul.f32 %v2701, %v2799
        %v2818 = vmul.f32 %v2702, %v2799
        %v2819 = vmul.f32 %v2703, %v2799
        %v2820 = vmul.f32 %v2704, %v2799
        %v2821 = vmul.f32 %v2705, %v2799
        %v2822 = vmul.f32 %v2706, %v2799
        %v2823 = vmul.f32 %v2707, %v2799
        %v2824 = vmul.f32 %v2708, %v2799
        %v2825 = vmul.f32 %v2709, %v2799
        %v2826 = vmul.f32 %v2710, %v2799
        %v2827 = vmul.f32 %v2711, %v2799
        %v2828 = vmul.f32 %v2712, %v2799
        %v2829 = vmul.f32 %v2713, %v2799
        %v2830 = vmul.f32 %v2714, %v2799
        %v2831 = vmul.f32 %v2715, %v2799
        %v2832 = vadd.f32 %v2763, %v2800
        %v2833 = vadd.f32 %v2764, %v2801
        %v2834 = vadd.f32 %v2765, %v2802
        %v2835 = vadd.f32 %v2766, %v2803
        %v2836 = vadd.f32 %v2767, %v2804
        %v2837 = vadd.f32 %v2768, %v2805
        %v2838 = vadd.f32 %v2769, %v2806
        %v2839 = vadd.f32 %v2770, %v2807
        %v2840 = vadd.f32 %v2771, %v2808
        %v2841 = vadd.f32 %v2772, %v2809
        %v2842 = vadd.f32 %v2773, %v2810
        %v2843 = vadd.f32 %v2774, %v2811
        %v2844 = vadd.f32 %v2775, %v2812
        %v2845 = vadd.f32 %v2776, %v2813
        %v2846 = vadd.f32 %v2777, %v2814
        %v2847 = vadd.f32 %v2778, %v2815
        %v2848 = vadd.f32 %v2779, %v2816
        %v2849 = vadd.f32 %v2780, %v2817
        %v2850 = vadd.f32 %v2781, %v2818
        %v2851 = vadd.f32 %v2782, %v2819
        %v2852 = vadd.f32 %v2783, %v2820
        %v2853 = vadd.f32 %v2784, %v2821
        %v2854 = vadd.f32 %v2785, %v2822
        %v2855 = vadd.f32 %v2786, %v2823
        %v2856 = vadd.f32 %v2787, %v2824
        %v2857 = vadd.f32 %v2788, %v2825
        %v2858 = vadd.f32 %v2789, %v2826
        %v2859 = vadd.f32 %v2790, %v2827
        %v2860 = vadd.f32 %v2791, %v2828
        %v2861 = vadd.f32 %v2792, %v2829
        %v2862 = vadd.f32 %v2793, %v2830
        %v2863 = vadd.f32 %v2794, %v2831
        %v2864 = vld [vmem:[#allocation6 + $0x12] sm:$0x1]
        %v2865 = vlaneseq
        %v2866 = vshrl.u32 %v2865, 7
        %v2867 = vsub.s32 0, %v2866
        %v2868 = vrot.slane %v2864, %v2867
        %v2869 = vmul.f32 %v2686, %v2868
        %v2870 = vmul.f32 %v2687, %v2868
        %v2871 = vmul.f32 %v2688, %v2868
        %v2872 = vmul.f32 %v2689, %v2868
        %v2873 = vmul.f32 %v2690, %v2868
        %v2874 = vmul.f32 %v2691, %v2868
        %v2875 = vmul.f32 %v2692, %v2868
        %v2876 = vmul.f32 %v2693, %v2868
        %v2877 = vmul.f32 %v2694, %v2868
        %v2878 = vmul.f32 %v2695, %v2868
        %v2879 = vmul.f32 %v2696, %v2868
        %v2880 = vmul.f32 %v2697, %v2868
        %v2881 = vmul.f32 %v2698, %v2868
        %v2882 = vmul.f32 %v2699, %v2868
        %v2883 = vmul.f32 %v2700, %v2868
        %v2884 = vmul.f32 %v2701, %v2868
        %v2885 = vmul.f32 %v2702, %v2868
        %v2886 = vmul.f32 %v2703, %v2868
        %v2887 = vmul.f32 %v2704, %v2868
        %v2888 = vmul.f32 %v2705, %v2868
        %v2889 = vmul.f32 %v2706, %v2868
        %v2890 = vmul.f32 %v2707, %v2868
        %v2891 = vmul.f32 %v2708, %v2868
        %v2892 = vmul.f32 %v2709, %v2868
        %v2893 = vmul.f32 %v2710, %v2868
        %v2894 = vmul.f32 %v2711, %v2868
        %v2895 = vmul.f32 %v2712, %v2868
        %v2896 = vmul.f32 %v2713, %v2868
        %v2897 = vmul.f32 %v2714, %v2868
        %v2898 = vmul.f32 %v2715, %v2868
        %v2899 = vmul.f32 %v2716, %v2868
        %v2900 = vmul.f32 %v2717, %v2868
        %v2901 = vadd.f32 %v2832, %v2869
        %v2902 = vadd.f32 %v2833, %v2870
        %v2903 = vadd.f32 %v2834, %v2871
        %v2904 = vadd.f32 %v2835, %v2872
        %v2905 = vadd.f32 %v2836, %v2873
        %v2906 = vadd.f32 %v2837, %v2874
        %v2907 = vadd.f32 %v2838, %v2875
        %v2908 = vadd.f32 %v2839, %v2876
        %v2909 = vadd.f32 %v2840, %v2877
        %v2910 = vadd.f32 %v2841, %v2878
        %v2911 = vadd.f32 %v2842, %v2879
        %v2912 = vadd.f32 %v2843, %v2880
        %v2913 = vadd.f32 %v2844, %v2881
        %v2914 = vadd.f32 %v2845, %v2882
        %v2915 = vadd.f32 %v2846, %v2883
        %v2916 = vadd.f32 %v2847, %v2884
        %v2917 = vadd.f32 %v2848, %v2885
        %v2918 = vadd.f32 %v2849, %v2886
        %v2919 = vadd.f32 %v2850, %v2887
        %v2920 = vadd.f32 %v2851, %v2888
        %v2921 = vadd.f32 %v2852, %v2889
        %v2922 = vadd.f32 %v2853, %v2890
        %v2923 = vadd.f32 %v2854, %v2891
        %v2924 = vadd.f32 %v2855, %v2892
        %v2925 = vadd.f32 %v2856, %v2893
        %v2926 = vadd.f32 %v2857, %v2894
        %v2927 = vadd.f32 %v2858, %v2895
        %v2928 = vadd.f32 %v2859, %v2896
        %v2929 = vadd.f32 %v2860, %v2897
        %v2930 = vadd.f32 %v2861, %v2898
        %v2931 = vadd.f32 %v2862, %v2899
        %v2932 = vadd.f32 %v2863, %v2900
        %v2933 = vld [vmem:[#allocation6 + $0x19] sm:$0x1]
        %v2934 = vlaneseq
        %v2935 = vshrl.u32 %v2934, 7
        %v2936 = vsub.s32 0, %v2935
        %v2937 = vrot.slane %v2933, %v2936
        %v2938 = vmul.f32 %v2688, %v2937
        %v2939 = vmul.f32 %v2689, %v2937
        %v2940 = vmul.f32 %v2690, %v2937
        %v2941 = vmul.f32 %v2691, %v2937
        %v2942 = vmul.f32 %v2692, %v2937
        %v2943 = vmul.f32 %v2693, %v2937
        %v2944 = vmul.f32 %v2694, %v2937
        %v2945 = vmul.f32 %v2695, %v2937
        %v2946 = vmul.f32 %v2696, %v2937
        %v2947 = vmul.f32 %v2697, %v2937
        %v2948 = vmul.f32 %v2698, %v2937
        %v2949 = vmul.f32 %v2699, %v2937
        %v2950 = vmul.f32 %v2700, %v2937
        %v2951 = vmul.f32 %v2701, %v2937
        %v2952 = vmul.f32 %v2702, %v2937
        %v2953 = vmul.f32 %v2703, %v2937
        %v2954 = vmul.f32 %v2704, %v2937
        %v2955 = vmul.f32 %v2705, %v2937
        %v2956 = vmul.f32 %v2706, %v2937
        %v2957 = vmul.f32 %v2707, %v2937
        %v2958 = vmul.f32 %v2708, %v2937
        %v2959 = vmul.f32 %v2709, %v2937
        %v2960 = vmul.f32 %v2710, %v2937
        %v2961 = vmul.f32 %v2711, %v2937
        %v2962 = vmul.f32 %v2712, %v2937
        %v2963 = vmul.f32 %v2713, %v2937
        %v2964 = vmul.f32 %v2714, %v2937
        %v2965 = vmul.f32 %v2715, %v2937
        %v2966 = vmul.f32 %v2716, %v2937
        %v2967 = vmul.f32 %v2717, %v2937
        %v2968 = vmul.f32 %v2718, %v2937
        %v2969 = vmul.f32 %v2719, %v2937
        %v2970 = vadd.f32 %v2901, %v2938
        %v2971 = vadd.f32 %v2902, %v2939
        %v2972 = vadd.f32 %v2903, %v2940
        %v2973 = vadd.f32 %v2904, %v2941
        %v2974 = vadd.f32 %v2905, %v2942
        %v2975 = vadd.f32 %v2906, %v2943
        %v2976 = vadd.f32 %v2907, %v2944
        %v2977 = vadd.f32 %v2908, %v2945
        %v2978 = vadd.f32 %v2909, %v2946
        %v2979 = vadd.f32 %v2910, %v2947
        %v2980 = vadd.f32 %v2911, %v2948
        %v2981 = vadd.f32 %v2912, %v2949
        %v2982 = vadd.f32 %v2913, %v2950
        %v2983 = vadd.f32 %v2914, %v2951
        %v2984 = vadd.f32 %v2915, %v2952
        %v2985 = vadd.f32 %v2916, %v2953
        %v2986 = vadd.f32 %v2917, %v2954
        %v2987 = vadd.f32 %v2918, %v2955
        %v2988 = vadd.f32 %v2919, %v2956
        %v2989 = vadd.f32 %v2920, %v2957
        %v2990 = vadd.f32 %v2921, %v2958
        %v2991 = vadd.f32 %v2922, %v2959
        %v2992 = vadd.f32 %v2923, %v2960
        %v2993 = vadd.f32 %v2924, %v2961
        %v2994 = vadd.f32 %v2925, %v2962
        %v2995 = vadd.f32 %v2926, %v2963
        %v2996 = vadd.f32 %v2927, %v2964
        %v2997 = vadd.f32 %v2928, %v2965
        %v2998 = vadd.f32 %v2929, %v2966
        %v2999 = vadd.f32 %v2930, %v2967
        %v3000 = vadd.f32 %v2931, %v2968
        %v3001 = vadd.f32 %v2932, %v2969
        %v3002 = vld [vmem:[#allocation6 + $0x20] sm:$0x1]
        %v3003 = vlaneseq
        %v3004 = vshrl.u32 %v3003, 7
        %v3005 = vsub.s32 0, %v3004
        %v3006 = vrot.slane %v3002, %v3005
        %v3007 = vmul.f32 %v2690, %v3006
        %v3008 = vmul.f32 %v2691, %v3006
        %v3009 = vmul.f32 %v2692, %v3006
        %v3010 = vmul.f32 %v2693, %v3006
        %v3011 = vmul.f32 %v2694, %v3006
        %v3012 = vmul.f32 %v2695, %v3006
        %v3013 = vmul.f32 %v2696, %v3006
        %v3014 = vmul.f32 %v2697, %v3006
        %v3015 = vmul.f32 %v2698, %v3006
        %v3016 = vmul.f32 %v2699, %v3006
        %v3017 = vmul.f32 %v2700, %v3006
        %v3018 = vmul.f32 %v2701, %v3006
        %v3019 = vmul.f32 %v2702, %v3006
        %v3020 = vmul.f32 %v2703, %v3006
        %v3021 = vmul.f32 %v2704, %v3006
        %v3022 = vmul.f32 %v2705, %v3006
        %v3023 = vmul.f32 %v2706, %v3006
        %v3024 = vmul.f32 %v2707, %v3006
        %v3025 = vmul.f32 %v2708, %v3006
        %v3026 = vmul.f32 %v2709, %v3006
        %v3027 = vmul.f32 %v2710, %v3006
        %v3028 = vmul.f32 %v2711, %v3006
        %v3029 = vmul.f32 %v2712, %v3006
        %v3030 = vmul.f32 %v2713, %v3006
        %v3031 = vmul.f32 %v2714, %v3006
        %v3032 = vmul.f32 %v2715, %v3006
        %v3033 = vmul.f32 %v2716, %v3006
        %v3034 = vmul.f32 %v2717, %v3006
        %v3035 = vmul.f32 %v2718, %v3006
        %v3036 = vmul.f32 %v2719, %v3006
        %v3037 = vmul.f32 %v2720, %v3006
        %v3038 = vmul.f32 %v2721, %v3006
        %v3039 = vadd.f32 %v2970, %v3007
        %v3040 = vadd.f32 %v2971, %v3008
        %v3041 = vadd.f32 %v2972, %v3009
        %v3042 = vadd.f32 %v2973, %v3010
        %v3043 = vadd.f32 %v2974, %v3011
        %v3044 = vadd.f32 %v2975, %v3012
        %v3045 = vadd.f32 %v2976, %v3013
        %v3046 = vadd.f32 %v2977, %v3014
        %v3047 = vadd.f32 %v2978, %v3015
        %v3048 = vadd.f32 %v2979, %v3016
        %v3049 = vadd.f32 %v2980, %v3017
        %v3050 = vadd.f32 %v2981, %v3018
        %v3051 = vadd.f32 %v2982, %v3019
        %v3052 = vadd.f32 %v2983, %v3020
        %v3053 = vadd.f32 %v2984, %v3021
        %v3054 = vadd.f32 %v2985, %v3022
        %v3055 = vadd.f32 %v2986, %v3023
        %v3056 = vadd.f32 %v2987, %v3024
        %v3057 = vadd.f32 %v2988, %v3025
        %v3058 = vadd.f32 %v2989, %v3026
        %v3059 = vadd.f32 %v2990, %v3027
        %v3060 = vadd.f32 %v2991, %v3028
        %v3061 = vadd.f32 %v2992, %v3029
        %v3062 = vadd.f32 %v2993, %v3030
        %v3063 = vadd.f32 %v2994, %v3031
        %v3064 = vadd.f32 %v2995, %v3032
        %v3065 = vadd.f32 %v2996, %v3033
        %v3066 = vadd.f32 %v2997, %v3034
        %v3067 = vadd.f32 %v2998, %v3035
        %v3068 = vadd.f32 %v2999, %v3036
        %v3069 = vadd.f32 %v3000, %v3037
        %v3070 = vadd.f32 %v3001, %v3038
        %v3071 = vld [vmem:[#allocation6 + $0x27] sm:$0x1]
        %v3072 = vlaneseq
        %v3073 = vshrl.u32 %v3072, 7
        %v3074 = vsub.s32 0, %v3073
        %v3075 = vrot.slane %v3071, %v3074
        %v3076 = vmul.f32 %v2692, %v3075
        %v3077 = vmul.f32 %v2693, %v3075
        %v3078 = vmul.f32 %v2694, %v3075
        %v3079 = vmul.f32 %v2695, %v3075
        %v3080 = vmul.f32 %v2696, %v3075
        %v3081 = vmul.f32 %v2697, %v3075
        %v3082 = vmul.f32 %v2698, %v3075
        %v3083 = vmul.f32 %v2699, %v3075
        %v3084 = vmul.f32 %v2700, %v3075
        %v3085 = vmul.f32 %v2701, %v3075
        %v3086 = vmul.f32 %v2702, %v3075
        %v3087 = vmul.f32 %v2703, %v3075
        %v3088 = vmul.f32 %v2704, %v3075
        %v3089 = vmul.f32 %v2705, %v3075
        %v3090 = vmul.f32 %v2706, %v3075
        %v3091 = vmul.f32 %v2707, %v3075
        %v3092 = vmul.f32 %v2708, %v3075
        %v3093 = vmul.f32 %v2709, %v3075
        %v3094 = vmul.f32 %v2710, %v3075
        %v3095 = vmul.f32 %v2711, %v3075
        %v3096 = vmul.f32 %v2712, %v3075
        %v3097 = vmul.f32 %v2713, %v3075
        %v3098 = vmul.f32 %v2714, %v3075
        %v3099 = vmul.f32 %v2715, %v3075
        %v3100 = vmul.f32 %v2716, %v3075
        %v3101 = vmul.f32 %v2717, %v3075
        %v3102 = vmul.f32 %v2718, %v3075
        %v3103 = vmul.f32 %v2719, %v3075
        %v3104 = vmul.f32 %v2720, %v3075
        %v3105 = vmul.f32 %v2721, %v3075
        %v3106 = vmul.f32 %v2722, %v3075
        %v3107 = vmul.f32 %v2723, %v3075
        %v3108 = vadd.f32 %v3039, %v3076
        %v3109 = vadd.f32 %v3040, %v3077
        %v3110 = vadd.f32 %v3041, %v3078
        %v3111 = vadd.f32 %v3042, %v3079
        %v3112 = vadd.f32 %v3043, %v3080
        %v3113 = vadd.f32 %v3044, %v3081
        %v3114 = vadd.f32 %v3045, %v3082
        %v3115 = vadd.f32 %v3046, %v3083
        %v3116 = vadd.f32 %v3047, %v3084
        %v3117 = vadd.f32 %v3048, %v3085
        %v3118 = vadd.f32 %v3049, %v3086
        %v3119 = vadd.f32 %v3050, %v3087
        %v3120 = vadd.f32 %v3051, %v3088
        %v3121 = vadd.f32 %v3052, %v3089
        %v3122 = vadd.f32 %v3053, %v3090
        %v3123 = vadd.f32 %v3054, %v3091
        %v3124 = vadd.f32 %v3055, %v3092
        %v3125 = vadd.f32 %v3056, %v3093
        %v3126 = vadd.f32 %v3057, %v3094
        %v3127 = vadd.f32 %v3058, %v3095
        %v3128 = vadd.f32 %v3059, %v3096
        %v3129 = vadd.f32 %v3060, %v3097
        %v3130 = vadd.f32 %v3061, %v3098
        %v3131 = vadd.f32 %v3062, %v3099
        %v3132 = vadd.f32 %v3063, %v3100
        %v3133 = vadd.f32 %v3064, %v3101
        %v3134 = vadd.f32 %v3065, %v3102
        %v3135 = vadd.f32 %v3066, %v3103
        %v3136 = vadd.f32 %v3067, %v3104
        %v3137 = vadd.f32 %v3068, %v3105
        %v3138 = vadd.f32 %v3069, %v3106
        %v3139 = vadd.f32 %v3070, %v3107
        %v3140 = vld [vmem:[#allocation6 + $0x2e] sm:$0x1]
        %v3141 = vlaneseq
        %v3142 = vshrl.u32 %v3141, 7
        %v3143 = vsub.s32 0, %v3142
        %v3144 = vrot.slane %v3140, %v3143
        %v3145 = vmul.f32 %v2694, %v3144
        %v3146 = vmul.f32 %v2695, %v3144
        %v3147 = vmul.f32 %v2696, %v3144
        %v3148 = vmul.f32 %v2697, %v3144
        %v3149 = vmul.f32 %v2698, %v3144
        %v3150 = vmul.f32 %v2699, %v3144
        %v3151 = vmul.f32 %v2700, %v3144
        %v3152 = vmul.f32 %v2701, %v3144
        %v3153 = vmul.f32 %v2702, %v3144
        %v3154 = vmul.f32 %v2703, %v3144
        %v3155 = vmul.f32 %v2704, %v3144
        %v3156 = vmul.f32 %v2705, %v3144
        %v3157 = vmul.f32 %v2706, %v3144
        %v3158 = vmul.f32 %v2707, %v3144
        %v3159 = vmul.f32 %v2708, %v3144
        %v3160 = vmul.f32 %v2709, %v3144
        %v3161 = vmul.f32 %v2710, %v3144
        %v3162 = vmul.f32 %v2711, %v3144
        %v3163 = vmul.f32 %v2712, %v3144
        %v3164 = vmul.f32 %v2713, %v3144
        %v3165 = vmul.f32 %v2714, %v3144
        %v3166 = vmul.f32 %v2715, %v3144
        %v3167 = vmul.f32 %v2716, %v3144
        %v3168 = vmul.f32 %v2717, %v3144
        %v3169 = vmul.f32 %v2718, %v3144
        %v3170 = vmul.f32 %v2719, %v3144
        %v3171 = vmul.f32 %v2720, %v3144
        %v3172 = vmul.f32 %v2721, %v3144
        %v3173 = vmul.f32 %v2722, %v3144
        %v3174 = vmul.f32 %v2723, %v3144
        %v3175 = vmul.f32 %v2724, %v3144
        %v3176 = vmul.f32 %v2725, %v3144
        %v3177 = vadd.f32 %v3108, %v3145
        %v3178 = vadd.f32 %v3109, %v3146
        %v3179 = vadd.f32 %v3110, %v3147
        %v3180 = vadd.f32 %v3111, %v3148
        %v3181 = vadd.f32 %v3112, %v3149
        %v3182 = vadd.f32 %v3113, %v3150
        %v3183 = vadd.f32 %v3114, %v3151
        %v3184 = vadd.f32 %v3115, %v3152
        %v3185 = vadd.f32 %v3116, %v3153
        %v3186 = vadd.f32 %v3117, %v3154
        %v3187 = vadd.f32 %v3118, %v3155
        %v3188 = vadd.f32 %v3119, %v3156
        %v3189 = vadd.f32 %v3120, %v3157
        %v3190 = vadd.f32 %v3121, %v3158
        %v3191 = vadd.f32 %v3122, %v3159
        %v3192 = vadd.f32 %v3123, %v3160
        %v3193 = vadd.f32 %v3124, %v3161
        %v3194 = vadd.f32 %v3125, %v3162
        %v3195 = vadd.f32 %v3126, %v3163
        %v3196 = vadd.f32 %v3127, %v3164
        %v3197 = vadd.f32 %v3128, %v3165
        %v3198 = vadd.f32 %v3129, %v3166
        %v3199 = vadd.f32 %v3130, %v3167
        %v3200 = vadd.f32 %v3131, %v3168
        %v3201 = vadd.f32 %v3132, %v3169
        %v3202 = vadd.f32 %v3133, %v3170
        %v3203 = vadd.f32 %v3134, %v3171
        %v3204 = vadd.f32 %v3135, %v3172
        %v3205 = vadd.f32 %v3136, %v3173
        %v3206 = vadd.f32 %v3137, %v3174
        %v3207 = vadd.f32 %v3138, %v3175
        %v3208 = vadd.f32 %v3139, %v3176
        %v3209 = vld [vmem:[#allocation2 + $0x5] sm:$0xff]
        %v3210 = vld [vmem:[#allocation2 + $0xd] sm:$0xff]
        %v3211 = vld [vmem:[#allocation2 + $0x1d] sm:$0xff]
        %v3212 = vld [vmem:[#allocation2 + $0x25] sm:$0xff]
        %v3213 = vld [vmem:[#allocation2 + $0x35] sm:$0xff]
        %v3214 = vld [vmem:[#allocation2 + $0x3d] sm:$0xff]
        %v3215 = vld [vmem:[#allocation2 + $0x4d] sm:$0xff]
        %v3216 = vld [vmem:[#allocation2 + $0x55] sm:$0xff]
        %v3217 = vld [vmem:[#allocation2 + $0x65] sm:$0xff]
        %v3218 = vld [vmem:[#allocation2 + $0x6d] sm:$0xff]
        %v3219 = vld [vmem:[#allocation2 + $0x7d] sm:$0xff]
        %v3220 = vld [vmem:[#allocation2 + $0x85] sm:$0xff]
        %v3221 = vld [vmem:[#allocation2 + $0x95] sm:$0xff]
        %v3222 = vld [vmem:[#allocation2 + $0x9d] sm:$0xff]
        %v3223 = vld [vmem:[#allocation2 + $0xad] sm:$0xff]
        %v3224 = vld [vmem:[#allocation2 + $0xb5] sm:$0xff]
        %v3225 = vld [vmem:[#allocation2 + $0xc5] sm:$0xff]
        %v3226 = vld [vmem:[#allocation2 + $0xcd] sm:$0xff]
        %v3227 = vld [vmem:[#allocation2 + $0xdd] sm:$0xff]
        %v3228 = vld [vmem:[#allocation2 + $0xe5] sm:$0xff]
        %v3229 = vld [vmem:[#allocation2 + $0xf5] sm:$0xff]
        %v3230 = vld [vmem:[#allocation2 + $0xfd] sm:$0xff]
        %v3231 = vld [vmem:[#allocation2 + $0x10d] sm:$0xff]
        %v3232 = vld [vmem:[#allocation2 + $0x115] sm:$0xff]
        %v3233 = vld [vmem:[#allocation2 + $0x125] sm:$0xff]
        %v3234 = vld [vmem:[#allocation2 + $0x12d] sm:$0xff]
        %v3235 = vld [vmem:[#allocation2 + $0x13d] sm:$0xff]
        %v3236 = vld [vmem:[#allocation2 + $0x145] sm:$0xff]
        %v3237 = vld [vmem:[#allocation2 + $0x155] sm:$0xff]
        %v3238 = vld [vmem:[#allocation2 + $0x15d] sm:$0xff]
        %v3239 = vld [vmem:[#allocation2 + $0x16d] sm:$0xff]
        %v3240 = vld [vmem:[#allocation2 + $0x175] sm:$0xff]
        %v3241 = vld [vmem:[#allocation2 + $0x185] sm:$0xff]
        %v3242 = vld [vmem:[#allocation2 + $0x18d] sm:$0xff]
        %v3243 = vld [vmem:[#allocation2 + $0x19d] sm:$0xff]
        %v3244 = vld [vmem:[#allocation2 + $0x1a5] sm:$0xff]
        %v3245 = vld [vmem:[#allocation2 + $0x1b5] sm:$0xff]
        %v3246 = vld [vmem:[#allocation2 + $0x1bd] sm:$0xff]
        %v3247 = vld [vmem:[#allocation2 + $0x1cd] sm:$0xff]
        %v3248 = vld [vmem:[#allocation2 + $0x1d5] sm:$0xff]
        %v3249 = vld [vmem:[#allocation2 + $0x1e5] sm:$0xff]
        %v3250 = vld [vmem:[#allocation2 + $0x1ed] sm:$0xff]
        %v3251 = vld [vmem:[#allocation2 + $0x1fd] sm:$0xff]
        %v3252 = vld [vmem:[#allocation2 + $0x205] sm:$0xff]
        %v3253 = vld [vmem:[#allocation6 + $0x5] sm:$0x1]
        %v3254 = vlaneseq
        %v3255 = vshrl.u32 %v3254, 7
        %v3256 = vsub.s32 0, %v3255
        %v3257 = vrot.slane %v3253, %v3256
        %v3258 = vmul.f32 %v3209, %v3257
        %v3259 = vmul.f32 %v3210, %v3257
        %v3260 = vmul.f32 %v3211, %v3257
        %v3261 = vmul.f32 %v3212, %v3257
        %v3262 = vmul.f32 %v3213, %v3257
        %v3263 = vmul.f32 %v3214, %v3257
        %v3264 = vmul.f32 %v3215, %v3257
        %v3265 = vmul.f32 %v3216, %v3257
        %v3266 = vmul.f32 %v3217, %v3257
        %v3267 = vmul.f32 %v3218, %v3257
        %v3268 = vmul.f32 %v3219, %v3257
        %v3269 = vmul.f32 %v3220, %v3257
        %v3270 = vmul.f32 %v3221, %v3257
        %v3271 = vmul.f32 %v3222, %v3257
        %v3272 = vmul.f32 %v3223, %v3257
        %v3273 = vmul.f32 %v3224, %v3257
        %v3274 = vmul.f32 %v3225, %v3257
        %v3275 = vmul.f32 %v3226, %v3257
        %v3276 = vmul.f32 %v3227, %v3257
        %v3277 = vmul.f32 %v3228, %v3257
        %v3278 = vmul.f32 %v3229, %v3257
        %v3279 = vmul.f32 %v3230, %v3257
        %v3280 = vmul.f32 %v3231, %v3257
        %v3281 = vmul.f32 %v3232, %v3257
        %v3282 = vmul.f32 %v3233, %v3257
        %v3283 = vmul.f32 %v3234, %v3257
        %v3284 = vmul.f32 %v3235, %v3257
        %v3285 = vmul.f32 %v3236, %v3257
        %v3286 = vmul.f32 %v3237, %v3257
        %v3287 = vmul.f32 %v3238, %v3257
        %v3288 = vmul.f32 %v3239, %v3257
        %v3289 = vmul.f32 %v3240, %v3257
        %v3290 = vadd.f32 %v3177, %v3258
        %v3291 = vadd.f32 %v3178, %v3259
        %v3292 = vadd.f32 %v3179, %v3260
        %v3293 = vadd.f32 %v3180, %v3261
        %v3294 = vadd.f32 %v3181, %v3262
        %v3295 = vadd.f32 %v3182, %v3263
        %v3296 = vadd.f32 %v3183, %v3264
        %v3297 = vadd.f32 %v3184, %v3265
        %v3298 = vadd.f32 %v3185, %v3266
        %v3299 = vadd.f32 %v3186, %v3267
        %v3300 = vadd.f32 %v3187, %v3268
        %v3301 = vadd.f32 %v3188, %v3269
        %v3302 = vadd.f32 %v3189, %v3270
        %v3303 = vadd.f32 %v3190, %v3271
        %v3304 = vadd.f32 %v3191, %v3272
        %v3305 = vadd.f32 %v3192, %v3273
        %v3306 = vadd.f32 %v3193, %v3274
        %v3307 = vadd.f32 %v3194, %v3275
        %v3308 = vadd.f32 %v3195, %v3276
        %v3309 = vadd.f32 %v3196, %v3277
        %v3310 = vadd.f32 %v3197, %v3278
        %v3311 = vadd.f32 %v3198, %v3279
        %v3312 = vadd.f32 %v3199, %v3280
        %v3313 = vadd.f32 %v3200, %v3281
        %v3314 = vadd.f32 %v3201, %v3282
        %v3315 = vadd.f32 %v3202, %v3283
        %v3316 = vadd.f32 %v3203, %v3284
        %v3317 = vadd.f32 %v3204, %v3285
        %v3318 = vadd.f32 %v3205, %v3286
        %v3319 = vadd.f32 %v3206, %v3287
        %v3320 = vadd.f32 %v3207, %v3288
        %v3321 = vadd.f32 %v3208, %v3289
        %v3322 = vld [vmem:[#allocation6 + $0xc] sm:$0x1]
        %v3323 = vlaneseq
        %v3324 = vshrl.u32 %v3323, 7
        %v3325 = vsub.s32 0, %v3324
        %v3326 = vrot.slane %v3322, %v3325
        %v3327 = vmul.f32 %v3211, %v3326
        %v3328 = vmul.f32 %v3212, %v3326
        %v3329 = vmul.f32 %v3213, %v3326
        %v3330 = vmul.f32 %v3214, %v3326
        %v3331 = vmul.f32 %v3215, %v3326
        %v3332 = vmul.f32 %v3216, %v3326
        %v3333 = vmul.f32 %v3217, %v3326
        %v3334 = vmul.f32 %v3218, %v3326
        %v3335 = vmul.f32 %v3219, %v3326
        %v3336 = vmul.f32 %v3220, %v3326
        %v3337 = vmul.f32 %v3221, %v3326
        %v3338 = vmul.f32 %v3222, %v3326
        %v3339 = vmul.f32 %v3223, %v3326
        %v3340 = vmul.f32 %v3224, %v3326
        %v3341 = vmul.f32 %v3225, %v3326
        %v3342 = vmul.f32 %v3226, %v3326
        %v3343 = vmul.f32 %v3227, %v3326
        %v3344 = vmul.f32 %v3228, %v3326
        %v3345 = vmul.f32 %v3229, %v3326
        %v3346 = vmul.f32 %v3230, %v3326
        %v3347 = vmul.f32 %v3231, %v3326
        %v3348 = vmul.f32 %v3232, %v3326
        %v3349 = vmul.f32 %v3233, %v3326
        %v3350 = vmul.f32 %v3234, %v3326
        %v3351 = vmul.f32 %v3235, %v3326
        %v3352 = vmul.f32 %v3236, %v3326
        %v3353 = vmul.f32 %v3237, %v3326
        %v3354 = vmul.f32 %v3238, %v3326
        %v3355 = vmul.f32 %v3239, %v3326
        %v3356 = vmul.f32 %v3240, %v3326
        %v3357 = vmul.f32 %v3241, %v3326
        %v3358 = vmul.f32 %v3242, %v3326
        %v3359 = vadd.f32 %v3290, %v3327
        %v3360 = vadd.f32 %v3291, %v3328
        %v3361 = vadd.f32 %v3292, %v3329
        %v3362 = vadd.f32 %v3293, %v3330
        %v3363 = vadd.f32 %v3294, %v3331
        %v3364 = vadd.f32 %v3295, %v3332
        %v3365 = vadd.f32 %v3296, %v3333
        %v3366 = vadd.f32 %v3297, %v3334
        %v3367 = vadd.f32 %v3298, %v3335
        %v3368 = vadd.f32 %v3299, %v3336
        %v3369 = vadd.f32 %v3300, %v3337
        %v3370 = vadd.f32 %v3301, %v3338
        %v3371 = vadd.f32 %v3302, %v3339
        %v3372 = vadd.f32 %v3303, %v3340
        %v3373 = vadd.f32 %v3304, %v3341
        %v3374 = vadd.f32 %v3305, %v3342
        %v3375 = vadd.f32 %v3306, %v3343
        %v3376 = vadd.f32 %v3307, %v3344
        %v3377 = vadd.f32 %v3308, %v3345
        %v3378 = vadd.f32 %v3309, %v3346
        %v3379 = vadd.f32 %v3310, %v3347
        %v3380 = vadd.f32 %v3311, %v3348
        %v3381 = vadd.f32 %v3312, %v3349
        %v3382 = vadd.f32 %v3313, %v3350
        %v3383 = vadd.f32 %v3314, %v3351
        %v3384 = vadd.f32 %v3315, %v3352
        %v3385 = vadd.f32 %v3316, %v3353
        %v3386 = vadd.f32 %v3317, %v3354
        %v3387 = vadd.f32 %v3318, %v3355
        %v3388 = vadd.f32 %v3319, %v3356
        %v3389 = vadd.f32 %v3320, %v3357
        %v3390 = vadd.f32 %v3321, %v3358
        %v3391 = vld [vmem:[#allocation6 + $0x13] sm:$0x1]
        %v3392 = vlaneseq
        %v3393 = vshrl.u32 %v3392, 7
        %v3394 = vsub.s32 0, %v3393
        %v3395 = vrot.slane %v3391, %v3394
        %v3396 = vmul.f32 %v3213, %v3395
        %v3397 = vmul.f32 %v3214, %v3395
        %v3398 = vmul.f32 %v3215, %v3395
        %v3399 = vmul.f32 %v3216, %v3395
        %v3400 = vmul.f32 %v3217, %v3395
        %v3401 = vmul.f32 %v3218, %v3395
        %v3402 = vmul.f32 %v3219, %v3395
        %v3403 = vmul.f32 %v3220, %v3395
        %v3404 = vmul.f32 %v3221, %v3395
        %v3405 = vmul.f32 %v3222, %v3395
        %v3406 = vmul.f32 %v3223, %v3395
        %v3407 = vmul.f32 %v3224, %v3395
        %v3408 = vmul.f32 %v3225, %v3395
        %v3409 = vmul.f32 %v3226, %v3395
        %v3410 = vmul.f32 %v3227, %v3395
        %v3411 = vmul.f32 %v3228, %v3395
        %v3412 = vmul.f32 %v3229, %v3395
        %v3413 = vmul.f32 %v3230, %v3395
        %v3414 = vmul.f32 %v3231, %v3395
        %v3415 = vmul.f32 %v3232, %v3395
        %v3416 = vmul.f32 %v3233, %v3395
        %v3417 = vmul.f32 %v3234, %v3395
        %v3418 = vmul.f32 %v3235, %v3395
        %v3419 = vmul.f32 %v3236, %v3395
        %v3420 = vmul.f32 %v3237, %v3395
        %v3421 = vmul.f32 %v3238, %v3395
        %v3422 = vmul.f32 %v3239, %v3395
        %v3423 = vmul.f32 %v3240, %v3395
        %v3424 = vmul.f32 %v3241, %v3395
        %v3425 = vmul.f32 %v3242, %v3395
        %v3426 = vmul.f32 %v3243, %v3395
        %v3427 = vmul.f32 %v3244, %v3395
        %v3428 = vadd.f32 %v3359, %v3396
        %v3429 = vadd.f32 %v3360, %v3397
        %v3430 = vadd.f32 %v3361, %v3398
        %v3431 = vadd.f32 %v3362, %v3399
        %v3432 = vadd.f32 %v3363, %v3400
        %v3433 = vadd.f32 %v3364, %v3401
        %v3434 = vadd.f32 %v3365, %v3402
        %v3435 = vadd.f32 %v3366, %v3403
        %v3436 = vadd.f32 %v3367, %v3404
        %v3437 = vadd.f32 %v3368, %v3405
        %v3438 = vadd.f32 %v3369, %v3406
        %v3439 = vadd.f32 %v3370, %v3407
        %v3440 = vadd.f32 %v3371, %v3408
        %v3441 = vadd.f32 %v3372, %v3409
        %v3442 = vadd.f32 %v3373, %v3410
        %v3443 = vadd.f32 %v3374, %v3411
        %v3444 = vadd.f32 %v3375, %v3412
        %v3445 = vadd.f32 %v3376, %v3413
        %v3446 = vadd.f32 %v3377, %v3414
        %v3447 = vadd.f32 %v3378, %v3415
        %v3448 = vadd.f32 %v3379, %v3416
        %v3449 = vadd.f32 %v3380, %v3417
        %v3450 = vadd.f32 %v3381, %v3418
        %v3451 = vadd.f32 %v3382, %v3419
        %v3452 = vadd.f32 %v3383, %v3420
        %v3453 = vadd.f32 %v3384, %v3421
        %v3454 = vadd.f32 %v3385, %v3422
        %v3455 = vadd.f32 %v3386, %v3423
        %v3456 = vadd.f32 %v3387, %v3424
        %v3457 = vadd.f32 %v3388, %v3425
        %v3458 = vadd.f32 %v3389, %v3426
        %v3459 = vadd.f32 %v3390, %v3427
        %v3460 = vld [vmem:[#allocation6 + $0x1a] sm:$0x1]
        %v3461 = vlaneseq
        %v3462 = vshrl.u32 %v3461, 7
        %v3463 = vsub.s32 0, %v3462
        %v3464 = vrot.slane %v3460, %v3463
        %v3465 = vmul.f32 %v3215, %v3464
        %v3466 = vmul.f32 %v3216, %v3464
        %v3467 = vmul.f32 %v3217, %v3464
        %v3468 = vmul.f32 %v3218, %v3464
        %v3469 = vmul.f32 %v3219, %v3464
        %v3470 = vmul.f32 %v3220, %v3464
        %v3471 = vmul.f32 %v3221, %v3464
        %v3472 = vmul.f32 %v3222, %v3464
        %v3473 = vmul.f32 %v3223, %v3464
        %v3474 = vmul.f32 %v3224, %v3464
        %v3475 = vmul.f32 %v3225, %v3464
        %v3476 = vmul.f32 %v3226, %v3464
        %v3477 = vmul.f32 %v3227, %v3464
        %v3478 = vmul.f32 %v3228, %v3464
        %v3479 = vmul.f32 %v3229, %v3464
        %v3480 = vmul.f32 %v3230, %v3464
        %v3481 = vmul.f32 %v3231, %v3464
        %v3482 = vmul.f32 %v3232, %v3464
        %v3483 = vmul.f32 %v3233, %v3464
        %v3484 = vmul.f32 %v3234, %v3464
        %v3485 = vmul.f32 %v3235, %v3464
        %v3486 = vmul.f32 %v3236, %v3464
        %v3487 = vmul.f32 %v3237, %v3464
        %v3488 = vmul.f32 %v3238, %v3464
        %v3489 = vmul.f32 %v3239, %v3464
        %v3490 = vmul.f32 %v3240, %v3464
        %v3491 = vmul.f32 %v3241, %v3464
        %v3492 = vmul.f32 %v3242, %v3464
        %v3493 = vmul.f32 %v3243, %v3464
        %v3494 = vmul.f32 %v3244, %v3464
        %v3495 = vmul.f32 %v3245, %v3464
        %v3496 = vmul.f32 %v3246, %v3464
        %v3497 = vadd.f32 %v3428, %v3465
        %v3498 = vadd.f32 %v3429, %v3466
        %v3499 = vadd.f32 %v3430, %v3467
        %v3500 = vadd.f32 %v3431, %v3468
        %v3501 = vadd.f32 %v3432, %v3469
        %v3502 = vadd.f32 %v3433, %v3470
        %v3503 = vadd.f32 %v3434, %v3471
        %v3504 = vadd.f32 %v3435, %v3472
        %v3505 = vadd.f32 %v3436, %v3473
        %v3506 = vadd.f32 %v3437, %v3474
        %v3507 = vadd.f32 %v3438, %v3475
        %v3508 = vadd.f32 %v3439, %v3476
        %v3509 = vadd.f32 %v3440, %v3477
        %v3510 = vadd.f32 %v3441, %v3478
        %v3511 = vadd.f32 %v3442, %v3479
        %v3512 = vadd.f32 %v3443, %v3480
        %v3513 = vadd.f32 %v3444, %v3481
        %v3514 = vadd.f32 %v3445, %v3482
        %v3515 = vadd.f32 %v3446, %v3483
        %v3516 = vadd.f32 %v3447, %v3484
        %v3517 = vadd.f32 %v3448, %v3485
        %v3518 = vadd.f32 %v3449, %v3486
        %v3519 = vadd.f32 %v3450, %v3487
        %v3520 = vadd.f32 %v3451, %v3488
        %v3521 = vadd.f32 %v3452, %v3489
        %v3522 = vadd.f32 %v3453, %v3490
        %v3523 = vadd.f32 %v3454, %v3491
        %v3524 = vadd.f32 %v3455, %v3492
        %v3525 = vadd.f32 %v3456, %v3493
        %v3526 = vadd.f32 %v3457, %v3494
        %v3527 = vadd.f32 %v3458, %v3495
        %v3528 = vadd.f32 %v3459, %v3496
        %v3529 = vld [vmem:[#allocation6 + $0x21] sm:$0x1]
        %v3530 = vlaneseq
        %v3531 = vshrl.u32 %v3530, 7
        %v3532 = vsub.s32 0, %v3531
        %v3533 = vrot.slane %v3529, %v3532
        %v3534 = vmul.f32 %v3217, %v3533
        %v3535 = vmul.f32 %v3218, %v3533
        %v3536 = vmul.f32 %v3219, %v3533
        %v3537 = vmul.f32 %v3220, %v3533
        %v3538 = vmul.f32 %v3221, %v3533
        %v3539 = vmul.f32 %v3222, %v3533
        %v3540 = vmul.f32 %v3223, %v3533
        %v3541 = vmul.f32 %v3224, %v3533
        %v3542 = vmul.f32 %v3225, %v3533
        %v3543 = vmul.f32 %v3226, %v3533
        %v3544 = vmul.f32 %v3227, %v3533
        %v3545 = vmul.f32 %v3228, %v3533
        %v3546 = vmul.f32 %v3229, %v3533
        %v3547 = vmul.f32 %v3230, %v3533
        %v3548 = vmul.f32 %v3231, %v3533
        %v3549 = vmul.f32 %v3232, %v3533
        %v3550 = vmul.f32 %v3233, %v3533
        %v3551 = vmul.f32 %v3234, %v3533
        %v3552 = vmul.f32 %v3235, %v3533
        %v3553 = vmul.f32 %v3236, %v3533
        %v3554 = vmul.f32 %v3237, %v3533
        %v3555 = vmul.f32 %v3238, %v3533
        %v3556 = vmul.f32 %v3239, %v3533
        %v3557 = vmul.f32 %v3240, %v3533
        %v3558 = vmul.f32 %v3241, %v3533
        %v3559 = vmul.f32 %v3242, %v3533
        %v3560 = vmul.f32 %v3243, %v3533
        %v3561 = vmul.f32 %v3244, %v3533
        %v3562 = vmul.f32 %v3245, %v3533
        %v3563 = vmul.f32 %v3246, %v3533
        %v3564 = vmul.f32 %v3247, %v3533
        %v3565 = vmul.f32 %v3248, %v3533
        %v3566 = vadd.f32 %v3497, %v3534
        %v3567 = vadd.f32 %v3498, %v3535
        %v3568 = vadd.f32 %v3499, %v3536
        %v3569 = vadd.f32 %v3500, %v3537
        %v3570 = vadd.f32 %v3501, %v3538
        %v3571 = vadd.f32 %v3502, %v3539
        %v3572 = vadd.f32 %v3503, %v3540
        %v3573 = vadd.f32 %v3504, %v3541
        %v3574 = vadd.f32 %v3505, %v3542
        %v3575 = vadd.f32 %v3506, %v3543
        %v3576 = vadd.f32 %v3507, %v3544
        %v3577 = vadd.f32 %v3508, %v3545
        %v3578 = vadd.f32 %v3509, %v3546
        %v3579 = vadd.f32 %v3510, %v3547
        %v3580 = vadd.f32 %v3511, %v3548
        %v3581 = vadd.f32 %v3512, %v3549
        %v3582 = vadd.f32 %v3513, %v3550
        %v3583 = vadd.f32 %v3514, %v3551
        %v3584 = vadd.f32 %v3515, %v3552
        %v3585 = vadd.f32 %v3516, %v3553
        %v3586 = vadd.f32 %v3517, %v3554
        %v3587 = vadd.f32 %v3518, %v3555
        %v3588 = vadd.f32 %v3519, %v3556
        %v3589 = vadd.f32 %v3520, %v3557
        %v3590 = vadd.f32 %v3521, %v3558
        %v3591 = vadd.f32 %v3522, %v3559
        %v3592 = vadd.f32 %v3523, %v3560
        %v3593 = vadd.f32 %v3524, %v3561
        %v3594 = vadd.f32 %v3525, %v3562
        %v3595 = vadd.f32 %v3526, %v3563
        %v3596 = vadd.f32 %v3527, %v3564
        %v3597 = vadd.f32 %v3528, %v3565
        %v3598 = vld [vmem:[#allocation6 + $0x28] sm:$0x1]
        %v3599 = vlaneseq
        %v3600 = vshrl.u32 %v3599, 7
        %v3601 = vsub.s32 0, %v3600
        %v3602 = vrot.slane %v3598, %v3601
        %v3603 = vmul.f32 %v3219, %v3602
        %v3604 = vmul.f32 %v3220, %v3602
        %v3605 = vmul.f32 %v3221, %v3602
        %v3606 = vmul.f32 %v3222, %v3602
        %v3607 = vmul.f32 %v3223, %v3602
        %v3608 = vmul.f32 %v3224, %v3602
        %v3609 = vmul.f32 %v3225, %v3602
        %v3610 = vmul.f32 %v3226, %v3602
        %v3611 = vmul.f32 %v3227, %v3602
        %v3612 = vmul.f32 %v3228, %v3602
        %v3613 = vmul.f32 %v3229, %v3602
        %v3614 = vmul.f32 %v3230, %v3602
        %v3615 = vmul.f32 %v3231, %v3602
        %v3616 = vmul.f32 %v3232, %v3602
        %v3617 = vmul.f32 %v3233, %v3602
        %v3618 = vmul.f32 %v3234, %v3602
        %v3619 = vmul.f32 %v3235, %v3602
        %v3620 = vmul.f32 %v3236, %v3602
        %v3621 = vmul.f32 %v3237, %v3602
        %v3622 = vmul.f32 %v3238, %v3602
        %v3623 = vmul.f32 %v3239, %v3602
        %v3624 = vmul.f32 %v3240, %v3602
        %v3625 = vmul.f32 %v3241, %v3602
        %v3626 = vmul.f32 %v3242, %v3602
        %v3627 = vmul.f32 %v3243, %v3602
        %v3628 = vmul.f32 %v3244, %v3602
        %v3629 = vmul.f32 %v3245, %v3602
        %v3630 = vmul.f32 %v3246, %v3602
        %v3631 = vmul.f32 %v3247, %v3602
        %v3632 = vmul.f32 %v3248, %v3602
        %v3633 = vmul.f32 %v3249, %v3602
        %v3634 = vmul.f32 %v3250, %v3602
        %v3635 = vadd.f32 %v3566, %v3603
        %v3636 = vadd.f32 %v3567, %v3604
        %v3637 = vadd.f32 %v3568, %v3605
        %v3638 = vadd.f32 %v3569, %v3606
        %v3639 = vadd.f32 %v3570, %v3607
        %v3640 = vadd.f32 %v3571, %v3608
        %v3641 = vadd.f32 %v3572, %v3609
        %v3642 = vadd.f32 %v3573, %v3610
        %v3643 = vadd.f32 %v3574, %v3611
        %v3644 = vadd.f32 %v3575, %v3612
        %v3645 = vadd.f32 %v3576, %v3613
        %v3646 = vadd.f32 %v3577, %v3614
        %v3647 = vadd.f32 %v3578, %v3615
        %v3648 = vadd.f32 %v3579, %v3616
        %v3649 = vadd.f32 %v3580, %v3617
        %v3650 = vadd.f32 %v3581, %v3618
        %v3651 = vadd.f32 %v3582, %v3619
        %v3652 = vadd.f32 %v3583, %v3620
        %v3653 = vadd.f32 %v3584, %v3621
        %v3654 = vadd.f32 %v3585, %v3622
        %v3655 = vadd.f32 %v3586, %v3623
        %v3656 = vadd.f32 %v3587, %v3624
        %v3657 = vadd.f32 %v3588, %v3625
        %v3658 = vadd.f32 %v3589, %v3626
        %v3659 = vadd.f32 %v3590, %v3627
        %v3660 = vadd.f32 %v3591, %v3628
        %v3661 = vadd.f32 %v3592, %v3629
        %v3662 = vadd.f32 %v3593, %v3630
        %v3663 = vadd.f32 %v3594, %v3631
        %v3664 = vadd.f32 %v3595, %v3632
        %v3665 = vadd.f32 %v3596, %v3633
        %v3666 = vadd.f32 %v3597, %v3634
        %v3667 = vld [vmem:[#allocation6 + $0x2f] sm:$0x1]
        %v3668 = vlaneseq
        %v3669 = vshrl.u32 %v3668, 7
        %v3670 = vsub.s32 0, %v3669
        %v3671 = vrot.slane %v3667, %v3670
        %v3672 = vmul.f32 %v3221, %v3671
        %v3673 = vmul.f32 %v3222, %v3671
        %v3674 = vmul.f32 %v3223, %v3671
        %v3675 = vmul.f32 %v3224, %v3671
        %v3676 = vmul.f32 %v3225, %v3671
        %v3677 = vmul.f32 %v3226, %v3671
        %v3678 = vmul.f32 %v3227, %v3671
        %v3679 = vmul.f32 %v3228, %v3671
        %v3680 = vmul.f32 %v3229, %v3671
        %v3681 = vmul.f32 %v3230, %v3671
        %v3682 = vmul.f32 %v3231, %v3671
        %v3683 = vmul.f32 %v3232, %v3671
        %v3684 = vmul.f32 %v3233, %v3671
        %v3685 = vmul.f32 %v3234, %v3671
        %v3686 = vmul.f32 %v3235, %v3671
        %v3687 = vmul.f32 %v3236, %v3671
        %v3688 = vmul.f32 %v3237, %v3671
        %v3689 = vmul.f32 %v3238, %v3671
        %v3690 = vmul.f32 %v3239, %v3671
        %v3691 = vmul.f32 %v3240, %v3671
        %v3692 = vmul.f32 %v3241, %v3671
        %v3693 = vmul.f32 %v3242, %v3671
        %v3694 = vmul.f32 %v3243, %v3671
        %v3695 = vmul.f32 %v3244, %v3671
        %v3696 = vmul.f32 %v3245, %v3671
        %v3697 = vmul.f32 %v3246, %v3671
        %v3698 = vmul.f32 %v3247, %v3671
        %v3699 = vmul.f32 %v3248, %v3671
        %v3700 = vmul.f32 %v3249, %v3671
        %v3701 = vmul.f32 %v3250, %v3671
        %v3702 = vmul.f32 %v3251, %v3671
        %v3703 = vmul.f32 %v3252, %v3671
        %v3704 = vadd.f32 %v3635, %v3672
        %v3705 = vadd.f32 %v3636, %v3673
        %v3706 = vadd.f32 %v3637, %v3674
        %v3707 = vadd.f32 %v3638, %v3675
        %v3708 = vadd.f32 %v3639, %v3676
        %v3709 = vadd.f32 %v3640, %v3677
        %v3710 = vadd.f32 %v3641, %v3678
        %v3711 = vadd.f32 %v3642, %v3679
        %v3712 = vadd.f32 %v3643, %v3680
        %v3713 = vadd.f32 %v3644, %v3681
        %v3714 = vadd.f32 %v3645, %v3682
        %v3715 = vadd.f32 %v3646, %v3683
        %v3716 = vadd.f32 %v3647, %v3684
        %v3717 = vadd.f32 %v3648, %v3685
        %v3718 = vadd.f32 %v3649, %v3686
        %v3719 = vadd.f32 %v3650, %v3687
        %v3720 = vadd.f32 %v3651, %v3688
        %v3721 = vadd.f32 %v3652, %v3689
        %v3722 = vadd.f32 %v3653, %v3690
        %v3723 = vadd.f32 %v3654, %v3691
        %v3724 = vadd.f32 %v3655, %v3692
        %v3725 = vadd.f32 %v3656, %v3693
        %v3726 = vadd.f32 %v3657, %v3694
        %v3727 = vadd.f32 %v3658, %v3695
        %v3728 = vadd.f32 %v3659, %v3696
        %v3729 = vadd.f32 %v3660, %v3697
        %v3730 = vadd.f32 %v3661, %v3698
        %v3731 = vadd.f32 %v3662, %v3699
        %v3732 = vadd.f32 %v3663, %v3700
        %v3733 = vadd.f32 %v3664, %v3701
        %v3734 = vadd.f32 %v3665, %v3702
        %v3735 = vadd.f32 %v3666, %v3703
        %v3736 = vld [vmem:[#allocation2 + $0x6] sm:$0xff]
        %v3737 = vld [vmem:[#allocation2 + $0xe] sm:$0xff]
        %v3738 = vld [vmem:[#allocation2 + $0x1e] sm:$0xff]
        %v3739 = vld [vmem:[#allocation2 + $0x26] sm:$0xff]
        %v3740 = vld [vmem:[#allocation2 + $0x36] sm:$0xff]
        %v3741 = vld [vmem:[#allocation2 + $0x3e] sm:$0xff]
        %v3742 = vld [vmem:[#allocation2 + $0x4e] sm:$0xff]
        %v3743 = vld [vmem:[#allocation2 + $0x56] sm:$0xff]
        %v3744 = vld [vmem:[#allocation2 + $0x66] sm:$0xff]
        %v3745 = vld [vmem:[#allocation2 + $0x6e] sm:$0xff]
        %v3746 = vld [vmem:[#allocation2 + $0x7e] sm:$0xff]
        %v3747 = vld [vmem:[#allocation2 + $0x86] sm:$0xff]
        %v3748 = vld [vmem:[#allocation2 + $0x96] sm:$0xff]
        %v3749 = vld [vmem:[#allocation2 + $0x9e] sm:$0xff]
        %v3750 = vld [vmem:[#allocation2 + $0xae] sm:$0xff]
        %v3751 = vld [vmem:[#allocation2 + $0xb6] sm:$0xff]
        %v3752 = vld [vmem:[#allocation2 + $0xc6] sm:$0xff]
        %v3753 = vld [vmem:[#allocation2 + $0xce] sm:$0xff]
        %v3754 = vld [vmem:[#allocation2 + $0xde] sm:$0xff]
        %v3755 = vld [vmem:[#allocation2 + $0xe6] sm:$0xff]
        %v3756 = vld [vmem:[#allocation2 + $0xf6] sm:$0xff]
        %v3757 = vld [vmem:[#allocation2 + $0xfe] sm:$0xff]
        %v3758 = vld [vmem:[#allocation2 + $0x10e] sm:$0xff]
        %v3759 = vld [vmem:[#allocation2 + $0x116] sm:$0xff]
        %v3760 = vld [vmem:[#allocation2 + $0x126] sm:$0xff]
        %v3761 = vld [vmem:[#allocation2 + $0x12e] sm:$0xff]
        %v3762 = vld [vmem:[#allocation2 + $0x13e] sm:$0xff]
        %v3763 = vld [vmem:[#allocation2 + $0x146] sm:$0xff]
        %v3764 = vld [vmem:[#allocation2 + $0x156] sm:$0xff]
        %v3765 = vld [vmem:[#allocation2 + $0x15e] sm:$0xff]
        %v3766 = vld [vmem:[#allocation2 + $0x16e] sm:$0xff]
        %v3767 = vld [vmem:[#allocation2 + $0x176] sm:$0xff]
        %v3768 = vld [vmem:[#allocation2 + $0x186] sm:$0xff]
        %v3769 = vld [vmem:[#allocation2 + $0x18e] sm:$0xff]
        %v3770 = vld [vmem:[#allocation2 + $0x19e] sm:$0xff]
        %v3771 = vld [vmem:[#allocation2 + $0x1a6] sm:$0xff]
        %v3772 = vld [vmem:[#allocation2 + $0x1b6] sm:$0xff]
        %v3773 = vld [vmem:[#allocation2 + $0x1be] sm:$0xff]
        %v3774 = vld [vmem:[#allocation2 + $0x1ce] sm:$0xff]
        %v3775 = vld [vmem:[#allocation2 + $0x1d6] sm:$0xff]
        %v3776 = vld [vmem:[#allocation2 + $0x1e6] sm:$0xff]
        %v3777 = vld [vmem:[#allocation2 + $0x1ee] sm:$0xff]
        %v3778 = vld [vmem:[#allocation2 + $0x1fe] sm:$0xff]
        %v3779 = vld [vmem:[#allocation2 + $0x206] sm:$0xff]
        %v3780 = vld [vmem:[#allocation6 + $0x6] sm:$0x1]
        %v3781 = vlaneseq
        %v3782 = vshrl.u32 %v3781, 7
        %v3783 = vsub.s32 0, %v3782
        %v3784 = vrot.slane %v3780, %v3783
        %v3785 = vmul.f32 %v3736, %v3784
        %v3786 = vmul.f32 %v3737, %v3784
        %v3787 = vmul.f32 %v3738, %v3784
        %v3788 = vmul.f32 %v3739, %v3784
        %v3789 = vmul.f32 %v3740, %v3784
        %v3790 = vmul.f32 %v3741, %v3784
        %v3791 = vmul.f32 %v3742, %v3784
        %v3792 = vmul.f32 %v3743, %v3784
        %v3793 = vmul.f32 %v3744, %v3784
        %v3794 = vmul.f32 %v3745, %v3784
        %v3795 = vmul.f32 %v3746, %v3784
        %v3796 = vmul.f32 %v3747, %v3784
        %v3797 = vmul.f32 %v3748, %v3784
        %v3798 = vmul.f32 %v3749, %v3784
        %v3799 = vmul.f32 %v3750, %v3784
        %v3800 = vmul.f32 %v3751, %v3784
        %v3801 = vmul.f32 %v3752, %v3784
        %v3802 = vmul.f32 %v3753, %v3784
        %v3803 = vmul.f32 %v3754, %v3784
        %v3804 = vmul.f32 %v3755, %v3784
        %v3805 = vmul.f32 %v3756, %v3784
        %v3806 = vmul.f32 %v3757, %v3784
        %v3807 = vmul.f32 %v3758, %v3784
        %v3808 = vmul.f32 %v3759, %v3784
        %v3809 = vmul.f32 %v3760, %v3784
        %v3810 = vmul.f32 %v3761, %v3784
        %v3811 = vmul.f32 %v3762, %v3784
        %v3812 = vmul.f32 %v3763, %v3784
        %v3813 = vmul.f32 %v3764, %v3784
        %v3814 = vmul.f32 %v3765, %v3784
        %v3815 = vmul.f32 %v3766, %v3784
        %v3816 = vmul.f32 %v3767, %v3784
        %v3817 = vadd.f32 %v3704, %v3785
        %v3818 = vadd.f32 %v3705, %v3786
        %v3819 = vadd.f32 %v3706, %v3787
        %v3820 = vadd.f32 %v3707, %v3788
        %v3821 = vadd.f32 %v3708, %v3789
        %v3822 = vadd.f32 %v3709, %v3790
        %v3823 = vadd.f32 %v3710, %v3791
        %v3824 = vadd.f32 %v3711, %v3792
        %v3825 = vadd.f32 %v3712, %v3793
        %v3826 = vadd.f32 %v3713, %v3794
        %v3827 = vadd.f32 %v3714, %v3795
        %v3828 = vadd.f32 %v3715, %v3796
        %v3829 = vadd.f32 %v3716, %v3797
        %v3830 = vadd.f32 %v3717, %v3798
        %v3831 = vadd.f32 %v3718, %v3799
        %v3832 = vadd.f32 %v3719, %v3800
        %v3833 = vadd.f32 %v3720, %v3801
        %v3834 = vadd.f32 %v3721, %v3802
        %v3835 = vadd.f32 %v3722, %v3803
        %v3836 = vadd.f32 %v3723, %v3804
        %v3837 = vadd.f32 %v3724, %v3805
        %v3838 = vadd.f32 %v3725, %v3806
        %v3839 = vadd.f32 %v3726, %v3807
        %v3840 = vadd.f32 %v3727, %v3808
        %v3841 = vadd.f32 %v3728, %v3809
        %v3842 = vadd.f32 %v3729, %v3810
        %v3843 = vadd.f32 %v3730, %v3811
        %v3844 = vadd.f32 %v3731, %v3812
        %v3845 = vadd.f32 %v3732, %v3813
        %v3846 = vadd.f32 %v3733, %v3814
        %v3847 = vadd.f32 %v3734, %v3815
        %v3848 = vadd.f32 %v3735, %v3816
        %v3849 = vld [vmem:[#allocation6 + $0xd] sm:$0x1]
        %v3850 = vlaneseq
        %v3851 = vshrl.u32 %v3850, 7
        %v3852 = vsub.s32 0, %v3851
        %v3853 = vrot.slane %v3849, %v3852
        %v3854 = vmul.f32 %v3738, %v3853
        %v3855 = vmul.f32 %v3739, %v3853
        %v3856 = vmul.f32 %v3740, %v3853
        %v3857 = vmul.f32 %v3741, %v3853
        %v3858 = vmul.f32 %v3742, %v3853
        %v3859 = vmul.f32 %v3743, %v3853
        %v3860 = vmul.f32 %v3744, %v3853
        %v3861 = vmul.f32 %v3745, %v3853
        %v3862 = vmul.f32 %v3746, %v3853
        %v3863 = vmul.f32 %v3747, %v3853
        %v3864 = vmul.f32 %v3748, %v3853
        %v3865 = vmul.f32 %v3749, %v3853
        %v3866 = vmul.f32 %v3750, %v3853
        %v3867 = vmul.f32 %v3751, %v3853
        %v3868 = vmul.f32 %v3752, %v3853
        %v3869 = vmul.f32 %v3753, %v3853
        %v3870 = vmul.f32 %v3754, %v3853
        %v3871 = vmul.f32 %v3755, %v3853
        %v3872 = vmul.f32 %v3756, %v3853
        %v3873 = vmul.f32 %v3757, %v3853
        %v3874 = vmul.f32 %v3758, %v3853
        %v3875 = vmul.f32 %v3759, %v3853
        %v3876 = vmul.f32 %v3760, %v3853
        %v3877 = vmul.f32 %v3761, %v3853
        %v3878 = vmul.f32 %v3762, %v3853
        %v3879 = vmul.f32 %v3763, %v3853
        %v3880 = vmul.f32 %v3764, %v3853
        %v3881 = vmul.f32 %v3765, %v3853
        %v3882 = vmul.f32 %v3766, %v3853
        %v3883 = vmul.f32 %v3767, %v3853
        %v3884 = vmul.f32 %v3768, %v3853
        %v3885 = vmul.f32 %v3769, %v3853
        %v3886 = vadd.f32 %v3817, %v3854
        %v3887 = vadd.f32 %v3818, %v3855
        %v3888 = vadd.f32 %v3819, %v3856
        %v3889 = vadd.f32 %v3820, %v3857
        %v3890 = vadd.f32 %v3821, %v3858
        %v3891 = vadd.f32 %v3822, %v3859
        %v3892 = vadd.f32 %v3823, %v3860
        %v3893 = vadd.f32 %v3824, %v3861
        %v3894 = vadd.f32 %v3825, %v3862
        %v3895 = vadd.f32 %v3826, %v3863
        %v3896 = vadd.f32 %v3827, %v3864
        %v3897 = vadd.f32 %v3828, %v3865
        %v3898 = vadd.f32 %v3829, %v3866
        %v3899 = vadd.f32 %v3830, %v3867
        %v3900 = vadd.f32 %v3831, %v3868
        %v3901 = vadd.f32 %v3832, %v3869
        %v3902 = vadd.f32 %v3833, %v3870
        %v3903 = vadd.f32 %v3834, %v3871
        %v3904 = vadd.f32 %v3835, %v3872
        %v3905 = vadd.f32 %v3836, %v3873
        %v3906 = vadd.f32 %v3837, %v3874
        %v3907 = vadd.f32 %v3838, %v3875
        %v3908 = vadd.f32 %v3839, %v3876
        %v3909 = vadd.f32 %v3840, %v3877
        %v3910 = vadd.f32 %v3841, %v3878
        %v3911 = vadd.f32 %v3842, %v3879
        %v3912 = vadd.f32 %v3843, %v3880
        %v3913 = vadd.f32 %v3844, %v3881
        %v3914 = vadd.f32 %v3845, %v3882
        %v3915 = vadd.f32 %v3846, %v3883
        %v3916 = vadd.f32 %v3847, %v3884
        %v3917 = vadd.f32 %v3848, %v3885
        %v3918 = vld [vmem:[#allocation6 + $0x14] sm:$0x1]
        %v3919 = vlaneseq
        %v3920 = vshrl.u32 %v3919, 7
        %v3921 = vsub.s32 0, %v3920
        %v3922 = vrot.slane %v3918, %v3921
        %v3923 = vmul.f32 %v3740, %v3922
        %v3924 = vmul.f32 %v3741, %v3922
        %v3925 = vmul.f32 %v3742, %v3922
        %v3926 = vmul.f32 %v3743, %v3922
        %v3927 = vmul.f32 %v3744, %v3922
        %v3928 = vmul.f32 %v3745, %v3922
        %v3929 = vmul.f32 %v3746, %v3922
        %v3930 = vmul.f32 %v3747, %v3922
        %v3931 = vmul.f32 %v3748, %v3922
        %v3932 = vmul.f32 %v3749, %v3922
        %v3933 = vmul.f32 %v3750, %v3922
        %v3934 = vmul.f32 %v3751, %v3922
        %v3935 = vmul.f32 %v3752, %v3922
        %v3936 = vmul.f32 %v3753, %v3922
        %v3937 = vmul.f32 %v3754, %v3922
        %v3938 = vmul.f32 %v3755, %v3922
        %v3939 = vmul.f32 %v3756, %v3922
        %v3940 = vmul.f32 %v3757, %v3922
        %v3941 = vmul.f32 %v3758, %v3922
        %v3942 = vmul.f32 %v3759, %v3922
        %v3943 = vmul.f32 %v3760, %v3922
        %v3944 = vmul.f32 %v3761, %v3922
        %v3945 = vmul.f32 %v3762, %v3922
        %v3946 = vmul.f32 %v3763, %v3922
        %v3947 = vmul.f32 %v3764, %v3922
        %v3948 = vmul.f32 %v3765, %v3922
        %v3949 = vmul.f32 %v3766, %v3922
        %v3950 = vmul.f32 %v3767, %v3922
        %v3951 = vmul.f32 %v3768, %v3922
        %v3952 = vmul.f32 %v3769, %v3922
        %v3953 = vmul.f32 %v3770, %v3922
        %v3954 = vmul.f32 %v3771, %v3922
        %v3955 = vadd.f32 %v3886, %v3923
        %v3956 = vadd.f32 %v3887, %v3924
        %v3957 = vadd.f32 %v3888, %v3925
        %v3958 = vadd.f32 %v3889, %v3926
        %v3959 = vadd.f32 %v3890, %v3927
        %v3960 = vadd.f32 %v3891, %v3928
        %v3961 = vadd.f32 %v3892, %v3929
        %v3962 = vadd.f32 %v3893, %v3930
        %v3963 = vadd.f32 %v3894, %v3931
        %v3964 = vadd.f32 %v3895, %v3932
        %v3965 = vadd.f32 %v3896, %v3933
        %v3966 = vadd.f32 %v3897, %v3934
        %v3967 = vadd.f32 %v3898, %v3935
        %v3968 = vadd.f32 %v3899, %v3936
        %v3969 = vadd.f32 %v3900, %v3937
        %v3970 = vadd.f32 %v3901, %v3938
        %v3971 = vadd.f32 %v3902, %v3939
        %v3972 = vadd.f32 %v3903, %v3940
        %v3973 = vadd.f32 %v3904, %v3941
        %v3974 = vadd.f32 %v3905, %v3942
        %v3975 = vadd.f32 %v3906, %v3943
        %v3976 = vadd.f32 %v3907, %v3944
        %v3977 = vadd.f32 %v3908, %v3945
        %v3978 = vadd.f32 %v3909, %v3946
        %v3979 = vadd.f32 %v3910, %v3947
        %v3980 = vadd.f32 %v3911, %v3948
        %v3981 = vadd.f32 %v3912, %v3949
        %v3982 = vadd.f32 %v3913, %v3950
        %v3983 = vadd.f32 %v3914, %v3951
        %v3984 = vadd.f32 %v3915, %v3952
        %v3985 = vadd.f32 %v3916, %v3953
        %v3986 = vadd.f32 %v3917, %v3954
        %v3987 = vld [vmem:[#allocation6 + $0x1b] sm:$0x1]
        %v3988 = vlaneseq
        %v3989 = vshrl.u32 %v3988, 7
        %v3990 = vsub.s32 0, %v3989
        %v3991 = vrot.slane %v3987, %v3990
        %v3992 = vmul.f32 %v3742, %v3991
        %v3993 = vmul.f32 %v3743, %v3991
        %v3994 = vmul.f32 %v3744, %v3991
        %v3995 = vmul.f32 %v3745, %v3991
        %v3996 = vmul.f32 %v3746, %v3991
        %v3997 = vmul.f32 %v3747, %v3991
        %v3998 = vmul.f32 %v3748, %v3991
        %v3999 = vmul.f32 %v3749, %v3991
        %v4000 = vmul.f32 %v3750, %v3991
        %v4001 = vmul.f32 %v3751, %v3991
        %v4002 = vmul.f32 %v3752, %v3991
        %v4003 = vmul.f32 %v3753, %v3991
        %v4004 = vmul.f32 %v3754, %v3991
        %v4005 = vmul.f32 %v3755, %v3991
        %v4006 = vmul.f32 %v3756, %v3991
        %v4007 = vmul.f32 %v3757, %v3991
        %v4008 = vmul.f32 %v3758, %v3991
        %v4009 = vmul.f32 %v3759, %v3991
        %v4010 = vmul.f32 %v3760, %v3991
        %v4011 = vmul.f32 %v3761, %v3991
        %v4012 = vmul.f32 %v3762, %v3991
        %v4013 = vmul.f32 %v3763, %v3991
        %v4014 = vmul.f32 %v3764, %v3991
        %v4015 = vmul.f32 %v3765, %v3991
        %v4016 = vmul.f32 %v3766, %v3991
        %v4017 = vmul.f32 %v3767, %v3991
        %v4018 = vmul.f32 %v3768, %v3991
        %v4019 = vmul.f32 %v3769, %v3991
        %v4020 = vmul.f32 %v3770, %v3991
        %v4021 = vmul.f32 %v3771, %v3991
        %v4022 = vmul.f32 %v3772, %v3991
        %v4023 = vmul.f32 %v3773, %v3991
        %v4024 = vadd.f32 %v3955, %v3992
        %v4025 = vadd.f32 %v3956, %v3993
        %v4026 = vadd.f32 %v3957, %v3994
        %v4027 = vadd.f32 %v3958, %v3995
        %v4028 = vadd.f32 %v3959, %v3996
        %v4029 = vadd.f32 %v3960, %v3997
        %v4030 = vadd.f32 %v3961, %v3998
        %v4031 = vadd.f32 %v3962, %v3999
        %v4032 = vadd.f32 %v3963, %v4000
        %v4033 = vadd.f32 %v3964, %v4001
        %v4034 = vadd.f32 %v3965, %v4002
        %v4035 = vadd.f32 %v3966, %v4003
        %v4036 = vadd.f32 %v3967, %v4004
        %v4037 = vadd.f32 %v3968, %v4005
        %v4038 = vadd.f32 %v3969, %v4006
        %v4039 = vadd.f32 %v3970, %v4007
        %v4040 = vadd.f32 %v3971, %v4008
        %v4041 = vadd.f32 %v3972, %v4009
        %v4042 = vadd.f32 %v3973, %v4010
        %v4043 = vadd.f32 %v3974, %v4011
        %v4044 = vadd.f32 %v3975, %v4012
        %v4045 = vadd.f32 %v3976, %v4013
        %v4046 = vadd.f32 %v3977, %v4014
        %v4047 = vadd.f32 %v3978, %v4015
        %v4048 = vadd.f32 %v3979, %v4016
        %v4049 = vadd.f32 %v3980, %v4017
        %v4050 = vadd.f32 %v3981, %v4018
        %v4051 = vadd.f32 %v3982, %v4019
        %v4052 = vadd.f32 %v3983, %v4020
        %v4053 = vadd.f32 %v3984, %v4021
        %v4054 = vadd.f32 %v3985, %v4022
        %v4055 = vadd.f32 %v3986, %v4023
        %v4056 = vld [vmem:[#allocation6 + $0x22] sm:$0x1]
        %v4057 = vlaneseq
        %v4058 = vshrl.u32 %v4057, 7
        %v4059 = vsub.s32 0, %v4058
        %v4060 = vrot.slane %v4056, %v4059
        %v4061 = vmul.f32 %v3744, %v4060
        %v4062 = vmul.f32 %v3745, %v4060
        %v4063 = vmul.f32 %v3746, %v4060
        %v4064 = vmul.f32 %v3747, %v4060
        %v4065 = vmul.f32 %v3748, %v4060
        %v4066 = vmul.f32 %v3749, %v4060
        %v4067 = vmul.f32 %v3750, %v4060
        %v4068 = vmul.f32 %v3751, %v4060
        %v4069 = vmul.f32 %v3752, %v4060
        %v4070 = vmul.f32 %v3753, %v4060
        %v4071 = vmul.f32 %v3754, %v4060
        %v4072 = vmul.f32 %v3755, %v4060
        %v4073 = vmul.f32 %v3756, %v4060
        %v4074 = vmul.f32 %v3757, %v4060
        %v4075 = vmul.f32 %v3758, %v4060
        %v4076 = vmul.f32 %v3759, %v4060
        %v4077 = vmul.f32 %v3760, %v4060
        %v4078 = vmul.f32 %v3761, %v4060
        %v4079 = vmul.f32 %v3762, %v4060
        %v4080 = vmul.f32 %v3763, %v4060
        %v4081 = vmul.f32 %v3764, %v4060
        %v4082 = vmul.f32 %v3765, %v4060
        %v4083 = vmul.f32 %v3766, %v4060
        %v4084 = vmul.f32 %v3767, %v4060
        %v4085 = vmul.f32 %v3768, %v4060
        %v4086 = vmul.f32 %v3769, %v4060
        %v4087 = vmul.f32 %v3770, %v4060
        %v4088 = vmul.f32 %v3771, %v4060
        %v4089 = vmul.f32 %v3772, %v4060
        %v4090 = vmul.f32 %v3773, %v4060
        %v4091 = vmul.f32 %v3774, %v4060
        %v4092 = vmul.f32 %v3775, %v4060
        %v4093 = vadd.f32 %v4024, %v4061
        %v4094 = vadd.f32 %v4025, %v4062
        %v4095 = vadd.f32 %v4026, %v4063
        %v4096 = vadd.f32 %v4027, %v4064
        %v4097 = vadd.f32 %v4028, %v4065
        %v4098 = vadd.f32 %v4029, %v4066
        %v4099 = vadd.f32 %v4030, %v4067
        %v4100 = vadd.f32 %v4031, %v4068
        %v4101 = vadd.f32 %v4032, %v4069
        %v4102 = vadd.f32 %v4033, %v4070
        %v4103 = vadd.f32 %v4034, %v4071
        %v4104 = vadd.f32 %v4035, %v4072
        %v4105 = vadd.f32 %v4036, %v4073
        %v4106 = vadd.f32 %v4037, %v4074
        %v4107 = vadd.f32 %v4038, %v4075
        %v4108 = vadd.f32 %v4039, %v4076
        %v4109 = vadd.f32 %v4040, %v4077
        %v4110 = vadd.f32 %v4041, %v4078
        %v4111 = vadd.f32 %v4042, %v4079
        %v4112 = vadd.f32 %v4043, %v4080
        %v4113 = vadd.f32 %v4044, %v4081
        %v4114 = vadd.f32 %v4045, %v4082
        %v4115 = vadd.f32 %v4046, %v4083
        %v4116 = vadd.f32 %v4047, %v4084
        %v4117 = vadd.f32 %v4048, %v4085
        %v4118 = vadd.f32 %v4049, %v4086
        %v4119 = vadd.f32 %v4050, %v4087
        %v4120 = vadd.f32 %v4051, %v4088
        %v4121 = vadd.f32 %v4052, %v4089
        %v4122 = vadd.f32 %v4053, %v4090
        %v4123 = vadd.f32 %v4054, %v4091
        %v4124 = vadd.f32 %v4055, %v4092
        %v4125 = vld [vmem:[#allocation6 + $0x29] sm:$0x1]
        %v4126 = vlaneseq
        %v4127 = vshrl.u32 %v4126, 7
        %v4128 = vsub.s32 0, %v4127
        %v4129 = vrot.slane %v4125, %v4128
        %v4130 = vmul.f32 %v3746, %v4129
        %v4131 = vmul.f32 %v3747, %v4129
        %v4132 = vmul.f32 %v3748, %v4129
        %v4133 = vmul.f32 %v3749, %v4129
        %v4134 = vmul.f32 %v3750, %v4129
        %v4135 = vmul.f32 %v3751, %v4129
        %v4136 = vmul.f32 %v3752, %v4129
        %v4137 = vmul.f32 %v3753, %v4129
        %v4138 = vmul.f32 %v3754, %v4129
        %v4139 = vmul.f32 %v3755, %v4129
        %v4140 = vmul.f32 %v3756, %v4129
        %v4141 = vmul.f32 %v3757, %v4129
        %v4142 = vmul.f32 %v3758, %v4129
        %v4143 = vmul.f32 %v3759, %v4129
        %v4144 = vmul.f32 %v3760, %v4129
        %v4145 = vmul.f32 %v3761, %v4129
        %v4146 = vmul.f32 %v3762, %v4129
        %v4147 = vmul.f32 %v3763, %v4129
        %v4148 = vmul.f32 %v3764, %v4129
        %v4149 = vmul.f32 %v3765, %v4129
        %v4150 = vmul.f32 %v3766, %v4129
        %v4151 = vmul.f32 %v3767, %v4129
        %v4152 = vmul.f32 %v3768, %v4129
        %v4153 = vmul.f32 %v3769, %v4129
        %v4154 = vmul.f32 %v3770, %v4129
        %v4155 = vmul.f32 %v3771, %v4129
        %v4156 = vmul.f32 %v3772, %v4129
        %v4157 = vmul.f32 %v3773, %v4129
        %v4158 = vmul.f32 %v3774, %v4129
        %v4159 = vmul.f32 %v3775, %v4129
        %v4160 = vmul.f32 %v3776, %v4129
        %v4161 = vmul.f32 %v3777, %v4129
        %v4162 = vadd.f32 %v4093, %v4130
        %v4163 = vadd.f32 %v4094, %v4131
        %v4164 = vadd.f32 %v4095, %v4132
        %v4165 = vadd.f32 %v4096, %v4133
        %v4166 = vadd.f32 %v4097, %v4134
        %v4167 = vadd.f32 %v4098, %v4135
        %v4168 = vadd.f32 %v4099, %v4136
        %v4169 = vadd.f32 %v4100, %v4137
        %v4170 = vadd.f32 %v4101, %v4138
        %v4171 = vadd.f32 %v4102, %v4139
        %v4172 = vadd.f32 %v4103, %v4140
        %v4173 = vadd.f32 %v4104, %v4141
        %v4174 = vadd.f32 %v4105, %v4142
        %v4175 = vadd.f32 %v4106, %v4143
        %v4176 = vadd.f32 %v4107, %v4144
        %v4177 = vadd.f32 %v4108, %v4145
        %v4178 = vadd.f32 %v4109, %v4146
        %v4179 = vadd.f32 %v4110, %v4147
        %v4180 = vadd.f32 %v4111, %v4148
        %v4181 = vadd.f32 %v4112, %v4149
        %v4182 = vadd.f32 %v4113, %v4150
        %v4183 = vadd.f32 %v4114, %v4151
        %v4184 = vadd.f32 %v4115, %v4152
        %v4185 = vadd.f32 %v4116, %v4153
        %v4186 = vadd.f32 %v4117, %v4154
        %v4187 = vadd.f32 %v4118, %v4155
        %v4188 = vadd.f32 %v4119, %v4156
        %v4189 = vadd.f32 %v4120, %v4157
        %v4190 = vadd.f32 %v4121, %v4158
        %v4191 = vadd.f32 %v4122, %v4159
        %v4192 = vadd.f32 %v4123, %v4160
        %v4193 = vadd.f32 %v4124, %v4161
        %v4194 = vld [vmem:[#allocation6 + $0x30] sm:$0x1]
        %v4195 = vlaneseq
        %v4196 = vshrl.u32 %v4195, 7
        %v4197 = vsub.s32 0, %v4196
        %v4198 = vrot.slane %v4194, %v4197
        %v4199 = vmul.f32 %v3748, %v4198
        %v4200 = vmul.f32 %v3749, %v4198
        %v4201 = vmul.f32 %v3750, %v4198
        %v4202 = vmul.f32 %v3751, %v4198
        %v4203 = vmul.f32 %v3752, %v4198
        %v4204 = vmul.f32 %v3753, %v4198
        %v4205 = vmul.f32 %v3754, %v4198
        %v4206 = vmul.f32 %v3755, %v4198
        %v4207 = vmul.f32 %v3756, %v4198
        %v4208 = vmul.f32 %v3757, %v4198
        %v4209 = vmul.f32 %v3758, %v4198
        %v4210 = vmul.f32 %v3759, %v4198
        %v4211 = vmul.f32 %v3760, %v4198
        %v4212 = vmul.f32 %v3761, %v4198
        %v4213 = vmul.f32 %v3762, %v4198
        %v4214 = vmul.f32 %v3763, %v4198
        %v4215 = vmul.f32 %v3764, %v4198
        %v4216 = vmul.f32 %v3765, %v4198
        %v4217 = vmul.f32 %v3766, %v4198
        %v4218 = vmul.f32 %v3767, %v4198
        %v4219 = vmul.f32 %v3768, %v4198
        %v4220 = vmul.f32 %v3769, %v4198
        %v4221 = vmul.f32 %v3770, %v4198
        %v4222 = vmul.f32 %v3771, %v4198
        %v4223 = vmul.f32 %v3772, %v4198
        %v4224 = vmul.f32 %v3773, %v4198
        %v4225 = vmul.f32 %v3774, %v4198
        %v4226 = vmul.f32 %v3775, %v4198
        %v4227 = vmul.f32 %v3776, %v4198
        %v4228 = vmul.f32 %v3777, %v4198
        %v4229 = vmul.f32 %v3778, %v4198
        %v4230 = vmul.f32 %v3779, %v4198
        %v4231 = vadd.f32 %v4162, %v4199
        %v4232 = vadd.f32 %v4163, %v4200
        %v4233 = vadd.f32 %v4164, %v4201
        %v4234 = vadd.f32 %v4165, %v4202
        %v4235 = vadd.f32 %v4166, %v4203
        %v4236 = vadd.f32 %v4167, %v4204
        %v4237 = vadd.f32 %v4168, %v4205
        %v4238 = vadd.f32 %v4169, %v4206
        %v4239 = vadd.f32 %v4170, %v4207
        %v4240 = vadd.f32 %v4171, %v4208
        %v4241 = vadd.f32 %v4172, %v4209
        %v4242 = vadd.f32 %v4173, %v4210
        %v4243 = vadd.f32 %v4174, %v4211
        %v4244 = vadd.f32 %v4175, %v4212
        %v4245 = vadd.f32 %v4176, %v4213
        %v4246 = vadd.f32 %v4177, %v4214
        %v4247 = vadd.f32 %v4178, %v4215
        %v4248 = vadd.f32 %v4179, %v4216
        %v4249 = vadd.f32 %v4180, %v4217
        %v4250 = vadd.f32 %v4181, %v4218
        %v4251 = vadd.f32 %v4182, %v4219
        %v4252 = vadd.f32 %v4183, %v4220
        %v4253 = vadd.f32 %v4184, %v4221
        %v4254 = vadd.f32 %v4185, %v4222
        %v4255 = vadd.f32 %v4186, %v4223
        %v4256 = vadd.f32 %v4187, %v4224
        %v4257 = vadd.f32 %v4188, %v4225
        %v4258 = vadd.f32 %v4189, %v4226
        %v4259 = vadd.f32 %v4190, %v4227
        %v4260 = vadd.f32 %v4191, %v4228
        %v4261 = vadd.f32 %v4192, %v4229
        %v4262 = vadd.f32 %v4193, %v4230
        %4263 = vadd.xlane.f32.xlu0 %v4231
        %v4264 = vpop.xlane.xlu0 %4263
        %4265 = vadd.xlane.f32.xlu0 %v4232
        %v4266 = vpop.xlane.xlu0 %4265
        %4267 = vadd.xlane.f32.xlu0 %v4233
        %v4268 = vpop.xlane.xlu0 %4267
        %4269 = vadd.xlane.f32.xlu0 %v4234
        %v4270 = vpop.xlane.xlu0 %4269
        %4271 = vadd.xlane.f32.xlu0 %v4235
        %v4272 = vpop.xlane.xlu0 %4271
        %4273 = vadd.xlane.f32.xlu0 %v4236
        %v4274 = vpop.xlane.xlu0 %4273
        %4275 = vadd.xlane.f32.xlu0 %v4237
        %v4276 = vpop.xlane.xlu0 %4275
        %4277 = vadd.xlane.f32.xlu0 %v4238
        %v4278 = vpop.xlane.xlu0 %4277
        %4279 = vadd.xlane.f32.xlu0 %v4239
        %v4280 = vpop.xlane.xlu0 %4279
        %4281 = vadd.xlane.f32.xlu0 %v4240
        %v4282 = vpop.xlane.xlu0 %4281
        %4283 = vadd.xlane.f32.xlu0 %v4241
        %v4284 = vpop.xlane.xlu0 %4283
        %4285 = vadd.xlane.f32.xlu0 %v4242
        %v4286 = vpop.xlane.xlu0 %4285
        %4287 = vadd.xlane.f32.xlu0 %v4243
        %v4288 = vpop.xlane.xlu0 %4287
        %4289 = vadd.xlane.f32.xlu0 %v4244
        %v4290 = vpop.xlane.xlu0 %4289
        %4291 = vadd.xlane.f32.xlu0 %v4245
        %v4292 = vpop.xlane.xlu0 %4291
        %4293 = vadd.xlane.f32.xlu0 %v4246
        %v4294 = vpop.xlane.xlu0 %4293
        %4295 = vadd.xlane.f32.xlu0 %v4247
        %v4296 = vpop.xlane.xlu0 %4295
        %4297 = vadd.xlane.f32.xlu0 %v4248
        %v4298 = vpop.xlane.xlu0 %4297
        %4299 = vadd.xlane.f32.xlu0 %v4249
        %v4300 = vpop.xlane.xlu0 %4299
        %4301 = vadd.xlane.f32.xlu0 %v4250
        %v4302 = vpop.xlane.xlu0 %4301
        %4303 = vadd.xlane.f32.xlu0 %v4251
        %v4304 = vpop.xlane.xlu0 %4303
        %4305 = vadd.xlane.f32.xlu0 %v4252
        %v4306 = vpop.xlane.xlu0 %4305
        %4307 = vadd.xlane.f32.xlu0 %v4253
        %v4308 = vpop.xlane.xlu0 %4307
        %4309 = vadd.xlane.f32.xlu0 %v4254
        %v4310 = vpop.xlane.xlu0 %4309
        %4311 = vadd.xlane.f32.xlu0 %v4255
        %v4312 = vpop.xlane.xlu0 %4311
        %4313 = vadd.xlane.f32.xlu0 %v4256
        %v4314 = vpop.xlane.xlu0 %4313
        %4315 = vadd.xlane.f32.xlu0 %v4257
        %v4316 = vpop.xlane.xlu0 %4315
        %4317 = vadd.xlane.f32.xlu0 %v4258
        %v4318 = vpop.xlane.xlu0 %4317
        %4319 = vadd.xlane.f32.xlu0 %v4259
        %v4320 = vpop.xlane.xlu0 %4319
        %4321 = vadd.xlane.f32.xlu0 %v4260
        %v4322 = vpop.xlane.xlu0 %4321
        %4323 = vadd.xlane.f32.xlu0 %v4261
        %v4324 = vpop.xlane.xlu0 %4323
        %4325 = vadd.xlane.f32.xlu0 %v4262
        %v4326 = vpop.xlane.xlu0 %4325
        %v4327 = vmul.f32 %v4264, 0.25
        %v4328 = vmul.f32 %v4266, 0.25
        %v4329 = vmul.f32 %v4268, 0.25
        %v4330 = vmul.f32 %v4270, 0.25
        %v4331 = vmul.f32 %v4272, 0.25
        %v4332 = vmul.f32 %v4274, 0.25
        %v4333 = vmul.f32 %v4276, 0.25
        %v4334 = vmul.f32 %v4278, 0.25
        %v4335 = vmul.f32 %v4280, 0.25
        %v4336 = vmul.f32 %v4282, 0.25
        %v4337 = vmul.f32 %v4284, 0.25
        %v4338 = vmul.f32 %v4286, 0.25
        %v4339 = vmul.f32 %v4288, 0.25
        %v4340 = vmul.f32 %v4290, 0.25
        %v4341 = vmul.f32 %v4292, 0.25
        %v4342 = vmul.f32 %v4294, 0.25
        %v4343 = vmul.f32 %v4296, 0.25
        %v4344 = vmul.f32 %v4298, 0.25
        %v4345 = vmul.f32 %v4300, 0.25
        %v4346 = vmul.f32 %v4302, 0.25
        %v4347 = vmul.f32 %v4304, 0.25
        %v4348 = vmul.f32 %v4306, 0.25
        %v4349 = vmul.f32 %v4308, 0.25
        %v4350 = vmul.f32 %v4310, 0.25
        %v4351 = vmul.f32 %v4312, 0.25
        %v4352 = vmul.f32 %v4314, 0.25
        %v4353 = vmul.f32 %v4316, 0.25
        %v4354 = vmul.f32 %v4318, 0.25
        %v4355 = vmul.f32 %v4320, 0.25
        %v4356 = vmul.f32 %v4322, 0.25
        %v4357 = vmul.f32 %v4324, 0.25
        %v4358 = vmul.f32 %v4326, 0.25
        %v4359 = vsub.f32 %v4231, %v4327
        %v4360 = vsub.f32 %v4232, %v4328
        %v4361 = vsub.f32 %v4233, %v4329
        %v4362 = vsub.f32 %v4234, %v4330
        %v4363 = vsub.f32 %v4235, %v4331
        %v4364 = vsub.f32 %v4236, %v4332
        %v4365 = vsub.f32 %v4237, %v4333
        %v4366 = vsub.f32 %v4238, %v4334
        %v4367 = vsub.f32 %v4239, %v4335
        %v4368 = vsub.f32 %v4240, %v4336
        %v4369 = vsub.f32 %v4241, %v4337
        %v4370 = vsub.f32 %v4242, %v4338
        %v4371 = vsub.f32 %v4243, %v4339
        %v4372 = vsub.f32 %v4244, %v4340
        %v4373 = vsub.f32 %v4245, %v4341
        %v4374 = vsub.f32 %v4246, %v4342
        %v4375 = vsub.f32 %v4247, %v4343
        %v4376 = vsub.f32 %v4248, %v4344
        %v4377 = vsub.f32 %v4249, %v4345
        %v4378 = vsub.f32 %v4250, %v4346
        %v4379 = vsub.f32 %v4251, %v4347
        %v4380 = vsub.f32 %v4252, %v4348
        %v4381 = vsub.f32 %v4253, %v4349
        %v4382 = vsub.f32 %v4254, %v4350
        %v4383 = vsub.f32 %v4255, %v4351
        %v4384 = vsub.f32 %v4256, %v4352
        %v4385 = vsub.f32 %v4257, %v4353
        %v4386 = vsub.f32 %v4258, %v4354
        %v4387 = vsub.f32 %v4259, %v4355
        %v4388 = vsub.f32 %v4260, %v4356
        %v4389 = vsub.f32 %v4261, %v4357
        %v4390 = vsub.f32 %v4262, %v4358
        %v4391 = vlaneseq
        %v4392 = vand.u32 %v4391, 127
        %vm4393 = vcmp.lt.s32.totalorder %v4392, 4
        %v4394 = vsel %vm4393, 1, 0
        %vm4395 = vcmp.eq.s32.totalorder %v4394, 1
        %v4396 = vsel %vm4395, %v4359, 0.0
        %v4397 = vsel %vm4395, %v4360, 0.0
        %v4398 = vsel %vm4395, %v4361, 0.0
        %v4399 = vsel %vm4395, %v4362, 0.0
        %v4400 = vsel %vm4395, %v4363, 0.0
        %v4401 = vsel %vm4395, %v4364, 0.0
        %v4402 = vsel %vm4395, %v4365, 0.0
        %v4403 = vsel %vm4395, %v4366, 0.0
        %v4404 = vsel %vm4395, %v4367, 0.0
        %v4405 = vsel %vm4395, %v4368, 0.0
        %v4406 = vsel %vm4395, %v4369, 0.0
        %v4407 = vsel %vm4395, %v4370, 0.0
        %v4408 = vsel %vm4395, %v4371, 0.0
        %v4409 = vsel %vm4395, %v4372, 0.0
        %v4410 = vsel %vm4395, %v4373, 0.0
        %v4411 = vsel %vm4395, %v4374, 0.0
        %v4412 = vsel %vm4395, %v4375, 0.0
        %v4413 = vsel %vm4395, %v4376, 0.0
        %v4414 = vsel %vm4395, %v4377, 0.0
        %v4415 = vsel %vm4395, %v4378, 0.0
        %v4416 = vsel %vm4395, %v4379, 0.0
        %v4417 = vsel %vm4395, %v4380, 0.0
        %v4418 = vsel %vm4395, %v4381, 0.0
        %v4419 = vsel %vm4395, %v4382, 0.0
        %v4420 = vsel %vm4395, %v4383, 0.0
        %v4421 = vsel %vm4395, %v4384, 0.0
        %v4422 = vsel %vm4395, %v4385, 0.0
        %v4423 = vsel %vm4395, %v4386, 0.0
        %v4424 = vsel %vm4395, %v4387, 0.0
        %v4425 = vsel %vm4395, %v4388, 0.0
        %v4426 = vsel %vm4395, %v4389, 0.0
        %v4427 = vsel %vm4395, %v4390, 0.0
        %v4428 = vmul.f32 %v4396, %v4396
        %v4429 = vmul.f32 %v4397, %v4397
        %v4430 = vmul.f32 %v4398, %v4398
        %v4431 = vmul.f32 %v4399, %v4399
        %v4432 = vmul.f32 %v4400, %v4400
        %v4433 = vmul.f32 %v4401, %v4401
        %v4434 = vmul.f32 %v4402, %v4402
        %v4435 = vmul.f32 %v4403, %v4403
        %v4436 = vmul.f32 %v4404, %v4404
        %v4437 = vmul.f32 %v4405, %v4405
        %v4438 = vmul.f32 %v4406, %v4406
        %v4439 = vmul.f32 %v4407, %v4407
        %v4440 = vmul.f32 %v4408, %v4408
        %v4441 = vmul.f32 %v4409, %v4409
        %v4442 = vmul.f32 %v4410, %v4410
        %v4443 = vmul.f32 %v4411, %v4411
        %v4444 = vmul.f32 %v4412, %v4412
        %v4445 = vmul.f32 %v4413, %v4413
        %v4446 = vmul.f32 %v4414, %v4414
        %v4447 = vmul.f32 %v4415, %v4415
        %v4448 = vmul.f32 %v4416, %v4416
        %v4449 = vmul.f32 %v4417, %v4417
        %v4450 = vmul.f32 %v4418, %v4418
        %v4451 = vmul.f32 %v4419, %v4419
        %v4452 = vmul.f32 %v4420, %v4420
        %v4453 = vmul.f32 %v4421, %v4421
        %v4454 = vmul.f32 %v4422, %v4422
        %v4455 = vmul.f32 %v4423, %v4423
        %v4456 = vmul.f32 %v4424, %v4424
        %v4457 = vmul.f32 %v4425, %v4425
        %v4458 = vmul.f32 %v4426, %v4426
        %v4459 = vmul.f32 %v4427, %v4427
        %4460 = vadd.xlane.f32.xlu0 %v4428
        %v4461 = vpop.xlane.xlu0 %4460
        %4462 = vadd.xlane.f32.xlu0 %v4429
        %v4463 = vpop.xlane.xlu0 %4462
        %4464 = vadd.xlane.f32.xlu0 %v4430
        %v4465 = vpop.xlane.xlu0 %4464
        %4466 = vadd.xlane.f32.xlu0 %v4431
        %v4467 = vpop.xlane.xlu0 %4466
        %4468 = vadd.xlane.f32.xlu0 %v4432
        %v4469 = vpop.xlane.xlu0 %4468
        %4470 = vadd.xlane.f32.xlu0 %v4433
        %v4471 = vpop.xlane.xlu0 %4470
        %4472 = vadd.xlane.f32.xlu0 %v4434
        %v4473 = vpop.xlane.xlu0 %4472
        %4474 = vadd.xlane.f32.xlu0 %v4435
        %v4475 = vpop.xlane.xlu0 %4474
        %4476 = vadd.xlane.f32.xlu0 %v4436
        %v4477 = vpop.xlane.xlu0 %4476
        %4478 = vadd.xlane.f32.xlu0 %v4437
        %v4479 = vpop.xlane.xlu0 %4478
        %4480 = vadd.xlane.f32.xlu0 %v4438
        %v4481 = vpop.xlane.xlu0 %4480
        %4482 = vadd.xlane.f32.xlu0 %v4439
        %v4483 = vpop.xlane.xlu0 %4482
        %4484 = vadd.xlane.f32.xlu0 %v4440
        %v4485 = vpop.xlane.xlu0 %4484
        %4486 = vadd.xlane.f32.xlu0 %v4441
        %v4487 = vpop.xlane.xlu0 %4486
        %4488 = vadd.xlane.f32.xlu0 %v4442
        %v4489 = vpop.xlane.xlu0 %4488
        %4490 = vadd.xlane.f32.xlu0 %v4443
        %v4491 = vpop.xlane.xlu0 %4490
        %4492 = vadd.xlane.f32.xlu0 %v4444
        %v4493 = vpop.xlane.xlu0 %4492
        %4494 = vadd.xlane.f32.xlu0 %v4445
        %v4495 = vpop.xlane.xlu0 %4494
        %4496 = vadd.xlane.f32.xlu0 %v4446
        %v4497 = vpop.xlane.xlu0 %4496
        %4498 = vadd.xlane.f32.xlu0 %v4447
        %v4499 = vpop.xlane.xlu0 %4498
        %4500 = vadd.xlane.f32.xlu0 %v4448
        %v4501 = vpop.xlane.xlu0 %4500
        %4502 = vadd.xlane.f32.xlu0 %v4449
        %v4503 = vpop.xlane.xlu0 %4502
        %4504 = vadd.xlane.f32.xlu0 %v4450
        %v4505 = vpop.xlane.xlu0 %4504
        %4506 = vadd.xlane.f32.xlu0 %v4451
        %v4507 = vpop.xlane.xlu0 %4506
        %4508 = vadd.xlane.f32.xlu0 %v4452
        %v4509 = vpop.xlane.xlu0 %4508
        %4510 = vadd.xlane.f32.xlu0 %v4453
        %v4511 = vpop.xlane.xlu0 %4510
        %4512 = vadd.xlane.f32.xlu0 %v4454
        %v4513 = vpop.xlane.xlu0 %4512
        %4514 = vadd.xlane.f32.xlu0 %v4455
        %v4515 = vpop.xlane.xlu0 %4514
        %4516 = vadd.xlane.f32.xlu0 %v4456
        %v4517 = vpop.xlane.xlu0 %4516
        %4518 = vadd.xlane.f32.xlu0 %v4457
        %v4519 = vpop.xlane.xlu0 %4518
        %4520 = vadd.xlane.f32.xlu0 %v4458
        %v4521 = vpop.xlane.xlu0 %4520
        %4522 = vadd.xlane.f32.xlu0 %v4459
        %v4523 = vpop.xlane.xlu0 %4522
        %v4524 = vmul.f32 %v4461, 0.25
        %v4525 = vmul.f32 %v4463, 0.25
        %v4526 = vmul.f32 %v4465, 0.25
        %v4527 = vmul.f32 %v4467, 0.25
        %v4528 = vmul.f32 %v4469, 0.25
        %v4529 = vmul.f32 %v4471, 0.25
        %v4530 = vmul.f32 %v4473, 0.25
        %v4531 = vmul.f32 %v4475, 0.25
        %v4532 = vmul.f32 %v4477, 0.25
        %v4533 = vmul.f32 %v4479, 0.25
        %v4534 = vmul.f32 %v4481, 0.25
        %v4535 = vmul.f32 %v4483, 0.25
        %v4536 = vmul.f32 %v4485, 0.25
        %v4537 = vmul.f32 %v4487, 0.25
        %v4538 = vmul.f32 %v4489, 0.25
        %v4539 = vmul.f32 %v4491, 0.25
        %v4540 = vmul.f32 %v4493, 0.25
        %v4541 = vmul.f32 %v4495, 0.25
        %v4542 = vmul.f32 %v4497, 0.25
        %v4543 = vmul.f32 %v4499, 0.25
        %v4544 = vmul.f32 %v4501, 0.25
        %v4545 = vmul.f32 %v4503, 0.25
        %v4546 = vmul.f32 %v4505, 0.25
        %v4547 = vmul.f32 %v4507, 0.25
        %v4548 = vmul.f32 %v4509, 0.25
        %v4549 = vmul.f32 %v4511, 0.25
        %v4550 = vmul.f32 %v4513, 0.25
        %v4551 = vmul.f32 %v4515, 0.25
        %v4552 = vmul.f32 %v4517, 0.25
        %v4553 = vmul.f32 %v4519, 0.25
        %v4554 = vmul.f32 %v4521, 0.25
        %v4555 = vmul.f32 %v4523, 0.25
        %v4556 = vadd.f32 %v4524, 1e-06
        %v4557 = vadd.f32 %v4525, 1e-06
        %v4558 = vadd.f32 %v4526, 1e-06
        %v4559 = vadd.f32 %v4527, 1e-06
        %v4560 = vadd.f32 %v4528, 1e-06
        %v4561 = vadd.f32 %v4529, 1e-06
        %v4562 = vadd.f32 %v4530, 1e-06
        %v4563 = vadd.f32 %v4531, 1e-06
        %v4564 = vadd.f32 %v4532, 1e-06
        %v4565 = vadd.f32 %v4533, 1e-06
        %v4566 = vadd.f32 %v4534, 1e-06
        %v4567 = vadd.f32 %v4535, 1e-06
        %v4568 = vadd.f32 %v4536, 1e-06
        %v4569 = vadd.f32 %v4537, 1e-06
        %v4570 = vadd.f32 %v4538, 1e-06
        %v4571 = vadd.f32 %v4539, 1e-06
        %v4572 = vadd.f32 %v4540, 1e-06
        %v4573 = vadd.f32 %v4541, 1e-06
        %v4574 = vadd.f32 %v4542, 1e-06
        %v4575 = vadd.f32 %v4543, 1e-06
        %v4576 = vadd.f32 %v4544, 1e-06
        %v4577 = vadd.f32 %v4545, 1e-06
        %v4578 = vadd.f32 %v4546, 1e-06
        %v4579 = vadd.f32 %v4547, 1e-06
        %v4580 = vadd.f32 %v4548, 1e-06
        %v4581 = vadd.f32 %v4549, 1e-06
        %v4582 = vadd.f32 %v4550, 1e-06
        %v4583 = vadd.f32 %v4551, 1e-06
        %v4584 = vadd.f32 %v4552, 1e-06
        %v4585 = vadd.f32 %v4553, 1e-06
        %v4586 = vadd.f32 %v4554, 1e-06
        %v4587 = vadd.f32 %v4555, 1e-06
        %v4588 = vrsqrt.pop %v4556
        %v4589 = vrsqrt.pop %v4557
        %v4590 = vrsqrt.pop %v4558
        %v4591 = vrsqrt.pop %v4559
        %v4592 = vrsqrt.pop %v4560
        %v4593 = vrsqrt.pop %v4561
        %v4594 = vrsqrt.pop %v4562
        %v4595 = vrsqrt.pop %v4563
        %v4596 = vrsqrt.pop %v4564
        %v4597 = vrsqrt.pop %v4565
        %v4598 = vrsqrt.pop %v4566
        %v4599 = vrsqrt.pop %v4567
        %v4600 = vrsqrt.pop %v4568
        %v4601 = vrsqrt.pop %v4569
        %v4602 = vrsqrt.pop %v4570
        %v4603 = vrsqrt.pop %v4571
        %v4604 = vrsqrt.pop %v4572
        %v4605 = vrsqrt.pop %v4573
        %v4606 = vrsqrt.pop %v4574
        %v4607 = vrsqrt.pop %v4575
        %v4608 = vrsqrt.pop %v4576
        %v4609 = vrsqrt.pop %v4577
        %v4610 = vrsqrt.pop %v4578
        %v4611 = vrsqrt.pop %v4579
        %v4612 = vrsqrt.pop %v4580
        %v4613 = vrsqrt.pop %v4581
        %v4614 = vrsqrt.pop %v4582
        %v4615 = vrsqrt.pop %v4583
        %v4616 = vrsqrt.pop %v4584
        %v4617 = vrsqrt.pop %v4585
        %v4618 = vrsqrt.pop %v4586
        %v4619 = vrsqrt.pop %v4587
        %v4620 = vmul.f32 %v4359, %v4588
        %v4621 = vmul.f32 %v4360, %v4589
        %v4622 = vmul.f32 %v4361, %v4590
        %v4623 = vmul.f32 %v4362, %v4591
        %v4624 = vmul.f32 %v4363, %v4592
        %v4625 = vmul.f32 %v4364, %v4593
        %v4626 = vmul.f32 %v4365, %v4594
        %v4627 = vmul.f32 %v4366, %v4595
        %v4628 = vmul.f32 %v4367, %v4596
        %v4629 = vmul.f32 %v4368, %v4597
        %v4630 = vmul.f32 %v4369, %v4598
        %v4631 = vmul.f32 %v4370, %v4599
        %v4632 = vmul.f32 %v4371, %v4600
        %v4633 = vmul.f32 %v4372, %v4601
        %v4634 = vmul.f32 %v4373, %v4602
        %v4635 = vmul.f32 %v4374, %v4603
        %v4636 = vmul.f32 %v4375, %v4604
        %v4637 = vmul.f32 %v4376, %v4605
        %v4638 = vmul.f32 %v4377, %v4606
        %v4639 = vmul.f32 %v4378, %v4607
        %v4640 = vmul.f32 %v4379, %v4608
        %v4641 = vmul.f32 %v4380, %v4609
        %v4642 = vmul.f32 %v4381, %v4610
        %v4643 = vmul.f32 %v4382, %v4611
        %v4644 = vmul.f32 %v4383, %v4612
        %v4645 = vmul.f32 %v4384, %v4613
        %v4646 = vmul.f32 %v4385, %v4614
        %v4647 = vmul.f32 %v4386, %v4615
        %v4648 = vmul.f32 %v4387, %v4616
        %v4649 = vmul.f32 %v4388, %v4617
        %v4650 = vmul.f32 %v4389, %v4618
        %v4651 = vmul.f32 %v4390, %v4619
        %v4652 = vld [vmem:[%s3] sm:$0x1]
        %v4654 = vlaneseq
        %v4655 = vshrl.u32 %v4654, 7
        %v4656 = vsub.s32 0, %v4655
        %v4657 = vrot.slane %v4652, %v4656
        %v4659 = vmul.f32 %v4620, %v4657
        %v4660 = vmul.f32 %v4621, %v4657
        %v4661 = vmul.f32 %v4622, %v4657
        %v4662 = vmul.f32 %v4623, %v4657
        %v4663 = vmul.f32 %v4624, %v4657
        %v4664 = vmul.f32 %v4625, %v4657
        %v4665 = vmul.f32 %v4626, %v4657
        %v4666 = vmul.f32 %v4627, %v4657
        %v4667 = vmul.f32 %v4628, %v4657
        %v4668 = vmul.f32 %v4629, %v4657
        %v4669 = vmul.f32 %v4630, %v4657
        %v4670 = vmul.f32 %v4631, %v4657
        %v4671 = vmul.f32 %v4632, %v4657
        %v4672 = vmul.f32 %v4633, %v4657
        %v4673 = vmul.f32 %v4634, %v4657
        %v4674 = vmul.f32 %v4635, %v4657
        %v4675 = vmul.f32 %v4636, %v4657
        %v4676 = vmul.f32 %v4637, %v4657
        %v4677 = vmul.f32 %v4638, %v4657
        %v4678 = vmul.f32 %v4639, %v4657
        %v4679 = vmul.f32 %v4640, %v4657
        %v4680 = vmul.f32 %v4641, %v4657
        %v4681 = vmul.f32 %v4642, %v4657
        %v4682 = vmul.f32 %v4643, %v4657
        %v4683 = vmul.f32 %v4644, %v4657
        %v4684 = vmul.f32 %v4645, %v4657
        %v4685 = vmul.f32 %v4646, %v4657
        %v4686 = vmul.f32 %v4647, %v4657
        %v4687 = vmul.f32 %v4648, %v4657
        %v4688 = vmul.f32 %v4649, %v4657
        %v4689 = vmul.f32 %v4650, %v4657
        %v4690 = vmul.f32 %v4651, %v4657
        %v4691 = vld [vmem:[%s4] sm:$0x1]
        %v4693 = vlaneseq
        %v4694 = vshrl.u32 %v4693, 7
        %v4695 = vsub.s32 0, %v4694
        %v4696 = vrot.slane %v4691, %v4695
        %v4698 = vadd.f32 %v4659, %v4696
        %v4699 = vadd.f32 %v4660, %v4696
        %v4700 = vadd.f32 %v4661, %v4696
        %v4701 = vadd.f32 %v4662, %v4696
        %v4702 = vadd.f32 %v4663, %v4696
        %v4703 = vadd.f32 %v4664, %v4696
        %v4704 = vadd.f32 %v4665, %v4696
        %v4705 = vadd.f32 %v4666, %v4696
        %v4706 = vadd.f32 %v4667, %v4696
        %v4707 = vadd.f32 %v4668, %v4696
        %v4708 = vadd.f32 %v4669, %v4696
        %v4709 = vadd.f32 %v4670, %v4696
        %v4710 = vadd.f32 %v4671, %v4696
        %v4711 = vadd.f32 %v4672, %v4696
        %v4712 = vadd.f32 %v4673, %v4696
        %v4713 = vadd.f32 %v4674, %v4696
        %v4714 = vadd.f32 %v4675, %v4696
        %v4715 = vadd.f32 %v4676, %v4696
        %v4716 = vadd.f32 %v4677, %v4696
        %v4717 = vadd.f32 %v4678, %v4696
        %v4718 = vadd.f32 %v4679, %v4696
        %v4719 = vadd.f32 %v4680, %v4696
        %v4720 = vadd.f32 %v4681, %v4696
        %v4721 = vadd.f32 %v4682, %v4696
        %v4722 = vadd.f32 %v4683, %v4696
        %v4723 = vadd.f32 %v4684, %v4696
        %v4724 = vadd.f32 %v4685, %v4696
        %v4725 = vadd.f32 %v4686, %v4696
        %v4726 = vadd.f32 %v4687, %v4696
        %v4727 = vadd.f32 %v4688, %v4696
        %v4728 = vadd.f32 %v4689, %v4696
        %v4729 = vadd.f32 %v4690, %v4696
        %v4730 = vpack.c.bf16 %v4699, %v4698
        %v4731 = vpack.c.bf16 %v4701, %v4700
        %v4732 = vpack.c.bf16 %v4703, %v4702
        %v4733 = vpack.c.bf16 %v4705, %v4704
        %v4734 = vpack.c.bf16 %v4707, %v4706
        %v4735 = vpack.c.bf16 %v4709, %v4708
        %v4736 = vpack.c.bf16 %v4711, %v4710
        %v4737 = vpack.c.bf16 %v4713, %v4712
        %v4738 = vpack.c.bf16 %v4715, %v4714
        %v4739 = vpack.c.bf16 %v4717, %v4716
        %v4740 = vpack.c.bf16 %v4719, %v4718
        %v4741 = vpack.c.bf16 %v4721, %v4720
        %v4742 = vpack.c.bf16 %v4723, %v4722
        %v4743 = vpack.c.bf16 %v4725, %v4724
        %v4744 = vpack.c.bf16 %v4727, %v4726
        %v4745 = vpack.c.bf16 %v4729, %v4728
        %v4746 = vld [vmem:[#allocation8] sm:$0xf]
        %v4747 = vld [vmem:[#allocation8 + $0x4] sm:$0xf]
        %v4748 = vld [vmem:[#allocation8 + $0x8] sm:$0xf]
        %v4749 = vld [vmem:[#allocation8 + $0xc] sm:$0xf]
        %v4750 = vld [vmem:[#allocation8 + $0x10] sm:$0xf]
        %v4751 = vld [vmem:[#allocation8 + $0x14] sm:$0xf]
        %v4752 = vld [vmem:[#allocation8 + $0x18] sm:$0xf]
        %v4753 = vld [vmem:[#allocation8 + $0x1c] sm:$0xf]
        %v4754 = vld [vmem:[#allocation8 + $0x20] sm:$0xf]
        %v4755 = vld [vmem:[#allocation8 + $0x24] sm:$0xf]
        %v4756 = vld [vmem:[#allocation8 + $0x28] sm:$0xf]
        %v4757 = vld [vmem:[#allocation8 + $0x2c] sm:$0xf]
        %v4758 = vld [vmem:[#allocation8 + $0x30] sm:$0xf]
        %v4759 = vld [vmem:[#allocation8 + $0x34] sm:$0xf]
        %v4760 = vld [vmem:[#allocation8 + $0x38] sm:$0xf]
        %v4761 = vld [vmem:[#allocation8 + $0x3c] sm:$0xf]
        %v4762 = vld [vmem:[%s6] sm:$0x1]
        %v4764 = vlaneseq
        %v4765 = vshrl.u32 %v4764, 7
        %v4766 = vsub.s32 0, %v4765
        %v4767 = vrot.slane %v4762, %v4766
        %v4785 = vunpack.c.l.b16 %v4746
        %v4786 = vunpack.c.l.b16 %v4747
        %v4787 = vunpack.c.l.b16 %v4748
        %v4788 = vunpack.c.l.b16 %v4749
        %v4789 = vunpack.c.l.b16 %v4750
        %v4790 = vunpack.c.l.b16 %v4751
        %v4791 = vunpack.c.l.b16 %v4752
        %v4792 = vunpack.c.l.b16 %v4753
        %v4793 = vunpack.c.l.b16 %v4754
        %v4794 = vunpack.c.l.b16 %v4755
        %v4795 = vunpack.c.l.b16 %v4756
        %v4796 = vunpack.c.l.b16 %v4757
        %v4797 = vunpack.c.l.b16 %v4758
        %v4798 = vunpack.c.l.b16 %v4759
        %v4799 = vunpack.c.l.b16 %v4760
        %v4800 = vunpack.c.l.b16 %v4761
        %v4801 = vpack.c.b16 %v4786, %v4785
        %v4802 = vpack.c.b16 %v4788, %v4787
        %v4803 = vpack.c.b16 %v4790, %v4789
        %v4804 = vpack.c.b16 %v4792, %v4791
        %v4805 = vpack.c.b16 %v4794, %v4793
        %v4806 = vpack.c.b16 %v4796, %v4795
        %v4807 = vpack.c.b16 %v4798, %v4797
        %v4808 = vpack.c.b16 %v4800, %v4799
        %4817 = vmatprep.subr.bf16.mxu0 0
        %4818 = vmatpush1.bf16.msra.mxu0 %v4808
        %4819 = vmatprep.subr.bf16.mxu0 0
        %4820 = vmatpush1.bf16.msra.mxu0 %v4807
        %4821 = vmatprep.subr.bf16.mxu0 0
        %4822 = vmatpush1.bf16.msra.mxu0 %v4806
        %4823 = vmatprep.subr.bf16.mxu0 0
        %4824 = vmatpush1.bf16.msra.mxu0 %v4805
        %4825 = vmatprep.subr.bf16.mxu0 0
        %4826 = vmatpush1.bf16.msra.mxu0 %v4804
        %4827 = vmatprep.subr.bf16.mxu0 0
        %4828 = vmatpush1.bf16.msra.mxu0 %v4803
        %4829 = vmatprep.subr.bf16.mxu0 0
        %4830 = vmatpush1.bf16.msra.mxu0 %v4802
        %4831 = vmatprep.subr.bf16.mxu0 0
        %4832 = vmatpush1.bf16.msra.mxu0 %v4801
        %4833 = vmatprep.subr.bf16.mxu0 0
        %4834 = vmatpush2.bf16.msra.mxu0 0
        %4835 = vmatprep.subr.bf16.mxu0 0
        %4836 = vmatpush2.bf16.msra.mxu0 0
        %4837 = vmatprep.subr.bf16.mxu0 0
        %4838 = vmatpush2.bf16.msra.mxu0 0
        %4839 = vmatprep.subr.bf16.mxu0 0
        %4840 = vmatpush2.bf16.msra.mxu0 0
        %4841 = vmatprep.subr.bf16.mxu0 0
        %4842 = vmatpush2.bf16.msra.mxu0 0
        %4843 = vmatprep.subr.bf16.mxu0 0
        %4844 = vmatpush2.bf16.msra.mxu0 0
        %4845 = vmatprep.subr.bf16.mxu0 0
        %4846 = vmatpush2.bf16.msra.mxu0 0
        %4847 = vmatprep.subr.bf16.mxu0 0
        %4848 = vmatpush2.bf16.msra.mxu0 0
        %4849 = vmatprep.mubr.bf16.mxu0 0
        %4850 = vmatmul.mubr.bf16.gmra.mxu0 %v4730
        %v4851 = vpop.f32.mrf.mxu0
        %v4852 = vadd.f32 %v4767, %v4851
        %v4853 = vpop.f32.mrf.mxu0
        %v4854 = vpop.f32.mrf.mxu0
        %v4855 = vadd.f32 %v4767, %v4854
        %v4856 = vpop.f32.mrf.mxu0
        %4857 = vmatprep.mubr.bf16.mxu0 0
        %4858 = vmatmul.mubr.bf16.gmra.mxu0 %v4731
        %v4859 = vpop.f32.mrf.mxu0
        %v4860 = vadd.f32 %v4767, %v4859
        %v4861 = vpop.f32.mrf.mxu0
        %v4862 = vpop.f32.mrf.mxu0
        %v4863 = vadd.f32 %v4767, %v4862
        %v4864 = vpop.f32.mrf.mxu0
        %4865 = vmatprep.mubr.bf16.mxu0 0
        %4866 = vmatmul.mubr.bf16.gmra.mxu0 %v4732
        %v4867 = vpop.f32.mrf.mxu0
        %v4868 = vadd.f32 %v4767, %v4867
        %v4869 = vpop.f32.mrf.mxu0
        %v4870 = vpop.f32.mrf.mxu0
        %v4871 = vadd.f32 %v4767, %v4870
        %v4872 = vpop.f32.mrf.mxu0
        %4873 = vmatprep.mubr.bf16.mxu0 0
        %4874 = vmatmul.mubr.bf16.gmra.mxu0 %v4733
        %v4875 = vpop.f32.mrf.mxu0
        %v4876 = vadd.f32 %v4767, %v4875
        %v4877 = vpop.f32.mrf.mxu0
        %v4878 = vpop.f32.mrf.mxu0
        %v4879 = vadd.f32 %v4767, %v4878
        %v4880 = vpop.f32.mrf.mxu0
        %4881 = vmatprep.mubr.bf16.mxu0 0
        %4882 = vmatmul.mubr.bf16.gmra.mxu0 %v4734
        %v4883 = vpop.f32.mrf.mxu0
        %v4884 = vadd.f32 %v4767, %v4883
        %v4885 = vpop.f32.mrf.mxu0
        %v4886 = vpop.f32.mrf.mxu0
        %v4887 = vadd.f32 %v4767, %v4886
        %v4888 = vpop.f32.mrf.mxu0
        %4889 = vmatprep.mubr.bf16.mxu0 0
        %4890 = vmatmul.mubr.bf16.gmra.mxu0 %v4735
        %v4891 = vpop.f32.mrf.mxu0
        %v4892 = vadd.f32 %v4767, %v4891
        %v4893 = vpop.f32.mrf.mxu0
        %v4894 = vpop.f32.mrf.mxu0
        %v4895 = vadd.f32 %v4767, %v4894
        %v4896 = vpop.f32.mrf.mxu0
        %4897 = vmatprep.mubr.bf16.mxu0 0
        %4898 = vmatmul.mubr.bf16.gmra.mxu0 %v4736
        %v4899 = vpop.f32.mrf.mxu0
        %v4900 = vadd.f32 %v4767, %v4899
        %v4901 = vpop.f32.mrf.mxu0
        %v4902 = vpop.f32.mrf.mxu0
        %v4903 = vadd.f32 %v4767, %v4902
        %v4904 = vpop.f32.mrf.mxu0
        %4905 = vmatprep.mubr.bf16.mxu0 0
        %4906 = vmatmul.mubr.bf16.gmra.mxu0 %v4737
        %v4907 = vpop.f32.mrf.mxu0
        %v4908 = vadd.f32 %v4767, %v4907
        %v4909 = vpop.f32.mrf.mxu0
        %v4910 = vpop.f32.mrf.mxu0
        %v4911 = vadd.f32 %v4767, %v4910
        %v4912 = vpop.f32.mrf.mxu0
        %4913 = vmatprep.mubr.bf16.mxu0 0
        %4914 = vmatmul.mubr.bf16.gmra.mxu0 %v4738
        %v4915 = vpop.f32.mrf.mxu0
        %v4916 = vadd.f32 %v4767, %v4915
        %v4917 = vpop.f32.mrf.mxu0
        %v4918 = vpop.f32.mrf.mxu0
        %v4919 = vadd.f32 %v4767, %v4918
        %v4920 = vpop.f32.mrf.mxu0
        %4921 = vmatprep.mubr.bf16.mxu0 0
        %4922 = vmatmul.mubr.bf16.gmra.mxu0 %v4739
        %v4923 = vpop.f32.mrf.mxu0
        %v4924 = vadd.f32 %v4767, %v4923
        %v4925 = vpop.f32.mrf.mxu0
        %v4926 = vpop.f32.mrf.mxu0
        %v4927 = vadd.f32 %v4767, %v4926
        %v4928 = vpop.f32.mrf.mxu0
        %4929 = vmatprep.mubr.bf16.mxu0 0
        %4930 = vmatmul.mubr.bf16.gmra.mxu0 %v4740
        %v4931 = vpop.f32.mrf.mxu0
        %v4932 = vadd.f32 %v4767, %v4931
        %v4933 = vpop.f32.mrf.mxu0
        %v4934 = vpop.f32.mrf.mxu0
        %v4935 = vadd.f32 %v4767, %v4934
        %v4936 = vpop.f32.mrf.mxu0
        %4937 = vmatprep.mubr.bf16.mxu0 0
        %4938 = vmatmul.mubr.bf16.gmra.mxu0 %v4741
        %v4939 = vpop.f32.mrf.mxu0
        %v4940 = vadd.f32 %v4767, %v4939
        %v4941 = vpop.f32.mrf.mxu0
        %v4942 = vpop.f32.mrf.mxu0
        %v4943 = vadd.f32 %v4767, %v4942
        %v4944 = vpop.f32.mrf.mxu0
        %4945 = vmatprep.mubr.bf16.mxu0 0
        %4946 = vmatmul.mubr.bf16.gmra.mxu0 %v4742
        %v4947 = vpop.f32.mrf.mxu0
        %v4948 = vadd.f32 %v4767, %v4947
        %v4949 = vpop.f32.mrf.mxu0
        %v4950 = vpop.f32.mrf.mxu0
        %v4951 = vadd.f32 %v4767, %v4950
        %v4952 = vpop.f32.mrf.mxu0
        %4953 = vmatprep.mubr.bf16.mxu0 0
        %4954 = vmatmul.mubr.bf16.gmra.mxu0 %v4743
        %v4955 = vpop.f32.mrf.mxu0
        %v4956 = vadd.f32 %v4767, %v4955
        %v4957 = vpop.f32.mrf.mxu0
        %v4958 = vpop.f32.mrf.mxu0
        %v4959 = vadd.f32 %v4767, %v4958
        %v4960 = vpop.f32.mrf.mxu0
        %4961 = vmatprep.mubr.bf16.mxu0 0
        %4962 = vmatmul.mubr.bf16.gmra.mxu0 %v4744
        %v4963 = vpop.f32.mrf.mxu0
        %v4964 = vadd.f32 %v4767, %v4963
        %v4965 = vpop.f32.mrf.mxu0
        %v4966 = vpop.f32.mrf.mxu0
        %v4967 = vadd.f32 %v4767, %v4966
        %v4968 = vpop.f32.mrf.mxu0
        %4969 = vmatprep.mubr.bf16.mxu0 0
        %4970 = vmatmul.mubr.bf16.gmra.mxu0 %v4745
        %v4971 = vpop.f32.mrf.mxu0
        %v4972 = vadd.f32 %v4767, %v4971
        %v4973 = vpop.f32.mrf.mxu0
        %v4974 = vpop.f32.mrf.mxu0
        %v4975 = vadd.f32 %v4767, %v4974
        %v4976 = vpop.f32.mrf.mxu0
        %4977 = vdwg.mxu0
        %v4978 = vmul.f32 %v4852, 0.5
        %v4979 = vmul.f32 %v4855, 0.5
        %v4980 = vmul.f32 %v4860, 0.5
        %v4981 = vmul.f32 %v4863, 0.5
        %v4982 = vmul.f32 %v4868, 0.5
        %v4983 = vmul.f32 %v4871, 0.5
        %v4984 = vmul.f32 %v4876, 0.5
        %v4985 = vmul.f32 %v4879, 0.5
        %v4986 = vmul.f32 %v4884, 0.5
        %v4987 = vmul.f32 %v4887, 0.5
        %v4988 = vmul.f32 %v4892, 0.5
        %v4989 = vmul.f32 %v4895, 0.5
        %v4990 = vmul.f32 %v4900, 0.5
        %v4991 = vmul.f32 %v4903, 0.5
        %v4992 = vmul.f32 %v4908, 0.5
        %v4993 = vmul.f32 %v4911, 0.5
        %v4994 = vmul.f32 %v4916, 0.5
        %v4995 = vmul.f32 %v4919, 0.5
        %v4996 = vmul.f32 %v4924, 0.5
        %v4997 = vmul.f32 %v4927, 0.5
        %v4998 = vmul.f32 %v4932, 0.5
        %v4999 = vmul.f32 %v4935, 0.5
        %v5000 = vmul.f32 %v4940, 0.5
        %v5001 = vmul.f32 %v4943, 0.5
        %v5002 = vmul.f32 %v4948, 0.5
        %v5003 = vmul.f32 %v4951, 0.5
        %v5004 = vmul.f32 %v4956, 0.5
        %v5005 = vmul.f32 %v4959, 0.5
        %v5006 = vmul.f32 %v4964, 0.5
        %v5007 = vmul.f32 %v4967, 0.5
        %v5008 = vmul.f32 %v4972, 0.5
        %v5009 = vmul.f32 %v4975, 0.5
        %v5010 = vmul.f32 %v4852, 0.70710677
        %v5011 = vmul.f32 %v4855, 0.70710677
        %v5012 = vmul.f32 %v4860, 0.70710677
        %v5013 = vmul.f32 %v4863, 0.70710677
        %v5014 = vmul.f32 %v4868, 0.70710677
        %v5015 = vmul.f32 %v4871, 0.70710677
        %v5016 = vmul.f32 %v4876, 0.70710677
        %v5017 = vmul.f32 %v4879, 0.70710677
        %v5018 = vmul.f32 %v4884, 0.70710677
        %v5019 = vmul.f32 %v4887, 0.70710677
        %v5020 = vmul.f32 %v4892, 0.70710677
        %v5021 = vmul.f32 %v4895, 0.70710677
        %v5022 = vmul.f32 %v4900, 0.70710677
        %v5023 = vmul.f32 %v4903, 0.70710677
        %v5024 = vmul.f32 %v4908, 0.70710677
        %v5025 = vmul.f32 %v4911, 0.70710677
        %v5026 = vmul.f32 %v4916, 0.70710677
        %v5027 = vmul.f32 %v4919, 0.70710677
        %v5028 = vmul.f32 %v4924, 0.70710677
        %v5029 = vmul.f32 %v4927, 0.70710677
        %v5030 = vmul.f32 %v4932, 0.70710677
        %v5031 = vmul.f32 %v4935, 0.70710677
        %v5032 = vmul.f32 %v4940, 0.70710677
        %v5033 = vmul.f32 %v4943, 0.70710677
        %v5034 = vmul.f32 %v4948, 0.70710677
        %v5035 = vmul.f32 %v4951, 0.70710677
        %v5036 = vmul.f32 %v4956, 0.70710677
        %v5037 = vmul.f32 %v4959, 0.70710677
        %v5038 = vmul.f32 %v4964, 0.70710677
        %v5039 = vmul.f32 %v4967, 0.70710677
        %v5040 = vmul.f32 %v4972, 0.70710677
        %v5041 = vmul.f32 %v4975, 0.70710677
        %vm5042 = vcmp.ge.f32.partialorder %v5010, 0.0
        %vm5043 = vcmp.ge.f32.partialorder %v5011, 0.0
        %vm5044 = vcmp.ge.f32.partialorder %v5012, 0.0
        %vm5045 = vcmp.ge.f32.partialorder %v5013, 0.0
        %vm5046 = vcmp.ge.f32.partialorder %v5014, 0.0
        %vm5047 = vcmp.ge.f32.partialorder %v5015, 0.0
        %vm5048 = vcmp.ge.f32.partialorder %v5016, 0.0
        %vm5049 = vcmp.ge.f32.partialorder %v5017, 0.0
        %vm5050 = vcmp.ge.f32.partialorder %v5018, 0.0
        %vm5051 = vcmp.ge.f32.partialorder %v5019, 0.0
        %vm5052 = vcmp.ge.f32.partialorder %v5020, 0.0
        %vm5053 = vcmp.ge.f32.partialorder %v5021, 0.0
        %vm5054 = vcmp.ge.f32.partialorder %v5022, 0.0
        %vm5055 = vcmp.ge.f32.partialorder %v5023, 0.0
        %vm5056 = vcmp.ge.f32.partialorder %v5024, 0.0
        %vm5057 = vcmp.ge.f32.partialorder %v5025, 0.0
        %vm5058 = vcmp.ge.f32.partialorder %v5026, 0.0
        %vm5059 = vcmp.ge.f32.partialorder %v5027, 0.0
        %vm5060 = vcmp.ge.f32.partialorder %v5028, 0.0
        %vm5061 = vcmp.ge.f32.partialorder %v5029, 0.0
        %vm5062 = vcmp.ge.f32.partialorder %v5030, 0.0
        %vm5063 = vcmp.ge.f32.partialorder %v5031, 0.0
        %vm5064 = vcmp.ge.f32.partialorder %v5032, 0.0
        %vm5065 = vcmp.ge.f32.partialorder %v5033, 0.0
        %vm5066 = vcmp.ge.f32.partialorder %v5034, 0.0
        %vm5067 = vcmp.ge.f32.partialorder %v5035, 0.0
        %vm5068 = vcmp.ge.f32.partialorder %v5036, 0.0
        %vm5069 = vcmp.ge.f32.partialorder %v5037, 0.0
        %vm5070 = vcmp.ge.f32.partialorder %v5038, 0.0
        %vm5071 = vcmp.ge.f32.partialorder %v5039, 0.0
        %vm5072 = vcmp.ge.f32.partialorder %v5040, 0.0
        %vm5073 = vcmp.ge.f32.partialorder %v5041, 0.0
        %v5074 = vsel %vm5042, 1.0, -1.0
        %v5075 = vsel %vm5043, 1.0, -1.0
        %v5076 = vsel %vm5044, 1.0, -1.0
        %v5077 = vsel %vm5045, 1.0, -1.0
        %v5078 = vsel %vm5046, 1.0, -1.0
        %v5079 = vsel %vm5047, 1.0, -1.0
        %v5080 = vsel %vm5048, 1.0, -1.0
        %v5081 = vsel %vm5049, 1.0, -1.0
        %v5082 = vsel %vm5050, 1.0, -1.0
        %v5083 = vsel %vm5051, 1.0, -1.0
        %v5084 = vsel %vm5052, 1.0, -1.0
        %v5085 = vsel %vm5053, 1.0, -1.0
        %v5086 = vsel %vm5054, 1.0, -1.0
        %v5087 = vsel %vm5055, 1.0, -1.0
        %v5088 = vsel %vm5056, 1.0, -1.0
        %v5089 = vsel %vm5057, 1.0, -1.0
        %v5090 = vsel %vm5058, 1.0, -1.0
        %v5091 = vsel %vm5059, 1.0, -1.0
        %v5092 = vsel %vm5060, 1.0, -1.0
        %v5093 = vsel %vm5061, 1.0, -1.0
        %v5094 = vsel %vm5062, 1.0, -1.0
        %v5095 = vsel %vm5063, 1.0, -1.0
        %v5096 = vsel %vm5064, 1.0, -1.0
        %v5097 = vsel %vm5065, 1.0, -1.0
        %v5098 = vsel %vm5066, 1.0, -1.0
        %v5099 = vsel %vm5067, 1.0, -1.0
        %v5100 = vsel %vm5068, 1.0, -1.0
        %v5101 = vsel %vm5069, 1.0, -1.0
        %v5102 = vsel %vm5070, 1.0, -1.0
        %v5103 = vsel %vm5071, 1.0, -1.0
        %v5104 = vsel %vm5072, 1.0, -1.0
        %v5105 = vsel %vm5073, 1.0, -1.0
        %v5106 = vand.u32 2147483647, %v5010
        %v5107 = vand.u32 2147483647, %v5011
        %v5108 = vand.u32 2147483647, %v5012
        %v5109 = vand.u32 2147483647, %v5013
        %v5110 = vand.u32 2147483647, %v5014
        %v5111 = vand.u32 2147483647, %v5015
        %v5112 = vand.u32 2147483647, %v5016
        %v5113 = vand.u32 2147483647, %v5017
        %v5114 = vand.u32 2147483647, %v5018
        %v5115 = vand.u32 2147483647, %v5019
        %v5116 = vand.u32 2147483647, %v5020
        %v5117 = vand.u32 2147483647, %v5021
        %v5118 = vand.u32 2147483647, %v5022
        %v5119 = vand.u32 2147483647, %v5023
        %v5120 = vand.u32 2147483647, %v5024
        %v5121 = vand.u32 2147483647, %v5025
        %v5122 = vand.u32 2147483647, %v5026
        %v5123 = vand.u32 2147483647, %v5027
        %v5124 = vand.u32 2147483647, %v5028
        %v5125 = vand.u32 2147483647, %v5029
        %v5126 = vand.u32 2147483647, %v5030
        %v5127 = vand.u32 2147483647, %v5031
        %v5128 = vand.u32 2147483647, %v5032
        %v5129 = vand.u32 2147483647, %v5033
        %v5130 = vand.u32 2147483647, %v5034
        %v5131 = vand.u32 2147483647, %v5035
        %v5132 = vand.u32 2147483647, %v5036
        %v5133 = vand.u32 2147483647, %v5037
        %v5134 = vand.u32 2147483647, %v5038
        %v5135 = vand.u32 2147483647, %v5039
        %v5136 = vand.u32 2147483647, %v5040
        %v5137 = vand.u32 2147483647, %v5041
        %v5138 = vmul.f32 %v5106, 0.3275911
        %v5139 = vmul.f32 %v5107, 0.3275911
        %v5140 = vmul.f32 %v5108, 0.3275911
        %v5141 = vmul.f32 %v5109, 0.3275911
        %v5142 = vmul.f32 %v5110, 0.3275911
        %v5143 = vmul.f32 %v5111, 0.3275911
        %v5144 = vmul.f32 %v5112, 0.3275911
        %v5145 = vmul.f32 %v5113, 0.3275911
        %v5146 = vmul.f32 %v5114, 0.3275911
        %v5147 = vmul.f32 %v5115, 0.3275911
        %v5148 = vmul.f32 %v5116, 0.3275911
        %v5149 = vmul.f32 %v5117, 0.3275911
        %v5150 = vmul.f32 %v5118, 0.3275911
        %v5151 = vmul.f32 %v5119, 0.3275911
        %v5152 = vmul.f32 %v5120, 0.3275911
        %v5153 = vmul.f32 %v5121, 0.3275911
        %v5154 = vmul.f32 %v5122, 0.3275911
        %v5155 = vmul.f32 %v5123, 0.3275911
        %v5156 = vmul.f32 %v5124, 0.3275911
        %v5157 = vmul.f32 %v5125, 0.3275911
        %v5158 = vmul.f32 %v5126, 0.3275911
        %v5159 = vmul.f32 %v5127, 0.3275911
        %v5160 = vmul.f32 %v5128, 0.3275911
        %v5161 = vmul.f32 %v5129, 0.3275911
        %v5162 = vmul.f32 %v5130, 0.3275911
        %v5163 = vmul.f32 %v5131, 0.3275911
        %v5164 = vmul.f32 %v5132, 0.3275911
        %v5165 = vmul.f32 %v5133, 0.3275911
        %v5166 = vmul.f32 %v5134, 0.3275911
        %v5167 = vmul.f32 %v5135, 0.3275911
        %v5168 = vmul.f32 %v5136, 0.3275911
        %v5169 = vmul.f32 %v5137, 0.3275911
        %v5170 = vadd.f32 %v5138, 1.0
        %v5171 = vadd.f32 %v5139, 1.0
        %v5172 = vadd.f32 %v5140, 1.0
        %v5173 = vadd.f32 %v5141, 1.0
        %v5174 = vadd.f32 %v5142, 1.0
        %v5175 = vadd.f32 %v5143, 1.0
        %v5176 = vadd.f32 %v5144, 1.0
        %v5177 = vadd.f32 %v5145, 1.0
        %v5178 = vadd.f32 %v5146, 1.0
        %v5179 = vadd.f32 %v5147, 1.0
        %v5180 = vadd.f32 %v5148, 1.0
        %v5181 = vadd.f32 %v5149, 1.0
        %v5182 = vadd.f32 %v5150, 1.0
        %v5183 = vadd.f32 %v5151, 1.0
        %v5184 = vadd.f32 %v5152, 1.0
        %v5185 = vadd.f32 %v5153, 1.0
        %v5186 = vadd.f32 %v5154, 1.0
        %v5187 = vadd.f32 %v5155, 1.0
        %v5188 = vadd.f32 %v5156, 1.0
        %v5189 = vadd.f32 %v5157, 1.0
        %v5190 = vadd.f32 %v5158, 1.0
        %v5191 = vadd.f32 %v5159, 1.0
        %v5192 = vadd.f32 %v5160, 1.0
        %v5193 = vadd.f32 %v5161, 1.0
        %v5194 = vadd.f32 %v5162, 1.0
        %v5195 = vadd.f32 %v5163, 1.0
        %v5196 = vadd.f32 %v5164, 1.0
        %v5197 = vadd.f32 %v5165, 1.0
        %v5198 = vadd.f32 %v5166, 1.0
        %v5199 = vadd.f32 %v5167, 1.0
        %v5200 = vadd.f32 %v5168, 1.0
        %v5201 = vadd.f32 %v5169, 1.0
        %v5202 = vrcp.pop %v5170
        %v5203 = vmul.f32 1.0, %v5202
        %v5204 = vrcp.pop %v5171
        %v5205 = vmul.f32 1.0, %v5204
        %v5206 = vrcp.pop %v5172
        %v5207 = vmul.f32 1.0, %v5206
        %v5208 = vrcp.pop %v5173
        %v5209 = vmul.f32 1.0, %v5208
        %v5210 = vrcp.pop %v5174
        %v5211 = vmul.f32 1.0, %v5210
        %v5212 = vrcp.pop %v5175
        %v5213 = vmul.f32 1.0, %v5212
        %v5214 = vrcp.pop %v5176
        %v5215 = vmul.f32 1.0, %v5214
        %v5216 = vrcp.pop %v5177
        %v5217 = vmul.f32 1.0, %v5216
        %v5218 = vrcp.pop %v5178
        %v5219 = vmul.f32 1.0, %v5218
        %v5220 = vrcp.pop %v5179
        %v5221 = vmul.f32 1.0, %v5220
        %v5222 = vrcp.pop %v5180
        %v5223 = vmul.f32 1.0, %v5222
        %v5224 = vrcp.pop %v5181
        %v5225 = vmul.f32 1.0, %v5224
        %v5226 = vrcp.pop %v5182
        %v5227 = vmul.f32 1.0, %v5226
        %v5228 = vrcp.pop %v5183
        %v5229 = vmul.f32 1.0, %v5228
        %v5230 = vrcp.pop %v5184
        %v5231 = vmul.f32 1.0, %v5230
        %v5232 = vrcp.pop %v5185
        %v5233 = vmul.f32 1.0, %v5232
        %v5234 = vrcp.pop %v5186
        %v5235 = vmul.f32 1.0, %v5234
        %v5236 = vrcp.pop %v5187
        %v5237 = vmul.f32 1.0, %v5236
        %v5238 = vrcp.pop %v5188
        %v5239 = vmul.f32 1.0, %v5238
        %v5240 = vrcp.pop %v5189
        %v5241 = vmul.f32 1.0, %v5240
        %v5242 = vrcp.pop %v5190
        %v5243 = vmul.f32 1.0, %v5242
        %v5244 = vrcp.pop %v5191
        %v5245 = vmul.f32 1.0, %v5244
        %v5246 = vrcp.pop %v5192
        %v5247 = vmul.f32 1.0, %v5246
        %v5248 = vrcp.pop %v5193
        %v5249 = vmul.f32 1.0, %v5248
        %v5250 = vrcp.pop %v5194
        %v5251 = vmul.f32 1.0, %v5250
        %v5252 = vrcp.pop %v5195
        %v5253 = vmul.f32 1.0, %v5252
        %v5254 = vrcp.pop %v5196
        %v5255 = vmul.f32 1.0, %v5254
        %v5256 = vrcp.pop %v5197
        %v5257 = vmul.f32 1.0, %v5256
        %v5258 = vrcp.pop %v5198
        %v5259 = vmul.f32 1.0, %v5258
        %v5260 = vrcp.pop %v5199
        %v5261 = vmul.f32 1.0, %v5260
        %v5262 = vrcp.pop %v5200
        %v5263 = vmul.f32 1.0, %v5262
        %v5264 = vrcp.pop %v5201
        %v5265 = vmul.f32 1.0, %v5264
        %v5266 = vmul.f32 %v5203, 1.0614054
        %v5267 = vmul.f32 %v5205, 1.0614054
        %v5268 = vmul.f32 %v5207, 1.0614054
        %v5269 = vmul.f32 %v5209, 1.0614054
        %v5270 = vmul.f32 %v5211, 1.0614054
        %v5271 = vmul.f32 %v5213, 1.0614054
        %v5272 = vmul.f32 %v5215, 1.0614054
        %v5273 = vmul.f32 %v5217, 1.0614054
        %v5274 = vmul.f32 %v5219, 1.0614054
        %v5275 = vmul.f32 %v5221, 1.0614054
        %v5276 = vmul.f32 %v5223, 1.0614054
        %v5277 = vmul.f32 %v5225, 1.0614054
        %v5278 = vmul.f32 %v5227, 1.0614054
        %v5279 = vmul.f32 %v5229, 1.0614054
        %v5280 = vmul.f32 %v5231, 1.0614054
        %v5281 = vmul.f32 %v5233, 1.0614054
        %v5282 = vmul.f32 %v5235, 1.0614054
        %v5283 = vmul.f32 %v5237, 1.0614054
        %v5284 = vmul.f32 %v5239, 1.0614054
        %v5285 = vmul.f32 %v5241, 1.0614054
        %v5286 = vmul.f32 %v5243, 1.0614054
        %v5287 = vmul.f32 %v5245, 1.0614054
        %v5288 = vmul.f32 %v5247, 1.0614054
        %v5289 = vmul.f32 %v5249, 1.0614054
        %v5290 = vmul.f32 %v5251, 1.0614054
        %v5291 = vmul.f32 %v5253, 1.0614054
        %v5292 = vmul.f32 %v5255, 1.0614054
        %v5293 = vmul.f32 %v5257, 1.0614054
        %v5294 = vmul.f32 %v5259, 1.0614054
        %v5295 = vmul.f32 %v5261, 1.0614054
        %v5296 = vmul.f32 %v5263, 1.0614054
        %v5297 = vmul.f32 %v5265, 1.0614054
        %v5298 = vadd.f32 %v5266, -1.4531521
        %v5299 = vadd.f32 %v5267, -1.4531521
        %v5300 = vadd.f32 %v5268, -1.4531521
        %v5301 = vadd.f32 %v5269, -1.4531521
        %v5302 = vadd.f32 %v5270, -1.4531521
        %v5303 = vadd.f32 %v5271, -1.4531521
        %v5304 = vadd.f32 %v5272, -1.4531521
        %v5305 = vadd.f32 %v5273, -1.4531521
        %v5306 = vadd.f32 %v5274, -1.4531521
        %v5307 = vadd.f32 %v5275, -1.4531521
        %v5308 = vadd.f32 %v5276, -1.4531521
        %v5309 = vadd.f32 %v5277, -1.4531521
        %v5310 = vadd.f32 %v5278, -1.4531521
        %v5311 = vadd.f32 %v5279, -1.4531521
        %v5312 = vadd.f32 %v5280, -1.4531521
        %v5313 = vadd.f32 %v5281, -1.4531521
        %v5314 = vadd.f32 %v5282, -1.4531521
        %v5315 = vadd.f32 %v5283, -1.4531521
        %v5316 = vadd.f32 %v5284, -1.4531521
        %v5317 = vadd.f32 %v5285, -1.4531521
        %v5318 = vadd.f32 %v5286, -1.4531521
        %v5319 = vadd.f32 %v5287, -1.4531521
        %v5320 = vadd.f32 %v5288, -1.4531521
        %v5321 = vadd.f32 %v5289, -1.4531521
        %v5322 = vadd.f32 %v5290, -1.4531521
        %v5323 = vadd.f32 %v5291, -1.4531521
        %v5324 = vadd.f32 %v5292, -1.4531521
        %v5325 = vadd.f32 %v5293, -1.4531521
        %v5326 = vadd.f32 %v5294, -1.4531521
        %v5327 = vadd.f32 %v5295, -1.4531521
        %v5328 = vadd.f32 %v5296, -1.4531521
        %v5329 = vadd.f32 %v5297, -1.4531521
        %v5330 = vmul.f32 %v5298, %v5203
        %v5331 = vmul.f32 %v5299, %v5205
        %v5332 = vmul.f32 %v5300, %v5207
        %v5333 = vmul.f32 %v5301, %v5209
        %v5334 = vmul.f32 %v5302, %v5211
        %v5335 = vmul.f32 %v5303, %v5213
        %v5336 = vmul.f32 %v5304, %v5215
        %v5337 = vmul.f32 %v5305, %v5217
        %v5338 = vmul.f32 %v5306, %v5219
        %v5339 = vmul.f32 %v5307, %v5221
        %v5340 = vmul.f32 %v5308, %v5223
        %v5341 = vmul.f32 %v5309, %v5225
        %v5342 = vmul.f32 %v5310, %v5227
        %v5343 = vmul.f32 %v5311, %v5229
        %v5344 = vmul.f32 %v5312, %v5231
        %v5345 = vmul.f32 %v5313, %v5233
        %v5346 = vmul.f32 %v5314, %v5235
        %v5347 = vmul.f32 %v5315, %v5237
        %v5348 = vmul.f32 %v5316, %v5239
        %v5349 = vmul.f32 %v5317, %v5241
        %v5350 = vmul.f32 %v5318, %v5243
        %v5351 = vmul.f32 %v5319, %v5245
        %v5352 = vmul.f32 %v5320, %v5247
        %v5353 = vmul.f32 %v5321, %v5249
        %v5354 = vmul.f32 %v5322, %v5251
        %v5355 = vmul.f32 %v5323, %v5253
        %v5356 = vmul.f32 %v5324, %v5255
        %v5357 = vmul.f32 %v5325, %v5257
        %v5358 = vmul.f32 %v5326, %v5259
        %v5359 = vmul.f32 %v5327, %v5261
        %v5360 = vmul.f32 %v5328, %v5263
        %v5361 = vmul.f32 %v5329, %v5265
        %v5362 = vadd.f32 %v5330, 1.4214138
        %v5363 = vadd.f32 %v5331, 1.4214138
        %v5364 = vadd.f32 %v5332, 1.4214138
        %v5365 = vadd.f32 %v5333, 1.4214138
        %v5366 = vadd.f32 %v5334, 1.4214138
        %v5367 = vadd.f32 %v5335, 1.4214138
        %v5368 = vadd.f32 %v5336, 1.4214138
        %v5369 = vadd.f32 %v5337, 1.4214138
        %v5370 = vadd.f32 %v5338, 1.4214138
        %v5371 = vadd.f32 %v5339, 1.4214138
        %v5372 = vadd.f32 %v5340, 1.4214138
        %v5373 = vadd.f32 %v5341, 1.4214138
        %v5374 = vadd.f32 %v5342, 1.4214138
        %v5375 = vadd.f32 %v5343, 1.4214138
        %v5376 = vadd.f32 %v5344, 1.4214138
        %v5377 = vadd.f32 %v5345, 1.4214138
        %v5378 = vadd.f32 %v5346, 1.4214138
        %v5379 = vadd.f32 %v5347, 1.4214138
        %v5380 = vadd.f32 %v5348, 1.4214138
        %v5381 = vadd.f32 %v5349, 1.4214138
        %v5382 = vadd.f32 %v5350, 1.4214138
        %v5383 = vadd.f32 %v5351, 1.4214138
        %v5384 = vadd.f32 %v5352, 1.4214138
        %v5385 = vadd.f32 %v5353, 1.4214138
        %v5386 = vadd.f32 %v5354, 1.4214138
        %v5387 = vadd.f32 %v5355, 1.4214138
        %v5388 = vadd.f32 %v5356, 1.4214138
        %v5389 = vadd.f32 %v5357, 1.4214138
        %v5390 = vadd.f32 %v5358, 1.4214138
        %v5391 = vadd.f32 %v5359, 1.4214138
        %v5392 = vadd.f32 %v5360, 1.4214138
        %v5393 = vadd.f32 %v5361, 1.4214138
        %v5394 = vmul.f32 %v5362, %v5203
        %v5395 = vmul.f32 %v5363, %v5205
        %v5396 = vmul.f32 %v5364, %v5207
        %v5397 = vmul.f32 %v5365, %v5209
        %v5398 = vmul.f32 %v5366, %v5211
        %v5399 = vmul.f32 %v5367, %v5213
        %v5400 = vmul.f32 %v5368, %v5215
        %v5401 = vmul.f32 %v5369, %v5217
        %v5402 = vmul.f32 %v5370, %v5219
        %v5403 = vmul.f32 %v5371, %v5221
        %v5404 = vmul.f32 %v5372, %v5223
        %v5405 = vmul.f32 %v5373, %v5225
        %v5406 = vmul.f32 %v5374, %v5227
        %v5407 = vmul.f32 %v5375, %v5229
        %v5408 = vmul.f32 %v5376, %v5231
        %v5409 = vmul.f32 %v5377, %v5233
        %v5410 = vmul.f32 %v5378, %v5235
        %v5411 = vmul.f32 %v5379, %v5237
        %v5412 = vmul.f32 %v5380, %v5239
        %v5413 = vmul.f32 %v5381, %v5241
        %v5414 = vmul.f32 %v5382, %v5243
        %v5415 = vmul.f32 %v5383, %v5245
        %v5416 = vmul.f32 %v5384, %v5247
        %v5417 = vmul.f32 %v5385, %v5249
        %v5418 = vmul.f32 %v5386, %v5251
        %v5419 = vmul.f32 %v5387, %v5253
        %v5420 = vmul.f32 %v5388, %v5255
        %v5421 = vmul.f32 %v5389, %v5257
        %v5422 = vmul.f32 %v5390, %v5259
        %v5423 = vmul.f32 %v5391, %v5261
        %v5424 = vmul.f32 %v5392, %v5263
        %v5425 = vmul.f32 %v5393, %v5265
        %v5426 = vadd.f32 %v5394, -0.28449672
        %v5427 = vadd.f32 %v5395, -0.28449672
        %v5428 = vadd.f32 %v5396, -0.28449672
        %v5429 = vadd.f32 %v5397, -0.28449672
        %v5430 = vadd.f32 %v5398, -0.28449672
        %v5431 = vadd.f32 %v5399, -0.28449672
        %v5432 = vadd.f32 %v5400, -0.28449672
        %v5433 = vadd.f32 %v5401, -0.28449672
        %v5434 = vadd.f32 %v5402, -0.28449672
        %v5435 = vadd.f32 %v5403, -0.28449672
        %v5436 = vadd.f32 %v5404, -0.28449672
        %v5437 = vadd.f32 %v5405, -0.28449672
        %v5438 = vadd.f32 %v5406, -0.28449672
        %v5439 = vadd.f32 %v5407, -0.28449672
        %v5440 = vadd.f32 %v5408, -0.28449672
        %v5441 = vadd.f32 %v5409, -0.28449672
        %v5442 = vadd.f32 %v5410, -0.28449672
        %v5443 = vadd.f32 %v5411, -0.28449672
        %v5444 = vadd.f32 %v5412, -0.28449672
        %v5445 = vadd.f32 %v5413, -0.28449672
        %v5446 = vadd.f32 %v5414, -0.28449672
        %v5447 = vadd.f32 %v5415, -0.28449672
        %v5448 = vadd.f32 %v5416, -0.28449672
        %v5449 = vadd.f32 %v5417, -0.28449672
        %v5450 = vadd.f32 %v5418, -0.28449672
        %v5451 = vadd.f32 %v5419, -0.28449672
        %v5452 = vadd.f32 %v5420, -0.28449672
        %v5453 = vadd.f32 %v5421, -0.28449672
        %v5454 = vadd.f32 %v5422, -0.28449672
        %v5455 = vadd.f32 %v5423, -0.28449672
        %v5456 = vadd.f32 %v5424, -0.28449672
        %v5457 = vadd.f32 %v5425, -0.28449672
        %v5458 = vmul.f32 %v5426, %v5203
        %v5459 = vmul.f32 %v5427, %v5205
        %v5460 = vmul.f32 %v5428, %v5207
        %v5461 = vmul.f32 %v5429, %v5209
        %v5462 = vmul.f32 %v5430, %v5211
        %v5463 = vmul.f32 %v5431, %v5213
        %v5464 = vmul.f32 %v5432, %v5215
        %v5465 = vmul.f32 %v5433, %v5217
        %v5466 = vmul.f32 %v5434, %v5219
        %v5467 = vmul.f32 %v5435, %v5221
        %v5468 = vmul.f32 %v5436, %v5223
        %v5469 = vmul.f32 %v5437, %v5225
        %v5470 = vmul.f32 %v5438, %v5227
        %v5471 = vmul.f32 %v5439, %v5229
        %v5472 = vmul.f32 %v5440, %v5231
        %v5473 = vmul.f32 %v5441, %v5233
        %v5474 = vmul.f32 %v5442, %v5235
        %v5475 = vmul.f32 %v5443, %v5237
        %v5476 = vmul.f32 %v5444, %v5239
        %v5477 = vmul.f32 %v5445, %v5241
        %v5478 = vmul.f32 %v5446, %v5243
        %v5479 = vmul.f32 %v5447, %v5245
        %v5480 = vmul.f32 %v5448, %v5247
        %v5481 = vmul.f32 %v5449, %v5249
        %v5482 = vmul.f32 %v5450, %v5251
        %v5483 = vmul.f32 %v5451, %v5253
        %v5484 = vmul.f32 %v5452, %v5255
        %v5485 = vmul.f32 %v5453, %v5257
        %v5486 = vmul.f32 %v5454, %v5259
        %v5487 = vmul.f32 %v5455, %v5261
        %v5488 = vmul.f32 %v5456, %v5263
        %v5489 = vmul.f32 %v5457, %v5265
        %v5490 = vadd.f32 %v5458, 0.2548296
        %v5491 = vadd.f32 %v5459, 0.2548296
        %v5492 = vadd.f32 %v5460, 0.2548296
        %v5493 = vadd.f32 %v5461, 0.2548296
        %v5494 = vadd.f32 %v5462, 0.2548296
        %v5495 = vadd.f32 %v5463, 0.2548296
        %v5496 = vadd.f32 %v5464, 0.2548296
        %v5497 = vadd.f32 %v5465, 0.2548296
        %v5498 = vadd.f32 %v5466, 0.2548296
        %v5499 = vadd.f32 %v5467, 0.2548296
        %v5500 = vadd.f32 %v5468, 0.2548296
        %v5501 = vadd.f32 %v5469, 0.2548296
        %v5502 = vadd.f32 %v5470, 0.2548296
        %v5503 = vadd.f32 %v5471, 0.2548296
        %v5504 = vadd.f32 %v5472, 0.2548296
        %v5505 = vadd.f32 %v5473, 0.2548296
        %v5506 = vadd.f32 %v5474, 0.2548296
        %v5507 = vadd.f32 %v5475, 0.2548296
        %v5508 = vadd.f32 %v5476, 0.2548296
        %v5509 = vadd.f32 %v5477, 0.2548296
        %v5510 = vadd.f32 %v5478, 0.2548296
        %v5511 = vadd.f32 %v5479, 0.2548296
        %v5512 = vadd.f32 %v5480, 0.2548296
        %v5513 = vadd.f32 %v5481, 0.2548296
        %v5514 = vadd.f32 %v5482, 0.2548296
        %v5515 = vadd.f32 %v5483, 0.2548296
        %v5516 = vadd.f32 %v5484, 0.2548296
        %v5517 = vadd.f32 %v5485, 0.2548296
        %v5518 = vadd.f32 %v5486, 0.2548296
        %v5519 = vadd.f32 %v5487, 0.2548296
        %v5520 = vadd.f32 %v5488, 0.2548296
        %v5521 = vadd.f32 %v5489, 0.2548296
        %v5522 = vmul.f32 %v5490, %v5203
        %v5523 = vmul.f32 %v5491, %v5205
        %v5524 = vmul.f32 %v5492, %v5207
        %v5525 = vmul.f32 %v5493, %v5209
        %v5526 = vmul.f32 %v5494, %v5211
        %v5527 = vmul.f32 %v5495, %v5213
        %v5528 = vmul.f32 %v5496, %v5215
        %v5529 = vmul.f32 %v5497, %v5217
        %v5530 = vmul.f32 %v5498, %v5219
        %v5531 = vmul.f32 %v5499, %v5221
        %v5532 = vmul.f32 %v5500, %v5223
        %v5533 = vmul.f32 %v5501, %v5225
        %v5534 = vmul.f32 %v5502, %v5227
        %v5535 = vmul.f32 %v5503, %v5229
        %v5536 = vmul.f32 %v5504, %v5231
        %v5537 = vmul.f32 %v5505, %v5233
        %v5538 = vmul.f32 %v5506, %v5235
        %v5539 = vmul.f32 %v5507, %v5237
        %v5540 = vmul.f32 %v5508, %v5239
        %v5541 = vmul.f32 %v5509, %v5241
        %v5542 = vmul.f32 %v5510, %v5243
        %v5543 = vmul.f32 %v5511, %v5245
        %v5544 = vmul.f32 %v5512, %v5247
        %v5545 = vmul.f32 %v5513, %v5249
        %v5546 = vmul.f32 %v5514, %v5251
        %v5547 = vmul.f32 %v5515, %v5253
        %v5548 = vmul.f32 %v5516, %v5255
        %v5549 = vmul.f32 %v5517, %v5257
        %v5550 = vmul.f32 %v5518, %v5259
        %v5551 = vmul.f32 %v5519, %v5261
        %v5552 = vmul.f32 %v5520, %v5263
        %v5553 = vmul.f32 %v5521, %v5265
        %v5554 = vsub.f32 0.0, %v5106
        %v5555 = vsub.f32 0.0, %v5107
        %v5556 = vsub.f32 0.0, %v5108
        %v5557 = vsub.f32 0.0, %v5109
        %v5558 = vsub.f32 0.0, %v5110
        %v5559 = vsub.f32 0.0, %v5111
        %v5560 = vsub.f32 0.0, %v5112
        %v5561 = vsub.f32 0.0, %v5113
        %v5562 = vsub.f32 0.0, %v5114
        %v5563 = vsub.f32 0.0, %v5115
        %v5564 = vsub.f32 0.0, %v5116
        %v5565 = vsub.f32 0.0, %v5117
        %v5566 = vsub.f32 0.0, %v5118
        %v5567 = vsub.f32 0.0, %v5119
        %v5568 = vsub.f32 0.0, %v5120
        %v5569 = vsub.f32 0.0, %v5121
        %v5570 = vsub.f32 0.0, %v5122
        %v5571 = vsub.f32 0.0, %v5123
        %v5572 = vsub.f32 0.0, %v5124
        %v5573 = vsub.f32 0.0, %v5125
        %v5574 = vsub.f32 0.0, %v5126
        %v5575 = vsub.f32 0.0, %v5127
        %v5576 = vsub.f32 0.0, %v5128
        %v5577 = vsub.f32 0.0, %v5129
        %v5578 = vsub.f32 0.0, %v5130
        %v5579 = vsub.f32 0.0, %v5131
        %v5580 = vsub.f32 0.0, %v5132
        %v5581 = vsub.f32 0.0, %v5133
        %v5582 = vsub.f32 0.0, %v5134
        %v5583 = vsub.f32 0.0, %v5135
        %v5584 = vsub.f32 0.0, %v5136
        %v5585 = vsub.f32 0.0, %v5137
        %v5586 = vmul.f32 %v5554, %v5106
        %v5587 = vmul.f32 %v5555, %v5107
        %v5588 = vmul.f32 %v5556, %v5108
        %v5589 = vmul.f32 %v5557, %v5109
        %v5590 = vmul.f32 %v5558, %v5110
        %v5591 = vmul.f32 %v5559, %v5111
        %v5592 = vmul.f32 %v5560, %v5112
        %v5593 = vmul.f32 %v5561, %v5113
        %v5594 = vmul.f32 %v5562, %v5114
        %v5595 = vmul.f32 %v5563, %v5115
        %v5596 = vmul.f32 %v5564, %v5116
        %v5597 = vmul.f32 %v5565, %v5117
        %v5598 = vmul.f32 %v5566, %v5118
        %v5599 = vmul.f32 %v5567, %v5119
        %v5600 = vmul.f32 %v5568, %v5120
        %v5601 = vmul.f32 %v5569, %v5121
        %v5602 = vmul.f32 %v5570, %v5122
        %v5603 = vmul.f32 %v5571, %v5123
        %v5604 = vmul.f32 %v5572, %v5124
        %v5605 = vmul.f32 %v5573, %v5125
        %v5606 = vmul.f32 %v5574, %v5126
        %v5607 = vmul.f32 %v5575, %v5127
        %v5608 = vmul.f32 %v5576, %v5128
        %v5609 = vmul.f32 %v5577, %v5129
        %v5610 = vmul.f32 %v5578, %v5130
        %v5611 = vmul.f32 %v5579, %v5131
        %v5612 = vmul.f32 %v5580, %v5132
        %v5613 = vmul.f32 %v5581, %v5133
        %v5614 = vmul.f32 %v5582, %v5134
        %v5615 = vmul.f32 %v5583, %v5135
        %v5616 = vmul.f32 %v5584, %v5136
        %v5617 = vmul.f32 %v5585, %v5137
        %v5618 = vmul.f32 %v5586, 1.442695
        %v5619 = vpow.pop %v5618
        %v5620 = vmul.f32 %v5587, 1.442695
        %v5621 = vpow.pop %v5620
        %v5622 = vmul.f32 %v5588, 1.442695
        %v5623 = vpow.pop %v5622
        %v5624 = vmul.f32 %v5589, 1.442695
        %v5625 = vpow.pop %v5624
        %v5626 = vmul.f32 %v5590, 1.442695
        %v5627 = vpow.pop %v5626
        %v5628 = vmul.f32 %v5591, 1.442695
        %v5629 = vpow.pop %v5628
        %v5630 = vmul.f32 %v5592, 1.442695
        %v5631 = vpow.pop %v5630
        %v5632 = vmul.f32 %v5593, 1.442695
        %v5633 = vpow.pop %v5632
        %v5634 = vmul.f32 %v5594, 1.442695
        %v5635 = vpow.pop %v5634
        %v5636 = vmul.f32 %v5595, 1.442695
        %v5637 = vpow.pop %v5636
        %v5638 = vmul.f32 %v5596, 1.442695
        %v5639 = vpow.pop %v5638
        %v5640 = vmul.f32 %v5597, 1.442695
        %v5641 = vpow.pop %v5640
        %v5642 = vmul.f32 %v5598, 1.442695
        %v5643 = vpow.pop %v5642
        %v5644 = vmul.f32 %v5599, 1.442695
        %v5645 = vpow.pop %v5644
        %v5646 = vmul.f32 %v5600, 1.442695
        %v5647 = vpow.pop %v5646
        %v5648 = vmul.f32 %v5601, 1.442695
        %v5649 = vpow.pop %v5648
        %v5650 = vmul.f32 %v5602, 1.442695
        %v5651 = vpow.pop %v5650
        %v5652 = vmul.f32 %v5603, 1.442695
        %v5653 = vpow.pop %v5652
        %v5654 = vmul.f32 %v5604, 1.442695
        %v5655 = vpow.pop %v5654
        %v5656 = vmul.f32 %v5605, 1.442695
        %v5657 = vpow.pop %v5656
        %v5658 = vmul.f32 %v5606, 1.442695
        %v5659 = vpow.pop %v5658
        %v5660 = vmul.f32 %v5607, 1.442695
        %v5661 = vpow.pop %v5660
        %v5662 = vmul.f32 %v5608, 1.442695
        %v5663 = vpow.pop %v5662
        %v5664 = vmul.f32 %v5609, 1.442695
        %v5665 = vpow.pop %v5664
        %v5666 = vmul.f32 %v5610, 1.442695
        %v5667 = vpow.pop %v5666
        %v5668 = vmul.f32 %v5611, 1.442695
        %v5669 = vpow.pop %v5668
        %v5670 = vmul.f32 %v5612, 1.442695
        %v5671 = vpow.pop %v5670
        %v5672 = vmul.f32 %v5613, 1.442695
        %v5673 = vpow.pop %v5672
        %v5674 = vmul.f32 %v5614, 1.442695
        %v5675 = vpow.pop %v5674
        %v5676 = vmul.f32 %v5615, 1.442695
        %v5677 = vpow.pop %v5676
        %v5678 = vmul.f32 %v5616, 1.442695
        %v5679 = vpow.pop %v5678
        %v5680 = vmul.f32 %v5617, 1.442695
        %v5681 = vpow.pop %v5680
        %v5682 = vmul.f32 %v5522, %v5619
        %v5683 = vmul.f32 %v5523, %v5621
        %v5684 = vmul.f32 %v5524, %v5623
        %v5685 = vmul.f32 %v5525, %v5625
        %v5686 = vmul.f32 %v5526, %v5627
        %v5687 = vmul.f32 %v5527, %v5629
        %v5688 = vmul.f32 %v5528, %v5631
        %v5689 = vmul.f32 %v5529, %v5633
        %v5690 = vmul.f32 %v5530, %v5635
        %v5691 = vmul.f32 %v5531, %v5637
        %v5692 = vmul.f32 %v5532, %v5639
        %v5693 = vmul.f32 %v5533, %v5641
        %v5694 = vmul.f32 %v5534, %v5643
        %v5695 = vmul.f32 %v5535, %v5645
        %v5696 = vmul.f32 %v5536, %v5647
        %v5697 = vmul.f32 %v5537, %v5649
        %v5698 = vmul.f32 %v5538, %v5651
        %v5699 = vmul.f32 %v5539, %v5653
        %v5700 = vmul.f32 %v5540, %v5655
        %v5701 = vmul.f32 %v5541, %v5657
        %v5702 = vmul.f32 %v5542, %v5659
        %v5703 = vmul.f32 %v5543, %v5661
        %v5704 = vmul.f32 %v5544, %v5663
        %v5705 = vmul.f32 %v5545, %v5665
        %v5706 = vmul.f32 %v5546, %v5667
        %v5707 = vmul.f32 %v5547, %v5669
        %v5708 = vmul.f32 %v5548, %v5671
        %v5709 = vmul.f32 %v5549, %v5673
        %v5710 = vmul.f32 %v5550, %v5675
        %v5711 = vmul.f32 %v5551, %v5677
        %v5712 = vmul.f32 %v5552, %v5679
        %v5713 = vmul.f32 %v5553, %v5681
        %v5714 = vsub.f32 1.0, %v5682
        %v5715 = vsub.f32 1.0, %v5683
        %v5716 = vsub.f32 1.0, %v5684
        %v5717 = vsub.f32 1.0, %v5685
        %v5718 = vsub.f32 1.0, %v5686
        %v5719 = vsub.f32 1.0, %v5687
        %v5720 = vsub.f32 1.0, %v5688
        %v5721 = vsub.f32 1.0, %v5689
        %v5722 = vsub.f32 1.0, %v5690
        %v5723 = vsub.f32 1.0, %v5691
        %v5724 = vsub.f32 1.0, %v5692
        %v5725 = vsub.f32 1.0, %v5693
        %v5726 = vsub.f32 1.0, %v5694
        %v5727 = vsub.f32 1.0, %v5695
        %v5728 = vsub.f32 1.0, %v5696
        %v5729 = vsub.f32 1.0, %v5697
        %v5730 = vsub.f32 1.0, %v5698
        %v5731 = vsub.f32 1.0, %v5699
        %v5732 = vsub.f32 1.0, %v5700
        %v5733 = vsub.f32 1.0, %v5701
        %v5734 = vsub.f32 1.0, %v5702
        %v5735 = vsub.f32 1.0, %v5703
        %v5736 = vsub.f32 1.0, %v5704
        %v5737 = vsub.f32 1.0, %v5705
        %v5738 = vsub.f32 1.0, %v5706
        %v5739 = vsub.f32 1.0, %v5707
        %v5740 = vsub.f32 1.0, %v5708
        %v5741 = vsub.f32 1.0, %v5709
        %v5742 = vsub.f32 1.0, %v5710
        %v5743 = vsub.f32 1.0, %v5711
        %v5744 = vsub.f32 1.0, %v5712
        %v5745 = vsub.f32 1.0, %v5713
        %v5746 = vmul.f32 %v5074, %v5714
        %v5747 = vmul.f32 %v5075, %v5715
        %v5748 = vmul.f32 %v5076, %v5716
        %v5749 = vmul.f32 %v5077, %v5717
        %v5750 = vmul.f32 %v5078, %v5718
        %v5751 = vmul.f32 %v5079, %v5719
        %v5752 = vmul.f32 %v5080, %v5720
        %v5753 = vmul.f32 %v5081, %v5721
        %v5754 = vmul.f32 %v5082, %v5722
        %v5755 = vmul.f32 %v5083, %v5723
        %v5756 = vmul.f32 %v5084, %v5724
        %v5757 = vmul.f32 %v5085, %v5725
        %v5758 = vmul.f32 %v5086, %v5726
        %v5759 = vmul.f32 %v5087, %v5727
        %v5760 = vmul.f32 %v5088, %v5728
        %v5761 = vmul.f32 %v5089, %v5729
        %v5762 = vmul.f32 %v5090, %v5730
        %v5763 = vmul.f32 %v5091, %v5731
        %v5764 = vmul.f32 %v5092, %v5732
        %v5765 = vmul.f32 %v5093, %v5733
        %v5766 = vmul.f32 %v5094, %v5734
        %v5767 = vmul.f32 %v5095, %v5735
        %v5768 = vmul.f32 %v5096, %v5736
        %v5769 = vmul.f32 %v5097, %v5737
        %v5770 = vmul.f32 %v5098, %v5738
        %v5771 = vmul.f32 %v5099, %v5739
        %v5772 = vmul.f32 %v5100, %v5740
        %v5773 = vmul.f32 %v5101, %v5741
        %v5774 = vmul.f32 %v5102, %v5742
        %v5775 = vmul.f32 %v5103, %v5743
        %v5776 = vmul.f32 %v5104, %v5744
        %v5777 = vmul.f32 %v5105, %v5745
        %v5778 = vadd.f32 %v5746, 1.0
        %v5779 = vadd.f32 %v5747, 1.0
        %v5780 = vadd.f32 %v5748, 1.0
        %v5781 = vadd.f32 %v5749, 1.0
        %v5782 = vadd.f32 %v5750, 1.0
        %v5783 = vadd.f32 %v5751, 1.0
        %v5784 = vadd.f32 %v5752, 1.0
        %v5785 = vadd.f32 %v5753, 1.0
        %v5786 = vadd.f32 %v5754, 1.0
        %v5787 = vadd.f32 %v5755, 1.0
        %v5788 = vadd.f32 %v5756, 1.0
        %v5789 = vadd.f32 %v5757, 1.0
        %v5790 = vadd.f32 %v5758, 1.0
        %v5791 = vadd.f32 %v5759, 1.0
        %v5792 = vadd.f32 %v5760, 1.0
        %v5793 = vadd.f32 %v5761, 1.0
        %v5794 = vadd.f32 %v5762, 1.0
        %v5795 = vadd.f32 %v5763, 1.0
        %v5796 = vadd.f32 %v5764, 1.0
        %v5797 = vadd.f32 %v5765, 1.0
        %v5798 = vadd.f32 %v5766, 1.0
        %v5799 = vadd.f32 %v5767, 1.0
        %v5800 = vadd.f32 %v5768, 1.0
        %v5801 = vadd.f32 %v5769, 1.0
        %v5802 = vadd.f32 %v5770, 1.0
        %v5803 = vadd.f32 %v5771, 1.0
        %v5804 = vadd.f32 %v5772, 1.0
        %v5805 = vadd.f32 %v5773, 1.0
        %v5806 = vadd.f32 %v5774, 1.0
        %v5807 = vadd.f32 %v5775, 1.0
        %v5808 = vadd.f32 %v5776, 1.0
        %v5809 = vadd.f32 %v5777, 1.0
        %v5810 = vmul.f32 %v4978, %v5778
        %v5811 = vmul.f32 %v4979, %v5779
        %v5812 = vmul.f32 %v4980, %v5780
        %v5813 = vmul.f32 %v4981, %v5781
        %v5814 = vmul.f32 %v4982, %v5782
        %v5815 = vmul.f32 %v4983, %v5783
        %v5816 = vmul.f32 %v4984, %v5784
        %v5817 = vmul.f32 %v4985, %v5785
        %v5818 = vmul.f32 %v4986, %v5786
        %v5819 = vmul.f32 %v4987, %v5787
        %v5820 = vmul.f32 %v4988, %v5788
        %v5821 = vmul.f32 %v4989, %v5789
        %v5822 = vmul.f32 %v4990, %v5790
        %v5823 = vmul.f32 %v4991, %v5791
        %v5824 = vmul.f32 %v4992, %v5792
        %v5825 = vmul.f32 %v4993, %v5793
        %v5826 = vmul.f32 %v4994, %v5794
        %v5827 = vmul.f32 %v4995, %v5795
        %v5828 = vmul.f32 %v4996, %v5796
        %v5829 = vmul.f32 %v4997, %v5797
        %v5830 = vmul.f32 %v4998, %v5798
        %v5831 = vmul.f32 %v4999, %v5799
        %v5832 = vmul.f32 %v5000, %v5800
        %v5833 = vmul.f32 %v5001, %v5801
        %v5834 = vmul.f32 %v5002, %v5802
        %v5835 = vmul.f32 %v5003, %v5803
        %v5836 = vmul.f32 %v5004, %v5804
        %v5837 = vmul.f32 %v5005, %v5805
        %v5838 = vmul.f32 %v5006, %v5806
        %v5839 = vmul.f32 %v5007, %v5807
        %v5840 = vmul.f32 %v5008, %v5808
        %v5841 = vmul.f32 %v5009, %v5809
        %v5842 = vmul.f32 %v5810, %v5810
        %v5843 = vmul.f32 %v5811, %v5811
        %v5844 = vmul.f32 %v5812, %v5812
        %v5845 = vmul.f32 %v5813, %v5813
        %v5846 = vmul.f32 %v5814, %v5814
        %v5847 = vmul.f32 %v5815, %v5815
        %v5848 = vmul.f32 %v5816, %v5816
        %v5849 = vmul.f32 %v5817, %v5817
        %v5850 = vmul.f32 %v5818, %v5818
        %v5851 = vmul.f32 %v5819, %v5819
        %v5852 = vmul.f32 %v5820, %v5820
        %v5853 = vmul.f32 %v5821, %v5821
        %v5854 = vmul.f32 %v5822, %v5822
        %v5855 = vmul.f32 %v5823, %v5823
        %v5856 = vmul.f32 %v5824, %v5824
        %v5857 = vmul.f32 %v5825, %v5825
        %v5858 = vmul.f32 %v5826, %v5826
        %v5859 = vmul.f32 %v5827, %v5827
        %v5860 = vmul.f32 %v5828, %v5828
        %v5861 = vmul.f32 %v5829, %v5829
        %v5862 = vmul.f32 %v5830, %v5830
        %v5863 = vmul.f32 %v5831, %v5831
        %v5864 = vmul.f32 %v5832, %v5832
        %v5865 = vmul.f32 %v5833, %v5833
        %v5866 = vmul.f32 %v5834, %v5834
        %v5867 = vmul.f32 %v5835, %v5835
        %v5868 = vmul.f32 %v5836, %v5836
        %v5869 = vmul.f32 %v5837, %v5837
        %v5870 = vmul.f32 %v5838, %v5838
        %v5871 = vmul.f32 %v5839, %v5839
        %v5872 = vmul.f32 %v5840, %v5840
        %v5873 = vmul.f32 %v5841, %v5841
        %v5874 = vadd.f32 %v5842, %v5843
        %v5875 = vadd.f32 %v5874, %v5844
        %v5876 = vadd.f32 %v5875, %v5845
        %v5877 = vadd.f32 %v5876, %v5846
        %v5878 = vadd.f32 %v5877, %v5847
        %v5879 = vadd.f32 %v5878, %v5848
        %v5880 = vadd.f32 %v5879, %v5849
        %v5881 = vadd.f32 %v5880, %v5850
        %v5882 = vadd.f32 %v5881, %v5851
        %v5883 = vadd.f32 %v5882, %v5852
        %v5884 = vadd.f32 %v5883, %v5853
        %v5885 = vadd.f32 %v5884, %v5854
        %v5886 = vadd.f32 %v5885, %v5855
        %v5887 = vadd.f32 %v5886, %v5856
        %v5888 = vadd.f32 %v5887, %v5857
        %v5889 = vadd.f32 %v5888, %v5858
        %v5890 = vadd.f32 %v5889, %v5859
        %v5891 = vadd.f32 %v5890, %v5860
        %v5892 = vadd.f32 %v5891, %v5861
        %v5893 = vadd.f32 %v5892, %v5862
        %v5894 = vadd.f32 %v5893, %v5863
        %v5895 = vadd.f32 %v5894, %v5864
        %v5896 = vadd.f32 %v5895, %v5865
        %v5897 = vadd.f32 %v5896, %v5866
        %v5898 = vadd.f32 %v5897, %v5867
        %v5899 = vadd.f32 %v5898, %v5868
        %v5900 = vadd.f32 %v5899, %v5869
        %v5901 = vadd.f32 %v5900, %v5870
        %v5902 = vadd.f32 %v5901, %v5871
        %v5903 = vadd.f32 %v5902, %v5872
        %v5904 = vadd.f32 %v5903, %v5873
        %v5905 = vrot.slane %v5904, 4
        %v5906 = vadd.f32 %v5904, %v5905
        %v5907 = vrot.slane %v5906, 2
        %v5908 = vadd.f32 %v5906, %v5907
        %v5909 = vrot.slane %v5908, 1
        %v5910 = vadd.f32 %v5908, %v5909
        %v5911 = vrsqrt.pop %v5910
        %v5912 = vmul.f32 %v5910, %v5911
        %vm5913 = vcmp.eq.f32.partialorder %v5910, inf
        %v5914 = vsel %vm5913, %v5910, %v5912
        %vm5915 = vcmp.eq.f32.partialorder %v5910, 0.0
        %v5916 = vand.u32 %v5910, 2147483648
        %v5917 = vsel %vm5915, %v5916, %v5914
        %5918 = vadd.xlane.f32.xlu0 %v5917
        %v5919 = vpop.xlane.xlu0 %5918
        %v5920 = vmul.f32 %v5919, 0.0625
        %v5921 = vadd.f32 %v5920, 1e-06
        %v5922 = vrcp.pop %v5921
        %v5923 = vmul.f32 %v5917, %v5922
        %v5924 = vld [vmem:[%s7] sm:$0x1]
        %v5925 = vmul.f32 %v5810, %v5923
        %v5926 = vmul.f32 %v5811, %v5923
        %v5927 = vmul.f32 %v5812, %v5923
        %v5928 = vmul.f32 %v5813, %v5923
        %v5929 = vmul.f32 %v5814, %v5923
        %v5930 = vmul.f32 %v5815, %v5923
        %v5931 = vmul.f32 %v5816, %v5923
        %v5932 = vmul.f32 %v5817, %v5923
        %v5933 = vmul.f32 %v5818, %v5923
        %v5934 = vmul.f32 %v5819, %v5923
        %v5935 = vmul.f32 %v5820, %v5923
        %v5936 = vmul.f32 %v5821, %v5923
        %v5937 = vmul.f32 %v5822, %v5923
        %v5938 = vmul.f32 %v5823, %v5923
        %v5939 = vmul.f32 %v5824, %v5923
        %v5940 = vmul.f32 %v5825, %v5923
        %v5941 = vmul.f32 %v5826, %v5923
        %v5942 = vmul.f32 %v5827, %v5923
        %v5943 = vmul.f32 %v5828, %v5923
        %v5944 = vmul.f32 %v5829, %v5923
        %v5945 = vmul.f32 %v5830, %v5923
        %v5946 = vmul.f32 %v5831, %v5923
        %v5947 = vmul.f32 %v5832, %v5923
        %v5948 = vmul.f32 %v5833, %v5923
        %v5949 = vmul.f32 %v5834, %v5923
        %v5950 = vmul.f32 %v5835, %v5923
        %v5951 = vmul.f32 %v5836, %v5923
        %v5952 = vmul.f32 %v5837, %v5923
        %v5953 = vmul.f32 %v5838, %v5923
        %v5954 = vmul.f32 %v5839, %v5923
        %v5955 = vmul.f32 %v5840, %v5923
        %v5956 = vmul.f32 %v5841, %v5923
        %v5958 = vlaneseq
        %v5959 = vshrl.u32 %v5958, 7
        %v5960 = vsub.s32 0, %v5959
        %v5961 = vrot.slane %v5924, %v5960
        %v5963 = vmul.f32 %v5961, %v5925
        %v5964 = vmul.f32 %v5961, %v5926
        %v5965 = vmul.f32 %v5961, %v5927
        %v5966 = vmul.f32 %v5961, %v5928
        %v5967 = vmul.f32 %v5961, %v5929
        %v5968 = vmul.f32 %v5961, %v5930
        %v5969 = vmul.f32 %v5961, %v5931
        %v5970 = vmul.f32 %v5961, %v5932
        %v5971 = vmul.f32 %v5961, %v5933
        %v5972 = vmul.f32 %v5961, %v5934
        %v5973 = vmul.f32 %v5961, %v5935
        %v5974 = vmul.f32 %v5961, %v5936
        %v5975 = vmul.f32 %v5961, %v5937
        %v5976 = vmul.f32 %v5961, %v5938
        %v5977 = vmul.f32 %v5961, %v5939
        %v5978 = vmul.f32 %v5961, %v5940
        %v5979 = vmul.f32 %v5961, %v5941
        %v5980 = vmul.f32 %v5961, %v5942
        %v5981 = vmul.f32 %v5961, %v5943
        %v5982 = vmul.f32 %v5961, %v5944
        %v5983 = vmul.f32 %v5961, %v5945
        %v5984 = vmul.f32 %v5961, %v5946
        %v5985 = vmul.f32 %v5961, %v5947
        %v5986 = vmul.f32 %v5961, %v5948
        %v5987 = vmul.f32 %v5961, %v5949
        %v5988 = vmul.f32 %v5961, %v5950
        %v5989 = vmul.f32 %v5961, %v5951
        %v5990 = vmul.f32 %v5961, %v5952
        %v5991 = vmul.f32 %v5961, %v5953
        %v5992 = vmul.f32 %v5961, %v5954
        %v5993 = vmul.f32 %v5961, %v5955
        %v5994 = vmul.f32 %v5961, %v5956
        %v5995 = vld [vmem:[%s8] sm:$0x1]
        %v5997 = vlaneseq
        %v5998 = vshrl.u32 %v5997, 7
        %v5999 = vsub.s32 0, %v5998
        %v6000 = vrot.slane %v5995, %v5999
        %v6002 = vadd.f32 %v5963, %v6000
        %v6003 = vadd.f32 %v5964, %v6000
        %v6004 = vadd.f32 %v5965, %v6000
        %v6005 = vadd.f32 %v5966, %v6000
        %v6006 = vadd.f32 %v5967, %v6000
        %v6007 = vadd.f32 %v5968, %v6000
        %v6008 = vadd.f32 %v5969, %v6000
        %v6009 = vadd.f32 %v5970, %v6000
        %v6010 = vadd.f32 %v5971, %v6000
        %v6011 = vadd.f32 %v5972, %v6000
        %v6012 = vadd.f32 %v5973, %v6000
        %v6013 = vadd.f32 %v5974, %v6000
        %v6014 = vadd.f32 %v5975, %v6000
        %v6015 = vadd.f32 %v5976, %v6000
        %v6016 = vadd.f32 %v5977, %v6000
        %v6017 = vadd.f32 %v5978, %v6000
        %v6018 = vadd.f32 %v5979, %v6000
        %v6019 = vadd.f32 %v5980, %v6000
        %v6020 = vadd.f32 %v5981, %v6000
        %v6021 = vadd.f32 %v5982, %v6000
        %v6022 = vadd.f32 %v5983, %v6000
        %v6023 = vadd.f32 %v5984, %v6000
        %v6024 = vadd.f32 %v5985, %v6000
        %v6025 = vadd.f32 %v5986, %v6000
        %v6026 = vadd.f32 %v5987, %v6000
        %v6027 = vadd.f32 %v5988, %v6000
        %v6028 = vadd.f32 %v5989, %v6000
        %v6029 = vadd.f32 %v5990, %v6000
        %v6030 = vadd.f32 %v5991, %v6000
        %v6031 = vadd.f32 %v5992, %v6000
        %v6032 = vadd.f32 %v5993, %v6000
        %v6033 = vadd.f32 %v5994, %v6000
        %v6034 = vpack.c.bf16 %v6003, %v6002
        %v6035 = vpack.c.bf16 %v6005, %v6004
        %v6036 = vpack.c.bf16 %v6007, %v6006
        %v6037 = vpack.c.bf16 %v6009, %v6008
        %v6038 = vpack.c.bf16 %v6011, %v6010
        %v6039 = vpack.c.bf16 %v6013, %v6012
        %v6040 = vpack.c.bf16 %v6015, %v6014
        %v6041 = vpack.c.bf16 %v6017, %v6016
        %v6042 = vpack.c.bf16 %v6019, %v6018
        %v6043 = vpack.c.bf16 %v6021, %v6020
        %v6044 = vpack.c.bf16 %v6023, %v6022
        %v6045 = vpack.c.bf16 %v6025, %v6024
        %v6046 = vpack.c.bf16 %v6027, %v6026
        %v6047 = vpack.c.bf16 %v6029, %v6028
        %v6048 = vpack.c.bf16 %v6031, %v6030
        %v6049 = vpack.c.bf16 %v6033, %v6032
        %v6050 = vld [vmem:[#allocation9] sm:$0xf]
        %v6051 = vld [vmem:[#allocation9 + $0x4] sm:$0xf]
        %v6052 = vld [vmem:[#allocation9 + $0x8] sm:$0xf]
        %v6053 = vld [vmem:[#allocation9 + $0xc] sm:$0xf]
        %v6054 = vld [vmem:[#allocation9 + $0x10] sm:$0xf]
        %v6055 = vld [vmem:[#allocation9 + $0x14] sm:$0xf]
        %v6056 = vld [vmem:[#allocation9 + $0x18] sm:$0xf]
        %v6057 = vld [vmem:[#allocation9 + $0x1c] sm:$0xf]
        %v6058 = vld [vmem:[#allocation9 + $0x20] sm:$0xf]
        %v6059 = vld [vmem:[#allocation9 + $0x24] sm:$0xf]
        %v6060 = vld [vmem:[#allocation9 + $0x28] sm:$0xf]
        %v6061 = vld [vmem:[#allocation9 + $0x2c] sm:$0xf]
        %v6062 = vld [vmem:[#allocation9 + $0x30] sm:$0xf]
        %v6063 = vld [vmem:[#allocation9 + $0x34] sm:$0xf]
        %v6064 = vld [vmem:[#allocation9 + $0x38] sm:$0xf]
        %v6065 = vld [vmem:[#allocation9 + $0x3c] sm:$0xf]
        %v6066 = vld [vmem:[%s10] sm:$0x1]
        %v6068 = vlaneseq
        %v6069 = vshrl.u32 %v6068, 7
        %v6070 = vsub.s32 0, %v6069
        %v6071 = vrot.slane %v6066, %v6070
        %v6089 = vunpack.c.l.b16 %v6050
        %v6090 = vunpack.c.l.b16 %v6051
        %v6091 = vunpack.c.l.b16 %v6052
        %v6092 = vunpack.c.l.b16 %v6053
        %v6093 = vunpack.c.l.b16 %v6054
        %v6094 = vunpack.c.l.b16 %v6055
        %v6095 = vunpack.c.l.b16 %v6056
        %v6096 = vunpack.c.l.b16 %v6057
        %v6097 = vunpack.c.l.b16 %v6058
        %v6098 = vunpack.c.l.b16 %v6059
        %v6099 = vunpack.c.l.b16 %v6060
        %v6100 = vunpack.c.l.b16 %v6061
        %v6101 = vunpack.c.l.b16 %v6062
        %v6102 = vunpack.c.l.b16 %v6063
        %v6103 = vunpack.c.l.b16 %v6064
        %v6104 = vunpack.c.l.b16 %v6065
        %v6105 = vpack.c.b16 %v6090, %v6089
        %v6106 = vpack.c.b16 %v6092, %v6091
        %v6107 = vpack.c.b16 %v6094, %v6093
        %v6108 = vpack.c.b16 %v6096, %v6095
        %v6109 = vpack.c.b16 %v6098, %v6097
        %v6110 = vpack.c.b16 %v6100, %v6099
        %v6111 = vpack.c.b16 %v6102, %v6101
        %v6112 = vpack.c.b16 %v6104, %v6103
        %6121 = vmatprep.subr.bf16.mxu0 0
        %6122 = vmatpush1.bf16.msra.mxu0 %v6112
        %6123 = vmatprep.subr.bf16.mxu0 0
        %6124 = vmatpush1.bf16.msra.mxu0 %v6111
        %6125 = vmatprep.subr.bf16.mxu0 0
        %6126 = vmatpush1.bf16.msra.mxu0 %v6110
        %6127 = vmatprep.subr.bf16.mxu0 0
        %6128 = vmatpush1.bf16.msra.mxu0 %v6109
        %6129 = vmatprep.subr.bf16.mxu0 0
        %6130 = vmatpush1.bf16.msra.mxu0 %v6108
        %6131 = vmatprep.subr.bf16.mxu0 0
        %6132 = vmatpush1.bf16.msra.mxu0 %v6107
        %6133 = vmatprep.subr.bf16.mxu0 0
        %6134 = vmatpush1.bf16.msra.mxu0 %v6106
        %6135 = vmatprep.subr.bf16.mxu0 0
        %6136 = vmatpush1.bf16.msra.mxu0 %v6105
        %6137 = vmatprep.subr.bf16.mxu0 0
        %6138 = vmatpush2.bf16.msra.mxu0 0
        %6139 = vmatprep.subr.bf16.mxu0 0
        %6140 = vmatpush2.bf16.msra.mxu0 0
        %6141 = vmatprep.subr.bf16.mxu0 0
        %6142 = vmatpush2.bf16.msra.mxu0 0
        %6143 = vmatprep.subr.bf16.mxu0 0
        %6144 = vmatpush2.bf16.msra.mxu0 0
        %6145 = vmatprep.subr.bf16.mxu0 0
        %6146 = vmatpush2.bf16.msra.mxu0 0
        %6147 = vmatprep.subr.bf16.mxu0 0
        %6148 = vmatpush2.bf16.msra.mxu0 0
        %6149 = vmatprep.subr.bf16.mxu0 0
        %6150 = vmatpush2.bf16.msra.mxu0 0
        %6151 = vmatprep.subr.bf16.mxu0 0
        %6152 = vmatpush2.bf16.msra.mxu0 0
        %6153 = vmatprep.mubr.bf16.mxu0 0
        %6154 = vmatmul.mubr.bf16.gmra.mxu0 %v6034
        %v6155 = vpop.f32.mrf.mxu0
        %v6156 = vadd.f32 %v6071, %v6155
        %v6157 = vpop.f32.mrf.mxu0
        %v6158 = vpop.f32.mrf.mxu0
        %v6159 = vadd.f32 %v6071, %v6158
        %v6160 = vpop.f32.mrf.mxu0
        %6161 = vmatprep.mubr.bf16.mxu0 0
        %6162 = vmatmul.mubr.bf16.gmra.mxu0 %v6035
        %v6163 = vpop.f32.mrf.mxu0
        %v6164 = vadd.f32 %v6071, %v6163
        %v6165 = vpop.f32.mrf.mxu0
        %v6166 = vpop.f32.mrf.mxu0
        %v6167 = vadd.f32 %v6071, %v6166
        %v6168 = vpop.f32.mrf.mxu0
        %6169 = vmatprep.mubr.bf16.mxu0 0
        %6170 = vmatmul.mubr.bf16.gmra.mxu0 %v6036
        %v6171 = vpop.f32.mrf.mxu0
        %v6172 = vadd.f32 %v6071, %v6171
        %v6173 = vpop.f32.mrf.mxu0
        %v6174 = vpop.f32.mrf.mxu0
        %v6175 = vadd.f32 %v6071, %v6174
        %v6176 = vpop.f32.mrf.mxu0
        %6177 = vmatprep.mubr.bf16.mxu0 0
        %6178 = vmatmul.mubr.bf16.gmra.mxu0 %v6037
        %v6179 = vpop.f32.mrf.mxu0
        %v6180 = vadd.f32 %v6071, %v6179
        %v6181 = vpop.f32.mrf.mxu0
        %v6182 = vpop.f32.mrf.mxu0
        %v6183 = vadd.f32 %v6071, %v6182
        %v6184 = vpop.f32.mrf.mxu0
        %6185 = vmatprep.mubr.bf16.mxu0 0
        %6186 = vmatmul.mubr.bf16.gmra.mxu0 %v6038
        %v6187 = vpop.f32.mrf.mxu0
        %v6188 = vadd.f32 %v6071, %v6187
        %v6189 = vpop.f32.mrf.mxu0
        %v6190 = vpop.f32.mrf.mxu0
        %v6191 = vadd.f32 %v6071, %v6190
        %v6192 = vpop.f32.mrf.mxu0
        %6193 = vmatprep.mubr.bf16.mxu0 0
        %6194 = vmatmul.mubr.bf16.gmra.mxu0 %v6039
        %v6195 = vpop.f32.mrf.mxu0
        %v6196 = vadd.f32 %v6071, %v6195
        %v6197 = vpop.f32.mrf.mxu0
        %v6198 = vpop.f32.mrf.mxu0
        %v6199 = vadd.f32 %v6071, %v6198
        %v6200 = vpop.f32.mrf.mxu0
        %6201 = vmatprep.mubr.bf16.mxu0 0
        %6202 = vmatmul.mubr.bf16.gmra.mxu0 %v6040
        %v6203 = vpop.f32.mrf.mxu0
        %v6204 = vadd.f32 %v6071, %v6203
        %v6205 = vpop.f32.mrf.mxu0
        %v6206 = vpop.f32.mrf.mxu0
        %v6207 = vadd.f32 %v6071, %v6206
        %v6208 = vpop.f32.mrf.mxu0
        %6209 = vmatprep.mubr.bf16.mxu0 0
        %6210 = vmatmul.mubr.bf16.gmra.mxu0 %v6041
        %v6211 = vpop.f32.mrf.mxu0
        %v6212 = vadd.f32 %v6071, %v6211
        %v6213 = vpop.f32.mrf.mxu0
        %v6214 = vpop.f32.mrf.mxu0
        %v6215 = vadd.f32 %v6071, %v6214
        %v6216 = vpop.f32.mrf.mxu0
        %6217 = vmatprep.mubr.bf16.mxu0 0
        %6218 = vmatmul.mubr.bf16.gmra.mxu0 %v6042
        %v6219 = vpop.f32.mrf.mxu0
        %v6220 = vadd.f32 %v6071, %v6219
        %v6221 = vpop.f32.mrf.mxu0
        %v6222 = vpop.f32.mrf.mxu0
        %v6223 = vadd.f32 %v6071, %v6222
        %v6224 = vpop.f32.mrf.mxu0
        %6225 = vmatprep.mubr.bf16.mxu0 0
        %6226 = vmatmul.mubr.bf16.gmra.mxu0 %v6043
        %v6227 = vpop.f32.mrf.mxu0
        %v6228 = vadd.f32 %v6071, %v6227
        %v6229 = vpop.f32.mrf.mxu0
        %v6230 = vpop.f32.mrf.mxu0
        %v6231 = vadd.f32 %v6071, %v6230
        %v6232 = vpop.f32.mrf.mxu0
        %6233 = vmatprep.mubr.bf16.mxu0 0
        %6234 = vmatmul.mubr.bf16.gmra.mxu0 %v6044
        %v6235 = vpop.f32.mrf.mxu0
        %v6236 = vadd.f32 %v6071, %v6235
        %v6237 = vpop.f32.mrf.mxu0
        %v6238 = vpop.f32.mrf.mxu0
        %v6239 = vadd.f32 %v6071, %v6238
        %v6240 = vpop.f32.mrf.mxu0
        %6241 = vmatprep.mubr.bf16.mxu0 0
        %6242 = vmatmul.mubr.bf16.gmra.mxu0 %v6045
        %v6243 = vpop.f32.mrf.mxu0
        %v6244 = vadd.f32 %v6071, %v6243
        %v6245 = vpop.f32.mrf.mxu0
        %v6246 = vpop.f32.mrf.mxu0
        %v6247 = vadd.f32 %v6071, %v6246
        %v6248 = vpop.f32.mrf.mxu0
        %6249 = vmatprep.mubr.bf16.mxu0 0
        %6250 = vmatmul.mubr.bf16.gmra.mxu0 %v6046
        %v6251 = vpop.f32.mrf.mxu0
        %v6252 = vadd.f32 %v6071, %v6251
        %v6253 = vpop.f32.mrf.mxu0
        %v6254 = vpop.f32.mrf.mxu0
        %v6255 = vadd.f32 %v6071, %v6254
        %v6256 = vpop.f32.mrf.mxu0
        %6257 = vmatprep.mubr.bf16.mxu0 0
        %6258 = vmatmul.mubr.bf16.gmra.mxu0 %v6047
        %v6259 = vpop.f32.mrf.mxu0
        %v6260 = vadd.f32 %v6071, %v6259
        %v6261 = vpop.f32.mrf.mxu0
        %v6262 = vpop.f32.mrf.mxu0
        %v6263 = vadd.f32 %v6071, %v6262
        %v6264 = vpop.f32.mrf.mxu0
        %6265 = vmatprep.mubr.bf16.mxu0 0
        %6266 = vmatmul.mubr.bf16.gmra.mxu0 %v6048
        %v6267 = vpop.f32.mrf.mxu0
        %v6268 = vadd.f32 %v6071, %v6267
        %v6269 = vpop.f32.mrf.mxu0
        %v6270 = vpop.f32.mrf.mxu0
        %v6271 = vadd.f32 %v6071, %v6270
        %v6272 = vpop.f32.mrf.mxu0
        %6273 = vmatprep.mubr.bf16.mxu0 0
        %6274 = vmatmul.mubr.bf16.gmra.mxu0 %v6049
        %v6275 = vpop.f32.mrf.mxu0
        %v6276 = vadd.f32 %v6071, %v6275
        %v6277 = vpop.f32.mrf.mxu0
        %v6278 = vpop.f32.mrf.mxu0
        %v6279 = vadd.f32 %v6071, %v6278
        %v6280 = vpop.f32.mrf.mxu0
        %6281 = vdwg.mxu0
        %v6282 = vld [vmem:[%s469 + $0x3] sm:$0xff]
        %v6283 = vld [vmem:[%s469 + $0xb] sm:$0xff]
        %v6284 = vld [vmem:[%s469 + $0x1b] sm:$0xff]
        %v6285 = vld [vmem:[%s469 + $0x23] sm:$0xff]
        %v6286 = vld [vmem:[%s469 + $0x33] sm:$0xff]
        %v6287 = vld [vmem:[%s469 + $0x3b] sm:$0xff]
        %v6288 = vld [vmem:[%s469 + $0x4b] sm:$0xff]
        %v6289 = vld [vmem:[%s469 + $0x53] sm:$0xff]
        %v6290 = vld [vmem:[%s469 + $0x63] sm:$0xff]
        %v6291 = vld [vmem:[%s469 + $0x6b] sm:$0xff]
        %v6292 = vld [vmem:[%s469 + $0x7b] sm:$0xff]
        %v6293 = vld [vmem:[%s469 + $0x83] sm:$0xff]
        %v6294 = vld [vmem:[%s469 + $0x93] sm:$0xff]
        %v6295 = vld [vmem:[%s469 + $0x9b] sm:$0xff]
        %v6296 = vld [vmem:[%s469 + $0xab] sm:$0xff]
        %v6297 = vld [vmem:[%s469 + $0xb3] sm:$0xff]
        %v6298 = vld [vmem:[%s469 + $0xc3] sm:$0xff]
        %v6299 = vld [vmem:[%s469 + $0xcb] sm:$0xff]
        %v6300 = vld [vmem:[%s469 + $0xdb] sm:$0xff]
        %v6301 = vld [vmem:[%s469 + $0xe3] sm:$0xff]
        %v6302 = vld [vmem:[%s469 + $0xf3] sm:$0xff]
        %v6303 = vld [vmem:[%s469 + $0xfb] sm:$0xff]
        %v6304 = vld [vmem:[%s469 + $0x10b] sm:$0xff]
        %v6305 = vld [vmem:[%s469 + $0x113] sm:$0xff]
        %v6306 = vld [vmem:[%s469 + $0x123] sm:$0xff]
        %v6307 = vld [vmem:[%s469 + $0x12b] sm:$0xff]
        %v6308 = vld [vmem:[%s469 + $0x13b] sm:$0xff]
        %v6309 = vld [vmem:[%s469 + $0x143] sm:$0xff]
        %v6310 = vld [vmem:[%s469 + $0x153] sm:$0xff]
        %v6311 = vld [vmem:[%s469 + $0x15b] sm:$0xff]
        %v6312 = vld [vmem:[%s469 + $0x16b] sm:$0xff]
        %v6313 = vld [vmem:[%s469 + $0x173] sm:$0xff]
        %v6314 = vadd.f32 %v6282, %v6156
        %v6315 = vadd.f32 %v6283, %v6159
        %v6316 = vadd.f32 %v6284, %v6164
        %v6317 = vadd.f32 %v6285, %v6167
        %v6318 = vadd.f32 %v6286, %v6172
        %v6319 = vadd.f32 %v6287, %v6175
        %v6320 = vadd.f32 %v6288, %v6180
        %v6321 = vadd.f32 %v6289, %v6183
        %v6322 = vadd.f32 %v6290, %v6188
        %v6323 = vadd.f32 %v6291, %v6191
        %v6324 = vadd.f32 %v6292, %v6196
        %v6325 = vadd.f32 %v6293, %v6199
        %v6326 = vadd.f32 %v6294, %v6204
        %v6327 = vadd.f32 %v6295, %v6207
        %v6328 = vadd.f32 %v6296, %v6212
        %v6329 = vadd.f32 %v6297, %v6215
        %v6330 = vadd.f32 %v6298, %v6220
        %v6331 = vadd.f32 %v6299, %v6223
        %v6332 = vadd.f32 %v6300, %v6228
        %v6333 = vadd.f32 %v6301, %v6231
        %v6334 = vadd.f32 %v6302, %v6236
        %v6335 = vadd.f32 %v6303, %v6239
        %v6336 = vadd.f32 %v6304, %v6244
        %v6337 = vadd.f32 %v6305, %v6247
        %v6338 = vadd.f32 %v6306, %v6252
        %v6339 = vadd.f32 %v6307, %v6255
        %v6340 = vadd.f32 %v6308, %v6260
        %v6341 = vadd.f32 %v6309, %v6263
        %v6342 = vadd.f32 %v6310, %v6268
        %v6343 = vadd.f32 %v6311, %v6271
        %v6344 = vadd.f32 %v6312, %v6276
        %v6345 = vadd.f32 %v6313, %v6279
        %6346 = vst [vmem:[%s448] sm:$0xff] %v6314
        %6347 = vst [vmem:[%s448 + $0x8] sm:$0xff] %v6315
        %6348 = vst [vmem:[%s448 + $0x10] sm:$0xff] %v6316
        %6349 = vst [vmem:[%s448 + $0x18] sm:$0xff] %v6317
        %6350 = vst [vmem:[%s448 + $0x20] sm:$0xff] %v6318
        %6351 = vst [vmem:[%s448 + $0x28] sm:$0xff] %v6319
        %6352 = vst [vmem:[%s448 + $0x30] sm:$0xff] %v6320
        %6353 = vst [vmem:[%s448 + $0x38] sm:$0xff] %v6321
        %6354 = vst [vmem:[%s448 + $0x40] sm:$0xff] %v6322
        %6355 = vst [vmem:[%s448 + $0x48] sm:$0xff] %v6323
        %6356 = vst [vmem:[%s448 + $0x50] sm:$0xff] %v6324
        %6357 = vst [vmem:[%s448 + $0x58] sm:$0xff] %v6325
        %6358 = vst [vmem:[%s448 + $0x60] sm:$0xff] %v6326
        %6359 = vst [vmem:[%s448 + $0x68] sm:$0xff] %v6327
        %6360 = vst [vmem:[%s448 + $0x70] sm:$0xff] %v6328
        %6361 = vst [vmem:[%s448 + $0x78] sm:$0xff] %v6329
        %6362 = vst [vmem:[%s448 + $0x80] sm:$0xff] %v6330
        %6363 = vst [vmem:[%s448 + $0x88] sm:$0xff] %v6331
        %6364 = vst [vmem:[%s448 + $0x90] sm:$0xff] %v6332
        %6365 = vst [vmem:[%s448 + $0x98] sm:$0xff] %v6333
        %6366 = vst [vmem:[%s448 + $0xa0] sm:$0xff] %v6334
        %6367 = vst [vmem:[%s448 + $0xa8] sm:$0xff] %v6335
        %6368 = vst [vmem:[%s448 + $0xb0] sm:$0xff] %v6336
        %6369 = vst [vmem:[%s448 + $0xb8] sm:$0xff] %v6337
        %6370 = vst [vmem:[%s448 + $0xc0] sm:$0xff] %v6338
        %6371 = vst [vmem:[%s448 + $0xc8] sm:$0xff] %v6339
        %6372 = vst [vmem:[%s448 + $0xd0] sm:$0xff] %v6340
        %6373 = vst [vmem:[%s448 + $0xd8] sm:$0xff] %v6341
        %6374 = vst [vmem:[%s448 + $0xe0] sm:$0xff] %v6342
        %6375 = vst [vmem:[%s448 + $0xe8] sm:$0xff] %v6343
        %6376 = vst [vmem:[%s448 + $0xf0] sm:$0xff] %v6344
        %6377 = vst [vmem:[%s448 + $0xf8] sm:$0xff] %v6345
        %s6378 = sand.u32 %s274, 1
        %s6379 = scalar_lea.sflag [#allocation5], %s6378
        %s6380 = sand.u32 %s274, 1
        %s6381 = smul.addr %s6380, 256
        %s6382 = scalar_lea.vmem [#allocation11], %s6381
        // Predicated region
        $region81: #{tpu_custom_call.1} parent=63 // pred_check
          %p6383 = pneg %p284
        $region82: #{tpu_custom_call.1} parent=63 // pred_check_branch
          %6385 = sbr.rel (%p6383) target = $region84
        $region83: #{tpu_custom_call.1} parent=63 // pred_region
          %s6387 = ssub.s32 4096, 4096
          %6388 = vsyncadd %s6379, %s6387
          %s6389 = smul.addr %s30, 32
          %s6390 = smul.addr %s6389, 128
          %s6391 = scalar_lea.hbm %s11, %s6390
          %s6392 = sshll.u32 %s6382, 4
          %s6393 = int_to_ptr.vmem [resolvable:$true] %s6392
          %6398 = dma.vmem_to_hbm [thread:$0]  %s6393, 4096, %s6391, %s6379, 128, 128, 8
        $region84: #{tpu_custom_call.1} parent=63 // pred_fallthru
          _
      $region64: #{tpu_custom_call.1} parent=5 // pred_fallthru
        _
      %p6399 = scmp.le.s32.totalorder 2, %s25
      // Predicated region
      $region85: #{tpu_custom_call.1} parent=5 // pred_check
        %p6400 = pneg %p6399
      $region86: #{tpu_custom_call.1} parent=5 // pred_check_branch
        %6402 = sbr.rel (%p6400) target = $region88
      $region87: #{tpu_custom_call.1} parent=5 // pred_region
        %s6403 = ssub.s32 %s25, 2
        // Predicated region
        $region89: #{tpu_custom_call.1} parent=87 // pred_check
          %p6404 = pneg %p290
        $region90: #{tpu_custom_call.1} parent=87 // pred_check_branch
          %6406 = sbr.rel (%p6404) target = $region92
        $region91: #{tpu_custom_call.1} parent=87 // pred_region
          %s6407 = sand.u32 %s275, 1
          %s6408 = scalar_lea.sflag [#allocation5], %s6407
          %s6409 = sand.u32 %s275, 1
          %s6410 = smul.addr %s6409, 256
          %s6411 = scalar_lea.vmem [#allocation11], %s6410
          %6412 = dma.done %s6408, 4096
        $region92: #{tpu_custom_call.1} parent=87 // pred_fallthru
          _
      $region88: #{tpu_custom_call.1} parent=5 // pred_fallthru
        _
    $region6: #{tpu_custom_call.1} parent=1 // loop_footer
      %s29 = sadd.s32 1, %s25
    $region7: #{tpu_custom_call.1} parent=1 // loop_footer_branch
      %24 = sbr.rel target = $region3
    $region8: #{tpu_custom_call.1} parent=1 // loop_exit
      _
    %6413 = vsyncpa [#allocation4], 1
    %s6414 = scalar_lea.sflag [#allocation4], 1
    %6415 = vsyncpa %s6414, 1
    %6416 = vsyncpa [#allocation7], 1
    %6417 = vsyncpa [#allocation10], 1
    %6418 = vsyncpa [#allocation5], 1
    %s6419 = scalar_lea.sflag [#allocation5], 1
    %6420 = vsyncpa %s6419, 1

</llo_original>
